<compile_context>
chip_gen: v7x
topology: tpu7x:2x2x1
jax: 0.10.0
libtpu: 0.0.40
codegen_flags: <defaults>
</compile_context>

<pallas_src>
import jax
import jax.numpy as jnp
from jax.experimental import pallas as pl
from jax.experimental.pallas import tpu as pltpu

IN_DIM = 128 * 3 * 3   # 1152
HIDDEN = 1024
OUT_DIM = 2
PAD_OUT = 128          # fc3 output padded to one full lane-width
BN_EPS = 1e-5
NEG_BIG = -1e30        # "minus infinity" for padded logit lanes


def _domain_classifier_kernel(x_ref,                    # (B, 1152) f32
                              m1_ref, m2_ref,           # (B, 1024) f32 dropout masks
                              w1_ref, g1_ref, be1_ref,  # (1152,1024) bf16, (1,1024) f32 x2
                              w2_ref, g2_ref, be2_ref,  # (1024,1024) bf16, (1,1024) f32 x2
                              w3_ref, b3_ref,           # (1024,128) bf16, (1,128) f32
                              o_ref):                   # (B, 128) f32
    # GradReverse is the identity in the forward pass.
    x = x_ref[...]

    def bn_relu(h, g_ref, be_ref):
        # Training-mode BatchNorm1d with biased batch statistics, one-pass:
        # var = E[h^2] - E[h]^2.
        inv_n = 1.0 / h.shape[0]
        mean = jnp.sum(h, axis=0, keepdims=True) * inv_n
        ex2 = jnp.sum(h * h, axis=0, keepdims=True) * inv_n
        var = jnp.maximum(ex2 - mean * mean, 0.0)
        hhat = (h - mean) * jax.lax.rsqrt(var + BN_EPS)
        return jnp.maximum(g_ref[...] * hhat + be_ref[...], 0.0)

    # fc1 (bias cancelled by BN) -> bn1 -> relu -> dropout (mask in {0,1}; the
    # 1/p=2 scale is a global scalar that the following BN cancels exactly).
    h = jnp.dot(x.astype(jnp.bfloat16), w1_ref[...],
                preferred_element_type=jnp.float32)
    h = bn_relu(h, g1_ref, be1_ref) * m1_ref[...]

    # fc2 (bias cancelled by BN) -> bn2 -> relu -> dropout (mask in {0,2}).
    h = jnp.dot(h.astype(jnp.bfloat16), w2_ref[...],
                preferred_element_type=jnp.float32)
    h = bn_relu(h, g2_ref, be2_ref) * m2_ref[...]

    # fc3, padded to 128 lanes.  Padded lanes carry a -1e30 bias, so they
    # contribute exp(...) == 0 to the logsumexp and the real lanes are exact.
    logits = jnp.dot(h.astype(jnp.bfloat16), w3_ref[...],
                     preferred_element_type=jnp.float32) + b3_ref[...]
    m = jnp.max(logits, axis=1, keepdims=True)
    lse = m + jnp.log(jnp.sum(jnp.exp(logits - m), axis=1, keepdims=True))
    o_ref[...] = logits - lse


def svhn_domain_classifier(x, params, constant=1.0, *, dropout_key=None):
    """x: (B, 1152) float32.  `constant` only matters for backward (unused here)."""
    del constant  # forward pass of GradReverse is identity
    B = x.shape[0]
    w1, g1, be1, w2, g2, be2, w3p, b3p = params

    if dropout_key is None:
        dropout_key = jax.random.PRNGKey(0)
    k1, k2 = jax.random.split(dropout_key)
    # F.dropout default p=0.5 -> keep prob 0.5.  First mask unscaled (BN follows),
    # second mask pre-scaled by 1/p = 2.
    m1 = jax.random.bernoulli(k1, 0.5, (B, HIDDEN)).astype(jnp.float32)
    m2 = jax.random.bernoulli(k2, 0.5, (B, HIDDEN)).astype(jnp.float32) * 2.0

    vmem = pl.BlockSpec(memory_space=pltpu.MemorySpace.VMEM)

    out_padded = pl.pallas_call(
        _domain_classifier_kernel,
        out_shape=jax.ShapeDtypeStruct((B, PAD_OUT), jnp.float32),
        in_specs=[vmem] * 11,
        out_specs=vmem,
        compiler_params=pltpu.CompilerParams(vmem_limit_bytes=32 * 1024 * 1024),
    )(x, m1, m2, w1, g1, be1, w2, g2, be2, w3p, b3p)

    return out_padded[:, :OUT_DIM]


def init_params(key):
    """Deterministic init mimicking PyTorch Linear defaults (U(-1/sqrt(fan_in), ...)).

    fc1/fc2 biases are intentionally omitted: training-mode BatchNorm subtracts the
    batch mean right after, which cancels any additive bias exactly.
    Weights are stored pre-transposed as (in, out) and cast to bfloat16.
    """
    ks = jax.random.split(key, 4)

    def linear_w(k, fan_in, fan_out):
        bound = 1.0 / jnp.sqrt(fan_in)
        return jax.random.uniform(k, (fan_in, fan_out), jnp.float32, -bound, bound)

    w1 = linear_w(ks[0], IN_DIM, HIDDEN).astype(jnp.bfloat16)
    w2 = linear_w(ks[1], HIDDEN, HIDDEN).astype(jnp.bfloat16)

    w3 = linear_w(ks[2], HIDDEN, OUT_DIM)
    b3_bound = 1.0 / jnp.sqrt(HIDDEN)
    b3 = jax.random.uniform(ks[3], (1, OUT_DIM), jnp.float32, -b3_bound, b3_bound)

    # Pad fc3 to a full 128-lane output; padded lanes get a huge negative bias so
    # they vanish under the logsumexp.
    w3p = jnp.zeros((HIDDEN, PAD_OUT), jnp.float32).at[:, :OUT_DIM].set(w3)
    w3p = w3p.astype(jnp.bfloat16)
    b3p = jnp.full((1, PAD_OUT), NEG_BIG, jnp.float32).at[:, :OUT_DIM].set(b3)

    g1 = jnp.ones((1, HIDDEN), jnp.float32)
    be1 = jnp.zeros((1, HIDDEN), jnp.float32)
    g2 = jnp.ones((1, HIDDEN), jnp.float32)
    be2 = jnp.zeros((1, HIDDEN), jnp.float32)

    return (w1, g1, be1, w2, g2, be2, w3p, b3p)


if __name__ == "__main__":
    key = jax.random.PRNGKey(0)
    k_x, k_p, k_d = jax.random.split(key, 3)

    B = 8
    x = jax.random.normal(k_x, (B, IN_DIM), dtype=jnp.float32)
    params = init_params(k_p)

    out = svhn_domain_classifier(x, params, constant=0.5, dropout_key=k_d)
    out = jax.block_until_ready(out)

    assert out.shape == (B, OUT_DIM)
    assert bool(jnp.all(jnp.isfinite(out)))
    # rows of log-probabilities should (approximately) exponentiate-sum to 1
    assert bool(jnp.allclose(jnp.sum(jnp.exp(out), axis=1), 1.0, atol=1e-4))
    print("KERNEL_OK")
</pallas_src>

<mosaic_0001>
module attributes {stable_mosaic.version = 11 : i64} {
  func.func @_domain_classifier_kernel(%arg0: memref<8x1152xf32, #tpu.memory_space<vmem>>, %arg1: memref<8x1024xf32, #tpu.memory_space<vmem>>, %arg2: memref<8x1024xf32, #tpu.memory_space<vmem>>, %arg3: memref<1152x1024xbf16, #tpu.memory_space<vmem>>, %arg4: memref<1x1024xf32, #tpu.memory_space<vmem>>, %arg5: memref<1x1024xf32, #tpu.memory_space<vmem>>, %arg6: memref<1024x1024xbf16, #tpu.memory_space<vmem>>, %arg7: memref<1x1024xf32, #tpu.memory_space<vmem>>, %arg8: memref<1x1024xf32, #tpu.memory_space<vmem>>, %arg9: memref<1024x128xbf16, #tpu.memory_space<vmem>>, %arg10: memref<1x128xf32, #tpu.memory_space<vmem>>, %arg11: memref<8x128xf32, #tpu.memory_space<vmem>>) attributes {dimension_semantics = [], scalar_prefetch = 0 : i64, scratch_operands = 0 : i64, tpu.core_type = #tpu.core_type<tc>} {
    %c0 = arith.constant 0 : index
    %c0_0 = arith.constant 0 : index
    %0 = vector.load %arg0[%c0, %c0_0] : memref<8x1152xf32, #tpu.memory_space<vmem>>, vector<8x1152xf32>
    %1 = arith.truncf %0 : vector<8x1152xf32> to vector<8x1152xbf16>
    %c0_1 = arith.constant 0 : index
    %c0_2 = arith.constant 0 : index
    %2 = vector.load %arg3[%c0_1, %c0_2] : memref<1152x1024xbf16, #tpu.memory_space<vmem>>, vector<1152x1024xbf16>
    %cst = arith.constant dense<0.000000e+00> : vector<8x1024xf32>
    %3 = tpu.matmul %1, %2, %cst {dimension_numbers = #tpu.dot_dimension_numbers<[1], [0], [0], [1], [0, 0, 1, 1], [], []>} : vector<8x1152xbf16>, vector<1152x1024xbf16>, vector<8x1024xf32> -> vector<8x1024xf32>
    %cst_3 = arith.constant dense<0.000000e+00> : vector<1024xf32>
    %4 = vector.multi_reduction <add>, %3, %cst_3 [0] : vector<8x1024xf32> to vector<1024xf32>
    %5 = vector.shape_cast %4 : vector<1024xf32> to vector<1x1024xf32>
    %cst_4 = arith.constant 1.250000e-01 : f32
    %6 = vector.broadcast %cst_4 : f32 to vector<1x1024xf32>
    %7 = arith.mulf %5, %6 : vector<1x1024xf32>
    %8 = arith.mulf %3, %3 : vector<8x1024xf32>
    %cst_5 = arith.constant dense<0.000000e+00> : vector<1024xf32>
    %9 = vector.multi_reduction <add>, %8, %cst_5 [0] : vector<8x1024xf32> to vector<1024xf32>
    %10 = vector.shape_cast %9 : vector<1024xf32> to vector<1x1024xf32>
    %cst_6 = arith.constant 1.250000e-01 : f32
    %11 = vector.broadcast %cst_6 : f32 to vector<1x1024xf32>
    %12 = arith.mulf %10, %11 : vector<1x1024xf32>
    %13 = arith.mulf %7, %7 : vector<1x1024xf32>
    %14 = arith.subf %12, %13 : vector<1x1024xf32>
    %cst_7 = arith.constant 0.000000e+00 : f32
    %15 = vector.broadcast %cst_7 : f32 to vector<1x1024xf32>
    %16 = arith.maximumf %14, %15 : vector<1x1024xf32>
    %17 = vector.broadcast %7 : vector<1x1024xf32> to vector<8x1024xf32>
    %18 = arith.subf %3, %17 : vector<8x1024xf32>
    %cst_8 = arith.constant 9.99999974E-6 : f32
    %19 = vector.broadcast %cst_8 : f32 to vector<1x1024xf32>
    %20 = arith.addf %16, %19 : vector<1x1024xf32>
    %21 = math.rsqrt %20 : vector<1x1024xf32>
    %22 = vector.broadcast %21 : vector<1x1024xf32> to vector<8x1024xf32>
    %23 = arith.mulf %18, %22 : vector<8x1024xf32>
    %c0_9 = arith.constant 0 : index
    %c0_10 = arith.constant 0 : index
    %24 = vector.load %arg4[%c0_9, %c0_10] : memref<1x1024xf32, #tpu.memory_space<vmem>>, vector<1x1024xf32>
    %25 = vector.broadcast %24 : vector<1x1024xf32> to vector<8x1024xf32>
    %26 = arith.mulf %25, %23 : vector<8x1024xf32>
    %c0_11 = arith.constant 0 : index
    %c0_12 = arith.constant 0 : index
    %27 = vector.load %arg5[%c0_11, %c0_12] : memref<1x1024xf32, #tpu.memory_space<vmem>>, vector<1x1024xf32>
    %28 = vector.broadcast %27 : vector<1x1024xf32> to vector<8x1024xf32>
    %29 = arith.addf %26, %28 : vector<8x1024xf32>
    %cst_13 = arith.constant 0.000000e+00 : f32
    %30 = vector.broadcast %cst_13 : f32 to vector<8x1024xf32>
    %31 = arith.maximumf %29, %30 : vector<8x1024xf32>
    %c0_14 = arith.constant 0 : index
    %c0_15 = arith.constant 0 : index
    %32 = vector.load %arg1[%c0_14, %c0_15] : memref<8x1024xf32, #tpu.memory_space<vmem>>, vector<8x1024xf32>
    %33 = arith.mulf %31, %32 : vector<8x1024xf32>
    %34 = arith.truncf %33 : vector<8x1024xf32> to vector<8x1024xbf16>
    %c0_16 = arith.constant 0 : index
    %c0_17 = arith.constant 0 : index
    %35 = vector.load %arg6[%c0_16, %c0_17] : memref<1024x1024xbf16, #tpu.memory_space<vmem>>, vector<1024x1024xbf16>
    %cst_18 = arith.constant dense<0.000000e+00> : vector<8x1024xf32>
    %36 = tpu.matmul %34, %35, %cst_18 {dimension_numbers = #tpu.dot_dimension_numbers<[1], [0], [0], [1], [0, 0, 1, 1], [], []>} : vector<8x1024xbf16>, vector<1024x1024xbf16>, vector<8x1024xf32> -> vector<8x1024xf32>
    %cst_19 = arith.constant dense<0.000000e+00> : vector<1024xf32>
    %37 = vector.multi_reduction <add>, %36, %cst_19 [0] : vector<8x1024xf32> to vector<1024xf32>
    %38 = vector.shape_cast %37 : vector<1024xf32> to vector<1x1024xf32>
    %cst_20 = arith.constant 1.250000e-01 : f32
    %39 = vector.broadcast %cst_20 : f32 to vector<1x1024xf32>
    %40 = arith.mulf %38, %39 : vector<1x1024xf32>
    %41 = arith.mulf %36, %36 : vector<8x1024xf32>
    %cst_21 = arith.constant dense<0.000000e+00> : vector<1024xf32>
    %42 = vector.multi_reduction <add>, %41, %cst_21 [0] : vector<8x1024xf32> to vector<1024xf32>
    %43 = vector.shape_cast %42 : vector<1024xf32> to vector<1x1024xf32>
    %cst_22 = arith.constant 1.250000e-01 : f32
    %44 = vector.broadcast %cst_22 : f32 to vector<1x1024xf32>
    %45 = arith.mulf %43, %44 : vector<1x1024xf32>
    %46 = arith.mulf %40, %40 : vector<1x1024xf32>
    %47 = arith.subf %45, %46 : vector<1x1024xf32>
    %cst_23 = arith.constant 0.000000e+00 : f32
    %48 = vector.broadcast %cst_23 : f32 to vector<1x1024xf32>
    %49 = arith.maximumf %47, %48 : vector<1x1024xf32>
    %50 = vector.broadcast %40 : vector<1x1024xf32> to vector<8x1024xf32>
    %51 = arith.subf %36, %50 : vector<8x1024xf32>
    %cst_24 = arith.constant 9.99999974E-6 : f32
    %52 = vector.broadcast %cst_24 : f32 to vector<1x1024xf32>
    %53 = arith.addf %49, %52 : vector<1x1024xf32>
    %54 = math.rsqrt %53 : vector<1x1024xf32>
    %55 = vector.broadcast %54 : vector<1x1024xf32> to vector<8x1024xf32>
    %56 = arith.mulf %51, %55 : vector<8x1024xf32>
    %c0_25 = arith.constant 0 : index
    %c0_26 = arith.constant 0 : index
    %57 = vector.load %arg7[%c0_25, %c0_26] : memref<1x1024xf32, #tpu.memory_space<vmem>>, vector<1x1024xf32>
    %58 = vector.broadcast %57 : vector<1x1024xf32> to vector<8x1024xf32>
    %59 = arith.mulf %58, %56 : vector<8x1024xf32>
    %c0_27 = arith.constant 0 : index
    %c0_28 = arith.constant 0 : index
    %60 = vector.load %arg8[%c0_27, %c0_28] : memref<1x1024xf32, #tpu.memory_space<vmem>>, vector<1x1024xf32>
    %61 = vector.broadcast %60 : vector<1x1024xf32> to vector<8x1024xf32>
    %62 = arith.addf %59, %61 : vector<8x1024xf32>
    %cst_29 = arith.constant 0.000000e+00 : f32
    %63 = vector.broadcast %cst_29 : f32 to vector<8x1024xf32>
    %64 = arith.maximumf %62, %63 : vector<8x1024xf32>
    %c0_30 = arith.constant 0 : index
    %c0_31 = arith.constant 0 : index
    %65 = vector.load %arg2[%c0_30, %c0_31] : memref<8x1024xf32, #tpu.memory_space<vmem>>, vector<8x1024xf32>
    %66 = arith.mulf %64, %65 : vector<8x1024xf32>
    %67 = arith.truncf %66 : vector<8x1024xf32> to vector<8x1024xbf16>
    %c0_32 = arith.constant 0 : index
    %c0_33 = arith.constant 0 : index
    %68 = vector.load %arg9[%c0_32, %c0_33] : memref<1024x128xbf16, #tpu.memory_space<vmem>>, vector<1024x128xbf16>
    %cst_34 = arith.constant dense<0.000000e+00> : vector<8x128xf32>
    %69 = tpu.matmul %67, %68, %cst_34 {dimension_numbers = #tpu.dot_dimension_numbers<[1], [0], [0], [1], [0, 0, 1, 1], [], []>} : vector<8x1024xbf16>, vector<1024x128xbf16>, vector<8x128xf32> -> vector<8x128xf32>
    %c0_35 = arith.constant 0 : index
    %c0_36 = arith.constant 0 : index
    %70 = vector.load %arg10[%c0_35, %c0_36] : memref<1x128xf32, #tpu.memory_space<vmem>>, vector<1x128xf32>
    %71 = vector.broadcast %70 : vector<1x128xf32> to vector<8x128xf32>
    %72 = arith.addf %69, %71 : vector<8x128xf32>
    %cst_37 = arith.constant dense<0xFF800000> : vector<8xf32>
    %73 = vector.multi_reduction <maximumf>, %72, %cst_37 [1] : vector<8x128xf32> to vector<8xf32>
    %74 = vector.shape_cast %73 : vector<8xf32> to vector<8x1xf32>
    %75 = vector.broadcast %74 : vector<8x1xf32> to vector<8x128xf32>
    %76 = arith.subf %72, %75 : vector<8x128xf32>
    %77 = math.exp %76 : vector<8x128xf32>
    %cst_38 = arith.constant dense<0.000000e+00> : vector<8xf32>
    %78 = vector.multi_reduction <add>, %77, %cst_38 [1] : vector<8x128xf32> to vector<8xf32>
    %79 = vector.shape_cast %78 : vector<8xf32> to vector<8x1xf32>
    %80 = math.log %79 : vector<8x1xf32>
    %81 = arith.addf %74, %80 : vector<8x1xf32>
    %82 = vector.broadcast %81 : vector<8x1xf32> to vector<8x128xf32>
    %83 = arith.subf %72, %82 : vector<8x128xf32>
    %c0_39 = arith.constant 0 : index
    %c0_40 = arith.constant 0 : index
    %84 = vector.load %arg11[%c0_39, %c0_40] : memref<8x128xf32, #tpu.memory_space<vmem>>, vector<8x128xf32>
    tpu.vector_store %arg11[%c0_39, %c0_40], %83 {strides = array<i32>} : memref<8x128xf32, #tpu.memory_space<vmem>>, vector<8x128xf32>,
    return
  }
}

</mosaic_0001>

<llo_original>
// kernel: tpu_custom_call.1
$region0: #{tpu_custom_call.1}
  #allocation0 [shape = 'u32[]', space=smem, size = 0x4, offset = 0x4, fixed_abs, tag = 'smem constant byte address 0x4 - core index']
  #allocation1 [shape = 'u32[144,128]{1,0:T(1,128)}', space=vmem, size = 0x12000, scoped, tag = 'internal scratch']
  %s0 = inlined_call_operand.hbm [shape: f32[8,1152], index: 0, kind: input, shape index: {}]
  %s1 = inlined_call_operand.hbm [shape: f32[8,1024], index: 1, kind: input, shape index: {}]
  %s2 = inlined_call_operand.hbm [shape: f32[8,1024], index: 2, kind: input, shape index: {}]
  %s3 = inlined_call_operand.hbm [shape: bf16[1152,1024], index: 3, kind: input, shape index: {}]
  %s4 = inlined_call_operand.hbm [shape: f32[1,1024], index: 4, kind: input, shape index: {}]
  %s5 = inlined_call_operand.hbm [shape: f32[1,1024], index: 5, kind: input, shape index: {}]
  %s6 = inlined_call_operand.hbm [shape: bf16[1024,1024], index: 6, kind: input, shape index: {}]
  %s7 = inlined_call_operand.hbm [shape: f32[1,1024], index: 7, kind: input, shape index: {}]
  %s8 = inlined_call_operand.hbm [shape: f32[1,1024], index: 8, kind: input, shape index: {}]
  %s9 = inlined_call_operand.hbm [shape: bf16[1024,128], index: 9, kind: input, shape index: {}]
  %s10 = inlined_call_operand.hbm [shape: f32[1,128], index: 10, kind: input, shape index: {}]
  %s11 = inlined_call_operand.hbm [shape: f32[8,128], index: 11, kind: output, shape index: {}]
  %s12 = sld [smem:[#allocation0]]
  $region98: #{tpu_custom_call.1} parent=0
    _
  %s14 = ssub.s32 1, %s12
  %s15 = scalar_select 0, %s14, %s12
  $region1: #{tpu_custom_call.1} parent=0
    #allocation2 [shape = 'u8[36864]{0}', space=vmem, size = 0x9000, scoped, tag = 'input window, operand 0, single buffered']
    #allocation3 [shape = 's32[1]{0}', space=sflag, size = 0x4, scoped, tag = 'scoped memory for tpu_custom_call.1']
    #allocation4 [shape = 's32[1]{0}', space=sflag, size = 0x4, scoped, tag = 'scoped memory for tpu_custom_call.1']
    #allocation5 [shape = 'u8[32768]{0}', space=vmem, size = 0x8000, scoped, tag = 'input window, operand 1, single buffered']
    #allocation6 [shape = 's32[1]{0}', space=sflag, size = 0x4, scoped, tag = 'scoped memory for tpu_custom_call.1']
    #allocation7 [shape = 'u8[32768]{0}', space=vmem, size = 0x8000, scoped, tag = 'input window, operand 2, single buffered']
    #allocation8 [shape = 'u8[2359296]{0}', space=vmem, size = 0x240000, scoped, tag = 'input window, operand 3, single buffered']
    #allocation9 [shape = 's32[1]{0}', space=sflag, size = 0x4, scoped, tag = 'scoped memory for tpu_custom_call.1']
    #allocation10 [shape = 'u8[4096]{0}', space=vmem, size = 0x1000, scoped, tag = 'input window, operand 4, single buffered']
    #allocation11 [shape = 'u8[4096]{0}', space=vmem, size = 0x1000, scoped, tag = 'input window, operand 5, single buffered']
    #allocation12 [shape = 's32[1]{0}', space=sflag, size = 0x4, scoped, tag = 'scoped memory for tpu_custom_call.1']
    #allocation13 [shape = 'u8[2097152]{0}', space=vmem, size = 0x200000, scoped, tag = 'input window, operand 6, single buffered']
    #allocation14 [shape = 'u8[4096]{0}', space=vmem, size = 0x1000, scoped, tag = 'input window, operand 7, single buffered']
    #allocation15 [shape = 's32[1]{0}', space=sflag, size = 0x4, scoped, tag = 'scoped memory for tpu_custom_call.1']
    #allocation16 [shape = 'u8[4096]{0}', space=vmem, size = 0x1000, scoped, tag = 'input window, operand 8, single buffered']
    #allocation17 [shape = 'u8[262144]{0}', space=vmem, size = 0x40000, scoped, tag = 'input window, operand 9, single buffered']
    #allocation18 [shape = 's32[1]{0}', space=sflag, size = 0x4, scoped, tag = 'scoped memory for tpu_custom_call.1']
    #allocation19 [shape = 'u8[512]{0}', space=vmem, size = 0x400, scoped, tag = 'input window, operand 10, single buffered']
    #allocation20 [shape = 'u8[4096]{0}', space=vmem, size = 0x1000, scoped, tag = 'output window, operand 0, single buffered']
    %16 = vsyncpa [#allocation3], 0
    %17 = vsyncpa [#allocation6], 0
    %18 = vsyncpa [#allocation9], 0
    %19 = vsyncpa [#allocation12], 0
    %20 = vsyncpa [#allocation15], 0
    %21 = vsyncpa [#allocation18], 0
    %22 = vsyncpa [#allocation4], 0
    // Predicated region
    $region2: #{tpu_custom_call.1} parent=1 // pred_check
      _
    $region3: #{tpu_custom_call.1} parent=1 // pred_check_branch
      %24 = sbr.rel (0) target = $region5
    $region4: #{tpu_custom_call.1} parent=1 // pred_region
      %s26 = ssub.s32 1152, 1152
      %27 = vsyncadd [#allocation3], %s26
      %s29 = sshll.u32 [#allocation2], 4
      %s30 = int_to_ptr.vmem [resolvable:$true] %s29
      %32 = dma.hbm_to_vmem [thread:$0]  %s0, 1152, %s30, [#allocation3]
    $region5: #{tpu_custom_call.1} parent=1 // pred_fallthru
      _
    // Predicated region
    $region6: #{tpu_custom_call.1} parent=1 // pred_check
      _
    $region7: #{tpu_custom_call.1} parent=1 // pred_check_branch
      %34 = sbr.rel (0) target = $region9
    $region8: #{tpu_custom_call.1} parent=1 // pred_region
      %s36 = ssub.s32 1024, 1024
      %37 = vsyncadd [#allocation6], %s36
      %s39 = sshll.u32 [#allocation5], 4
      %s40 = int_to_ptr.vmem [resolvable:$true] %s39
      %42 = dma.hbm_to_vmem [thread:$0]  %s1, 1024, %s40, [#allocation6]
    $region9: #{tpu_custom_call.1} parent=1 // pred_fallthru
      _
    // Predicated region
    $region10: #{tpu_custom_call.1} parent=1 // pred_check
      _
    $region11: #{tpu_custom_call.1} parent=1 // pred_check_branch
      %44 = sbr.rel (0) target = $region13
    $region12: #{tpu_custom_call.1} parent=1 // pred_region
      %s46 = ssub.s32 1024, 1024
      %47 = vsyncadd [#allocation6], %s46
      %s49 = sshll.u32 [#allocation7], 4
      %s50 = int_to_ptr.vmem [resolvable:$true] %s49
      %52 = dma.hbm_to_vmem [thread:$0]  %s2, 1024, %s50, [#allocation6]
    $region13: #{tpu_custom_call.1} parent=1 // pred_fallthru
      _
    // Predicated region
    $region14: #{tpu_custom_call.1} parent=1 // pred_check
      _
    $region15: #{tpu_custom_call.1} parent=1 // pred_check_branch
      %54 = sbr.rel (0) target = $region17
    $region16: #{tpu_custom_call.1} parent=1 // pred_region
      %s56 = ssub.s32 73728, 73728
      %57 = vsyncadd [#allocation9], %s56
      %s58 = sshll.u32 [#allocation8], 4
      %s59 = int_to_ptr.vmem [resolvable:$true] %s58
      %64 = dma.hbm_to_vmem [thread:$0]  %s3, 73728, %s59, [#allocation9], 512, 512, 32
    $region17: #{tpu_custom_call.1} parent=1 // pred_fallthru
      _
    // Predicated region
    $region18: #{tpu_custom_call.1} parent=1 // pred_check
      _
    $region19: #{tpu_custom_call.1} parent=1 // pred_check_branch
      %66 = sbr.rel (0) target = $region21
    $region20: #{tpu_custom_call.1} parent=1 // pred_region
      %s68 = ssub.s32 128, 128
      %69 = vsyncadd [#allocation9], %s68
      %s71 = sshll.u32 [#allocation10], 4
      %s72 = int_to_ptr.vmem [resolvable:$true] %s71
      %74 = dma.hbm_to_vmem [thread:$0]  %s4, 128, %s72, [#allocation9]
    $region21: #{tpu_custom_call.1} parent=1 // pred_fallthru
      _
    // Predicated region
    $region22: #{tpu_custom_call.1} parent=1 // pred_check
      _
    $region23: #{tpu_custom_call.1} parent=1 // pred_check_branch
      %76 = sbr.rel (0) target = $region25
    $region24: #{tpu_custom_call.1} parent=1 // pred_region
      %s78 = ssub.s32 128, 128
      %79 = vsyncadd [#allocation12], %s78
      %s81 = sshll.u32 [#allocation11], 4
      %s82 = int_to_ptr.vmem [resolvable:$true] %s81
      %84 = dma.hbm_to_vmem [thread:$0]  %s5, 128, %s82, [#allocation12]
    $region25: #{tpu_custom_call.1} parent=1 // pred_fallthru
      _
    // Predicated region
    $region26: #{tpu_custom_call.1} parent=1 // pred_check
      _
    $region27: #{tpu_custom_call.1} parent=1 // pred_check_branch
      %86 = sbr.rel (0) target = $region29
    $region28: #{tpu_custom_call.1} parent=1 // pred_region
      %s88 = ssub.s32 65536, 65536
      %89 = vsyncadd [#allocation12], %s88
      %s90 = sshll.u32 [#allocation13], 4
      %s91 = int_to_ptr.vmem [resolvable:$true] %s90
      %96 = dma.hbm_to_vmem [thread:$0]  %s6, 65536, %s91, [#allocation12], 512, 512, 32
    $region29: #{tpu_custom_call.1} parent=1 // pred_fallthru
      _
    // Predicated region
    $region30: #{tpu_custom_call.1} parent=1 // pred_check
      _
    $region31: #{tpu_custom_call.1} parent=1 // pred_check_branch
      %98 = sbr.rel (0) target = $region33
    $region32: #{tpu_custom_call.1} parent=1 // pred_region
      %s100 = ssub.s32 128, 128
      %101 = vsyncadd [#allocation15], %s100
      %s103 = sshll.u32 [#allocation14], 4
      %s104 = int_to_ptr.vmem [resolvable:$true] %s103
      %106 = dma.hbm_to_vmem [thread:$0]  %s7, 128, %s104, [#allocation15]
    $region33: #{tpu_custom_call.1} parent=1 // pred_fallthru
      _
    // Predicated region
    $region34: #{tpu_custom_call.1} parent=1 // pred_check
      _
    $region35: #{tpu_custom_call.1} parent=1 // pred_check_branch
      %108 = sbr.rel (0) target = $region37
    $region36: #{tpu_custom_call.1} parent=1 // pred_region
      %s110 = ssub.s32 128, 128
      %111 = vsyncadd [#allocation15], %s110
      %s113 = sshll.u32 [#allocation16], 4
      %s114 = int_to_ptr.vmem [resolvable:$true] %s113
      %116 = dma.hbm_to_vmem [thread:$0]  %s8, 128, %s114, [#allocation15]
    $region37: #{tpu_custom_call.1} parent=1 // pred_fallthru
      _
    // Predicated region
    $region38: #{tpu_custom_call.1} parent=1 // pred_check
      _
    $region39: #{tpu_custom_call.1} parent=1 // pred_check_branch
      %118 = sbr.rel (0) target = $region41
    $region40: #{tpu_custom_call.1} parent=1 // pred_region
      %s120 = ssub.s32 8192, 8192
      %121 = vsyncadd [#allocation18], %s120
      %s122 = sshll.u32 [#allocation17], 4
      %s123 = int_to_ptr.vmem [resolvable:$true] %s122
      %128 = dma.hbm_to_vmem [thread:$0]  %s9, 8192, %s123, [#allocation18], 64, 64, 4
    $region41: #{tpu_custom_call.1} parent=1 // pred_fallthru
      _
    // Predicated region
    $region42: #{tpu_custom_call.1} parent=1 // pred_check
      _
    $region43: #{tpu_custom_call.1} parent=1 // pred_check_branch
      %130 = sbr.rel (0) target = $region45
    $region44: #{tpu_custom_call.1} parent=1 // pred_region
      %s132 = ssub.s32 16, 16
      %133 = vsyncadd [#allocation18], %s132
      %s135 = sshll.u32 [#allocation19], 4
      %s136 = int_to_ptr.vmem [resolvable:$true] %s135
      %138 = dma.hbm_to_vmem [thread:$0]  %s10, 16, %s136, [#allocation18]
    $region45: #{tpu_custom_call.1} parent=1 // pred_fallthru
      _
    // Predicated region
    $region46: #{tpu_custom_call.1} parent=1 // pred_check
      _
    $region47: #{tpu_custom_call.1} parent=1 // pred_check_branch
      %140 = sbr.rel (0) target = $region49
    $region48: #{tpu_custom_call.1} parent=1 // pred_region
      %141 = dma.done [#allocation3], 1152
    $region49: #{tpu_custom_call.1} parent=1 // pred_fallthru
      _
    // Predicated region
    $region50: #{tpu_custom_call.1} parent=1 // pred_check
      _
    $region51: #{tpu_custom_call.1} parent=1 // pred_check_branch
      %143 = sbr.rel (0) target = $region53
    $region52: #{tpu_custom_call.1} parent=1 // pred_region
      %144 = dma.done [#allocation6], 1024
    $region53: #{tpu_custom_call.1} parent=1 // pred_fallthru
      _
    // Predicated region
    $region54: #{tpu_custom_call.1} parent=1 // pred_check
      _
    $region55: #{tpu_custom_call.1} parent=1 // pred_check_branch
      %146 = sbr.rel (0) target = $region57
    $region56: #{tpu_custom_call.1} parent=1 // pred_region
      %147 = dma.done [#allocation6], 1024
    $region57: #{tpu_custom_call.1} parent=1 // pred_fallthru
      _
    // Predicated region
    $region58: #{tpu_custom_call.1} parent=1 // pred_check
      _
    $region59: #{tpu_custom_call.1} parent=1 // pred_check_branch
      %149 = sbr.rel (0) target = $region61
    $region60: #{tpu_custom_call.1} parent=1 // pred_region
      %150 = dma.done [#allocation9], 73728
    $region61: #{tpu_custom_call.1} parent=1 // pred_fallthru
      _
    // Predicated region
    $region62: #{tpu_custom_call.1} parent=1 // pred_check
      _
    $region63: #{tpu_custom_call.1} parent=1 // pred_check_branch
      %152 = sbr.rel (0) target = $region65
    $region64: #{tpu_custom_call.1} parent=1 // pred_region
      %153 = dma.done [#allocation9], 128
    $region65: #{tpu_custom_call.1} parent=1 // pred_fallthru
      _
    // Predicated region
    $region66: #{tpu_custom_call.1} parent=1 // pred_check
      _
    $region67: #{tpu_custom_call.1} parent=1 // pred_check_branch
      %155 = sbr.rel (0) target = $region69
    $region68: #{tpu_custom_call.1} parent=1 // pred_region
      %156 = dma.done [#allocation12], 128
    $region69: #{tpu_custom_call.1} parent=1 // pred_fallthru
      _
    // Predicated region
    $region70: #{tpu_custom_call.1} parent=1 // pred_check
      _
    $region71: #{tpu_custom_call.1} parent=1 // pred_check_branch
      %158 = sbr.rel (0) target = $region73
    $region72: #{tpu_custom_call.1} parent=1 // pred_region
      %159 = dma.done [#allocation12], 65536
    $region73: #{tpu_custom_call.1} parent=1 // pred_fallthru
      _
    // Predicated region
    $region74: #{tpu_custom_call.1} parent=1 // pred_check
      _
    $region75: #{tpu_custom_call.1} parent=1 // pred_check_branch
      %161 = sbr.rel (0) target = $region77
    $region76: #{tpu_custom_call.1} parent=1 // pred_region
      %162 = dma.done [#allocation15], 128
    $region77: #{tpu_custom_call.1} parent=1 // pred_fallthru
      _
    // Predicated region
    $region78: #{tpu_custom_call.1} parent=1 // pred_check
      _
    $region79: #{tpu_custom_call.1} parent=1 // pred_check_branch
      %164 = sbr.rel (0) target = $region81
    $region80: #{tpu_custom_call.1} parent=1 // pred_region
      %165 = dma.done [#allocation15], 128
    $region81: #{tpu_custom_call.1} parent=1 // pred_fallthru
      _
    // Predicated region
    $region82: #{tpu_custom_call.1} parent=1 // pred_check
      _
    $region83: #{tpu_custom_call.1} parent=1 // pred_check_branch
      %167 = sbr.rel (0) target = $region85
    $region84: #{tpu_custom_call.1} parent=1 // pred_region
      %168 = dma.done [#allocation18], 8192
    $region85: #{tpu_custom_call.1} parent=1 // pred_fallthru
      _
    // Predicated region
    $region86: #{tpu_custom_call.1} parent=1 // pred_check
      _
    $region87: #{tpu_custom_call.1} parent=1 // pred_check_branch
      %170 = sbr.rel (0) target = $region89
    $region88: #{tpu_custom_call.1} parent=1 // pred_region
      %171 = dma.done [#allocation18], 16
    $region89: #{tpu_custom_call.1} parent=1 // pred_fallthru
      _
    %v173 = vld [vmem:[#allocation2] sm:$0xff]
    %v174 = vld [vmem:[#allocation2 + $0x8] sm:$0xff]
    %v175 = vld [vmem:[#allocation2 + $0x10] sm:$0xff]
    %v176 = vld [vmem:[#allocation2 + $0x18] sm:$0xff]
    %v177 = vld [vmem:[#allocation2 + $0x20] sm:$0xff]
    %v178 = vld [vmem:[#allocation2 + $0x28] sm:$0xff]
    %v179 = vld [vmem:[#allocation2 + $0x30] sm:$0xff]
    %v180 = vld [vmem:[#allocation2 + $0x38] sm:$0xff]
    %v181 = vld [vmem:[#allocation2 + $0x40] sm:$0xff]
    %v182 = vpack.c.bf16 %v173, %v173
    %v183 = vpack.c.bf16 %v174, %v174
    %v184 = vpack.c.bf16 %v175, %v175
    %v185 = vpack.c.bf16 %v176, %v176
    %v186 = vpack.c.bf16 %v177, %v177
    %v187 = vpack.c.bf16 %v178, %v178
    %v188 = vpack.c.bf16 %v179, %v179
    %v189 = vpack.c.bf16 %v180, %v180
    %v190 = vpack.c.bf16 %v181, %v181
    %v191 = vld [vmem:[#allocation8] sm:$0xff]
    %v192 = vld [vmem:[#allocation8 + $0x8] sm:$0xff]
    %v193 = vld [vmem:[#allocation8 + $0x10] sm:$0xff]
    %v194 = vld [vmem:[#allocation8 + $0x18] sm:$0xff]
    %v195 = vld [vmem:[#allocation8 + $0x20] sm:$0xff]
    %v196 = vld [vmem:[#allocation8 + $0x28] sm:$0xff]
    %v197 = vld [vmem:[#allocation8 + $0x30] sm:$0xff]
    %v198 = vld [vmem:[#allocation8 + $0x38] sm:$0xff]
    %v199 = vld [vmem:[#allocation8 + $0x40] sm:$0xff]
    %v200 = vld [vmem:[#allocation8 + $0x48] sm:$0xff]
    %v201 = vld [vmem:[#allocation8 + $0x50] sm:$0xff]
    %v202 = vld [vmem:[#allocation8 + $0x58] sm:$0xff]
    %v203 = vld [vmem:[#allocation8 + $0x60] sm:$0xff]
    %v204 = vld [vmem:[#allocation8 + $0x68] sm:$0xff]
    %v205 = vld [vmem:[#allocation8 + $0x70] sm:$0xff]
    %v206 = vld [vmem:[#allocation8 + $0x78] sm:$0xff]
    %v207 = vld [vmem:[#allocation8 + $0x80] sm:$0xff]
    %v208 = vld [vmem:[#allocation8 + $0x88] sm:$0xff]
    %v209 = vld [vmem:[#allocation8 + $0x90] sm:$0xff]
    %v210 = vld [vmem:[#allocation8 + $0x98] sm:$0xff]
    %v211 = vld [vmem:[#allocation8 + $0xa0] sm:$0xff]
    %v212 = vld [vmem:[#allocation8 + $0xa8] sm:$0xff]
    %v213 = vld [vmem:[#allocation8 + $0xb0] sm:$0xff]
    %v214 = vld [vmem:[#allocation8 + $0xb8] sm:$0xff]
    %v215 = vld [vmem:[#allocation8 + $0xc0] sm:$0xff]
    %v216 = vld [vmem:[#allocation8 + $0xc8] sm:$0xff]
    %v217 = vld [vmem:[#allocation8 + $0xd0] sm:$0xff]
    %v218 = vld [vmem:[#allocation8 + $0xd8] sm:$0xff]
    %v219 = vld [vmem:[#allocation8 + $0xe0] sm:$0xff]
    %v220 = vld [vmem:[#allocation8 + $0xe8] sm:$0xff]
    %v221 = vld [vmem:[#allocation8 + $0xf0] sm:$0xff]
    %v222 = vld [vmem:[#allocation8 + $0xf8] sm:$0xff]
    %v223 = vld [vmem:[#allocation8 + $0x100] sm:$0xff]
    %v224 = vld [vmem:[#allocation8 + $0x108] sm:$0xff]
    %v225 = vld [vmem:[#allocation8 + $0x110] sm:$0xff]
    %v226 = vld [vmem:[#allocation8 + $0x118] sm:$0xff]
    %v227 = vld [vmem:[#allocation8 + $0x120] sm:$0xff]
    %v228 = vld [vmem:[#allocation8 + $0x128] sm:$0xff]
    %v229 = vld [vmem:[#allocation8 + $0x130] sm:$0xff]
    %v230 = vld [vmem:[#allocation8 + $0x138] sm:$0xff]
    %v231 = vld [vmem:[#allocation8 + $0x140] sm:$0xff]
    %v232 = vld [vmem:[#allocation8 + $0x148] sm:$0xff]
    %v233 = vld [vmem:[#allocation8 + $0x150] sm:$0xff]
    %v234 = vld [vmem:[#allocation8 + $0x158] sm:$0xff]
    %v235 = vld [vmem:[#allocation8 + $0x160] sm:$0xff]
    %v236 = vld [vmem:[#allocation8 + $0x168] sm:$0xff]
    %v237 = vld [vmem:[#allocation8 + $0x170] sm:$0xff]
    %v238 = vld [vmem:[#allocation8 + $0x178] sm:$0xff]
    %v239 = vld [vmem:[#allocation8 + $0x180] sm:$0xff]
    %v240 = vld [vmem:[#allocation8 + $0x188] sm:$0xff]
    %v241 = vld [vmem:[#allocation8 + $0x190] sm:$0xff]
    %v242 = vld [vmem:[#allocation8 + $0x198] sm:$0xff]
    %v243 = vld [vmem:[#allocation8 + $0x1a0] sm:$0xff]
    %v244 = vld [vmem:[#allocation8 + $0x1a8] sm:$0xff]
    %v245 = vld [vmem:[#allocation8 + $0x1b0] sm:$0xff]
    %v246 = vld [vmem:[#allocation8 + $0x1b8] sm:$0xff]
    %v247 = vld [vmem:[#allocation8 + $0x1c0] sm:$0xff]
    %v248 = vld [vmem:[#allocation8 + $0x1c8] sm:$0xff]
    %v249 = vld [vmem:[#allocation8 + $0x1d0] sm:$0xff]
    %v250 = vld [vmem:[#allocation8 + $0x1d8] sm:$0xff]
    %v251 = vld [vmem:[#allocation8 + $0x1e0] sm:$0xff]
    %v252 = vld [vmem:[#allocation8 + $0x1e8] sm:$0xff]
    %v253 = vld [vmem:[#allocation8 + $0x1f0] sm:$0xff]
    %v254 = vld [vmem:[#allocation8 + $0x1f8] sm:$0xff]
    %v255 = vld [vmem:[#allocation8 + $0x200] sm:$0xff]
    %v256 = vld [vmem:[#allocation8 + $0x208] sm:$0xff]
    %v257 = vld [vmem:[#allocation8 + $0x210] sm:$0xff]
    %v258 = vld [vmem:[#allocation8 + $0x218] sm:$0xff]
    %v259 = vld [vmem:[#allocation8 + $0x220] sm:$0xff]
    %v260 = vld [vmem:[#allocation8 + $0x228] sm:$0xff]
    %v261 = vld [vmem:[#allocation8 + $0x230] sm:$0xff]
    %v262 = vld [vmem:[#allocation8 + $0x238] sm:$0xff]
    %v263 = vld [vmem:[#allocation8 + $0x240] sm:$0xff]
    %v264 = vld [vmem:[#allocation8 + $0x248] sm:$0xff]
    %v265 = vld [vmem:[#allocation8 + $0x250] sm:$0xff]
    %v266 = vld [vmem:[#allocation8 + $0x258] sm:$0xff]
    %v267 = vld [vmem:[#allocation8 + $0x260] sm:$0xff]
    %v268 = vld [vmem:[#allocation8 + $0x268] sm:$0xff]
    %v269 = vld [vmem:[#allocation8 + $0x270] sm:$0xff]
    %v270 = vld [vmem:[#allocation8 + $0x278] sm:$0xff]
    %v271 = vld [vmem:[#allocation8 + $0x280] sm:$0xff]
    %v272 = vld [vmem:[#allocation8 + $0x288] sm:$0xff]
    %v273 = vld [vmem:[#allocation8 + $0x290] sm:$0xff]
    %v274 = vld [vmem:[#allocation8 + $0x298] sm:$0xff]
    %v275 = vld [vmem:[#allocation8 + $0x2a0] sm:$0xff]
    %v276 = vld [vmem:[#allocation8 + $0x2a8] sm:$0xff]
    %v277 = vld [vmem:[#allocation8 + $0x2b0] sm:$0xff]
    %v278 = vld [vmem:[#allocation8 + $0x2b8] sm:$0xff]
    %v279 = vld [vmem:[#allocation8 + $0x2c0] sm:$0xff]
    %v280 = vld [vmem:[#allocation8 + $0x2c8] sm:$0xff]
    %v281 = vld [vmem:[#allocation8 + $0x2d0] sm:$0xff]
    %v282 = vld [vmem:[#allocation8 + $0x2d8] sm:$0xff]
    %v283 = vld [vmem:[#allocation8 + $0x2e0] sm:$0xff]
    %v284 = vld [vmem:[#allocation8 + $0x2e8] sm:$0xff]
    %v285 = vld [vmem:[#allocation8 + $0x2f0] sm:$0xff]
    %v286 = vld [vmem:[#allocation8 + $0x2f8] sm:$0xff]
    %v287 = vld [vmem:[#allocation8 + $0x300] sm:$0xff]
    %v288 = vld [vmem:[#allocation8 + $0x308] sm:$0xff]
    %v289 = vld [vmem:[#allocation8 + $0x310] sm:$0xff]
    %v290 = vld [vmem:[#allocation8 + $0x318] sm:$0xff]
    %v291 = vld [vmem:[#allocation8 + $0x320] sm:$0xff]
    %v292 = vld [vmem:[#allocation8 + $0x328] sm:$0xff]
    %v293 = vld [vmem:[#allocation8 + $0x330] sm:$0xff]
    %v294 = vld [vmem:[#allocation8 + $0x338] sm:$0xff]
    %v295 = vld [vmem:[#allocation8 + $0x340] sm:$0xff]
    %v296 = vld [vmem:[#allocation8 + $0x348] sm:$0xff]
    %v297 = vld [vmem:[#allocation8 + $0x350] sm:$0xff]
    %v298 = vld [vmem:[#allocation8 + $0x358] sm:$0xff]
    %v299 = vld [vmem:[#allocation8 + $0x360] sm:$0xff]
    %v300 = vld [vmem:[#allocation8 + $0x368] sm:$0xff]
    %v301 = vld [vmem:[#allocation8 + $0x370] sm:$0xff]
    %v302 = vld [vmem:[#allocation8 + $0x378] sm:$0xff]
    %v303 = vld [vmem:[#allocation8 + $0x380] sm:$0xff]
    %v304 = vld [vmem:[#allocation8 + $0x388] sm:$0xff]
    %v305 = vld [vmem:[#allocation8 + $0x390] sm:$0xff]
    %v306 = vld [vmem:[#allocation8 + $0x398] sm:$0xff]
    %v307 = vld [vmem:[#allocation8 + $0x3a0] sm:$0xff]
    %v308 = vld [vmem:[#allocation8 + $0x3a8] sm:$0xff]
    %v309 = vld [vmem:[#allocation8 + $0x3b0] sm:$0xff]
    %v310 = vld [vmem:[#allocation8 + $0x3b8] sm:$0xff]
    %v311 = vld [vmem:[#allocation8 + $0x3c0] sm:$0xff]
    %v312 = vld [vmem:[#allocation8 + $0x3c8] sm:$0xff]
    %v313 = vld [vmem:[#allocation8 + $0x3d0] sm:$0xff]
    %v314 = vld [vmem:[#allocation8 + $0x3d8] sm:$0xff]
    %v315 = vld [vmem:[#allocation8 + $0x3e0] sm:$0xff]
    %v316 = vld [vmem:[#allocation8 + $0x3e8] sm:$0xff]
    %v317 = vld [vmem:[#allocation8 + $0x3f0] sm:$0xff]
    %v318 = vld [vmem:[#allocation8 + $0x3f8] sm:$0xff]
    %v319 = vld [vmem:[#allocation8 + $0x400] sm:$0xff]
    %v320 = vld [vmem:[#allocation8 + $0x408] sm:$0xff]
    %v321 = vld [vmem:[#allocation8 + $0x410] sm:$0xff]
    %v322 = vld [vmem:[#allocation8 + $0x418] sm:$0xff]
    %v323 = vld [vmem:[#allocation8 + $0x420] sm:$0xff]
    %v324 = vld [vmem:[#allocation8 + $0x428] sm:$0xff]
    %v325 = vld [vmem:[#allocation8 + $0x430] sm:$0xff]
    %v326 = vld [vmem:[#allocation8 + $0x438] sm:$0xff]
    %v327 = vld [vmem:[#allocation8 + $0x440] sm:$0xff]
    %v328 = vld [vmem:[#allocation8 + $0x448] sm:$0xff]
    %v329 = vld [vmem:[#allocation8 + $0x450] sm:$0xff]
    %v330 = vld [vmem:[#allocation8 + $0x458] sm:$0xff]
    %v331 = vld [vmem:[#allocation8 + $0x460] sm:$0xff]
    %v332 = vld [vmem:[#allocation8 + $0x468] sm:$0xff]
    %v333 = vld [vmem:[#allocation8 + $0x470] sm:$0xff]
    %v334 = vld [vmem:[#allocation8 + $0x478] sm:$0xff]
    %v335 = vld [vmem:[#allocation8 + $0x480] sm:$0xff]
    %v336 = vld [vmem:[#allocation8 + $0x488] sm:$0xff]
    %v337 = vld [vmem:[#allocation8 + $0x490] sm:$0xff]
    %v338 = vld [vmem:[#allocation8 + $0x498] sm:$0xff]
    %v339 = vld [vmem:[#allocation8 + $0x4a0] sm:$0xff]
    %v340 = vld [vmem:[#allocation8 + $0x4a8] sm:$0xff]
    %v341 = vld [vmem:[#allocation8 + $0x4b0] sm:$0xff]
    %v342 = vld [vmem:[#allocation8 + $0x4b8] sm:$0xff]
    %v343 = vld [vmem:[#allocation8 + $0x4c0] sm:$0xff]
    %v344 = vld [vmem:[#allocation8 + $0x4c8] sm:$0xff]
    %v345 = vld [vmem:[#allocation8 + $0x4d0] sm:$0xff]
    %v346 = vld [vmem:[#allocation8 + $0x4d8] sm:$0xff]
    %v347 = vld [vmem:[#allocation8 + $0x4e0] sm:$0xff]
    %v348 = vld [vmem:[#allocation8 + $0x4e8] sm:$0xff]
    %v349 = vld [vmem:[#allocation8 + $0x4f0] sm:$0xff]
    %v350 = vld [vmem:[#allocation8 + $0x4f8] sm:$0xff]
    %v351 = vld [vmem:[#allocation8 + $0x500] sm:$0xff]
    %v352 = vld [vmem:[#allocation8 + $0x508] sm:$0xff]
    %v353 = vld [vmem:[#allocation8 + $0x510] sm:$0xff]
    %v354 = vld [vmem:[#allocation8 + $0x518] sm:$0xff]
    %v355 = vld [vmem:[#allocation8 + $0x520] sm:$0xff]
    %v356 = vld [vmem:[#allocation8 + $0x528] sm:$0xff]
    %v357 = vld [vmem:[#allocation8 + $0x530] sm:$0xff]
    %v358 = vld [vmem:[#allocation8 + $0x538] sm:$0xff]
    %v359 = vld [vmem:[#allocation8 + $0x540] sm:$0xff]
    %v360 = vld [vmem:[#allocation8 + $0x548] sm:$0xff]
    %v361 = vld [vmem:[#allocation8 + $0x550] sm:$0xff]
    %v362 = vld [vmem:[#allocation8 + $0x558] sm:$0xff]
    %v363 = vld [vmem:[#allocation8 + $0x560] sm:$0xff]
    %v364 = vld [vmem:[#allocation8 + $0x568] sm:$0xff]
    %v365 = vld [vmem:[#allocation8 + $0x570] sm:$0xff]
    %v366 = vld [vmem:[#allocation8 + $0x578] sm:$0xff]
    %v367 = vld [vmem:[#allocation8 + $0x580] sm:$0xff]
    %v368 = vld [vmem:[#allocation8 + $0x588] sm:$0xff]
    %v369 = vld [vmem:[#allocation8 + $0x590] sm:$0xff]
    %v370 = vld [vmem:[#allocation8 + $0x598] sm:$0xff]
    %v371 = vld [vmem:[#allocation8 + $0x5a0] sm:$0xff]
    %v372 = vld [vmem:[#allocation8 + $0x5a8] sm:$0xff]
    %v373 = vld [vmem:[#allocation8 + $0x5b0] sm:$0xff]
    %v374 = vld [vmem:[#allocation8 + $0x5b8] sm:$0xff]
    %v375 = vld [vmem:[#allocation8 + $0x5c0] sm:$0xff]
    %v376 = vld [vmem:[#allocation8 + $0x5c8] sm:$0xff]
    %v377 = vld [vmem:[#allocation8 + $0x5d0] sm:$0xff]
    %v378 = vld [vmem:[#allocation8 + $0x5d8] sm:$0xff]
    %v379 = vld [vmem:[#allocation8 + $0x5e0] sm:$0xff]
    %v380 = vld [vmem:[#allocation8 + $0x5e8] sm:$0xff]
    %v381 = vld [vmem:[#allocation8 + $0x5f0] sm:$0xff]
    %v382 = vld [vmem:[#allocation8 + $0x5f8] sm:$0xff]
    %v383 = vld [vmem:[#allocation8 + $0x600] sm:$0xff]
    %v384 = vld [vmem:[#allocation8 + $0x608] sm:$0xff]
    %v385 = vld [vmem:[#allocation8 + $0x610] sm:$0xff]
    %v386 = vld [vmem:[#allocation8 + $0x618] sm:$0xff]
    %v387 = vld [vmem:[#allocation8 + $0x620] sm:$0xff]
    %v388 = vld [vmem:[#allocation8 + $0x628] sm:$0xff]
    %v389 = vld [vmem:[#allocation8 + $0x630] sm:$0xff]
    %v390 = vld [vmem:[#allocation8 + $0x638] sm:$0xff]
    %v391 = vld [vmem:[#allocation8 + $0x640] sm:$0xff]
    %v392 = vld [vmem:[#allocation8 + $0x648] sm:$0xff]
    %v393 = vld [vmem:[#allocation8 + $0x650] sm:$0xff]
    %v394 = vld [vmem:[#allocation8 + $0x658] sm:$0xff]
    %v395 = vld [vmem:[#allocation8 + $0x660] sm:$0xff]
    %v396 = vld [vmem:[#allocation8 + $0x668] sm:$0xff]
    %v397 = vld [vmem:[#allocation8 + $0x670] sm:$0xff]
    %v398 = vld [vmem:[#allocation8 + $0x678] sm:$0xff]
    %v399 = vld [vmem:[#allocation8 + $0x680] sm:$0xff]
    %v400 = vld [vmem:[#allocation8 + $0x688] sm:$0xff]
    %v401 = vld [vmem:[#allocation8 + $0x690] sm:$0xff]
    %v402 = vld [vmem:[#allocation8 + $0x698] sm:$0xff]
    %v403 = vld [vmem:[#allocation8 + $0x6a0] sm:$0xff]
    %v404 = vld [vmem:[#allocation8 + $0x6a8] sm:$0xff]
    %v405 = vld [vmem:[#allocation8 + $0x6b0] sm:$0xff]
    %v406 = vld [vmem:[#allocation8 + $0x6b8] sm:$0xff]
    %v407 = vld [vmem:[#allocation8 + $0x6c0] sm:$0xff]
    %v408 = vld [vmem:[#allocation8 + $0x6c8] sm:$0xff]
    %v409 = vld [vmem:[#allocation8 + $0x6d0] sm:$0xff]
    %v410 = vld [vmem:[#allocation8 + $0x6d8] sm:$0xff]
    %v411 = vld [vmem:[#allocation8 + $0x6e0] sm:$0xff]
    %v412 = vld [vmem:[#allocation8 + $0x6e8] sm:$0xff]
    %v413 = vld [vmem:[#allocation8 + $0x6f0] sm:$0xff]
    %v414 = vld [vmem:[#allocation8 + $0x6f8] sm:$0xff]
    %v415 = vld [vmem:[#allocation8 + $0x700] sm:$0xff]
    %v416 = vld [vmem:[#allocation8 + $0x708] sm:$0xff]
    %v417 = vld [vmem:[#allocation8 + $0x710] sm:$0xff]
    %v418 = vld [vmem:[#allocation8 + $0x718] sm:$0xff]
    %v419 = vld [vmem:[#allocation8 + $0x720] sm:$0xff]
    %v420 = vld [vmem:[#allocation8 + $0x728] sm:$0xff]
    %v421 = vld [vmem:[#allocation8 + $0x730] sm:$0xff]
    %v422 = vld [vmem:[#allocation8 + $0x738] sm:$0xff]
    %v423 = vld [vmem:[#allocation8 + $0x740] sm:$0xff]
    %v424 = vld [vmem:[#allocation8 + $0x748] sm:$0xff]
    %v425 = vld [vmem:[#allocation8 + $0x750] sm:$0xff]
    %v426 = vld [vmem:[#allocation8 + $0x758] sm:$0xff]
    %v427 = vld [vmem:[#allocation8 + $0x760] sm:$0xff]
    %v428 = vld [vmem:[#allocation8 + $0x768] sm:$0xff]
    %v429 = vld [vmem:[#allocation8 + $0x770] sm:$0xff]
    %v430 = vld [vmem:[#allocation8 + $0x778] sm:$0xff]
    %v431 = vld [vmem:[#allocation8 + $0x780] sm:$0xff]
    %v432 = vld [vmem:[#allocation8 + $0x788] sm:$0xff]
    %v433 = vld [vmem:[#allocation8 + $0x790] sm:$0xff]
    %v434 = vld [vmem:[#allocation8 + $0x798] sm:$0xff]
    %v435 = vld [vmem:[#allocation8 + $0x7a0] sm:$0xff]
    %v436 = vld [vmem:[#allocation8 + $0x7a8] sm:$0xff]
    %v437 = vld [vmem:[#allocation8 + $0x7b0] sm:$0xff]
    %v438 = vld [vmem:[#allocation8 + $0x7b8] sm:$0xff]
    %v439 = vld [vmem:[#allocation8 + $0x7c0] sm:$0xff]
    %v440 = vld [vmem:[#allocation8 + $0x7c8] sm:$0xff]
    %v441 = vld [vmem:[#allocation8 + $0x7d0] sm:$0xff]
    %v442 = vld [vmem:[#allocation8 + $0x7d8] sm:$0xff]
    %v443 = vld [vmem:[#allocation8 + $0x7e0] sm:$0xff]
    %v444 = vld [vmem:[#allocation8 + $0x7e8] sm:$0xff]
    %v445 = vld [vmem:[#allocation8 + $0x7f0] sm:$0xff]
    %v446 = vld [vmem:[#allocation8 + $0x7f8] sm:$0xff]
    %v447 = vld [vmem:[#allocation8 + $0x800] sm:$0xff]
    %v448 = vld [vmem:[#allocation8 + $0x808] sm:$0xff]
    %v449 = vld [vmem:[#allocation8 + $0x810] sm:$0xff]
    %v450 = vld [vmem:[#allocation8 + $0x818] sm:$0xff]
    %v451 = vld [vmem:[#allocation8 + $0x820] sm:$0xff]
    %v452 = vld [vmem:[#allocation8 + $0x828] sm:$0xff]
    %v453 = vld [vmem:[#allocation8 + $0x830] sm:$0xff]
    %v454 = vld [vmem:[#allocation8 + $0x838] sm:$0xff]
    %v455 = vld [vmem:[#allocation8 + $0x840] sm:$0xff]
    %v456 = vld [vmem:[#allocation8 + $0x848] sm:$0xff]
    %v457 = vld [vmem:[#allocation8 + $0x850] sm:$0xff]
    %v458 = vld [vmem:[#allocation8 + $0x858] sm:$0xff]
    %v459 = vld [vmem:[#allocation8 + $0x860] sm:$0xff]
    %v460 = vld [vmem:[#allocation8 + $0x868] sm:$0xff]
    %v461 = vld [vmem:[#allocation8 + $0x870] sm:$0xff]
    %v462 = vld [vmem:[#allocation8 + $0x878] sm:$0xff]
    %v463 = vld [vmem:[#allocation8 + $0x880] sm:$0xff]
    %v464 = vld [vmem:[#allocation8 + $0x888] sm:$0xff]
    %v465 = vld [vmem:[#allocation8 + $0x890] sm:$0xff]
    %v466 = vld [vmem:[#allocation8 + $0x898] sm:$0xff]
    %v467 = vld [vmem:[#allocation8 + $0x8a0] sm:$0xff]
    %v468 = vld [vmem:[#allocation8 + $0x8a8] sm:$0xff]
    %v469 = vld [vmem:[#allocation8 + $0x8b0] sm:$0xff]
    %v470 = vld [vmem:[#allocation8 + $0x8b8] sm:$0xff]
    %v471 = vld [vmem:[#allocation8 + $0x8c0] sm:$0xff]
    %v472 = vld [vmem:[#allocation8 + $0x8c8] sm:$0xff]
    %v473 = vld [vmem:[#allocation8 + $0x8d0] sm:$0xff]
    %v474 = vld [vmem:[#allocation8 + $0x8d8] sm:$0xff]
    %v475 = vld [vmem:[#allocation8 + $0x8e0] sm:$0xff]
    %v476 = vld [vmem:[#allocation8 + $0x8e8] sm:$0xff]
    %v477 = vld [vmem:[#allocation8 + $0x8f0] sm:$0xff]
    %v478 = vld [vmem:[#allocation8 + $0x8f8] sm:$0xff]
    %v479 = vld [vmem:[#allocation8 + $0x900] sm:$0xff]
    %v480 = vld [vmem:[#allocation8 + $0x908] sm:$0xff]
    %v481 = vld [vmem:[#allocation8 + $0x910] sm:$0xff]
    %v482 = vld [vmem:[#allocation8 + $0x918] sm:$0xff]
    %v483 = vld [vmem:[#allocation8 + $0x920] sm:$0xff]
    %v484 = vld [vmem:[#allocation8 + $0x928] sm:$0xff]
    %v485 = vld [vmem:[#allocation8 + $0x930] sm:$0xff]
    %v486 = vld [vmem:[#allocation8 + $0x938] sm:$0xff]
    %v487 = vld [vmem:[#allocation8 + $0x940] sm:$0xff]
    %v488 = vld [vmem:[#allocation8 + $0x948] sm:$0xff]
    %v489 = vld [vmem:[#allocation8 + $0x950] sm:$0xff]
    %v490 = vld [vmem:[#allocation8 + $0x958] sm:$0xff]
    %v491 = vld [vmem:[#allocation8 + $0x960] sm:$0xff]
    %v492 = vld [vmem:[#allocation8 + $0x968] sm:$0xff]
    %v493 = vld [vmem:[#allocation8 + $0x970] sm:$0xff]
    %v494 = vld [vmem:[#allocation8 + $0x978] sm:$0xff]
    %v495 = vld [vmem:[#allocation8 + $0x980] sm:$0xff]
    %v496 = vld [vmem:[#allocation8 + $0x988] sm:$0xff]
    %v497 = vld [vmem:[#allocation8 + $0x990] sm:$0xff]
    %v498 = vld [vmem:[#allocation8 + $0x998] sm:$0xff]
    %v499 = vld [vmem:[#allocation8 + $0x9a0] sm:$0xff]
    %v500 = vld [vmem:[#allocation8 + $0x9a8] sm:$0xff]
    %v501 = vld [vmem:[#allocation8 + $0x9b0] sm:$0xff]
    %v502 = vld [vmem:[#allocation8 + $0x9b8] sm:$0xff]
    %v503 = vld [vmem:[#allocation8 + $0x9c0] sm:$0xff]
    %v504 = vld [vmem:[#allocation8 + $0x9c8] sm:$0xff]
    %v505 = vld [vmem:[#allocation8 + $0x9d0] sm:$0xff]
    %v506 = vld [vmem:[#allocation8 + $0x9d8] sm:$0xff]
    %v507 = vld [vmem:[#allocation8 + $0x9e0] sm:$0xff]
    %v508 = vld [vmem:[#allocation8 + $0x9e8] sm:$0xff]
    %v509 = vld [vmem:[#allocation8 + $0x9f0] sm:$0xff]
    %v510 = vld [vmem:[#allocation8 + $0x9f8] sm:$0xff]
    %v511 = vld [vmem:[#allocation8 + $0xa00] sm:$0xff]
    %v512 = vld [vmem:[#allocation8 + $0xa08] sm:$0xff]
    %v513 = vld [vmem:[#allocation8 + $0xa10] sm:$0xff]
    %v514 = vld [vmem:[#allocation8 + $0xa18] sm:$0xff]
    %v515 = vld [vmem:[#allocation8 + $0xa20] sm:$0xff]
    %v516 = vld [vmem:[#allocation8 + $0xa28] sm:$0xff]
    %v517 = vld [vmem:[#allocation8 + $0xa30] sm:$0xff]
    %v518 = vld [vmem:[#allocation8 + $0xa38] sm:$0xff]
    %v519 = vld [vmem:[#allocation8 + $0xa40] sm:$0xff]
    %v520 = vld [vmem:[#allocation8 + $0xa48] sm:$0xff]
    %v521 = vld [vmem:[#allocation8 + $0xa50] sm:$0xff]
    %v522 = vld [vmem:[#allocation8 + $0xa58] sm:$0xff]
    %v523 = vld [vmem:[#allocation8 + $0xa60] sm:$0xff]
    %v524 = vld [vmem:[#allocation8 + $0xa68] sm:$0xff]
    %v525 = vld [vmem:[#allocation8 + $0xa70] sm:$0xff]
    %v526 = vld [vmem:[#allocation8 + $0xa78] sm:$0xff]
    %v527 = vld [vmem:[#allocation8 + $0xa80] sm:$0xff]
    %v528 = vld [vmem:[#allocation8 + $0xa88] sm:$0xff]
    %v529 = vld [vmem:[#allocation8 + $0xa90] sm:$0xff]
    %v530 = vld [vmem:[#allocation8 + $0xa98] sm:$0xff]
    %v531 = vld [vmem:[#allocation8 + $0xaa0] sm:$0xff]
    %v532 = vld [vmem:[#allocation8 + $0xaa8] sm:$0xff]
    %v533 = vld [vmem:[#allocation8 + $0xab0] sm:$0xff]
    %v534 = vld [vmem:[#allocation8 + $0xab8] sm:$0xff]
    %v535 = vld [vmem:[#allocation8 + $0xac0] sm:$0xff]
    %v536 = vld [vmem:[#allocation8 + $0xac8] sm:$0xff]
    %v537 = vld [vmem:[#allocation8 + $0xad0] sm:$0xff]
    %v538 = vld [vmem:[#allocation8 + $0xad8] sm:$0xff]
    %v539 = vld [vmem:[#allocation8 + $0xae0] sm:$0xff]
    %v540 = vld [vmem:[#allocation8 + $0xae8] sm:$0xff]
    %v541 = vld [vmem:[#allocation8 + $0xaf0] sm:$0xff]
    %v542 = vld [vmem:[#allocation8 + $0xaf8] sm:$0xff]
    %v543 = vld [vmem:[#allocation8 + $0xb00] sm:$0xff]
    %v544 = vld [vmem:[#allocation8 + $0xb08] sm:$0xff]
    %v545 = vld [vmem:[#allocation8 + $0xb10] sm:$0xff]
    %v546 = vld [vmem:[#allocation8 + $0xb18] sm:$0xff]
    %v547 = vld [vmem:[#allocation8 + $0xb20] sm:$0xff]
    %v548 = vld [vmem:[#allocation8 + $0xb28] sm:$0xff]
    %v549 = vld [vmem:[#allocation8 + $0xb30] sm:$0xff]
    %v550 = vld [vmem:[#allocation8 + $0xb38] sm:$0xff]
    %v551 = vld [vmem:[#allocation8 + $0xb40] sm:$0xff]
    %v552 = vld [vmem:[#allocation8 + $0xb48] sm:$0xff]
    %v553 = vld [vmem:[#allocation8 + $0xb50] sm:$0xff]
    %v554 = vld [vmem:[#allocation8 + $0xb58] sm:$0xff]
    %v555 = vld [vmem:[#allocation8 + $0xb60] sm:$0xff]
    %v556 = vld [vmem:[#allocation8 + $0xb68] sm:$0xff]
    %v557 = vld [vmem:[#allocation8 + $0xb70] sm:$0xff]
    %v558 = vld [vmem:[#allocation8 + $0xb78] sm:$0xff]
    %v559 = vld [vmem:[#allocation8 + $0xb80] sm:$0xff]
    %v560 = vld [vmem:[#allocation8 + $0xb88] sm:$0xff]
    %v561 = vld [vmem:[#allocation8 + $0xb90] sm:$0xff]
    %v562 = vld [vmem:[#allocation8 + $0xb98] sm:$0xff]
    %v563 = vld [vmem:[#allocation8 + $0xba0] sm:$0xff]
    %v564 = vld [vmem:[#allocation8 + $0xba8] sm:$0xff]
    %v565 = vld [vmem:[#allocation8 + $0xbb0] sm:$0xff]
    %v566 = vld [vmem:[#allocation8 + $0xbb8] sm:$0xff]
    %v567 = vld [vmem:[#allocation8 + $0xbc0] sm:$0xff]
    %v568 = vld [vmem:[#allocation8 + $0xbc8] sm:$0xff]
    %v569 = vld [vmem:[#allocation8 + $0xbd0] sm:$0xff]
    %v570 = vld [vmem:[#allocation8 + $0xbd8] sm:$0xff]
    %v571 = vld [vmem:[#allocation8 + $0xbe0] sm:$0xff]
    %v572 = vld [vmem:[#allocation8 + $0xbe8] sm:$0xff]
    %v573 = vld [vmem:[#allocation8 + $0xbf0] sm:$0xff]
    %v574 = vld [vmem:[#allocation8 + $0xbf8] sm:$0xff]
    %v575 = vld [vmem:[#allocation8 + $0xc00] sm:$0xff]
    %v576 = vld [vmem:[#allocation8 + $0xc08] sm:$0xff]
    %v577 = vld [vmem:[#allocation8 + $0xc10] sm:$0xff]
    %v578 = vld [vmem:[#allocation8 + $0xc18] sm:$0xff]
    %v579 = vld [vmem:[#allocation8 + $0xc20] sm:$0xff]
    %v580 = vld [vmem:[#allocation8 + $0xc28] sm:$0xff]
    %v581 = vld [vmem:[#allocation8 + $0xc30] sm:$0xff]
    %v582 = vld [vmem:[#allocation8 + $0xc38] sm:$0xff]
    %v583 = vld [vmem:[#allocation8 + $0xc40] sm:$0xff]
    %v584 = vld [vmem:[#allocation8 + $0xc48] sm:$0xff]
    %v585 = vld [vmem:[#allocation8 + $0xc50] sm:$0xff]
    %v586 = vld [vmem:[#allocation8 + $0xc58] sm:$0xff]
    %v587 = vld [vmem:[#allocation8 + $0xc60] sm:$0xff]
    %v588 = vld [vmem:[#allocation8 + $0xc68] sm:$0xff]
    %v589 = vld [vmem:[#allocation8 + $0xc70] sm:$0xff]
    %v590 = vld [vmem:[#allocation8 + $0xc78] sm:$0xff]
    %v591 = vld [vmem:[#allocation8 + $0xc80] sm:$0xff]
    %v592 = vld [vmem:[#allocation8 + $0xc88] sm:$0xff]
    %v593 = vld [vmem:[#allocation8 + $0xc90] sm:$0xff]
    %v594 = vld [vmem:[#allocation8 + $0xc98] sm:$0xff]
    %v595 = vld [vmem:[#allocation8 + $0xca0] sm:$0xff]
    %v596 = vld [vmem:[#allocation8 + $0xca8] sm:$0xff]
    %v597 = vld [vmem:[#allocation8 + $0xcb0] sm:$0xff]
    %v598 = vld [vmem:[#allocation8 + $0xcb8] sm:$0xff]
    %v599 = vld [vmem:[#allocation8 + $0xcc0] sm:$0xff]
    %v600 = vld [vmem:[#allocation8 + $0xcc8] sm:$0xff]
    %v601 = vld [vmem:[#allocation8 + $0xcd0] sm:$0xff]
    %v602 = vld [vmem:[#allocation8 + $0xcd8] sm:$0xff]
    %v603 = vld [vmem:[#allocation8 + $0xce0] sm:$0xff]
    %v604 = vld [vmem:[#allocation8 + $0xce8] sm:$0xff]
    %v605 = vld [vmem:[#allocation8 + $0xcf0] sm:$0xff]
    %v606 = vld [vmem:[#allocation8 + $0xcf8] sm:$0xff]
    %v607 = vld [vmem:[#allocation8 + $0xd00] sm:$0xff]
    %v608 = vld [vmem:[#allocation8 + $0xd08] sm:$0xff]
    %v609 = vld [vmem:[#allocation8 + $0xd10] sm:$0xff]
    %v610 = vld [vmem:[#allocation8 + $0xd18] sm:$0xff]
    %v611 = vld [vmem:[#allocation8 + $0xd20] sm:$0xff]
    %v612 = vld [vmem:[#allocation8 + $0xd28] sm:$0xff]
    %v613 = vld [vmem:[#allocation8 + $0xd30] sm:$0xff]
    %v614 = vld [vmem:[#allocation8 + $0xd38] sm:$0xff]
    %v615 = vld [vmem:[#allocation8 + $0xd40] sm:$0xff]
    %v616 = vld [vmem:[#allocation8 + $0xd48] sm:$0xff]
    %v617 = vld [vmem:[#allocation8 + $0xd50] sm:$0xff]
    %v618 = vld [vmem:[#allocation8 + $0xd58] sm:$0xff]
    %v619 = vld [vmem:[#allocation8 + $0xd60] sm:$0xff]
    %v620 = vld [vmem:[#allocation8 + $0xd68] sm:$0xff]
    %v621 = vld [vmem:[#allocation8 + $0xd70] sm:$0xff]
    %v622 = vld [vmem:[#allocation8 + $0xd78] sm:$0xff]
    %v623 = vld [vmem:[#allocation8 + $0xd80] sm:$0xff]
    %v624 = vld [vmem:[#allocation8 + $0xd88] sm:$0xff]
    %v625 = vld [vmem:[#allocation8 + $0xd90] sm:$0xff]
    %v626 = vld [vmem:[#allocation8 + $0xd98] sm:$0xff]
    %v627 = vld [vmem:[#allocation8 + $0xda0] sm:$0xff]
    %v628 = vld [vmem:[#allocation8 + $0xda8] sm:$0xff]
    %v629 = vld [vmem:[#allocation8 + $0xdb0] sm:$0xff]
    %v630 = vld [vmem:[#allocation8 + $0xdb8] sm:$0xff]
    %v631 = vld [vmem:[#allocation8 + $0xdc0] sm:$0xff]
    %v632 = vld [vmem:[#allocation8 + $0xdc8] sm:$0xff]
    %v633 = vld [vmem:[#allocation8 + $0xdd0] sm:$0xff]
    %v634 = vld [vmem:[#allocation8 + $0xdd8] sm:$0xff]
    %v635 = vld [vmem:[#allocation8 + $0xde0] sm:$0xff]
    %v636 = vld [vmem:[#allocation8 + $0xde8] sm:$0xff]
    %v637 = vld [vmem:[#allocation8 + $0xdf0] sm:$0xff]
    %v638 = vld [vmem:[#allocation8 + $0xdf8] sm:$0xff]
    %v639 = vld [vmem:[#allocation8 + $0xe00] sm:$0xff]
    %v640 = vld [vmem:[#allocation8 + $0xe08] sm:$0xff]
    %v641 = vld [vmem:[#allocation8 + $0xe10] sm:$0xff]
    %v642 = vld [vmem:[#allocation8 + $0xe18] sm:$0xff]
    %v643 = vld [vmem:[#allocation8 + $0xe20] sm:$0xff]
    %v644 = vld [vmem:[#allocation8 + $0xe28] sm:$0xff]
    %v645 = vld [vmem:[#allocation8 + $0xe30] sm:$0xff]
    %v646 = vld [vmem:[#allocation8 + $0xe38] sm:$0xff]
    %v647 = vld [vmem:[#allocation8 + $0xe40] sm:$0xff]
    %v648 = vld [vmem:[#allocation8 + $0xe48] sm:$0xff]
    %v649 = vld [vmem:[#allocation8 + $0xe50] sm:$0xff]
    %v650 = vld [vmem:[#allocation8 + $0xe58] sm:$0xff]
    %v651 = vld [vmem:[#allocation8 + $0xe60] sm:$0xff]
    %v652 = vld [vmem:[#allocation8 + $0xe68] sm:$0xff]
    %v653 = vld [vmem:[#allocation8 + $0xe70] sm:$0xff]
    %v654 = vld [vmem:[#allocation8 + $0xe78] sm:$0xff]
    %v655 = vld [vmem:[#allocation8 + $0xe80] sm:$0xff]
    %v656 = vld [vmem:[#allocation8 + $0xe88] sm:$0xff]
    %v657 = vld [vmem:[#allocation8 + $0xe90] sm:$0xff]
    %v658 = vld [vmem:[#allocation8 + $0xe98] sm:$0xff]
    %v659 = vld [vmem:[#allocation8 + $0xea0] sm:$0xff]
    %v660 = vld [vmem:[#allocation8 + $0xea8] sm:$0xff]
    %v661 = vld [vmem:[#allocation8 + $0xeb0] sm:$0xff]
    %v662 = vld [vmem:[#allocation8 + $0xeb8] sm:$0xff]
    %v663 = vld [vmem:[#allocation8 + $0xec0] sm:$0xff]
    %v664 = vld [vmem:[#allocation8 + $0xec8] sm:$0xff]
    %v665 = vld [vmem:[#allocation8 + $0xed0] sm:$0xff]
    %v666 = vld [vmem:[#allocation8 + $0xed8] sm:$0xff]
    %v667 = vld [vmem:[#allocation8 + $0xee0] sm:$0xff]
    %v668 = vld [vmem:[#allocation8 + $0xee8] sm:$0xff]
    %v669 = vld [vmem:[#allocation8 + $0xef0] sm:$0xff]
    %v670 = vld [vmem:[#allocation8 + $0xef8] sm:$0xff]
    %v671 = vld [vmem:[#allocation8 + $0xf00] sm:$0xff]
    %v672 = vld [vmem:[#allocation8 + $0xf08] sm:$0xff]
    %v673 = vld [vmem:[#allocation8 + $0xf10] sm:$0xff]
    %v674 = vld [vmem:[#allocation8 + $0xf18] sm:$0xff]
    %v675 = vld [vmem:[#allocation8 + $0xf20] sm:$0xff]
    %v676 = vld [vmem:[#allocation8 + $0xf28] sm:$0xff]
    %v677 = vld [vmem:[#allocation8 + $0xf30] sm:$0xff]
    %v678 = vld [vmem:[#allocation8 + $0xf38] sm:$0xff]
    %v679 = vld [vmem:[#allocation8 + $0xf40] sm:$0xff]
    %v680 = vld [vmem:[#allocation8 + $0xf48] sm:$0xff]
    %v681 = vld [vmem:[#allocation8 + $0xf50] sm:$0xff]
    %v682 = vld [vmem:[#allocation8 + $0xf58] sm:$0xff]
    %v683 = vld [vmem:[#allocation8 + $0xf60] sm:$0xff]
    %v684 = vld [vmem:[#allocation8 + $0xf68] sm:$0xff]
    %v685 = vld [vmem:[#allocation8 + $0xf70] sm:$0xff]
    %v686 = vld [vmem:[#allocation8 + $0xf78] sm:$0xff]
    %v687 = vld [vmem:[#allocation8 + $0xf80] sm:$0xff]
    %v688 = vld [vmem:[#allocation8 + $0xf88] sm:$0xff]
    %v689 = vld [vmem:[#allocation8 + $0xf90] sm:$0xff]
    %v690 = vld [vmem:[#allocation8 + $0xf98] sm:$0xff]
    %v691 = vld [vmem:[#allocation8 + $0xfa0] sm:$0xff]
    %v692 = vld [vmem:[#allocation8 + $0xfa8] sm:$0xff]
    %v693 = vld [vmem:[#allocation8 + $0xfb0] sm:$0xff]
    %v694 = vld [vmem:[#allocation8 + $0xfb8] sm:$0xff]
    %v695 = vld [vmem:[#allocation8 + $0xfc0] sm:$0xff]
    %v696 = vld [vmem:[#allocation8 + $0xfc8] sm:$0xff]
    %v697 = vld [vmem:[#allocation8 + $0xfd0] sm:$0xff]
    %v698 = vld [vmem:[#allocation8 + $0xfd8] sm:$0xff]
    %v699 = vld [vmem:[#allocation8 + $0xfe0] sm:$0xff]
    %v700 = vld [vmem:[#allocation8 + $0xfe8] sm:$0xff]
    %v701 = vld [vmem:[#allocation8 + $0xff0] sm:$0xff]
    %v702 = vld [vmem:[#allocation8 + $0xff8] sm:$0xff]
    %v703 = vld [vmem:[#allocation8 + $0x1000] sm:$0xff]
    %v704 = vld [vmem:[#allocation8 + $0x1008] sm:$0xff]
    %v705 = vld [vmem:[#allocation8 + $0x1010] sm:$0xff]
    %v706 = vld [vmem:[#allocation8 + $0x1018] sm:$0xff]
    %v707 = vld [vmem:[#allocation8 + $0x1020] sm:$0xff]
    %v708 = vld [vmem:[#allocation8 + $0x1028] sm:$0xff]
    %v709 = vld [vmem:[#allocation8 + $0x1030] sm:$0xff]
    %v710 = vld [vmem:[#allocation8 + $0x1038] sm:$0xff]
    %v711 = vld [vmem:[#allocation8 + $0x1040] sm:$0xff]
    %v712 = vld [vmem:[#allocation8 + $0x1048] sm:$0xff]
    %v713 = vld [vmem:[#allocation8 + $0x1050] sm:$0xff]
    %v714 = vld [vmem:[#allocation8 + $0x1058] sm:$0xff]
    %v715 = vld [vmem:[#allocation8 + $0x1060] sm:$0xff]
    %v716 = vld [vmem:[#allocation8 + $0x1068] sm:$0xff]
    %v717 = vld [vmem:[#allocation8 + $0x1070] sm:$0xff]
    %v718 = vld [vmem:[#allocation8 + $0x1078] sm:$0xff]
    %v719 = vld [vmem:[#allocation8 + $0x1080] sm:$0xff]
    %v720 = vld [vmem:[#allocation8 + $0x1088] sm:$0xff]
    %v721 = vld [vmem:[#allocation8 + $0x1090] sm:$0xff]
    %v722 = vld [vmem:[#allocation8 + $0x1098] sm:$0xff]
    %v723 = vld [vmem:[#allocation8 + $0x10a0] sm:$0xff]
    %v724 = vld [vmem:[#allocation8 + $0x10a8] sm:$0xff]
    %v725 = vld [vmem:[#allocation8 + $0x10b0] sm:$0xff]
    %v726 = vld [vmem:[#allocation8 + $0x10b8] sm:$0xff]
    %v727 = vld [vmem:[#allocation8 + $0x10c0] sm:$0xff]
    %v728 = vld [vmem:[#allocation8 + $0x10c8] sm:$0xff]
    %v729 = vld [vmem:[#allocation8 + $0x10d0] sm:$0xff]
    %v730 = vld [vmem:[#allocation8 + $0x10d8] sm:$0xff]
    %v731 = vld [vmem:[#allocation8 + $0x10e0] sm:$0xff]
    %v732 = vld [vmem:[#allocation8 + $0x10e8] sm:$0xff]
    %v733 = vld [vmem:[#allocation8 + $0x10f0] sm:$0xff]
    %v734 = vld [vmem:[#allocation8 + $0x10f8] sm:$0xff]
    %v735 = vld [vmem:[#allocation8 + $0x1100] sm:$0xff]
    %v736 = vld [vmem:[#allocation8 + $0x1108] sm:$0xff]
    %v737 = vld [vmem:[#allocation8 + $0x1110] sm:$0xff]
    %v738 = vld [vmem:[#allocation8 + $0x1118] sm:$0xff]
    %v739 = vld [vmem:[#allocation8 + $0x1120] sm:$0xff]
    %v740 = vld [vmem:[#allocation8 + $0x1128] sm:$0xff]
    %v741 = vld [vmem:[#allocation8 + $0x1130] sm:$0xff]
    %v742 = vld [vmem:[#allocation8 + $0x1138] sm:$0xff]
    %v743 = vld [vmem:[#allocation8 + $0x1140] sm:$0xff]
    %v744 = vld [vmem:[#allocation8 + $0x1148] sm:$0xff]
    %v745 = vld [vmem:[#allocation8 + $0x1150] sm:$0xff]
    %v746 = vld [vmem:[#allocation8 + $0x1158] sm:$0xff]
    %v747 = vld [vmem:[#allocation8 + $0x1160] sm:$0xff]
    %v748 = vld [vmem:[#allocation8 + $0x1168] sm:$0xff]
    %v749 = vld [vmem:[#allocation8 + $0x1170] sm:$0xff]
    %v750 = vld [vmem:[#allocation8 + $0x1178] sm:$0xff]
    %v751 = vld [vmem:[#allocation8 + $0x1180] sm:$0xff]
    %v752 = vld [vmem:[#allocation8 + $0x1188] sm:$0xff]
    %v753 = vld [vmem:[#allocation8 + $0x1190] sm:$0xff]
    %v754 = vld [vmem:[#allocation8 + $0x1198] sm:$0xff]
    %v755 = vld [vmem:[#allocation8 + $0x11a0] sm:$0xff]
    %v756 = vld [vmem:[#allocation8 + $0x11a8] sm:$0xff]
    %v757 = vld [vmem:[#allocation8 + $0x11b0] sm:$0xff]
    %v758 = vld [vmem:[#allocation8 + $0x11b8] sm:$0xff]
    %v759 = vld [vmem:[#allocation8 + $0x11c0] sm:$0xff]
    %v760 = vld [vmem:[#allocation8 + $0x11c8] sm:$0xff]
    %v761 = vld [vmem:[#allocation8 + $0x11d0] sm:$0xff]
    %v762 = vld [vmem:[#allocation8 + $0x11d8] sm:$0xff]
    %v763 = vld [vmem:[#allocation8 + $0x11e0] sm:$0xff]
    %v764 = vld [vmem:[#allocation8 + $0x11e8] sm:$0xff]
    %v765 = vld [vmem:[#allocation8 + $0x11f0] sm:$0xff]
    %v766 = vld [vmem:[#allocation8 + $0x11f8] sm:$0xff]
    %v1343 = vunpack.c.l.b16 %v191
    %v1344 = vunpack.c.h.b16 %v191
    %v1345 = vunpack.c.l.b16 %v192
    %v1346 = vunpack.c.h.b16 %v192
    %v1347 = vunpack.c.l.b16 %v193
    %v1348 = vunpack.c.h.b16 %v193
    %v1349 = vunpack.c.l.b16 %v194
    %v1350 = vunpack.c.h.b16 %v194
    %v1351 = vunpack.c.l.b16 %v195
    %v1352 = vunpack.c.h.b16 %v195
    %v1353 = vunpack.c.l.b16 %v196
    %v1354 = vunpack.c.h.b16 %v196
    %v1355 = vunpack.c.l.b16 %v197
    %v1356 = vunpack.c.h.b16 %v197
    %v1357 = vunpack.c.l.b16 %v198
    %v1358 = vunpack.c.h.b16 %v198
    %v1359 = vunpack.c.l.b16 %v199
    %v1360 = vunpack.c.h.b16 %v199
    %v1361 = vunpack.c.l.b16 %v200
    %v1362 = vunpack.c.h.b16 %v200
    %v1363 = vunpack.c.l.b16 %v201
    %v1364 = vunpack.c.h.b16 %v201
    %v1365 = vunpack.c.l.b16 %v202
    %v1366 = vunpack.c.h.b16 %v202
    %v1367 = vunpack.c.l.b16 %v203
    %v1368 = vunpack.c.h.b16 %v203
    %v1369 = vunpack.c.l.b16 %v204
    %v1370 = vunpack.c.h.b16 %v204
    %v1371 = vunpack.c.l.b16 %v205
    %v1372 = vunpack.c.h.b16 %v205
    %v1373 = vunpack.c.l.b16 %v206
    %v1374 = vunpack.c.h.b16 %v206
    %v1375 = vunpack.c.l.b16 %v207
    %v1376 = vunpack.c.h.b16 %v207
    %v1377 = vunpack.c.l.b16 %v208
    %v1378 = vunpack.c.h.b16 %v208
    %v1379 = vunpack.c.l.b16 %v209
    %v1380 = vunpack.c.h.b16 %v209
    %v1381 = vunpack.c.l.b16 %v210
    %v1382 = vunpack.c.h.b16 %v210
    %v1383 = vunpack.c.l.b16 %v211
    %v1384 = vunpack.c.h.b16 %v211
    %v1385 = vunpack.c.l.b16 %v212
    %v1386 = vunpack.c.h.b16 %v212
    %v1387 = vunpack.c.l.b16 %v213
    %v1388 = vunpack.c.h.b16 %v213
    %v1389 = vunpack.c.l.b16 %v214
    %v1390 = vunpack.c.h.b16 %v214
    %v1391 = vunpack.c.l.b16 %v215
    %v1392 = vunpack.c.h.b16 %v215
    %v1393 = vunpack.c.l.b16 %v216
    %v1394 = vunpack.c.h.b16 %v216
    %v1395 = vunpack.c.l.b16 %v217
    %v1396 = vunpack.c.h.b16 %v217
    %v1397 = vunpack.c.l.b16 %v218
    %v1398 = vunpack.c.h.b16 %v218
    %v1399 = vunpack.c.l.b16 %v219
    %v1400 = vunpack.c.h.b16 %v219
    %v1401 = vunpack.c.l.b16 %v220
    %v1402 = vunpack.c.h.b16 %v220
    %v1403 = vunpack.c.l.b16 %v221
    %v1404 = vunpack.c.h.b16 %v221
    %v1405 = vunpack.c.l.b16 %v222
    %v1406 = vunpack.c.h.b16 %v222
    %v1407 = vunpack.c.l.b16 %v223
    %v1408 = vunpack.c.h.b16 %v223
    %v1409 = vunpack.c.l.b16 %v224
    %v1410 = vunpack.c.h.b16 %v224
    %v1411 = vunpack.c.l.b16 %v225
    %v1412 = vunpack.c.h.b16 %v225
    %v1413 = vunpack.c.l.b16 %v226
    %v1414 = vunpack.c.h.b16 %v226
    %v1415 = vunpack.c.l.b16 %v227
    %v1416 = vunpack.c.h.b16 %v227
    %v1417 = vunpack.c.l.b16 %v228
    %v1418 = vunpack.c.h.b16 %v228
    %v1419 = vunpack.c.l.b16 %v229
    %v1420 = vunpack.c.h.b16 %v229
    %v1421 = vunpack.c.l.b16 %v230
    %v1422 = vunpack.c.h.b16 %v230
    %v1423 = vunpack.c.l.b16 %v231
    %v1424 = vunpack.c.h.b16 %v231
    %v1425 = vunpack.c.l.b16 %v232
    %v1426 = vunpack.c.h.b16 %v232
    %v1427 = vunpack.c.l.b16 %v233
    %v1428 = vunpack.c.h.b16 %v233
    %v1429 = vunpack.c.l.b16 %v234
    %v1430 = vunpack.c.h.b16 %v234
    %v1431 = vunpack.c.l.b16 %v235
    %v1432 = vunpack.c.h.b16 %v235
    %v1433 = vunpack.c.l.b16 %v236
    %v1434 = vunpack.c.h.b16 %v236
    %v1435 = vunpack.c.l.b16 %v237
    %v1436 = vunpack.c.h.b16 %v237
    %v1437 = vunpack.c.l.b16 %v238
    %v1438 = vunpack.c.h.b16 %v238
    %v1439 = vunpack.c.l.b16 %v239
    %v1440 = vunpack.c.h.b16 %v239
    %v1441 = vunpack.c.l.b16 %v240
    %v1442 = vunpack.c.h.b16 %v240
    %v1443 = vunpack.c.l.b16 %v241
    %v1444 = vunpack.c.h.b16 %v241
    %v1445 = vunpack.c.l.b16 %v242
    %v1446 = vunpack.c.h.b16 %v242
    %v1447 = vunpack.c.l.b16 %v243
    %v1448 = vunpack.c.h.b16 %v243
    %v1449 = vunpack.c.l.b16 %v244
    %v1450 = vunpack.c.h.b16 %v244
    %v1451 = vunpack.c.l.b16 %v245
    %v1452 = vunpack.c.h.b16 %v245
    %v1453 = vunpack.c.l.b16 %v246
    %v1454 = vunpack.c.h.b16 %v246
    %v1455 = vunpack.c.l.b16 %v247
    %v1456 = vunpack.c.h.b16 %v247
    %v1457 = vunpack.c.l.b16 %v248
    %v1458 = vunpack.c.h.b16 %v248
    %v1459 = vunpack.c.l.b16 %v249
    %v1460 = vunpack.c.h.b16 %v249
    %v1461 = vunpack.c.l.b16 %v250
    %v1462 = vunpack.c.h.b16 %v250
    %v1463 = vunpack.c.l.b16 %v251
    %v1464 = vunpack.c.h.b16 %v251
    %v1465 = vunpack.c.l.b16 %v252
    %v1466 = vunpack.c.h.b16 %v252
    %v1467 = vunpack.c.l.b16 %v253
    %v1468 = vunpack.c.h.b16 %v253
    %v1469 = vunpack.c.l.b16 %v254
    %v1470 = vunpack.c.h.b16 %v254
    %v1471 = vunpack.c.l.b16 %v255
    %v1472 = vunpack.c.h.b16 %v255
    %v1473 = vunpack.c.l.b16 %v256
    %v1474 = vunpack.c.h.b16 %v256
    %v1475 = vunpack.c.l.b16 %v257
    %v1476 = vunpack.c.h.b16 %v257
    %v1477 = vunpack.c.l.b16 %v258
    %v1478 = vunpack.c.h.b16 %v258
    %v1479 = vunpack.c.l.b16 %v259
    %v1480 = vunpack.c.h.b16 %v259
    %v1481 = vunpack.c.l.b16 %v260
    %v1482 = vunpack.c.h.b16 %v260
    %v1483 = vunpack.c.l.b16 %v261
    %v1484 = vunpack.c.h.b16 %v261
    %v1485 = vunpack.c.l.b16 %v262
    %v1486 = vunpack.c.h.b16 %v262
    %v1487 = vunpack.c.l.b16 %v263
    %v1488 = vunpack.c.h.b16 %v263
    %v1489 = vunpack.c.l.b16 %v264
    %v1490 = vunpack.c.h.b16 %v264
    %v1491 = vunpack.c.l.b16 %v265
    %v1492 = vunpack.c.h.b16 %v265
    %v1493 = vunpack.c.l.b16 %v266
    %v1494 = vunpack.c.h.b16 %v266
    %v1495 = vunpack.c.l.b16 %v267
    %v1496 = vunpack.c.h.b16 %v267
    %v1497 = vunpack.c.l.b16 %v268
    %v1498 = vunpack.c.h.b16 %v268
    %v1499 = vunpack.c.l.b16 %v269
    %v1500 = vunpack.c.h.b16 %v269
    %v1501 = vunpack.c.l.b16 %v270
    %v1502 = vunpack.c.h.b16 %v270
    %v1503 = vunpack.c.l.b16 %v271
    %v1504 = vunpack.c.h.b16 %v271
    %v1505 = vunpack.c.l.b16 %v272
    %v1506 = vunpack.c.h.b16 %v272
    %v1507 = vunpack.c.l.b16 %v273
    %v1508 = vunpack.c.h.b16 %v273
    %v1509 = vunpack.c.l.b16 %v274
    %v1510 = vunpack.c.h.b16 %v274
    %v1511 = vunpack.c.l.b16 %v275
    %v1512 = vunpack.c.h.b16 %v275
    %v1513 = vunpack.c.l.b16 %v276
    %v1514 = vunpack.c.h.b16 %v276
    %v1515 = vunpack.c.l.b16 %v277
    %v1516 = vunpack.c.h.b16 %v277
    %v1517 = vunpack.c.l.b16 %v278
    %v1518 = vunpack.c.h.b16 %v278
    %v1519 = vunpack.c.l.b16 %v279
    %v1520 = vunpack.c.h.b16 %v279
    %v1521 = vunpack.c.l.b16 %v280
    %v1522 = vunpack.c.h.b16 %v280
    %v1523 = vunpack.c.l.b16 %v281
    %v1524 = vunpack.c.h.b16 %v281
    %v1525 = vunpack.c.l.b16 %v282
    %v1526 = vunpack.c.h.b16 %v282
    %v1527 = vunpack.c.l.b16 %v283
    %v1528 = vunpack.c.h.b16 %v283
    %v1529 = vunpack.c.l.b16 %v284
    %v1530 = vunpack.c.h.b16 %v284
    %v1531 = vunpack.c.l.b16 %v285
    %v1532 = vunpack.c.h.b16 %v285
    %v1533 = vunpack.c.l.b16 %v286
    %v1534 = vunpack.c.h.b16 %v286
    %v1535 = vunpack.c.l.b16 %v287
    %v1536 = vunpack.c.h.b16 %v287
    %v1537 = vunpack.c.l.b16 %v288
    %v1538 = vunpack.c.h.b16 %v288
    %v1539 = vunpack.c.l.b16 %v289
    %v1540 = vunpack.c.h.b16 %v289
    %v1541 = vunpack.c.l.b16 %v290
    %v1542 = vunpack.c.h.b16 %v290
    %v1543 = vunpack.c.l.b16 %v291
    %v1544 = vunpack.c.h.b16 %v291
    %v1545 = vunpack.c.l.b16 %v292
    %v1546 = vunpack.c.h.b16 %v292
    %v1547 = vunpack.c.l.b16 %v293
    %v1548 = vunpack.c.h.b16 %v293
    %v1549 = vunpack.c.l.b16 %v294
    %v1550 = vunpack.c.h.b16 %v294
    %v1551 = vunpack.c.l.b16 %v295
    %v1552 = vunpack.c.h.b16 %v295
    %v1553 = vunpack.c.l.b16 %v296
    %v1554 = vunpack.c.h.b16 %v296
    %v1555 = vunpack.c.l.b16 %v297
    %v1556 = vunpack.c.h.b16 %v297
    %v1557 = vunpack.c.l.b16 %v298
    %v1558 = vunpack.c.h.b16 %v298
    %v1559 = vunpack.c.l.b16 %v299
    %v1560 = vunpack.c.h.b16 %v299
    %v1561 = vunpack.c.l.b16 %v300
    %v1562 = vunpack.c.h.b16 %v300
    %v1563 = vunpack.c.l.b16 %v301
    %v1564 = vunpack.c.h.b16 %v301
    %v1565 = vunpack.c.l.b16 %v302
    %v1566 = vunpack.c.h.b16 %v302
    %v1567 = vunpack.c.l.b16 %v303
    %v1568 = vunpack.c.h.b16 %v303
    %v1569 = vunpack.c.l.b16 %v304
    %v1570 = vunpack.c.h.b16 %v304
    %v1571 = vunpack.c.l.b16 %v305
    %v1572 = vunpack.c.h.b16 %v305
    %v1573 = vunpack.c.l.b16 %v306
    %v1574 = vunpack.c.h.b16 %v306
    %v1575 = vunpack.c.l.b16 %v307
    %v1576 = vunpack.c.h.b16 %v307
    %v1577 = vunpack.c.l.b16 %v308
    %v1578 = vunpack.c.h.b16 %v308
    %v1579 = vunpack.c.l.b16 %v309
    %v1580 = vunpack.c.h.b16 %v309
    %v1581 = vunpack.c.l.b16 %v310
    %v1582 = vunpack.c.h.b16 %v310
    %v1583 = vunpack.c.l.b16 %v311
    %v1584 = vunpack.c.h.b16 %v311
    %v1585 = vunpack.c.l.b16 %v312
    %v1586 = vunpack.c.h.b16 %v312
    %v1587 = vunpack.c.l.b16 %v313
    %v1588 = vunpack.c.h.b16 %v313
    %v1589 = vunpack.c.l.b16 %v314
    %v1590 = vunpack.c.h.b16 %v314
    %v1591 = vunpack.c.l.b16 %v315
    %v1592 = vunpack.c.h.b16 %v315
    %v1593 = vunpack.c.l.b16 %v316
    %v1594 = vunpack.c.h.b16 %v316
    %v1595 = vunpack.c.l.b16 %v317
    %v1596 = vunpack.c.h.b16 %v317
    %v1597 = vunpack.c.l.b16 %v318
    %v1598 = vunpack.c.h.b16 %v318
    %v1599 = vunpack.c.l.b16 %v319
    %v1600 = vunpack.c.h.b16 %v319
    %v1601 = vunpack.c.l.b16 %v320
    %v1602 = vunpack.c.h.b16 %v320
    %v1603 = vunpack.c.l.b16 %v321
    %v1604 = vunpack.c.h.b16 %v321
    %v1605 = vunpack.c.l.b16 %v322
    %v1606 = vunpack.c.h.b16 %v322
    %v1607 = vunpack.c.l.b16 %v323
    %v1608 = vunpack.c.h.b16 %v323
    %v1609 = vunpack.c.l.b16 %v324
    %v1610 = vunpack.c.h.b16 %v324
    %v1611 = vunpack.c.l.b16 %v325
    %v1612 = vunpack.c.h.b16 %v325
    %v1613 = vunpack.c.l.b16 %v326
    %v1614 = vunpack.c.h.b16 %v326
    %v1615 = vunpack.c.l.b16 %v327
    %v1616 = vunpack.c.h.b16 %v327
    %v1617 = vunpack.c.l.b16 %v328
    %v1618 = vunpack.c.h.b16 %v328
    %v1619 = vunpack.c.l.b16 %v329
    %v1620 = vunpack.c.h.b16 %v329
    %v1621 = vunpack.c.l.b16 %v330
    %v1622 = vunpack.c.h.b16 %v330
    %v1623 = vunpack.c.l.b16 %v331
    %v1624 = vunpack.c.h.b16 %v331
    %v1625 = vunpack.c.l.b16 %v332
    %v1626 = vunpack.c.h.b16 %v332
    %v1627 = vunpack.c.l.b16 %v333
    %v1628 = vunpack.c.h.b16 %v333
    %v1629 = vunpack.c.l.b16 %v334
    %v1630 = vunpack.c.h.b16 %v334
    %v1631 = vunpack.c.l.b16 %v335
    %v1632 = vunpack.c.h.b16 %v335
    %v1633 = vunpack.c.l.b16 %v336
    %v1634 = vunpack.c.h.b16 %v336
    %v1635 = vunpack.c.l.b16 %v337
    %v1636 = vunpack.c.h.b16 %v337
    %v1637 = vunpack.c.l.b16 %v338
    %v1638 = vunpack.c.h.b16 %v338
    %v1639 = vunpack.c.l.b16 %v339
    %v1640 = vunpack.c.h.b16 %v339
    %v1641 = vunpack.c.l.b16 %v340
    %v1642 = vunpack.c.h.b16 %v340
    %v1643 = vunpack.c.l.b16 %v341
    %v1644 = vunpack.c.h.b16 %v341
    %v1645 = vunpack.c.l.b16 %v342
    %v1646 = vunpack.c.h.b16 %v342
    %v1647 = vunpack.c.l.b16 %v343
    %v1648 = vunpack.c.h.b16 %v343
    %v1649 = vunpack.c.l.b16 %v344
    %v1650 = vunpack.c.h.b16 %v344
    %v1651 = vunpack.c.l.b16 %v345
    %v1652 = vunpack.c.h.b16 %v345
    %v1653 = vunpack.c.l.b16 %v346
    %v1654 = vunpack.c.h.b16 %v346
    %v1655 = vunpack.c.l.b16 %v347
    %v1656 = vunpack.c.h.b16 %v347
    %v1657 = vunpack.c.l.b16 %v348
    %v1658 = vunpack.c.h.b16 %v348
    %v1659 = vunpack.c.l.b16 %v349
    %v1660 = vunpack.c.h.b16 %v349
    %v1661 = vunpack.c.l.b16 %v350
    %v1662 = vunpack.c.h.b16 %v350
    %v1663 = vunpack.c.l.b16 %v351
    %v1664 = vunpack.c.h.b16 %v351
    %v1665 = vunpack.c.l.b16 %v352
    %v1666 = vunpack.c.h.b16 %v352
    %v1667 = vunpack.c.l.b16 %v353
    %v1668 = vunpack.c.h.b16 %v353
    %v1669 = vunpack.c.l.b16 %v354
    %v1670 = vunpack.c.h.b16 %v354
    %v1671 = vunpack.c.l.b16 %v355
    %v1672 = vunpack.c.h.b16 %v355
    %v1673 = vunpack.c.l.b16 %v356
    %v1674 = vunpack.c.h.b16 %v356
    %v1675 = vunpack.c.l.b16 %v357
    %v1676 = vunpack.c.h.b16 %v357
    %v1677 = vunpack.c.l.b16 %v358
    %v1678 = vunpack.c.h.b16 %v358
    %v1679 = vunpack.c.l.b16 %v359
    %v1680 = vunpack.c.h.b16 %v359
    %v1681 = vunpack.c.l.b16 %v360
    %v1682 = vunpack.c.h.b16 %v360
    %v1683 = vunpack.c.l.b16 %v361
    %v1684 = vunpack.c.h.b16 %v361
    %v1685 = vunpack.c.l.b16 %v362
    %v1686 = vunpack.c.h.b16 %v362
    %v1687 = vunpack.c.l.b16 %v363
    %v1688 = vunpack.c.h.b16 %v363
    %v1689 = vunpack.c.l.b16 %v364
    %v1690 = vunpack.c.h.b16 %v364
    %v1691 = vunpack.c.l.b16 %v365
    %v1692 = vunpack.c.h.b16 %v365
    %v1693 = vunpack.c.l.b16 %v366
    %v1694 = vunpack.c.h.b16 %v366
    %v1695 = vunpack.c.l.b16 %v367
    %v1696 = vunpack.c.h.b16 %v367
    %v1697 = vunpack.c.l.b16 %v368
    %v1698 = vunpack.c.h.b16 %v368
    %v1699 = vunpack.c.l.b16 %v369
    %v1700 = vunpack.c.h.b16 %v369
    %v1701 = vunpack.c.l.b16 %v370
    %v1702 = vunpack.c.h.b16 %v370
    %v1703 = vunpack.c.l.b16 %v371
    %v1704 = vunpack.c.h.b16 %v371
    %v1705 = vunpack.c.l.b16 %v372
    %v1706 = vunpack.c.h.b16 %v372
    %v1707 = vunpack.c.l.b16 %v373
    %v1708 = vunpack.c.h.b16 %v373
    %v1709 = vunpack.c.l.b16 %v374
    %v1710 = vunpack.c.h.b16 %v374
    %v1711 = vunpack.c.l.b16 %v375
    %v1712 = vunpack.c.h.b16 %v375
    %v1713 = vunpack.c.l.b16 %v376
    %v1714 = vunpack.c.h.b16 %v376
    %v1715 = vunpack.c.l.b16 %v377
    %v1716 = vunpack.c.h.b16 %v377
    %v1717 = vunpack.c.l.b16 %v378
    %v1718 = vunpack.c.h.b16 %v378
    %v1719 = vunpack.c.l.b16 %v379
    %v1720 = vunpack.c.h.b16 %v379
    %v1721 = vunpack.c.l.b16 %v380
    %v1722 = vunpack.c.h.b16 %v380
    %v1723 = vunpack.c.l.b16 %v381
    %v1724 = vunpack.c.h.b16 %v381
    %v1725 = vunpack.c.l.b16 %v382
    %v1726 = vunpack.c.h.b16 %v382
    %v1727 = vunpack.c.l.b16 %v383
    %v1728 = vunpack.c.h.b16 %v383
    %v1729 = vunpack.c.l.b16 %v384
    %v1730 = vunpack.c.h.b16 %v384
    %v1731 = vunpack.c.l.b16 %v385
    %v1732 = vunpack.c.h.b16 %v385
    %v1733 = vunpack.c.l.b16 %v386
    %v1734 = vunpack.c.h.b16 %v386
    %v1735 = vunpack.c.l.b16 %v387
    %v1736 = vunpack.c.h.b16 %v387
    %v1737 = vunpack.c.l.b16 %v388
    %v1738 = vunpack.c.h.b16 %v388
    %v1739 = vunpack.c.l.b16 %v389
    %v1740 = vunpack.c.h.b16 %v389
    %v1741 = vunpack.c.l.b16 %v390
    %v1742 = vunpack.c.h.b16 %v390
    %v1743 = vunpack.c.l.b16 %v391
    %v1744 = vunpack.c.h.b16 %v391
    %v1745 = vunpack.c.l.b16 %v392
    %v1746 = vunpack.c.h.b16 %v392
    %v1747 = vunpack.c.l.b16 %v393
    %v1748 = vunpack.c.h.b16 %v393
    %v1749 = vunpack.c.l.b16 %v394
    %v1750 = vunpack.c.h.b16 %v394
    %v1751 = vunpack.c.l.b16 %v395
    %v1752 = vunpack.c.h.b16 %v395
    %v1753 = vunpack.c.l.b16 %v396
    %v1754 = vunpack.c.h.b16 %v396
    %v1755 = vunpack.c.l.b16 %v397
    %v1756 = vunpack.c.h.b16 %v397
    %v1757 = vunpack.c.l.b16 %v398
    %v1758 = vunpack.c.h.b16 %v398
    %v1759 = vunpack.c.l.b16 %v399
    %v1760 = vunpack.c.h.b16 %v399
    %v1761 = vunpack.c.l.b16 %v400
    %v1762 = vunpack.c.h.b16 %v400
    %v1763 = vunpack.c.l.b16 %v401
    %v1764 = vunpack.c.h.b16 %v401
    %v1765 = vunpack.c.l.b16 %v402
    %v1766 = vunpack.c.h.b16 %v402
    %v1767 = vunpack.c.l.b16 %v403
    %v1768 = vunpack.c.h.b16 %v403
    %v1769 = vunpack.c.l.b16 %v404
    %v1770 = vunpack.c.h.b16 %v404
    %v1771 = vunpack.c.l.b16 %v405
    %v1772 = vunpack.c.h.b16 %v405
    %v1773 = vunpack.c.l.b16 %v406
    %v1774 = vunpack.c.h.b16 %v406
    %v1775 = vunpack.c.l.b16 %v407
    %v1776 = vunpack.c.h.b16 %v407
    %v1777 = vunpack.c.l.b16 %v408
    %v1778 = vunpack.c.h.b16 %v408
    %v1779 = vunpack.c.l.b16 %v409
    %v1780 = vunpack.c.h.b16 %v409
    %v1781 = vunpack.c.l.b16 %v410
    %v1782 = vunpack.c.h.b16 %v410
    %v1783 = vunpack.c.l.b16 %v411
    %v1784 = vunpack.c.h.b16 %v411
    %v1785 = vunpack.c.l.b16 %v412
    %v1786 = vunpack.c.h.b16 %v412
    %v1787 = vunpack.c.l.b16 %v413
    %v1788 = vunpack.c.h.b16 %v413
    %v1789 = vunpack.c.l.b16 %v414
    %v1790 = vunpack.c.h.b16 %v414
    %v1791 = vunpack.c.l.b16 %v415
    %v1792 = vunpack.c.h.b16 %v415
    %v1793 = vunpack.c.l.b16 %v416
    %v1794 = vunpack.c.h.b16 %v416
    %v1795 = vunpack.c.l.b16 %v417
    %v1796 = vunpack.c.h.b16 %v417
    %v1797 = vunpack.c.l.b16 %v418
    %v1798 = vunpack.c.h.b16 %v418
    %v1799 = vunpack.c.l.b16 %v419
    %v1800 = vunpack.c.h.b16 %v419
    %v1801 = vunpack.c.l.b16 %v420
    %v1802 = vunpack.c.h.b16 %v420
    %v1803 = vunpack.c.l.b16 %v421
    %v1804 = vunpack.c.h.b16 %v421
    %v1805 = vunpack.c.l.b16 %v422
    %v1806 = vunpack.c.h.b16 %v422
    %v1807 = vunpack.c.l.b16 %v423
    %v1808 = vunpack.c.h.b16 %v423
    %v1809 = vunpack.c.l.b16 %v424
    %v1810 = vunpack.c.h.b16 %v424
    %v1811 = vunpack.c.l.b16 %v425
    %v1812 = vunpack.c.h.b16 %v425
    %v1813 = vunpack.c.l.b16 %v426
    %v1814 = vunpack.c.h.b16 %v426
    %v1815 = vunpack.c.l.b16 %v427
    %v1816 = vunpack.c.h.b16 %v427
    %v1817 = vunpack.c.l.b16 %v428
    %v1818 = vunpack.c.h.b16 %v428
    %v1819 = vunpack.c.l.b16 %v429
    %v1820 = vunpack.c.h.b16 %v429
    %v1821 = vunpack.c.l.b16 %v430
    %v1822 = vunpack.c.h.b16 %v430
    %v1823 = vunpack.c.l.b16 %v431
    %v1824 = vunpack.c.h.b16 %v431
    %v1825 = vunpack.c.l.b16 %v432
    %v1826 = vunpack.c.h.b16 %v432
    %v1827 = vunpack.c.l.b16 %v433
    %v1828 = vunpack.c.h.b16 %v433
    %v1829 = vunpack.c.l.b16 %v434
    %v1830 = vunpack.c.h.b16 %v434
    %v1831 = vunpack.c.l.b16 %v435
    %v1832 = vunpack.c.h.b16 %v435
    %v1833 = vunpack.c.l.b16 %v436
    %v1834 = vunpack.c.h.b16 %v436
    %v1835 = vunpack.c.l.b16 %v437
    %v1836 = vunpack.c.h.b16 %v437
    %v1837 = vunpack.c.l.b16 %v438
    %v1838 = vunpack.c.h.b16 %v438
    %v1839 = vunpack.c.l.b16 %v439
    %v1840 = vunpack.c.h.b16 %v439
    %v1841 = vunpack.c.l.b16 %v440
    %v1842 = vunpack.c.h.b16 %v440
    %v1843 = vunpack.c.l.b16 %v441
    %v1844 = vunpack.c.h.b16 %v441
    %v1845 = vunpack.c.l.b16 %v442
    %v1846 = vunpack.c.h.b16 %v442
    %v1847 = vunpack.c.l.b16 %v443
    %v1848 = vunpack.c.h.b16 %v443
    %v1849 = vunpack.c.l.b16 %v444
    %v1850 = vunpack.c.h.b16 %v444
    %v1851 = vunpack.c.l.b16 %v445
    %v1852 = vunpack.c.h.b16 %v445
    %v1853 = vunpack.c.l.b16 %v446
    %v1854 = vunpack.c.h.b16 %v446
    %v1855 = vunpack.c.l.b16 %v447
    %v1856 = vunpack.c.h.b16 %v447
    %v1857 = vunpack.c.l.b16 %v448
    %v1858 = vunpack.c.h.b16 %v448
    %v1859 = vunpack.c.l.b16 %v449
    %v1860 = vunpack.c.h.b16 %v449
    %v1861 = vunpack.c.l.b16 %v450
    %v1862 = vunpack.c.h.b16 %v450
    %v1863 = vunpack.c.l.b16 %v451
    %v1864 = vunpack.c.h.b16 %v451
    %v1865 = vunpack.c.l.b16 %v452
    %v1866 = vunpack.c.h.b16 %v452
    %v1867 = vunpack.c.l.b16 %v453
    %v1868 = vunpack.c.h.b16 %v453
    %v1869 = vunpack.c.l.b16 %v454
    %v1870 = vunpack.c.h.b16 %v454
    %v1871 = vunpack.c.l.b16 %v455
    %v1872 = vunpack.c.h.b16 %v455
    %v1873 = vunpack.c.l.b16 %v456
    %v1874 = vunpack.c.h.b16 %v456
    %v1875 = vunpack.c.l.b16 %v457
    %v1876 = vunpack.c.h.b16 %v457
    %v1877 = vunpack.c.l.b16 %v458
    %v1878 = vunpack.c.h.b16 %v458
    %v1879 = vunpack.c.l.b16 %v459
    %v1880 = vunpack.c.h.b16 %v459
    %v1881 = vunpack.c.l.b16 %v460
    %v1882 = vunpack.c.h.b16 %v460
    %v1883 = vunpack.c.l.b16 %v461
    %v1884 = vunpack.c.h.b16 %v461
    %v1885 = vunpack.c.l.b16 %v462
    %v1886 = vunpack.c.h.b16 %v462
    %v1887 = vunpack.c.l.b16 %v463
    %v1888 = vunpack.c.h.b16 %v463
    %v1889 = vunpack.c.l.b16 %v464
    %v1890 = vunpack.c.h.b16 %v464
    %v1891 = vunpack.c.l.b16 %v465
    %v1892 = vunpack.c.h.b16 %v465
    %v1893 = vunpack.c.l.b16 %v466
    %v1894 = vunpack.c.h.b16 %v466
    %v1895 = vunpack.c.l.b16 %v467
    %v1896 = vunpack.c.h.b16 %v467
    %v1897 = vunpack.c.l.b16 %v468
    %v1898 = vunpack.c.h.b16 %v468
    %v1899 = vunpack.c.l.b16 %v469
    %v1900 = vunpack.c.h.b16 %v469
    %v1901 = vunpack.c.l.b16 %v470
    %v1902 = vunpack.c.h.b16 %v470
    %v1903 = vunpack.c.l.b16 %v471
    %v1904 = vunpack.c.h.b16 %v471
    %v1905 = vunpack.c.l.b16 %v472
    %v1906 = vunpack.c.h.b16 %v472
    %v1907 = vunpack.c.l.b16 %v473
    %v1908 = vunpack.c.h.b16 %v473
    %v1909 = vunpack.c.l.b16 %v474
    %v1910 = vunpack.c.h.b16 %v474
    %v1911 = vunpack.c.l.b16 %v475
    %v1912 = vunpack.c.h.b16 %v475
    %v1913 = vunpack.c.l.b16 %v476
    %v1914 = vunpack.c.h.b16 %v476
    %v1915 = vunpack.c.l.b16 %v477
    %v1916 = vunpack.c.h.b16 %v477
    %v1917 = vunpack.c.l.b16 %v478
    %v1918 = vunpack.c.h.b16 %v478
    %v1919 = vunpack.c.l.b16 %v479
    %v1920 = vunpack.c.h.b16 %v479
    %v1921 = vunpack.c.l.b16 %v480
    %v1922 = vunpack.c.h.b16 %v480
    %v1923 = vunpack.c.l.b16 %v481
    %v1924 = vunpack.c.h.b16 %v481
    %v1925 = vunpack.c.l.b16 %v482
    %v1926 = vunpack.c.h.b16 %v482
    %v1927 = vunpack.c.l.b16 %v483
    %v1928 = vunpack.c.h.b16 %v483
    %v1929 = vunpack.c.l.b16 %v484
    %v1930 = vunpack.c.h.b16 %v484
    %v1931 = vunpack.c.l.b16 %v485
    %v1932 = vunpack.c.h.b16 %v485
    %v1933 = vunpack.c.l.b16 %v486
    %v1934 = vunpack.c.h.b16 %v486
    %v1935 = vunpack.c.l.b16 %v487
    %v1936 = vunpack.c.h.b16 %v487
    %v1937 = vunpack.c.l.b16 %v488
    %v1938 = vunpack.c.h.b16 %v488
    %v1939 = vunpack.c.l.b16 %v489
    %v1940 = vunpack.c.h.b16 %v489
    %v1941 = vunpack.c.l.b16 %v490
    %v1942 = vunpack.c.h.b16 %v490
    %v1943 = vunpack.c.l.b16 %v491
    %v1944 = vunpack.c.h.b16 %v491
    %v1945 = vunpack.c.l.b16 %v492
    %v1946 = vunpack.c.h.b16 %v492
    %v1947 = vunpack.c.l.b16 %v493
    %v1948 = vunpack.c.h.b16 %v493
    %v1949 = vunpack.c.l.b16 %v494
    %v1950 = vunpack.c.h.b16 %v494
    %v1951 = vunpack.c.l.b16 %v495
    %v1952 = vunpack.c.h.b16 %v495
    %v1953 = vunpack.c.l.b16 %v496
    %v1954 = vunpack.c.h.b16 %v496
    %v1955 = vunpack.c.l.b16 %v497
    %v1956 = vunpack.c.h.b16 %v497
    %v1957 = vunpack.c.l.b16 %v498
    %v1958 = vunpack.c.h.b16 %v498
    %v1959 = vunpack.c.l.b16 %v499
    %v1960 = vunpack.c.h.b16 %v499
    %v1961 = vunpack.c.l.b16 %v500
    %v1962 = vunpack.c.h.b16 %v500
    %v1963 = vunpack.c.l.b16 %v501
    %v1964 = vunpack.c.h.b16 %v501
    %v1965 = vunpack.c.l.b16 %v502
    %v1966 = vunpack.c.h.b16 %v502
    %v1967 = vunpack.c.l.b16 %v503
    %v1968 = vunpack.c.h.b16 %v503
    %v1969 = vunpack.c.l.b16 %v504
    %v1970 = vunpack.c.h.b16 %v504
    %v1971 = vunpack.c.l.b16 %v505
    %v1972 = vunpack.c.h.b16 %v505
    %v1973 = vunpack.c.l.b16 %v506
    %v1974 = vunpack.c.h.b16 %v506
    %v1975 = vunpack.c.l.b16 %v507
    %v1976 = vunpack.c.h.b16 %v507
    %v1977 = vunpack.c.l.b16 %v508
    %v1978 = vunpack.c.h.b16 %v508
    %v1979 = vunpack.c.l.b16 %v509
    %v1980 = vunpack.c.h.b16 %v509
    %v1981 = vunpack.c.l.b16 %v510
    %v1982 = vunpack.c.h.b16 %v510
    %v1983 = vunpack.c.l.b16 %v511
    %v1984 = vunpack.c.h.b16 %v511
    %v1985 = vunpack.c.l.b16 %v512
    %v1986 = vunpack.c.h.b16 %v512
    %v1987 = vunpack.c.l.b16 %v513
    %v1988 = vunpack.c.h.b16 %v513
    %v1989 = vunpack.c.l.b16 %v514
    %v1990 = vunpack.c.h.b16 %v514
    %v1991 = vunpack.c.l.b16 %v515
    %v1992 = vunpack.c.h.b16 %v515
    %v1993 = vunpack.c.l.b16 %v516
    %v1994 = vunpack.c.h.b16 %v516
    %v1995 = vunpack.c.l.b16 %v517
    %v1996 = vunpack.c.h.b16 %v517
    %v1997 = vunpack.c.l.b16 %v518
    %v1998 = vunpack.c.h.b16 %v518
    %v1999 = vunpack.c.l.b16 %v519
    %v2000 = vunpack.c.h.b16 %v519
    %v2001 = vunpack.c.l.b16 %v520
    %v2002 = vunpack.c.h.b16 %v520
    %v2003 = vunpack.c.l.b16 %v521
    %v2004 = vunpack.c.h.b16 %v521
    %v2005 = vunpack.c.l.b16 %v522
    %v2006 = vunpack.c.h.b16 %v522
    %v2007 = vunpack.c.l.b16 %v523
    %v2008 = vunpack.c.h.b16 %v523
    %v2009 = vunpack.c.l.b16 %v524
    %v2010 = vunpack.c.h.b16 %v524
    %v2011 = vunpack.c.l.b16 %v525
    %v2012 = vunpack.c.h.b16 %v525
    %v2013 = vunpack.c.l.b16 %v526
    %v2014 = vunpack.c.h.b16 %v526
    %v2015 = vunpack.c.l.b16 %v527
    %v2016 = vunpack.c.h.b16 %v527
    %v2017 = vunpack.c.l.b16 %v528
    %v2018 = vunpack.c.h.b16 %v528
    %v2019 = vunpack.c.l.b16 %v529
    %v2020 = vunpack.c.h.b16 %v529
    %v2021 = vunpack.c.l.b16 %v530
    %v2022 = vunpack.c.h.b16 %v530
    %v2023 = vunpack.c.l.b16 %v531
    %v2024 = vunpack.c.h.b16 %v531
    %v2025 = vunpack.c.l.b16 %v532
    %v2026 = vunpack.c.h.b16 %v532
    %v2027 = vunpack.c.l.b16 %v533
    %v2028 = vunpack.c.h.b16 %v533
    %v2029 = vunpack.c.l.b16 %v534
    %v2030 = vunpack.c.h.b16 %v534
    %v2031 = vunpack.c.l.b16 %v535
    %v2032 = vunpack.c.h.b16 %v535
    %v2033 = vunpack.c.l.b16 %v536
    %v2034 = vunpack.c.h.b16 %v536
    %v2035 = vunpack.c.l.b16 %v537
    %v2036 = vunpack.c.h.b16 %v537
    %v2037 = vunpack.c.l.b16 %v538
    %v2038 = vunpack.c.h.b16 %v538
    %v2039 = vunpack.c.l.b16 %v539
    %v2040 = vunpack.c.h.b16 %v539
    %v2041 = vunpack.c.l.b16 %v540
    %v2042 = vunpack.c.h.b16 %v540
    %v2043 = vunpack.c.l.b16 %v541
    %v2044 = vunpack.c.h.b16 %v541
    %v2045 = vunpack.c.l.b16 %v542
    %v2046 = vunpack.c.h.b16 %v542
    %v2047 = vunpack.c.l.b16 %v543
    %v2048 = vunpack.c.h.b16 %v543
    %v2049 = vunpack.c.l.b16 %v544
    %v2050 = vunpack.c.h.b16 %v544
    %v2051 = vunpack.c.l.b16 %v545
    %v2052 = vunpack.c.h.b16 %v545
    %v2053 = vunpack.c.l.b16 %v546
    %v2054 = vunpack.c.h.b16 %v546
    %v2055 = vunpack.c.l.b16 %v547
    %v2056 = vunpack.c.h.b16 %v547
    %v2057 = vunpack.c.l.b16 %v548
    %v2058 = vunpack.c.h.b16 %v548
    %v2059 = vunpack.c.l.b16 %v549
    %v2060 = vunpack.c.h.b16 %v549
    %v2061 = vunpack.c.l.b16 %v550
    %v2062 = vunpack.c.h.b16 %v550
    %v2063 = vunpack.c.l.b16 %v551
    %v2064 = vunpack.c.h.b16 %v551
    %v2065 = vunpack.c.l.b16 %v552
    %v2066 = vunpack.c.h.b16 %v552
    %v2067 = vunpack.c.l.b16 %v553
    %v2068 = vunpack.c.h.b16 %v553
    %v2069 = vunpack.c.l.b16 %v554
    %v2070 = vunpack.c.h.b16 %v554
    %v2071 = vunpack.c.l.b16 %v555
    %v2072 = vunpack.c.h.b16 %v555
    %v2073 = vunpack.c.l.b16 %v556
    %v2074 = vunpack.c.h.b16 %v556
    %v2075 = vunpack.c.l.b16 %v557
    %v2076 = vunpack.c.h.b16 %v557
    %v2077 = vunpack.c.l.b16 %v558
    %v2078 = vunpack.c.h.b16 %v558
    %v2079 = vunpack.c.l.b16 %v559
    %v2080 = vunpack.c.h.b16 %v559
    %v2081 = vunpack.c.l.b16 %v560
    %v2082 = vunpack.c.h.b16 %v560
    %v2083 = vunpack.c.l.b16 %v561
    %v2084 = vunpack.c.h.b16 %v561
    %v2085 = vunpack.c.l.b16 %v562
    %v2086 = vunpack.c.h.b16 %v562
    %v2087 = vunpack.c.l.b16 %v563
    %v2088 = vunpack.c.h.b16 %v563
    %v2089 = vunpack.c.l.b16 %v564
    %v2090 = vunpack.c.h.b16 %v564
    %v2091 = vunpack.c.l.b16 %v565
    %v2092 = vunpack.c.h.b16 %v565
    %v2093 = vunpack.c.l.b16 %v566
    %v2094 = vunpack.c.h.b16 %v566
    %v2095 = vunpack.c.l.b16 %v567
    %v2096 = vunpack.c.h.b16 %v567
    %v2097 = vunpack.c.l.b16 %v568
    %v2098 = vunpack.c.h.b16 %v568
    %v2099 = vunpack.c.l.b16 %v569
    %v2100 = vunpack.c.h.b16 %v569
    %v2101 = vunpack.c.l.b16 %v570
    %v2102 = vunpack.c.h.b16 %v570
    %v2103 = vunpack.c.l.b16 %v571
    %v2104 = vunpack.c.h.b16 %v571
    %v2105 = vunpack.c.l.b16 %v572
    %v2106 = vunpack.c.h.b16 %v572
    %v2107 = vunpack.c.l.b16 %v573
    %v2108 = vunpack.c.h.b16 %v573
    %v2109 = vunpack.c.l.b16 %v574
    %v2110 = vunpack.c.h.b16 %v574
    %v2111 = vunpack.c.l.b16 %v575
    %v2112 = vunpack.c.h.b16 %v575
    %v2113 = vunpack.c.l.b16 %v576
    %v2114 = vunpack.c.h.b16 %v576
    %v2115 = vunpack.c.l.b16 %v577
    %v2116 = vunpack.c.h.b16 %v577
    %v2117 = vunpack.c.l.b16 %v578
    %v2118 = vunpack.c.h.b16 %v578
    %v2119 = vunpack.c.l.b16 %v579
    %v2120 = vunpack.c.h.b16 %v579
    %v2121 = vunpack.c.l.b16 %v580
    %v2122 = vunpack.c.h.b16 %v580
    %v2123 = vunpack.c.l.b16 %v581
    %v2124 = vunpack.c.h.b16 %v581
    %v2125 = vunpack.c.l.b16 %v582
    %v2126 = vunpack.c.h.b16 %v582
    %v2127 = vunpack.c.l.b16 %v583
    %v2128 = vunpack.c.h.b16 %v583
    %v2129 = vunpack.c.l.b16 %v584
    %v2130 = vunpack.c.h.b16 %v584
    %v2131 = vunpack.c.l.b16 %v585
    %v2132 = vunpack.c.h.b16 %v585
    %v2133 = vunpack.c.l.b16 %v586
    %v2134 = vunpack.c.h.b16 %v586
    %v2135 = vunpack.c.l.b16 %v587
    %v2136 = vunpack.c.h.b16 %v587
    %v2137 = vunpack.c.l.b16 %v588
    %v2138 = vunpack.c.h.b16 %v588
    %v2139 = vunpack.c.l.b16 %v589
    %v2140 = vunpack.c.h.b16 %v589
    %v2141 = vunpack.c.l.b16 %v590
    %v2142 = vunpack.c.h.b16 %v590
    %v2143 = vunpack.c.l.b16 %v591
    %v2144 = vunpack.c.h.b16 %v591
    %v2145 = vunpack.c.l.b16 %v592
    %v2146 = vunpack.c.h.b16 %v592
    %v2147 = vunpack.c.l.b16 %v593
    %v2148 = vunpack.c.h.b16 %v593
    %v2149 = vunpack.c.l.b16 %v594
    %v2150 = vunpack.c.h.b16 %v594
    %v2151 = vunpack.c.l.b16 %v595
    %v2152 = vunpack.c.h.b16 %v595
    %v2153 = vunpack.c.l.b16 %v596
    %v2154 = vunpack.c.h.b16 %v596
    %v2155 = vunpack.c.l.b16 %v597
    %v2156 = vunpack.c.h.b16 %v597
    %v2157 = vunpack.c.l.b16 %v598
    %v2158 = vunpack.c.h.b16 %v598
    %v2159 = vunpack.c.l.b16 %v599
    %v2160 = vunpack.c.h.b16 %v599
    %v2161 = vunpack.c.l.b16 %v600
    %v2162 = vunpack.c.h.b16 %v600
    %v2163 = vunpack.c.l.b16 %v601
    %v2164 = vunpack.c.h.b16 %v601
    %v2165 = vunpack.c.l.b16 %v602
    %v2166 = vunpack.c.h.b16 %v602
    %v2167 = vunpack.c.l.b16 %v603
    %v2168 = vunpack.c.h.b16 %v603
    %v2169 = vunpack.c.l.b16 %v604
    %v2170 = vunpack.c.h.b16 %v604
    %v2171 = vunpack.c.l.b16 %v605
    %v2172 = vunpack.c.h.b16 %v605
    %v2173 = vunpack.c.l.b16 %v606
    %v2174 = vunpack.c.h.b16 %v606
    %v2175 = vunpack.c.l.b16 %v607
    %v2176 = vunpack.c.h.b16 %v607
    %v2177 = vunpack.c.l.b16 %v608
    %v2178 = vunpack.c.h.b16 %v608
    %v2179 = vunpack.c.l.b16 %v609
    %v2180 = vunpack.c.h.b16 %v609
    %v2181 = vunpack.c.l.b16 %v610
    %v2182 = vunpack.c.h.b16 %v610
    %v2183 = vunpack.c.l.b16 %v611
    %v2184 = vunpack.c.h.b16 %v611
    %v2185 = vunpack.c.l.b16 %v612
    %v2186 = vunpack.c.h.b16 %v612
    %v2187 = vunpack.c.l.b16 %v613
    %v2188 = vunpack.c.h.b16 %v613
    %v2189 = vunpack.c.l.b16 %v614
    %v2190 = vunpack.c.h.b16 %v614
    %v2191 = vunpack.c.l.b16 %v615
    %v2192 = vunpack.c.h.b16 %v615
    %v2193 = vunpack.c.l.b16 %v616
    %v2194 = vunpack.c.h.b16 %v616
    %v2195 = vunpack.c.l.b16 %v617
    %v2196 = vunpack.c.h.b16 %v617
    %v2197 = vunpack.c.l.b16 %v618
    %v2198 = vunpack.c.h.b16 %v618
    %v2199 = vunpack.c.l.b16 %v619
    %v2200 = vunpack.c.h.b16 %v619
    %v2201 = vunpack.c.l.b16 %v620
    %v2202 = vunpack.c.h.b16 %v620
    %v2203 = vunpack.c.l.b16 %v621
    %v2204 = vunpack.c.h.b16 %v621
    %v2205 = vunpack.c.l.b16 %v622
    %v2206 = vunpack.c.h.b16 %v622
    %v2207 = vunpack.c.l.b16 %v623
    %v2208 = vunpack.c.h.b16 %v623
    %v2209 = vunpack.c.l.b16 %v624
    %v2210 = vunpack.c.h.b16 %v624
    %v2211 = vunpack.c.l.b16 %v625
    %v2212 = vunpack.c.h.b16 %v625
    %v2213 = vunpack.c.l.b16 %v626
    %v2214 = vunpack.c.h.b16 %v626
    %v2215 = vunpack.c.l.b16 %v627
    %v2216 = vunpack.c.h.b16 %v627
    %v2217 = vunpack.c.l.b16 %v628
    %v2218 = vunpack.c.h.b16 %v628
    %v2219 = vunpack.c.l.b16 %v629
    %v2220 = vunpack.c.h.b16 %v629
    %v2221 = vunpack.c.l.b16 %v630
    %v2222 = vunpack.c.h.b16 %v630
    %v2223 = vunpack.c.l.b16 %v631
    %v2224 = vunpack.c.h.b16 %v631
    %v2225 = vunpack.c.l.b16 %v632
    %v2226 = vunpack.c.h.b16 %v632
    %v2227 = vunpack.c.l.b16 %v633
    %v2228 = vunpack.c.h.b16 %v633
    %v2229 = vunpack.c.l.b16 %v634
    %v2230 = vunpack.c.h.b16 %v634
    %v2231 = vunpack.c.l.b16 %v635
    %v2232 = vunpack.c.h.b16 %v635
    %v2233 = vunpack.c.l.b16 %v636
    %v2234 = vunpack.c.h.b16 %v636
    %v2235 = vunpack.c.l.b16 %v637
    %v2236 = vunpack.c.h.b16 %v637
    %v2237 = vunpack.c.l.b16 %v638
    %v2238 = vunpack.c.h.b16 %v638
    %v2239 = vunpack.c.l.b16 %v639
    %v2240 = vunpack.c.h.b16 %v639
    %v2241 = vunpack.c.l.b16 %v640
    %v2242 = vunpack.c.h.b16 %v640
    %v2243 = vunpack.c.l.b16 %v641
    %v2244 = vunpack.c.h.b16 %v641
    %v2245 = vunpack.c.l.b16 %v642
    %v2246 = vunpack.c.h.b16 %v642
    %v2247 = vunpack.c.l.b16 %v643
    %v2248 = vunpack.c.h.b16 %v643
    %v2249 = vunpack.c.l.b16 %v644
    %v2250 = vunpack.c.h.b16 %v644
    %v2251 = vunpack.c.l.b16 %v645
    %v2252 = vunpack.c.h.b16 %v645
    %v2253 = vunpack.c.l.b16 %v646
    %v2254 = vunpack.c.h.b16 %v646
    %v2255 = vunpack.c.l.b16 %v647
    %v2256 = vunpack.c.h.b16 %v647
    %v2257 = vunpack.c.l.b16 %v648
    %v2258 = vunpack.c.h.b16 %v648
    %v2259 = vunpack.c.l.b16 %v649
    %v2260 = vunpack.c.h.b16 %v649
    %v2261 = vunpack.c.l.b16 %v650
    %v2262 = vunpack.c.h.b16 %v650
    %v2263 = vunpack.c.l.b16 %v651
    %v2264 = vunpack.c.h.b16 %v651
    %v2265 = vunpack.c.l.b16 %v652
    %v2266 = vunpack.c.h.b16 %v652
    %v2267 = vunpack.c.l.b16 %v653
    %v2268 = vunpack.c.h.b16 %v653
    %v2269 = vunpack.c.l.b16 %v654
    %v2270 = vunpack.c.h.b16 %v654
    %v2271 = vunpack.c.l.b16 %v655
    %v2272 = vunpack.c.h.b16 %v655
    %v2273 = vunpack.c.l.b16 %v656
    %v2274 = vunpack.c.h.b16 %v656
    %v2275 = vunpack.c.l.b16 %v657
    %v2276 = vunpack.c.h.b16 %v657
    %v2277 = vunpack.c.l.b16 %v658
    %v2278 = vunpack.c.h.b16 %v658
    %v2279 = vunpack.c.l.b16 %v659
    %v2280 = vunpack.c.h.b16 %v659
    %v2281 = vunpack.c.l.b16 %v660
    %v2282 = vunpack.c.h.b16 %v660
    %v2283 = vunpack.c.l.b16 %v661
    %v2284 = vunpack.c.h.b16 %v661
    %v2285 = vunpack.c.l.b16 %v662
    %v2286 = vunpack.c.h.b16 %v662
    %v2287 = vunpack.c.l.b16 %v663
    %v2288 = vunpack.c.h.b16 %v663
    %v2289 = vunpack.c.l.b16 %v664
    %v2290 = vunpack.c.h.b16 %v664
    %v2291 = vunpack.c.l.b16 %v665
    %v2292 = vunpack.c.h.b16 %v665
    %v2293 = vunpack.c.l.b16 %v666
    %v2294 = vunpack.c.h.b16 %v666
    %v2295 = vunpack.c.l.b16 %v667
    %v2296 = vunpack.c.h.b16 %v667
    %v2297 = vunpack.c.l.b16 %v668
    %v2298 = vunpack.c.h.b16 %v668
    %v2299 = vunpack.c.l.b16 %v669
    %v2300 = vunpack.c.h.b16 %v669
    %v2301 = vunpack.c.l.b16 %v670
    %v2302 = vunpack.c.h.b16 %v670
    %v2303 = vunpack.c.l.b16 %v671
    %v2304 = vunpack.c.h.b16 %v671
    %v2305 = vunpack.c.l.b16 %v672
    %v2306 = vunpack.c.h.b16 %v672
    %v2307 = vunpack.c.l.b16 %v673
    %v2308 = vunpack.c.h.b16 %v673
    %v2309 = vunpack.c.l.b16 %v674
    %v2310 = vunpack.c.h.b16 %v674
    %v2311 = vunpack.c.l.b16 %v675
    %v2312 = vunpack.c.h.b16 %v675
    %v2313 = vunpack.c.l.b16 %v676
    %v2314 = vunpack.c.h.b16 %v676
    %v2315 = vunpack.c.l.b16 %v677
    %v2316 = vunpack.c.h.b16 %v677
    %v2317 = vunpack.c.l.b16 %v678
    %v2318 = vunpack.c.h.b16 %v678
    %v2319 = vunpack.c.l.b16 %v679
    %v2320 = vunpack.c.h.b16 %v679
    %v2321 = vunpack.c.l.b16 %v680
    %v2322 = vunpack.c.h.b16 %v680
    %v2323 = vunpack.c.l.b16 %v681
    %v2324 = vunpack.c.h.b16 %v681
    %v2325 = vunpack.c.l.b16 %v682
    %v2326 = vunpack.c.h.b16 %v682
    %v2327 = vunpack.c.l.b16 %v683
    %v2328 = vunpack.c.h.b16 %v683
    %v2329 = vunpack.c.l.b16 %v684
    %v2330 = vunpack.c.h.b16 %v684
    %v2331 = vunpack.c.l.b16 %v685
    %v2332 = vunpack.c.h.b16 %v685
    %v2333 = vunpack.c.l.b16 %v686
    %v2334 = vunpack.c.h.b16 %v686
    %v2335 = vunpack.c.l.b16 %v687
    %v2336 = vunpack.c.h.b16 %v687
    %v2337 = vunpack.c.l.b16 %v688
    %v2338 = vunpack.c.h.b16 %v688
    %v2339 = vunpack.c.l.b16 %v689
    %v2340 = vunpack.c.h.b16 %v689
    %v2341 = vunpack.c.l.b16 %v690
    %v2342 = vunpack.c.h.b16 %v690
    %v2343 = vunpack.c.l.b16 %v691
    %v2344 = vunpack.c.h.b16 %v691
    %v2345 = vunpack.c.l.b16 %v692
    %v2346 = vunpack.c.h.b16 %v692
    %v2347 = vunpack.c.l.b16 %v693
    %v2348 = vunpack.c.h.b16 %v693
    %v2349 = vunpack.c.l.b16 %v694
    %v2350 = vunpack.c.h.b16 %v694
    %v2351 = vunpack.c.l.b16 %v695
    %v2352 = vunpack.c.h.b16 %v695
    %v2353 = vunpack.c.l.b16 %v696
    %v2354 = vunpack.c.h.b16 %v696
    %v2355 = vunpack.c.l.b16 %v697
    %v2356 = vunpack.c.h.b16 %v697
    %v2357 = vunpack.c.l.b16 %v698
    %v2358 = vunpack.c.h.b16 %v698
    %v2359 = vunpack.c.l.b16 %v699
    %v2360 = vunpack.c.h.b16 %v699
    %v2361 = vunpack.c.l.b16 %v700
    %v2362 = vunpack.c.h.b16 %v700
    %v2363 = vunpack.c.l.b16 %v701
    %v2364 = vunpack.c.h.b16 %v701
    %v2365 = vunpack.c.l.b16 %v702
    %v2366 = vunpack.c.h.b16 %v702
    %v2367 = vunpack.c.l.b16 %v703
    %v2368 = vunpack.c.h.b16 %v703
    %v2369 = vunpack.c.l.b16 %v704
    %v2370 = vunpack.c.h.b16 %v704
    %v2371 = vunpack.c.l.b16 %v705
    %v2372 = vunpack.c.h.b16 %v705
    %v2373 = vunpack.c.l.b16 %v706
    %v2374 = vunpack.c.h.b16 %v706
    %v2375 = vunpack.c.l.b16 %v707
    %v2376 = vunpack.c.h.b16 %v707
    %v2377 = vunpack.c.l.b16 %v708
    %v2378 = vunpack.c.h.b16 %v708
    %v2379 = vunpack.c.l.b16 %v709
    %v2380 = vunpack.c.h.b16 %v709
    %v2381 = vunpack.c.l.b16 %v710
    %v2382 = vunpack.c.h.b16 %v710
    %v2383 = vunpack.c.l.b16 %v711
    %v2384 = vunpack.c.h.b16 %v711
    %v2385 = vunpack.c.l.b16 %v712
    %v2386 = vunpack.c.h.b16 %v712
    %v2387 = vunpack.c.l.b16 %v713
    %v2388 = vunpack.c.h.b16 %v713
    %v2389 = vunpack.c.l.b16 %v714
    %v2390 = vunpack.c.h.b16 %v714
    %v2391 = vunpack.c.l.b16 %v715
    %v2392 = vunpack.c.h.b16 %v715
    %v2393 = vunpack.c.l.b16 %v716
    %v2394 = vunpack.c.h.b16 %v716
    %v2395 = vunpack.c.l.b16 %v717
    %v2396 = vunpack.c.h.b16 %v717
    %v2397 = vunpack.c.l.b16 %v718
    %v2398 = vunpack.c.h.b16 %v718
    %v2399 = vunpack.c.l.b16 %v719
    %v2400 = vunpack.c.h.b16 %v719
    %v2401 = vunpack.c.l.b16 %v720
    %v2402 = vunpack.c.h.b16 %v720
    %v2403 = vunpack.c.l.b16 %v721
    %v2404 = vunpack.c.h.b16 %v721
    %v2405 = vunpack.c.l.b16 %v722
    %v2406 = vunpack.c.h.b16 %v722
    %v2407 = vunpack.c.l.b16 %v723
    %v2408 = vunpack.c.h.b16 %v723
    %v2409 = vunpack.c.l.b16 %v724
    %v2410 = vunpack.c.h.b16 %v724
    %v2411 = vunpack.c.l.b16 %v725
    %v2412 = vunpack.c.h.b16 %v725
    %v2413 = vunpack.c.l.b16 %v726
    %v2414 = vunpack.c.h.b16 %v726
    %v2415 = vunpack.c.l.b16 %v727
    %v2416 = vunpack.c.h.b16 %v727
    %v2417 = vunpack.c.l.b16 %v728
    %v2418 = vunpack.c.h.b16 %v728
    %v2419 = vunpack.c.l.b16 %v729
    %v2420 = vunpack.c.h.b16 %v729
    %v2421 = vunpack.c.l.b16 %v730
    %v2422 = vunpack.c.h.b16 %v730
    %v2423 = vunpack.c.l.b16 %v731
    %v2424 = vunpack.c.h.b16 %v731
    %v2425 = vunpack.c.l.b16 %v732
    %v2426 = vunpack.c.h.b16 %v732
    %v2427 = vunpack.c.l.b16 %v733
    %v2428 = vunpack.c.h.b16 %v733
    %v2429 = vunpack.c.l.b16 %v734
    %v2430 = vunpack.c.h.b16 %v734
    %v2431 = vunpack.c.l.b16 %v735
    %v2432 = vunpack.c.h.b16 %v735
    %v2433 = vunpack.c.l.b16 %v736
    %v2434 = vunpack.c.h.b16 %v736
    %v2435 = vunpack.c.l.b16 %v737
    %v2436 = vunpack.c.h.b16 %v737
    %v2437 = vunpack.c.l.b16 %v738
    %v2438 = vunpack.c.h.b16 %v738
    %v2439 = vunpack.c.l.b16 %v739
    %v2440 = vunpack.c.h.b16 %v739
    %v2441 = vunpack.c.l.b16 %v740
    %v2442 = vunpack.c.h.b16 %v740
    %v2443 = vunpack.c.l.b16 %v741
    %v2444 = vunpack.c.h.b16 %v741
    %v2445 = vunpack.c.l.b16 %v742
    %v2446 = vunpack.c.h.b16 %v742
    %v2447 = vunpack.c.l.b16 %v743
    %v2448 = vunpack.c.h.b16 %v743
    %v2449 = vunpack.c.l.b16 %v744
    %v2450 = vunpack.c.h.b16 %v744
    %v2451 = vunpack.c.l.b16 %v745
    %v2452 = vunpack.c.h.b16 %v745
    %v2453 = vunpack.c.l.b16 %v746
    %v2454 = vunpack.c.h.b16 %v746
    %v2455 = vunpack.c.l.b16 %v747
    %v2456 = vunpack.c.h.b16 %v747
    %v2457 = vunpack.c.l.b16 %v748
    %v2458 = vunpack.c.h.b16 %v748
    %v2459 = vunpack.c.l.b16 %v749
    %v2460 = vunpack.c.h.b16 %v749
    %v2461 = vunpack.c.l.b16 %v750
    %v2462 = vunpack.c.h.b16 %v750
    %v2463 = vunpack.c.l.b16 %v751
    %v2464 = vunpack.c.h.b16 %v751
    %v2465 = vunpack.c.l.b16 %v752
    %v2466 = vunpack.c.h.b16 %v752
    %v2467 = vunpack.c.l.b16 %v753
    %v2468 = vunpack.c.h.b16 %v753
    %v2469 = vunpack.c.l.b16 %v754
    %v2470 = vunpack.c.h.b16 %v754
    %v2471 = vunpack.c.l.b16 %v755
    %v2472 = vunpack.c.h.b16 %v755
    %v2473 = vunpack.c.l.b16 %v756
    %v2474 = vunpack.c.h.b16 %v756
    %v2475 = vunpack.c.l.b16 %v757
    %v2476 = vunpack.c.h.b16 %v757
    %v2477 = vunpack.c.l.b16 %v758
    %v2478 = vunpack.c.h.b16 %v758
    %v2479 = vunpack.c.l.b16 %v759
    %v2480 = vunpack.c.h.b16 %v759
    %v2481 = vunpack.c.l.b16 %v760
    %v2482 = vunpack.c.h.b16 %v760
    %v2483 = vunpack.c.l.b16 %v761
    %v2484 = vunpack.c.h.b16 %v761
    %v2485 = vunpack.c.l.b16 %v762
    %v2486 = vunpack.c.h.b16 %v762
    %v2487 = vunpack.c.l.b16 %v763
    %v2488 = vunpack.c.h.b16 %v763
    %v2489 = vunpack.c.l.b16 %v764
    %v2490 = vunpack.c.h.b16 %v764
    %v2491 = vunpack.c.l.b16 %v765
    %v2492 = vunpack.c.h.b16 %v765
    %v2493 = vunpack.c.l.b16 %v766
    %v2494 = vunpack.c.h.b16 %v766
    %v2495 = vpack.c.b16 %v1351, %v1343
    %v2496 = vpack.c.b16 %v1352, %v1344
    %v2497 = vpack.c.b16 %v1353, %v1345
    %v2498 = vpack.c.b16 %v1354, %v1346
    %v2499 = vpack.c.b16 %v1355, %v1347
    %v2500 = vpack.c.b16 %v1356, %v1348
    %v2501 = vpack.c.b16 %v1357, %v1349
    %v2502 = vpack.c.b16 %v1358, %v1350
    %v2503 = vpack.c.b16 %v1367, %v1359
    %v2504 = vpack.c.b16 %v1368, %v1360
    %v2505 = vpack.c.b16 %v1369, %v1361
    %v2506 = vpack.c.b16 %v1370, %v1362
    %v2507 = vpack.c.b16 %v1371, %v1363
    %v2508 = vpack.c.b16 %v1372, %v1364
    %v2509 = vpack.c.b16 %v1373, %v1365
    %v2510 = vpack.c.b16 %v1374, %v1366
    %v2511 = vpack.c.b16 %v1383, %v1375
    %v2512 = vpack.c.b16 %v1384, %v1376
    %v2513 = vpack.c.b16 %v1385, %v1377
    %v2514 = vpack.c.b16 %v1386, %v1378
    %v2515 = vpack.c.b16 %v1387, %v1379
    %v2516 = vpack.c.b16 %v1388, %v1380
    %v2517 = vpack.c.b16 %v1389, %v1381
    %v2518 = vpack.c.b16 %v1390, %v1382
    %v2519 = vpack.c.b16 %v1399, %v1391
    %v2520 = vpack.c.b16 %v1400, %v1392
    %v2521 = vpack.c.b16 %v1401, %v1393
    %v2522 = vpack.c.b16 %v1402, %v1394
    %v2523 = vpack.c.b16 %v1403, %v1395
    %v2524 = vpack.c.b16 %v1404, %v1396
    %v2525 = vpack.c.b16 %v1405, %v1397
    %v2526 = vpack.c.b16 %v1406, %v1398
    %v2527 = vpack.c.b16 %v1415, %v1407
    %v2528 = vpack.c.b16 %v1416, %v1408
    %v2529 = vpack.c.b16 %v1417, %v1409
    %v2530 = vpack.c.b16 %v1418, %v1410
    %v2531 = vpack.c.b16 %v1419, %v1411
    %v2532 = vpack.c.b16 %v1420, %v1412
    %v2533 = vpack.c.b16 %v1421, %v1413
    %v2534 = vpack.c.b16 %v1422, %v1414
    %v2535 = vpack.c.b16 %v1431, %v1423
    %v2536 = vpack.c.b16 %v1432, %v1424
    %v2537 = vpack.c.b16 %v1433, %v1425
    %v2538 = vpack.c.b16 %v1434, %v1426
    %v2539 = vpack.c.b16 %v1435, %v1427
    %v2540 = vpack.c.b16 %v1436, %v1428
    %v2541 = vpack.c.b16 %v1437, %v1429
    %v2542 = vpack.c.b16 %v1438, %v1430
    %v2543 = vpack.c.b16 %v1447, %v1439
    %v2544 = vpack.c.b16 %v1448, %v1440
    %v2545 = vpack.c.b16 %v1449, %v1441
    %v2546 = vpack.c.b16 %v1450, %v1442
    %v2547 = vpack.c.b16 %v1451, %v1443
    %v2548 = vpack.c.b16 %v1452, %v1444
    %v2549 = vpack.c.b16 %v1453, %v1445
    %v2550 = vpack.c.b16 %v1454, %v1446
    %v2551 = vpack.c.b16 %v1463, %v1455
    %v2552 = vpack.c.b16 %v1464, %v1456
    %v2553 = vpack.c.b16 %v1465, %v1457
    %v2554 = vpack.c.b16 %v1466, %v1458
    %v2555 = vpack.c.b16 %v1467, %v1459
    %v2556 = vpack.c.b16 %v1468, %v1460
    %v2557 = vpack.c.b16 %v1469, %v1461
    %v2558 = vpack.c.b16 %v1470, %v1462
    %v2559 = vpack.c.b16 %v1479, %v1471
    %v2560 = vpack.c.b16 %v1480, %v1472
    %v2561 = vpack.c.b16 %v1481, %v1473
    %v2562 = vpack.c.b16 %v1482, %v1474
    %v2563 = vpack.c.b16 %v1483, %v1475
    %v2564 = vpack.c.b16 %v1484, %v1476
    %v2565 = vpack.c.b16 %v1485, %v1477
    %v2566 = vpack.c.b16 %v1486, %v1478
    %v2567 = vpack.c.b16 %v1495, %v1487
    %v2568 = vpack.c.b16 %v1496, %v1488
    %v2569 = vpack.c.b16 %v1497, %v1489
    %v2570 = vpack.c.b16 %v1498, %v1490
    %v2571 = vpack.c.b16 %v1499, %v1491
    %v2572 = vpack.c.b16 %v1500, %v1492
    %v2573 = vpack.c.b16 %v1501, %v1493
    %v2574 = vpack.c.b16 %v1502, %v1494
    %v2575 = vpack.c.b16 %v1511, %v1503
    %v2576 = vpack.c.b16 %v1512, %v1504
    %v2577 = vpack.c.b16 %v1513, %v1505
    %v2578 = vpack.c.b16 %v1514, %v1506
    %v2579 = vpack.c.b16 %v1515, %v1507
    %v2580 = vpack.c.b16 %v1516, %v1508
    %v2581 = vpack.c.b16 %v1517, %v1509
    %v2582 = vpack.c.b16 %v1518, %v1510
    %v2583 = vpack.c.b16 %v1527, %v1519
    %v2584 = vpack.c.b16 %v1528, %v1520
    %v2585 = vpack.c.b16 %v1529, %v1521
    %v2586 = vpack.c.b16 %v1530, %v1522
    %v2587 = vpack.c.b16 %v1531, %v1523
    %v2588 = vpack.c.b16 %v1532, %v1524
    %v2589 = vpack.c.b16 %v1533, %v1525
    %v2590 = vpack.c.b16 %v1534, %v1526
    %v2591 = vpack.c.b16 %v1543, %v1535
    %v2592 = vpack.c.b16 %v1544, %v1536
    %v2593 = vpack.c.b16 %v1545, %v1537
    %v2594 = vpack.c.b16 %v1546, %v1538
    %v2595 = vpack.c.b16 %v1547, %v1539
    %v2596 = vpack.c.b16 %v1548, %v1540
    %v2597 = vpack.c.b16 %v1549, %v1541
    %v2598 = vpack.c.b16 %v1550, %v1542
    %v2599 = vpack.c.b16 %v1559, %v1551
    %v2600 = vpack.c.b16 %v1560, %v1552
    %v2601 = vpack.c.b16 %v1561, %v1553
    %v2602 = vpack.c.b16 %v1562, %v1554
    %v2603 = vpack.c.b16 %v1563, %v1555
    %v2604 = vpack.c.b16 %v1564, %v1556
    %v2605 = vpack.c.b16 %v1565, %v1557
    %v2606 = vpack.c.b16 %v1566, %v1558
    %v2607 = vpack.c.b16 %v1575, %v1567
    %v2608 = vpack.c.b16 %v1576, %v1568
    %v2609 = vpack.c.b16 %v1577, %v1569
    %v2610 = vpack.c.b16 %v1578, %v1570
    %v2611 = vpack.c.b16 %v1579, %v1571
    %v2612 = vpack.c.b16 %v1580, %v1572
    %v2613 = vpack.c.b16 %v1581, %v1573
    %v2614 = vpack.c.b16 %v1582, %v1574
    %v2615 = vpack.c.b16 %v1591, %v1583
    %v2616 = vpack.c.b16 %v1592, %v1584
    %v2617 = vpack.c.b16 %v1593, %v1585
    %v2618 = vpack.c.b16 %v1594, %v1586
    %v2619 = vpack.c.b16 %v1595, %v1587
    %v2620 = vpack.c.b16 %v1596, %v1588
    %v2621 = vpack.c.b16 %v1597, %v1589
    %v2622 = vpack.c.b16 %v1598, %v1590
    %v2623 = vpack.c.b16 %v1607, %v1599
    %v2624 = vpack.c.b16 %v1608, %v1600
    %v2625 = vpack.c.b16 %v1609, %v1601
    %v2626 = vpack.c.b16 %v1610, %v1602
    %v2627 = vpack.c.b16 %v1611, %v1603
    %v2628 = vpack.c.b16 %v1612, %v1604
    %v2629 = vpack.c.b16 %v1613, %v1605
    %v2630 = vpack.c.b16 %v1614, %v1606
    %v2631 = vpack.c.b16 %v1623, %v1615
    %v2632 = vpack.c.b16 %v1624, %v1616
    %v2633 = vpack.c.b16 %v1625, %v1617
    %v2634 = vpack.c.b16 %v1626, %v1618
    %v2635 = vpack.c.b16 %v1627, %v1619
    %v2636 = vpack.c.b16 %v1628, %v1620
    %v2637 = vpack.c.b16 %v1629, %v1621
    %v2638 = vpack.c.b16 %v1630, %v1622
    %v2639 = vpack.c.b16 %v1639, %v1631
    %v2640 = vpack.c.b16 %v1640, %v1632
    %v2641 = vpack.c.b16 %v1641, %v1633
    %v2642 = vpack.c.b16 %v1642, %v1634
    %v2643 = vpack.c.b16 %v1643, %v1635
    %v2644 = vpack.c.b16 %v1644, %v1636
    %v2645 = vpack.c.b16 %v1645, %v1637
    %v2646 = vpack.c.b16 %v1646, %v1638
    %v2647 = vpack.c.b16 %v1655, %v1647
    %v2648 = vpack.c.b16 %v1656, %v1648
    %v2649 = vpack.c.b16 %v1657, %v1649
    %v2650 = vpack.c.b16 %v1658, %v1650
    %v2651 = vpack.c.b16 %v1659, %v1651
    %v2652 = vpack.c.b16 %v1660, %v1652
    %v2653 = vpack.c.b16 %v1661, %v1653
    %v2654 = vpack.c.b16 %v1662, %v1654
    %v2655 = vpack.c.b16 %v1671, %v1663
    %v2656 = vpack.c.b16 %v1672, %v1664
    %v2657 = vpack.c.b16 %v1673, %v1665
    %v2658 = vpack.c.b16 %v1674, %v1666
    %v2659 = vpack.c.b16 %v1675, %v1667
    %v2660 = vpack.c.b16 %v1676, %v1668
    %v2661 = vpack.c.b16 %v1677, %v1669
    %v2662 = vpack.c.b16 %v1678, %v1670
    %v2663 = vpack.c.b16 %v1687, %v1679
    %v2664 = vpack.c.b16 %v1688, %v1680
    %v2665 = vpack.c.b16 %v1689, %v1681
    %v2666 = vpack.c.b16 %v1690, %v1682
    %v2667 = vpack.c.b16 %v1691, %v1683
    %v2668 = vpack.c.b16 %v1692, %v1684
    %v2669 = vpack.c.b16 %v1693, %v1685
    %v2670 = vpack.c.b16 %v1694, %v1686
    %v2671 = vpack.c.b16 %v1703, %v1695
    %v2672 = vpack.c.b16 %v1704, %v1696
    %v2673 = vpack.c.b16 %v1705, %v1697
    %v2674 = vpack.c.b16 %v1706, %v1698
    %v2675 = vpack.c.b16 %v1707, %v1699
    %v2676 = vpack.c.b16 %v1708, %v1700
    %v2677 = vpack.c.b16 %v1709, %v1701
    %v2678 = vpack.c.b16 %v1710, %v1702
    %v2679 = vpack.c.b16 %v1719, %v1711
    %v2680 = vpack.c.b16 %v1720, %v1712
    %v2681 = vpack.c.b16 %v1721, %v1713
    %v2682 = vpack.c.b16 %v1722, %v1714
    %v2683 = vpack.c.b16 %v1723, %v1715
    %v2684 = vpack.c.b16 %v1724, %v1716
    %v2685 = vpack.c.b16 %v1725, %v1717
    %v2686 = vpack.c.b16 %v1726, %v1718
    %v2687 = vpack.c.b16 %v1735, %v1727
    %v2688 = vpack.c.b16 %v1736, %v1728
    %v2689 = vpack.c.b16 %v1737, %v1729
    %v2690 = vpack.c.b16 %v1738, %v1730
    %v2691 = vpack.c.b16 %v1739, %v1731
    %v2692 = vpack.c.b16 %v1740, %v1732
    %v2693 = vpack.c.b16 %v1741, %v1733
    %v2694 = vpack.c.b16 %v1742, %v1734
    %v2695 = vpack.c.b16 %v1751, %v1743
    %v2696 = vpack.c.b16 %v1752, %v1744
    %v2697 = vpack.c.b16 %v1753, %v1745
    %v2698 = vpack.c.b16 %v1754, %v1746
    %v2699 = vpack.c.b16 %v1755, %v1747
    %v2700 = vpack.c.b16 %v1756, %v1748
    %v2701 = vpack.c.b16 %v1757, %v1749
    %v2702 = vpack.c.b16 %v1758, %v1750
    %v2703 = vpack.c.b16 %v1767, %v1759
    %v2704 = vpack.c.b16 %v1768, %v1760
    %v2705 = vpack.c.b16 %v1769, %v1761
    %v2706 = vpack.c.b16 %v1770, %v1762
    %v2707 = vpack.c.b16 %v1771, %v1763
    %v2708 = vpack.c.b16 %v1772, %v1764
    %v2709 = vpack.c.b16 %v1773, %v1765
    %v2710 = vpack.c.b16 %v1774, %v1766
    %v2711 = vpack.c.b16 %v1783, %v1775
    %v2712 = vpack.c.b16 %v1784, %v1776
    %v2713 = vpack.c.b16 %v1785, %v1777
    %v2714 = vpack.c.b16 %v1786, %v1778
    %v2715 = vpack.c.b16 %v1787, %v1779
    %v2716 = vpack.c.b16 %v1788, %v1780
    %v2717 = vpack.c.b16 %v1789, %v1781
    %v2718 = vpack.c.b16 %v1790, %v1782
    %v2719 = vpack.c.b16 %v1799, %v1791
    %v2720 = vpack.c.b16 %v1800, %v1792
    %v2721 = vpack.c.b16 %v1801, %v1793
    %v2722 = vpack.c.b16 %v1802, %v1794
    %v2723 = vpack.c.b16 %v1803, %v1795
    %v2724 = vpack.c.b16 %v1804, %v1796
    %v2725 = vpack.c.b16 %v1805, %v1797
    %v2726 = vpack.c.b16 %v1806, %v1798
    %v2727 = vpack.c.b16 %v1815, %v1807
    %v2728 = vpack.c.b16 %v1816, %v1808
    %v2729 = vpack.c.b16 %v1817, %v1809
    %v2730 = vpack.c.b16 %v1818, %v1810
    %v2731 = vpack.c.b16 %v1819, %v1811
    %v2732 = vpack.c.b16 %v1820, %v1812
    %v2733 = vpack.c.b16 %v1821, %v1813
    %v2734 = vpack.c.b16 %v1822, %v1814
    %v2735 = vpack.c.b16 %v1831, %v1823
    %v2736 = vpack.c.b16 %v1832, %v1824
    %v2737 = vpack.c.b16 %v1833, %v1825
    %v2738 = vpack.c.b16 %v1834, %v1826
    %v2739 = vpack.c.b16 %v1835, %v1827
    %v2740 = vpack.c.b16 %v1836, %v1828
    %v2741 = vpack.c.b16 %v1837, %v1829
    %v2742 = vpack.c.b16 %v1838, %v1830
    %v2743 = vpack.c.b16 %v1847, %v1839
    %v2744 = vpack.c.b16 %v1848, %v1840
    %v2745 = vpack.c.b16 %v1849, %v1841
    %v2746 = vpack.c.b16 %v1850, %v1842
    %v2747 = vpack.c.b16 %v1851, %v1843
    %v2748 = vpack.c.b16 %v1852, %v1844
    %v2749 = vpack.c.b16 %v1853, %v1845
    %v2750 = vpack.c.b16 %v1854, %v1846
    %v2751 = vpack.c.b16 %v1863, %v1855
    %v2752 = vpack.c.b16 %v1864, %v1856
    %v2753 = vpack.c.b16 %v1865, %v1857
    %v2754 = vpack.c.b16 %v1866, %v1858
    %v2755 = vpack.c.b16 %v1867, %v1859
    %v2756 = vpack.c.b16 %v1868, %v1860
    %v2757 = vpack.c.b16 %v1869, %v1861
    %v2758 = vpack.c.b16 %v1870, %v1862
    %v2759 = vpack.c.b16 %v1879, %v1871
    %v2760 = vpack.c.b16 %v1880, %v1872
    %v2761 = vpack.c.b16 %v1881, %v1873
    %v2762 = vpack.c.b16 %v1882, %v1874
    %v2763 = vpack.c.b16 %v1883, %v1875
    %v2764 = vpack.c.b16 %v1884, %v1876
    %v2765 = vpack.c.b16 %v1885, %v1877
    %v2766 = vpack.c.b16 %v1886, %v1878
    %v2767 = vpack.c.b16 %v1895, %v1887
    %v2768 = vpack.c.b16 %v1896, %v1888
    %v2769 = vpack.c.b16 %v1897, %v1889
    %v2770 = vpack.c.b16 %v1898, %v1890
    %v2771 = vpack.c.b16 %v1899, %v1891
    %v2772 = vpack.c.b16 %v1900, %v1892
    %v2773 = vpack.c.b16 %v1901, %v1893
    %v2774 = vpack.c.b16 %v1902, %v1894
    %v2775 = vpack.c.b16 %v1911, %v1903
    %v2776 = vpack.c.b16 %v1912, %v1904
    %v2777 = vpack.c.b16 %v1913, %v1905
    %v2778 = vpack.c.b16 %v1914, %v1906
    %v2779 = vpack.c.b16 %v1915, %v1907
    %v2780 = vpack.c.b16 %v1916, %v1908
    %v2781 = vpack.c.b16 %v1917, %v1909
    %v2782 = vpack.c.b16 %v1918, %v1910
    %v2783 = vpack.c.b16 %v1927, %v1919
    %v2784 = vpack.c.b16 %v1928, %v1920
    %v2785 = vpack.c.b16 %v1929, %v1921
    %v2786 = vpack.c.b16 %v1930, %v1922
    %v2787 = vpack.c.b16 %v1931, %v1923
    %v2788 = vpack.c.b16 %v1932, %v1924
    %v2789 = vpack.c.b16 %v1933, %v1925
    %v2790 = vpack.c.b16 %v1934, %v1926
    %v2791 = vpack.c.b16 %v1943, %v1935
    %v2792 = vpack.c.b16 %v1944, %v1936
    %v2793 = vpack.c.b16 %v1945, %v1937
    %v2794 = vpack.c.b16 %v1946, %v1938
    %v2795 = vpack.c.b16 %v1947, %v1939
    %v2796 = vpack.c.b16 %v1948, %v1940
    %v2797 = vpack.c.b16 %v1949, %v1941
    %v2798 = vpack.c.b16 %v1950, %v1942
    %v2799 = vpack.c.b16 %v1959, %v1951
    %v2800 = vpack.c.b16 %v1960, %v1952
    %v2801 = vpack.c.b16 %v1961, %v1953
    %v2802 = vpack.c.b16 %v1962, %v1954
    %v2803 = vpack.c.b16 %v1963, %v1955
    %v2804 = vpack.c.b16 %v1964, %v1956
    %v2805 = vpack.c.b16 %v1965, %v1957
    %v2806 = vpack.c.b16 %v1966, %v1958
    %v2807 = vpack.c.b16 %v1975, %v1967
    %v2808 = vpack.c.b16 %v1976, %v1968
    %v2809 = vpack.c.b16 %v1977, %v1969
    %v2810 = vpack.c.b16 %v1978, %v1970
    %v2811 = vpack.c.b16 %v1979, %v1971
    %v2812 = vpack.c.b16 %v1980, %v1972
    %v2813 = vpack.c.b16 %v1981, %v1973
    %v2814 = vpack.c.b16 %v1982, %v1974
    %v2815 = vpack.c.b16 %v1991, %v1983
    %v2816 = vpack.c.b16 %v1992, %v1984
    %v2817 = vpack.c.b16 %v1993, %v1985
    %v2818 = vpack.c.b16 %v1994, %v1986
    %v2819 = vpack.c.b16 %v1995, %v1987
    %v2820 = vpack.c.b16 %v1996, %v1988
    %v2821 = vpack.c.b16 %v1997, %v1989
    %v2822 = vpack.c.b16 %v1998, %v1990
    %v2823 = vpack.c.b16 %v2007, %v1999
    %v2824 = vpack.c.b16 %v2008, %v2000
    %v2825 = vpack.c.b16 %v2009, %v2001
    %v2826 = vpack.c.b16 %v2010, %v2002
    %v2827 = vpack.c.b16 %v2011, %v2003
    %v2828 = vpack.c.b16 %v2012, %v2004
    %v2829 = vpack.c.b16 %v2013, %v2005
    %v2830 = vpack.c.b16 %v2014, %v2006
    %v2831 = vpack.c.b16 %v2023, %v2015
    %v2832 = vpack.c.b16 %v2024, %v2016
    %v2833 = vpack.c.b16 %v2025, %v2017
    %v2834 = vpack.c.b16 %v2026, %v2018
    %v2835 = vpack.c.b16 %v2027, %v2019
    %v2836 = vpack.c.b16 %v2028, %v2020
    %v2837 = vpack.c.b16 %v2029, %v2021
    %v2838 = vpack.c.b16 %v2030, %v2022
    %v2839 = vpack.c.b16 %v2039, %v2031
    %v2840 = vpack.c.b16 %v2040, %v2032
    %v2841 = vpack.c.b16 %v2041, %v2033
    %v2842 = vpack.c.b16 %v2042, %v2034
    %v2843 = vpack.c.b16 %v2043, %v2035
    %v2844 = vpack.c.b16 %v2044, %v2036
    %v2845 = vpack.c.b16 %v2045, %v2037
    %v2846 = vpack.c.b16 %v2046, %v2038
    %v2847 = vpack.c.b16 %v2055, %v2047
    %v2848 = vpack.c.b16 %v2056, %v2048
    %v2849 = vpack.c.b16 %v2057, %v2049
    %v2850 = vpack.c.b16 %v2058, %v2050
    %v2851 = vpack.c.b16 %v2059, %v2051
    %v2852 = vpack.c.b16 %v2060, %v2052
    %v2853 = vpack.c.b16 %v2061, %v2053
    %v2854 = vpack.c.b16 %v2062, %v2054
    %v2855 = vpack.c.b16 %v2071, %v2063
    %v2856 = vpack.c.b16 %v2072, %v2064
    %v2857 = vpack.c.b16 %v2073, %v2065
    %v2858 = vpack.c.b16 %v2074, %v2066
    %v2859 = vpack.c.b16 %v2075, %v2067
    %v2860 = vpack.c.b16 %v2076, %v2068
    %v2861 = vpack.c.b16 %v2077, %v2069
    %v2862 = vpack.c.b16 %v2078, %v2070
    %v2863 = vpack.c.b16 %v2087, %v2079
    %v2864 = vpack.c.b16 %v2088, %v2080
    %v2865 = vpack.c.b16 %v2089, %v2081
    %v2866 = vpack.c.b16 %v2090, %v2082
    %v2867 = vpack.c.b16 %v2091, %v2083
    %v2868 = vpack.c.b16 %v2092, %v2084
    %v2869 = vpack.c.b16 %v2093, %v2085
    %v2870 = vpack.c.b16 %v2094, %v2086
    %v2871 = vpack.c.b16 %v2103, %v2095
    %v2872 = vpack.c.b16 %v2104, %v2096
    %v2873 = vpack.c.b16 %v2105, %v2097
    %v2874 = vpack.c.b16 %v2106, %v2098
    %v2875 = vpack.c.b16 %v2107, %v2099
    %v2876 = vpack.c.b16 %v2108, %v2100
    %v2877 = vpack.c.b16 %v2109, %v2101
    %v2878 = vpack.c.b16 %v2110, %v2102
    %v2879 = vpack.c.b16 %v2119, %v2111
    %v2880 = vpack.c.b16 %v2120, %v2112
    %v2881 = vpack.c.b16 %v2121, %v2113
    %v2882 = vpack.c.b16 %v2122, %v2114
    %v2883 = vpack.c.b16 %v2123, %v2115
    %v2884 = vpack.c.b16 %v2124, %v2116
    %v2885 = vpack.c.b16 %v2125, %v2117
    %v2886 = vpack.c.b16 %v2126, %v2118
    %v2887 = vpack.c.b16 %v2135, %v2127
    %v2888 = vpack.c.b16 %v2136, %v2128
    %v2889 = vpack.c.b16 %v2137, %v2129
    %v2890 = vpack.c.b16 %v2138, %v2130
    %v2891 = vpack.c.b16 %v2139, %v2131
    %v2892 = vpack.c.b16 %v2140, %v2132
    %v2893 = vpack.c.b16 %v2141, %v2133
    %v2894 = vpack.c.b16 %v2142, %v2134
    %v2895 = vpack.c.b16 %v2151, %v2143
    %v2896 = vpack.c.b16 %v2152, %v2144
    %v2897 = vpack.c.b16 %v2153, %v2145
    %v2898 = vpack.c.b16 %v2154, %v2146
    %v2899 = vpack.c.b16 %v2155, %v2147
    %v2900 = vpack.c.b16 %v2156, %v2148
    %v2901 = vpack.c.b16 %v2157, %v2149
    %v2902 = vpack.c.b16 %v2158, %v2150
    %v2903 = vpack.c.b16 %v2167, %v2159
    %v2904 = vpack.c.b16 %v2168, %v2160
    %v2905 = vpack.c.b16 %v2169, %v2161
    %v2906 = vpack.c.b16 %v2170, %v2162
    %v2907 = vpack.c.b16 %v2171, %v2163
    %v2908 = vpack.c.b16 %v2172, %v2164
    %v2909 = vpack.c.b16 %v2173, %v2165
    %v2910 = vpack.c.b16 %v2174, %v2166
    %v2911 = vpack.c.b16 %v2183, %v2175
    %v2912 = vpack.c.b16 %v2184, %v2176
    %v2913 = vpack.c.b16 %v2185, %v2177
    %v2914 = vpack.c.b16 %v2186, %v2178
    %v2915 = vpack.c.b16 %v2187, %v2179
    %v2916 = vpack.c.b16 %v2188, %v2180
    %v2917 = vpack.c.b16 %v2189, %v2181
    %v2918 = vpack.c.b16 %v2190, %v2182
    %v2919 = vpack.c.b16 %v2199, %v2191
    %v2920 = vpack.c.b16 %v2200, %v2192
    %v2921 = vpack.c.b16 %v2201, %v2193
    %v2922 = vpack.c.b16 %v2202, %v2194
    %v2923 = vpack.c.b16 %v2203, %v2195
    %v2924 = vpack.c.b16 %v2204, %v2196
    %v2925 = vpack.c.b16 %v2205, %v2197
    %v2926 = vpack.c.b16 %v2206, %v2198
    %v2927 = vpack.c.b16 %v2215, %v2207
    %v2928 = vpack.c.b16 %v2216, %v2208
    %v2929 = vpack.c.b16 %v2217, %v2209
    %v2930 = vpack.c.b16 %v2218, %v2210
    %v2931 = vpack.c.b16 %v2219, %v2211
    %v2932 = vpack.c.b16 %v2220, %v2212
    %v2933 = vpack.c.b16 %v2221, %v2213
    %v2934 = vpack.c.b16 %v2222, %v2214
    %v2935 = vpack.c.b16 %v2231, %v2223
    %v2936 = vpack.c.b16 %v2232, %v2224
    %v2937 = vpack.c.b16 %v2233, %v2225
    %v2938 = vpack.c.b16 %v2234, %v2226
    %v2939 = vpack.c.b16 %v2235, %v2227
    %v2940 = vpack.c.b16 %v2236, %v2228
    %v2941 = vpack.c.b16 %v2237, %v2229
    %v2942 = vpack.c.b16 %v2238, %v2230
    %v2943 = vpack.c.b16 %v2247, %v2239
    %v2944 = vpack.c.b16 %v2248, %v2240
    %v2945 = vpack.c.b16 %v2249, %v2241
    %v2946 = vpack.c.b16 %v2250, %v2242
    %v2947 = vpack.c.b16 %v2251, %v2243
    %v2948 = vpack.c.b16 %v2252, %v2244
    %v2949 = vpack.c.b16 %v2253, %v2245
    %v2950 = vpack.c.b16 %v2254, %v2246
    %v2951 = vpack.c.b16 %v2263, %v2255
    %v2952 = vpack.c.b16 %v2264, %v2256
    %v2953 = vpack.c.b16 %v2265, %v2257
    %v2954 = vpack.c.b16 %v2266, %v2258
    %v2955 = vpack.c.b16 %v2267, %v2259
    %v2956 = vpack.c.b16 %v2268, %v2260
    %v2957 = vpack.c.b16 %v2269, %v2261
    %v2958 = vpack.c.b16 %v2270, %v2262
    %v2959 = vpack.c.b16 %v2279, %v2271
    %v2960 = vpack.c.b16 %v2280, %v2272
    %v2961 = vpack.c.b16 %v2281, %v2273
    %v2962 = vpack.c.b16 %v2282, %v2274
    %v2963 = vpack.c.b16 %v2283, %v2275
    %v2964 = vpack.c.b16 %v2284, %v2276
    %v2965 = vpack.c.b16 %v2285, %v2277
    %v2966 = vpack.c.b16 %v2286, %v2278
    %v2967 = vpack.c.b16 %v2295, %v2287
    %v2968 = vpack.c.b16 %v2296, %v2288
    %v2969 = vpack.c.b16 %v2297, %v2289
    %v2970 = vpack.c.b16 %v2298, %v2290
    %v2971 = vpack.c.b16 %v2299, %v2291
    %v2972 = vpack.c.b16 %v2300, %v2292
    %v2973 = vpack.c.b16 %v2301, %v2293
    %v2974 = vpack.c.b16 %v2302, %v2294
    %v2975 = vpack.c.b16 %v2311, %v2303
    %v2976 = vpack.c.b16 %v2312, %v2304
    %v2977 = vpack.c.b16 %v2313, %v2305
    %v2978 = vpack.c.b16 %v2314, %v2306
    %v2979 = vpack.c.b16 %v2315, %v2307
    %v2980 = vpack.c.b16 %v2316, %v2308
    %v2981 = vpack.c.b16 %v2317, %v2309
    %v2982 = vpack.c.b16 %v2318, %v2310
    %v2983 = vpack.c.b16 %v2327, %v2319
    %v2984 = vpack.c.b16 %v2328, %v2320
    %v2985 = vpack.c.b16 %v2329, %v2321
    %v2986 = vpack.c.b16 %v2330, %v2322
    %v2987 = vpack.c.b16 %v2331, %v2323
    %v2988 = vpack.c.b16 %v2332, %v2324
    %v2989 = vpack.c.b16 %v2333, %v2325
    %v2990 = vpack.c.b16 %v2334, %v2326
    %v2991 = vpack.c.b16 %v2343, %v2335
    %v2992 = vpack.c.b16 %v2344, %v2336
    %v2993 = vpack.c.b16 %v2345, %v2337
    %v2994 = vpack.c.b16 %v2346, %v2338
    %v2995 = vpack.c.b16 %v2347, %v2339
    %v2996 = vpack.c.b16 %v2348, %v2340
    %v2997 = vpack.c.b16 %v2349, %v2341
    %v2998 = vpack.c.b16 %v2350, %v2342
    %v2999 = vpack.c.b16 %v2359, %v2351
    %v3000 = vpack.c.b16 %v2360, %v2352
    %v3001 = vpack.c.b16 %v2361, %v2353
    %v3002 = vpack.c.b16 %v2362, %v2354
    %v3003 = vpack.c.b16 %v2363, %v2355
    %v3004 = vpack.c.b16 %v2364, %v2356
    %v3005 = vpack.c.b16 %v2365, %v2357
    %v3006 = vpack.c.b16 %v2366, %v2358
    %v3007 = vpack.c.b16 %v2375, %v2367
    %v3008 = vpack.c.b16 %v2376, %v2368
    %v3009 = vpack.c.b16 %v2377, %v2369
    %v3010 = vpack.c.b16 %v2378, %v2370
    %v3011 = vpack.c.b16 %v2379, %v2371
    %v3012 = vpack.c.b16 %v2380, %v2372
    %v3013 = vpack.c.b16 %v2381, %v2373
    %v3014 = vpack.c.b16 %v2382, %v2374
    %v3015 = vpack.c.b16 %v2391, %v2383
    %v3016 = vpack.c.b16 %v2392, %v2384
    %v3017 = vpack.c.b16 %v2393, %v2385
    %v3018 = vpack.c.b16 %v2394, %v2386
    %v3019 = vpack.c.b16 %v2395, %v2387
    %v3020 = vpack.c.b16 %v2396, %v2388
    %v3021 = vpack.c.b16 %v2397, %v2389
    %v3022 = vpack.c.b16 %v2398, %v2390
    %v3023 = vpack.c.b16 %v2407, %v2399
    %v3024 = vpack.c.b16 %v2408, %v2400
    %v3025 = vpack.c.b16 %v2409, %v2401
    %v3026 = vpack.c.b16 %v2410, %v2402
    %v3027 = vpack.c.b16 %v2411, %v2403
    %v3028 = vpack.c.b16 %v2412, %v2404
    %v3029 = vpack.c.b16 %v2413, %v2405
    %v3030 = vpack.c.b16 %v2414, %v2406
    %v3031 = vpack.c.b16 %v2423, %v2415
    %v3032 = vpack.c.b16 %v2424, %v2416
    %v3033 = vpack.c.b16 %v2425, %v2417
    %v3034 = vpack.c.b16 %v2426, %v2418
    %v3035 = vpack.c.b16 %v2427, %v2419
    %v3036 = vpack.c.b16 %v2428, %v2420
    %v3037 = vpack.c.b16 %v2429, %v2421
    %v3038 = vpack.c.b16 %v2430, %v2422
    %v3039 = vpack.c.b16 %v2439, %v2431
    %v3040 = vpack.c.b16 %v2440, %v2432
    %v3041 = vpack.c.b16 %v2441, %v2433
    %v3042 = vpack.c.b16 %v2442, %v2434
    %v3043 = vpack.c.b16 %v2443, %v2435
    %v3044 = vpack.c.b16 %v2444, %v2436
    %v3045 = vpack.c.b16 %v2445, %v2437
    %v3046 = vpack.c.b16 %v2446, %v2438
    %v3047 = vpack.c.b16 %v2455, %v2447
    %v3048 = vpack.c.b16 %v2456, %v2448
    %v3049 = vpack.c.b16 %v2457, %v2449
    %v3050 = vpack.c.b16 %v2458, %v2450
    %v3051 = vpack.c.b16 %v2459, %v2451
    %v3052 = vpack.c.b16 %v2460, %v2452
    %v3053 = vpack.c.b16 %v2461, %v2453
    %v3054 = vpack.c.b16 %v2462, %v2454
    %v3055 = vpack.c.b16 %v2471, %v2463
    %v3056 = vpack.c.b16 %v2472, %v2464
    %v3057 = vpack.c.b16 %v2473, %v2465
    %v3058 = vpack.c.b16 %v2474, %v2466
    %v3059 = vpack.c.b16 %v2475, %v2467
    %v3060 = vpack.c.b16 %v2476, %v2468
    %v3061 = vpack.c.b16 %v2477, %v2469
    %v3062 = vpack.c.b16 %v2478, %v2470
    %v3063 = vpack.c.b16 %v2487, %v2479
    %v3064 = vpack.c.b16 %v2488, %v2480
    %v3065 = vpack.c.b16 %v2489, %v2481
    %v3066 = vpack.c.b16 %v2490, %v2482
    %v3067 = vpack.c.b16 %v2491, %v2483
    %v3068 = vpack.c.b16 %v2492, %v2484
    %v3069 = vpack.c.b16 %v2493, %v2485
    %v3070 = vpack.c.b16 %v2494, %v2486
    %3647 = vmatprep.subr.bf16.mxu0 %v2496
    %3648 = vmatpush1.bf16.msra.mxu0 %v2495
    %3649 = vmatprep.subr.bf16.mxu0 %v2504
    %3650 = vmatpush1.bf16.msra.mxu0 %v2503
    %3651 = vmatprep.subr.bf16.mxu0 %v2512
    %3652 = vmatpush1.bf16.msra.mxu0 %v2511
    %3653 = vmatprep.subr.bf16.mxu0 %v2520
    %3654 = vmatpush1.bf16.msra.mxu0 %v2519
    %3655 = vmatprep.subr.bf16.mxu0 %v2528
    %3656 = vmatpush1.bf16.msra.mxu0 %v2527
    %3657 = vmatprep.subr.bf16.mxu0 %v2536
    %3658 = vmatpush1.bf16.msra.mxu0 %v2535
    %3659 = vmatprep.subr.bf16.mxu0 %v2544
    %3660 = vmatpush1.bf16.msra.mxu0 %v2543
    %3661 = vmatprep.subr.bf16.mxu0 %v2552
    %3662 = vmatpush1.bf16.msra.mxu0 %v2551
    %3663 = vmatprep.subr.bf16.mxu0 %v2560
    %3664 = vmatpush1.bf16.msra.mxu0 %v2559
    %3665 = vmatprep.subr.bf16.mxu0 %v2568
    %3666 = vmatpush1.bf16.msra.mxu0 %v2567
    %3667 = vmatprep.subr.bf16.mxu0 %v2576
    %3668 = vmatpush1.bf16.msra.mxu0 %v2575
    %3669 = vmatprep.subr.bf16.mxu0 %v2584
    %3670 = vmatpush1.bf16.msra.mxu0 %v2583
    %3671 = vmatprep.subr.bf16.mxu0 %v2592
    %3672 = vmatpush1.bf16.msra.mxu0 %v2591
    %3673 = vmatprep.subr.bf16.mxu0 %v2600
    %3674 = vmatpush1.bf16.msra.mxu0 %v2599
    %3675 = vmatprep.subr.bf16.mxu0 %v2608
    %3676 = vmatpush1.bf16.msra.mxu0 %v2607
    %3677 = vmatprep.subr.bf16.mxu0 %v2616
    %3678 = vmatpush1.bf16.msra.mxu0 %v2615
    %3679 = vmatprep.mubr.bf16.mxu0 %v183
    %3680 = vmatmul.mubr.bf16.gmra.mrb[0].mxu0 %v182
    %v3681 = vpop.f32.mrb[0].mxu0
    %v3682 = vadd.f32 0.0, %v3681
    %v3683 = vpop.f32.mrb[0].mxu0
    %v3684 = vadd.f32 0.0, %v3683
    %v3685 = vpop.f32.mrb[0].mxu0
    %v3686 = vpop.f32.mrb[0].mxu0
    %3687 = vdwg.mxu0
    %3688 = vmatprep.subr.bf16.mxu0 %v2624
    %3689 = vmatpush1.bf16.msra.mxu0 %v2623
    %3690 = vmatprep.subr.bf16.mxu0 %v2632
    %3691 = vmatpush1.bf16.msra.mxu0 %v2631
    %3692 = vmatprep.subr.bf16.mxu0 %v2640
    %3693 = vmatpush1.bf16.msra.mxu0 %v2639
    %3694 = vmatprep.subr.bf16.mxu0 %v2648
    %3695 = vmatpush1.bf16.msra.mxu0 %v2647
    %3696 = vmatprep.subr.bf16.mxu0 %v2656
    %3697 = vmatpush1.bf16.msra.mxu0 %v2655
    %3698 = vmatprep.subr.bf16.mxu0 %v2664
    %3699 = vmatpush1.bf16.msra.mxu0 %v2663
    %3700 = vmatprep.subr.bf16.mxu0 %v2672
    %3701 = vmatpush1.bf16.msra.mxu0 %v2671
    %3702 = vmatprep.subr.bf16.mxu0 %v2680
    %3703 = vmatpush1.bf16.msra.mxu0 %v2679
    %3704 = vmatprep.subr.bf16.mxu0 %v2688
    %3705 = vmatpush1.bf16.msra.mxu0 %v2687
    %3706 = vmatprep.subr.bf16.mxu0 %v2696
    %3707 = vmatpush1.bf16.msra.mxu0 %v2695
    %3708 = vmatprep.subr.bf16.mxu0 %v2704
    %3709 = vmatpush1.bf16.msra.mxu0 %v2703
    %3710 = vmatprep.subr.bf16.mxu0 %v2712
    %3711 = vmatpush1.bf16.msra.mxu0 %v2711
    %3712 = vmatprep.subr.bf16.mxu0 %v2720
    %3713 = vmatpush1.bf16.msra.mxu0 %v2719
    %3714 = vmatprep.subr.bf16.mxu0 %v2728
    %3715 = vmatpush1.bf16.msra.mxu0 %v2727
    %3716 = vmatprep.subr.bf16.mxu0 %v2736
    %3717 = vmatpush1.bf16.msra.mxu0 %v2735
    %3718 = vmatprep.subr.bf16.mxu0 %v2744
    %3719 = vmatpush1.bf16.msra.mxu0 %v2743
    %3720 = vmatprep.mubr.bf16.mxu0 %v185
    %3721 = vmatmul.mubr.bf16.gmra.mrb[0].mxu0 %v184
    %v3722 = vpop.f32.mrb[0].mxu0
    %v3723 = vadd.f32 %v3682, %v3722
    %v3724 = vpop.f32.mrb[0].mxu0
    %v3725 = vadd.f32 %v3684, %v3724
    %v3726 = vpop.f32.mrb[0].mxu0
    %v3727 = vpop.f32.mrb[0].mxu0
    %3728 = vdwg.mxu0
    %3729 = vmatprep.subr.bf16.mxu0 %v2752
    %3730 = vmatpush1.bf16.msra.mxu0 %v2751
    %3731 = vmatprep.subr.bf16.mxu0 %v2760
    %3732 = vmatpush1.bf16.msra.mxu0 %v2759
    %3733 = vmatprep.subr.bf16.mxu0 %v2768
    %3734 = vmatpush1.bf16.msra.mxu0 %v2767
    %3735 = vmatprep.subr.bf16.mxu0 %v2776
    %3736 = vmatpush1.bf16.msra.mxu0 %v2775
    %3737 = vmatprep.subr.bf16.mxu0 %v2784
    %3738 = vmatpush1.bf16.msra.mxu0 %v2783
    %3739 = vmatprep.subr.bf16.mxu0 %v2792
    %3740 = vmatpush1.bf16.msra.mxu0 %v2791
    %3741 = vmatprep.subr.bf16.mxu0 %v2800
    %3742 = vmatpush1.bf16.msra.mxu0 %v2799
    %3743 = vmatprep.subr.bf16.mxu0 %v2808
    %3744 = vmatpush1.bf16.msra.mxu0 %v2807
    %3745 = vmatprep.subr.bf16.mxu0 %v2816
    %3746 = vmatpush1.bf16.msra.mxu0 %v2815
    %3747 = vmatprep.subr.bf16.mxu0 %v2824
    %3748 = vmatpush1.bf16.msra.mxu0 %v2823
    %3749 = vmatprep.subr.bf16.mxu0 %v2832
    %3750 = vmatpush1.bf16.msra.mxu0 %v2831
    %3751 = vmatprep.subr.bf16.mxu0 %v2840
    %3752 = vmatpush1.bf16.msra.mxu0 %v2839
    %3753 = vmatprep.subr.bf16.mxu0 %v2848
    %3754 = vmatpush1.bf16.msra.mxu0 %v2847
    %3755 = vmatprep.subr.bf16.mxu0 %v2856
    %3756 = vmatpush1.bf16.msra.mxu0 %v2855
    %3757 = vmatprep.subr.bf16.mxu0 %v2864
    %3758 = vmatpush1.bf16.msra.mxu0 %v2863
    %3759 = vmatprep.subr.bf16.mxu0 %v2872
    %3760 = vmatpush1.bf16.msra.mxu0 %v2871
    %3761 = vmatprep.mubr.bf16.mxu0 %v187
    %3762 = vmatmul.mubr.bf16.gmra.mrb[0].mxu0 %v186
    %v3763 = vpop.f32.mrb[0].mxu0
    %v3764 = vadd.f32 %v3723, %v3763
    %v3765 = vpop.f32.mrb[0].mxu0
    %v3766 = vadd.f32 %v3725, %v3765
    %v3767 = vpop.f32.mrb[0].mxu0
    %v3768 = vpop.f32.mrb[0].mxu0
    %3769 = vdwg.mxu0
    %3770 = vmatprep.subr.bf16.mxu0 %v2880
    %3771 = vmatpush1.bf16.msra.mxu0 %v2879
    %3772 = vmatprep.subr.bf16.mxu0 %v2888
    %3773 = vmatpush1.bf16.msra.mxu0 %v2887
    %3774 = vmatprep.subr.bf16.mxu0 %v2896
    %3775 = vmatpush1.bf16.msra.mxu0 %v2895
    %3776 = vmatprep.subr.bf16.mxu0 %v2904
    %3777 = vmatpush1.bf16.msra.mxu0 %v2903
    %3778 = vmatprep.subr.bf16.mxu0 %v2912
    %3779 = vmatpush1.bf16.msra.mxu0 %v2911
    %3780 = vmatprep.subr.bf16.mxu0 %v2920
    %3781 = vmatpush1.bf16.msra.mxu0 %v2919
    %3782 = vmatprep.subr.bf16.mxu0 %v2928
    %3783 = vmatpush1.bf16.msra.mxu0 %v2927
    %3784 = vmatprep.subr.bf16.mxu0 %v2936
    %3785 = vmatpush1.bf16.msra.mxu0 %v2935
    %3786 = vmatprep.subr.bf16.mxu0 %v2944
    %3787 = vmatpush1.bf16.msra.mxu0 %v2943
    %3788 = vmatprep.subr.bf16.mxu0 %v2952
    %3789 = vmatpush1.bf16.msra.mxu0 %v2951
    %3790 = vmatprep.subr.bf16.mxu0 %v2960
    %3791 = vmatpush1.bf16.msra.mxu0 %v2959
    %3792 = vmatprep.subr.bf16.mxu0 %v2968
    %3793 = vmatpush1.bf16.msra.mxu0 %v2967
    %3794 = vmatprep.subr.bf16.mxu0 %v2976
    %3795 = vmatpush1.bf16.msra.mxu0 %v2975
    %3796 = vmatprep.subr.bf16.mxu0 %v2984
    %3797 = vmatpush1.bf16.msra.mxu0 %v2983
    %3798 = vmatprep.subr.bf16.mxu0 %v2992
    %3799 = vmatpush1.bf16.msra.mxu0 %v2991
    %3800 = vmatprep.subr.bf16.mxu0 %v3000
    %3801 = vmatpush1.bf16.msra.mxu0 %v2999
    %3802 = vmatprep.mubr.bf16.mxu0 %v189
    %3803 = vmatmul.mubr.bf16.gmra.mrb[0].mxu0 %v188
    %v3804 = vpop.f32.mrb[0].mxu0
    %v3805 = vadd.f32 %v3764, %v3804
    %v3806 = vpop.f32.mrb[0].mxu0
    %v3807 = vadd.f32 %v3766, %v3806
    %v3808 = vpop.f32.mrb[0].mxu0
    %v3809 = vpop.f32.mrb[0].mxu0
    %3810 = vdwg.mxu0
    %3811 = vmatprep.subr.bf16.mxu0 %v3008
    %3812 = vmatpush1.bf16.msra.mxu0 %v3007
    %3813 = vmatprep.subr.bf16.mxu0 %v3016
    %3814 = vmatpush1.bf16.msra.mxu0 %v3015
    %3815 = vmatprep.subr.bf16.mxu0 %v3024
    %3816 = vmatpush1.bf16.msra.mxu0 %v3023
    %3817 = vmatprep.subr.bf16.mxu0 %v3032
    %3818 = vmatpush1.bf16.msra.mxu0 %v3031
    %3819 = vmatprep.subr.bf16.mxu0 %v3040
    %3820 = vmatpush1.bf16.msra.mxu0 %v3039
    %3821 = vmatprep.subr.bf16.mxu0 %v3048
    %3822 = vmatpush1.bf16.msra.mxu0 %v3047
    %3823 = vmatprep.subr.bf16.mxu0 %v3056
    %3824 = vmatpush1.bf16.msra.mxu0 %v3055
    %3825 = vmatprep.subr.bf16.mxu0 %v3064
    %3826 = vmatpush1.bf16.msra.mxu0 %v3063
    %3827 = vmatprep.subr.bf16.mxu0 0
    %3828 = vmatpush1.bf16.msra.mxu0 0
    %3829 = vmatprep.subr.bf16.mxu0 0
    %3830 = vmatpush1.bf16.msra.mxu0 0
    %3831 = vmatprep.subr.bf16.mxu0 0
    %3832 = vmatpush1.bf16.msra.mxu0 0
    %3833 = vmatprep.subr.bf16.mxu0 0
    %3834 = vmatpush1.bf16.msra.mxu0 0
    %3835 = vmatprep.subr.bf16.mxu0 0
    %3836 = vmatpush1.bf16.msra.mxu0 0
    %3837 = vmatprep.subr.bf16.mxu0 0
    %3838 = vmatpush1.bf16.msra.mxu0 0
    %3839 = vmatprep.subr.bf16.mxu0 0
    %3840 = vmatpush1.bf16.msra.mxu0 0
    %3841 = vmatprep.subr.bf16.mxu0 0
    %3842 = vmatpush1.bf16.msra.mxu0 0
    %3843 = vmatprep.mubr.bf16.mxu0 0
    %3844 = vmatmul.mubr.bf16.gmra.mrb[0].mxu0 %v190
    %v3845 = vpop.f32.mrb[0].mxu0
    %v3846 = vadd.f32 %v3805, %v3845
    %v3847 = vpop.f32.mrb[0].mxu0
    %v3848 = vadd.f32 %v3807, %v3847
    %v3849 = vpop.f32.mrb[0].mxu0
    %v3850 = vpop.f32.mrb[0].mxu0
    %3851 = vdwg.mxu0
    %3852 = vmatprep.subr.bf16.mxu0 %v2498
    %3853 = vmatpush1.bf16.msra.mxu0 %v2497
    %3854 = vmatprep.subr.bf16.mxu0 %v2506
    %3855 = vmatpush1.bf16.msra.mxu0 %v2505
    %3856 = vmatprep.subr.bf16.mxu0 %v2514
    %3857 = vmatpush1.bf16.msra.mxu0 %v2513
    %3858 = vmatprep.subr.bf16.mxu0 %v2522
    %3859 = vmatpush1.bf16.msra.mxu0 %v2521
    %3860 = vmatprep.subr.bf16.mxu0 %v2530
    %3861 = vmatpush1.bf16.msra.mxu0 %v2529
    %3862 = vmatprep.subr.bf16.mxu0 %v2538
    %3863 = vmatpush1.bf16.msra.mxu0 %v2537
    %3864 = vmatprep.subr.bf16.mxu0 %v2546
    %3865 = vmatpush1.bf16.msra.mxu0 %v2545
    %3866 = vmatprep.subr.bf16.mxu0 %v2554
    %3867 = vmatpush1.bf16.msra.mxu0 %v2553
    %3868 = vmatprep.subr.bf16.mxu0 %v2562
    %3869 = vmatpush1.bf16.msra.mxu0 %v2561
    %3870 = vmatprep.subr.bf16.mxu0 %v2570
    %3871 = vmatpush1.bf16.msra.mxu0 %v2569
    %3872 = vmatprep.subr.bf16.mxu0 %v2578
    %3873 = vmatpush1.bf16.msra.mxu0 %v2577
    %3874 = vmatprep.subr.bf16.mxu0 %v2586
    %3875 = vmatpush1.bf16.msra.mxu0 %v2585
    %3876 = vmatprep.subr.bf16.mxu0 %v2594
    %3877 = vmatpush1.bf16.msra.mxu0 %v2593
    %3878 = vmatprep.subr.bf16.mxu0 %v2602
    %3879 = vmatpush1.bf16.msra.mxu0 %v2601
    %3880 = vmatprep.subr.bf16.mxu0 %v2610
    %3881 = vmatpush1.bf16.msra.mxu0 %v2609
    %3882 = vmatprep.subr.bf16.mxu0 %v2618
    %3883 = vmatpush1.bf16.msra.mxu0 %v2617
    %3884 = vmatprep.mubr.bf16.mxu0 %v183
    %3885 = vmatmul.mubr.bf16.gmra.mrb[0].mxu0 %v182
    %v3886 = vpop.f32.mrb[0].mxu0
    %v3887 = vadd.f32 0.0, %v3886
    %v3888 = vpop.f32.mrb[0].mxu0
    %v3889 = vadd.f32 0.0, %v3888
    %v3890 = vpop.f32.mrb[0].mxu0
    %v3891 = vpop.f32.mrb[0].mxu0
    %3892 = vdwg.mxu0
    %3893 = vmatprep.subr.bf16.mxu0 %v2626
    %3894 = vmatpush1.bf16.msra.mxu0 %v2625
    %3895 = vmatprep.subr.bf16.mxu0 %v2634
    %3896 = vmatpush1.bf16.msra.mxu0 %v2633
    %3897 = vmatprep.subr.bf16.mxu0 %v2642
    %3898 = vmatpush1.bf16.msra.mxu0 %v2641
    %3899 = vmatprep.subr.bf16.mxu0 %v2650
    %3900 = vmatpush1.bf16.msra.mxu0 %v2649
    %3901 = vmatprep.subr.bf16.mxu0 %v2658
    %3902 = vmatpush1.bf16.msra.mxu0 %v2657
    %3903 = vmatprep.subr.bf16.mxu0 %v2666
    %3904 = vmatpush1.bf16.msra.mxu0 %v2665
    %3905 = vmatprep.subr.bf16.mxu0 %v2674
    %3906 = vmatpush1.bf16.msra.mxu0 %v2673
    %3907 = vmatprep.subr.bf16.mxu0 %v2682
    %3908 = vmatpush1.bf16.msra.mxu0 %v2681
    %3909 = vmatprep.subr.bf16.mxu0 %v2690
    %3910 = vmatpush1.bf16.msra.mxu0 %v2689
    %3911 = vmatprep.subr.bf16.mxu0 %v2698
    %3912 = vmatpush1.bf16.msra.mxu0 %v2697
    %3913 = vmatprep.subr.bf16.mxu0 %v2706
    %3914 = vmatpush1.bf16.msra.mxu0 %v2705
    %3915 = vmatprep.subr.bf16.mxu0 %v2714
    %3916 = vmatpush1.bf16.msra.mxu0 %v2713
    %3917 = vmatprep.subr.bf16.mxu0 %v2722
    %3918 = vmatpush1.bf16.msra.mxu0 %v2721
    %3919 = vmatprep.subr.bf16.mxu0 %v2730
    %3920 = vmatpush1.bf16.msra.mxu0 %v2729
    %3921 = vmatprep.subr.bf16.mxu0 %v2738
    %3922 = vmatpush1.bf16.msra.mxu0 %v2737
    %3923 = vmatprep.subr.bf16.mxu0 %v2746
    %3924 = vmatpush1.bf16.msra.mxu0 %v2745
    %3925 = vmatprep.mubr.bf16.mxu0 %v185
    %3926 = vmatmul.mubr.bf16.gmra.mrb[0].mxu0 %v184
    %v3927 = vpop.f32.mrb[0].mxu0
    %v3928 = vadd.f32 %v3887, %v3927
    %v3929 = vpop.f32.mrb[0].mxu0
    %v3930 = vadd.f32 %v3889, %v3929
    %v3931 = vpop.f32.mrb[0].mxu0
    %v3932 = vpop.f32.mrb[0].mxu0
    %3933 = vdwg.mxu0
    %3934 = vmatprep.subr.bf16.mxu0 %v2754
    %3935 = vmatpush1.bf16.msra.mxu0 %v2753
    %3936 = vmatprep.subr.bf16.mxu0 %v2762
    %3937 = vmatpush1.bf16.msra.mxu0 %v2761
    %3938 = vmatprep.subr.bf16.mxu0 %v2770
    %3939 = vmatpush1.bf16.msra.mxu0 %v2769
    %3940 = vmatprep.subr.bf16.mxu0 %v2778
    %3941 = vmatpush1.bf16.msra.mxu0 %v2777
    %3942 = vmatprep.subr.bf16.mxu0 %v2786
    %3943 = vmatpush1.bf16.msra.mxu0 %v2785
    %3944 = vmatprep.subr.bf16.mxu0 %v2794
    %3945 = vmatpush1.bf16.msra.mxu0 %v2793
    %3946 = vmatprep.subr.bf16.mxu0 %v2802
    %3947 = vmatpush1.bf16.msra.mxu0 %v2801
    %3948 = vmatprep.subr.bf16.mxu0 %v2810
    %3949 = vmatpush1.bf16.msra.mxu0 %v2809
    %3950 = vmatprep.subr.bf16.mxu0 %v2818
    %3951 = vmatpush1.bf16.msra.mxu0 %v2817
    %3952 = vmatprep.subr.bf16.mxu0 %v2826
    %3953 = vmatpush1.bf16.msra.mxu0 %v2825
    %3954 = vmatprep.subr.bf16.mxu0 %v2834
    %3955 = vmatpush1.bf16.msra.mxu0 %v2833
    %3956 = vmatprep.subr.bf16.mxu0 %v2842
    %3957 = vmatpush1.bf16.msra.mxu0 %v2841
    %3958 = vmatprep.subr.bf16.mxu0 %v2850
    %3959 = vmatpush1.bf16.msra.mxu0 %v2849
    %3960 = vmatprep.subr.bf16.mxu0 %v2858
    %3961 = vmatpush1.bf16.msra.mxu0 %v2857
    %3962 = vmatprep.subr.bf16.mxu0 %v2866
    %3963 = vmatpush1.bf16.msra.mxu0 %v2865
    %3964 = vmatprep.subr.bf16.mxu0 %v2874
    %3965 = vmatpush1.bf16.msra.mxu0 %v2873
    %3966 = vmatprep.mubr.bf16.mxu0 %v187
    %3967 = vmatmul.mubr.bf16.gmra.mrb[0].mxu0 %v186
    %v3968 = vpop.f32.mrb[0].mxu0
    %v3969 = vadd.f32 %v3928, %v3968
    %v3970 = vpop.f32.mrb[0].mxu0
    %v3971 = vadd.f32 %v3930, %v3970
    %v3972 = vpop.f32.mrb[0].mxu0
    %v3973 = vpop.f32.mrb[0].mxu0
    %3974 = vdwg.mxu0
    %3975 = vmatprep.subr.bf16.mxu0 %v2882
    %3976 = vmatpush1.bf16.msra.mxu0 %v2881
    %3977 = vmatprep.subr.bf16.mxu0 %v2890
    %3978 = vmatpush1.bf16.msra.mxu0 %v2889
    %3979 = vmatprep.subr.bf16.mxu0 %v2898
    %3980 = vmatpush1.bf16.msra.mxu0 %v2897
    %3981 = vmatprep.subr.bf16.mxu0 %v2906
    %3982 = vmatpush1.bf16.msra.mxu0 %v2905
    %3983 = vmatprep.subr.bf16.mxu0 %v2914
    %3984 = vmatpush1.bf16.msra.mxu0 %v2913
    %3985 = vmatprep.subr.bf16.mxu0 %v2922
    %3986 = vmatpush1.bf16.msra.mxu0 %v2921
    %3987 = vmatprep.subr.bf16.mxu0 %v2930
    %3988 = vmatpush1.bf16.msra.mxu0 %v2929
    %3989 = vmatprep.subr.bf16.mxu0 %v2938
    %3990 = vmatpush1.bf16.msra.mxu0 %v2937
    %3991 = vmatprep.subr.bf16.mxu0 %v2946
    %3992 = vmatpush1.bf16.msra.mxu0 %v2945
    %3993 = vmatprep.subr.bf16.mxu0 %v2954
    %3994 = vmatpush1.bf16.msra.mxu0 %v2953
    %3995 = vmatprep.subr.bf16.mxu0 %v2962
    %3996 = vmatpush1.bf16.msra.mxu0 %v2961
    %3997 = vmatprep.subr.bf16.mxu0 %v2970
    %3998 = vmatpush1.bf16.msra.mxu0 %v2969
    %3999 = vmatprep.subr.bf16.mxu0 %v2978
    %4000 = vmatpush1.bf16.msra.mxu0 %v2977
    %4001 = vmatprep.subr.bf16.mxu0 %v2986
    %4002 = vmatpush1.bf16.msra.mxu0 %v2985
    %4003 = vmatprep.subr.bf16.mxu0 %v2994
    %4004 = vmatpush1.bf16.msra.mxu0 %v2993
    %4005 = vmatprep.subr.bf16.mxu0 %v3002
    %4006 = vmatpush1.bf16.msra.mxu0 %v3001
    %4007 = vmatprep.mubr.bf16.mxu0 %v189
    %4008 = vmatmul.mubr.bf16.gmra.mrb[0].mxu0 %v188
    %v4009 = vpop.f32.mrb[0].mxu0
    %v4010 = vadd.f32 %v3969, %v4009
    %v4011 = vpop.f32.mrb[0].mxu0
    %v4012 = vadd.f32 %v3971, %v4011
    %v4013 = vpop.f32.mrb[0].mxu0
    %v4014 = vpop.f32.mrb[0].mxu0
    %4015 = vdwg.mxu0
    %4016 = vmatprep.subr.bf16.mxu0 %v3010
    %4017 = vmatpush1.bf16.msra.mxu0 %v3009
    %4018 = vmatprep.subr.bf16.mxu0 %v3018
    %4019 = vmatpush1.bf16.msra.mxu0 %v3017
    %4020 = vmatprep.subr.bf16.mxu0 %v3026
    %4021 = vmatpush1.bf16.msra.mxu0 %v3025
    %4022 = vmatprep.subr.bf16.mxu0 %v3034
    %4023 = vmatpush1.bf16.msra.mxu0 %v3033
    %4024 = vmatprep.subr.bf16.mxu0 %v3042
    %4025 = vmatpush1.bf16.msra.mxu0 %v3041
    %4026 = vmatprep.subr.bf16.mxu0 %v3050
    %4027 = vmatpush1.bf16.msra.mxu0 %v3049
    %4028 = vmatprep.subr.bf16.mxu0 %v3058
    %4029 = vmatpush1.bf16.msra.mxu0 %v3057
    %4030 = vmatprep.subr.bf16.mxu0 %v3066
    %4031 = vmatpush1.bf16.msra.mxu0 %v3065
    %4032 = vmatprep.subr.bf16.mxu0 0
    %4033 = vmatpush1.bf16.msra.mxu0 0
    %4034 = vmatprep.subr.bf16.mxu0 0
    %4035 = vmatpush1.bf16.msra.mxu0 0
    %4036 = vmatprep.subr.bf16.mxu0 0
    %4037 = vmatpush1.bf16.msra.mxu0 0
    %4038 = vmatprep.subr.bf16.mxu0 0
    %4039 = vmatpush1.bf16.msra.mxu0 0
    %4040 = vmatprep.subr.bf16.mxu0 0
    %4041 = vmatpush1.bf16.msra.mxu0 0
    %4042 = vmatprep.subr.bf16.mxu0 0
    %4043 = vmatpush1.bf16.msra.mxu0 0
    %4044 = vmatprep.subr.bf16.mxu0 0
    %4045 = vmatpush1.bf16.msra.mxu0 0
    %4046 = vmatprep.subr.bf16.mxu0 0
    %4047 = vmatpush1.bf16.msra.mxu0 0
    %4048 = vmatprep.mubr.bf16.mxu0 0
    %4049 = vmatmul.mubr.bf16.gmra.mrb[0].mxu0 %v190
    %v4050 = vpop.f32.mrb[0].mxu0
    %v4051 = vadd.f32 %v4010, %v4050
    %v4052 = vpop.f32.mrb[0].mxu0
    %v4053 = vadd.f32 %v4012, %v4052
    %v4054 = vpop.f32.mrb[0].mxu0
    %v4055 = vpop.f32.mrb[0].mxu0
    %4056 = vdwg.mxu0
    %4057 = vmatprep.subr.bf16.mxu0 %v2500
    %4058 = vmatpush1.bf16.msra.mxu0 %v2499
    %4059 = vmatprep.subr.bf16.mxu0 %v2508
    %4060 = vmatpush1.bf16.msra.mxu0 %v2507
    %4061 = vmatprep.subr.bf16.mxu0 %v2516
    %4062 = vmatpush1.bf16.msra.mxu0 %v2515
    %4063 = vmatprep.subr.bf16.mxu0 %v2524
    %4064 = vmatpush1.bf16.msra.mxu0 %v2523
    %4065 = vmatprep.subr.bf16.mxu0 %v2532
    %4066 = vmatpush1.bf16.msra.mxu0 %v2531
    %4067 = vmatprep.subr.bf16.mxu0 %v2540
    %4068 = vmatpush1.bf16.msra.mxu0 %v2539
    %4069 = vmatprep.subr.bf16.mxu0 %v2548
    %4070 = vmatpush1.bf16.msra.mxu0 %v2547
    %4071 = vmatprep.subr.bf16.mxu0 %v2556
    %4072 = vmatpush1.bf16.msra.mxu0 %v2555
    %4073 = vmatprep.subr.bf16.mxu0 %v2564
    %4074 = vmatpush1.bf16.msra.mxu0 %v2563
    %4075 = vmatprep.subr.bf16.mxu0 %v2572
    %4076 = vmatpush1.bf16.msra.mxu0 %v2571
    %4077 = vmatprep.subr.bf16.mxu0 %v2580
    %4078 = vmatpush1.bf16.msra.mxu0 %v2579
    %4079 = vmatprep.subr.bf16.mxu0 %v2588
    %4080 = vmatpush1.bf16.msra.mxu0 %v2587
    %4081 = vmatprep.subr.bf16.mxu0 %v2596
    %4082 = vmatpush1.bf16.msra.mxu0 %v2595
    %4083 = vmatprep.subr.bf16.mxu0 %v2604
    %4084 = vmatpush1.bf16.msra.mxu0 %v2603
    %4085 = vmatprep.subr.bf16.mxu0 %v2612
    %4086 = vmatpush1.bf16.msra.mxu0 %v2611
    %4087 = vmatprep.subr.bf16.mxu0 %v2620
    %4088 = vmatpush1.bf16.msra.mxu0 %v2619
    %4089 = vmatprep.mubr.bf16.mxu0 %v183
    %4090 = vmatmul.mubr.bf16.gmra.mrb[0].mxu0 %v182
    %v4091 = vpop.f32.mrb[0].mxu0
    %v4092 = vadd.f32 0.0, %v4091
    %v4093 = vpop.f32.mrb[0].mxu0
    %v4094 = vadd.f32 0.0, %v4093
    %v4095 = vpop.f32.mrb[0].mxu0
    %v4096 = vpop.f32.mrb[0].mxu0
    %4097 = vdwg.mxu0
    %4098 = vmatprep.subr.bf16.mxu0 %v2628
    %4099 = vmatpush1.bf16.msra.mxu0 %v2627
    %4100 = vmatprep.subr.bf16.mxu0 %v2636
    %4101 = vmatpush1.bf16.msra.mxu0 %v2635
    %4102 = vmatprep.subr.bf16.mxu0 %v2644
    %4103 = vmatpush1.bf16.msra.mxu0 %v2643
    %4104 = vmatprep.subr.bf16.mxu0 %v2652
    %4105 = vmatpush1.bf16.msra.mxu0 %v2651
    %4106 = vmatprep.subr.bf16.mxu0 %v2660
    %4107 = vmatpush1.bf16.msra.mxu0 %v2659
    %4108 = vmatprep.subr.bf16.mxu0 %v2668
    %4109 = vmatpush1.bf16.msra.mxu0 %v2667
    %4110 = vmatprep.subr.bf16.mxu0 %v2676
    %4111 = vmatpush1.bf16.msra.mxu0 %v2675
    %4112 = vmatprep.subr.bf16.mxu0 %v2684
    %4113 = vmatpush1.bf16.msra.mxu0 %v2683
    %4114 = vmatprep.subr.bf16.mxu0 %v2692
    %4115 = vmatpush1.bf16.msra.mxu0 %v2691
    %4116 = vmatprep.subr.bf16.mxu0 %v2700
    %4117 = vmatpush1.bf16.msra.mxu0 %v2699
    %4118 = vmatprep.subr.bf16.mxu0 %v2708
    %4119 = vmatpush1.bf16.msra.mxu0 %v2707
    %4120 = vmatprep.subr.bf16.mxu0 %v2716
    %4121 = vmatpush1.bf16.msra.mxu0 %v2715
    %4122 = vmatprep.subr.bf16.mxu0 %v2724
    %4123 = vmatpush1.bf16.msra.mxu0 %v2723
    %4124 = vmatprep.subr.bf16.mxu0 %v2732
    %4125 = vmatpush1.bf16.msra.mxu0 %v2731
    %4126 = vmatprep.subr.bf16.mxu0 %v2740
    %4127 = vmatpush1.bf16.msra.mxu0 %v2739
    %4128 = vmatprep.subr.bf16.mxu0 %v2748
    %4129 = vmatpush1.bf16.msra.mxu0 %v2747
    %4130 = vmatprep.mubr.bf16.mxu0 %v185
    %4131 = vmatmul.mubr.bf16.gmra.mrb[0].mxu0 %v184
    %v4132 = vpop.f32.mrb[0].mxu0
    %v4133 = vadd.f32 %v4092, %v4132
    %v4134 = vpop.f32.mrb[0].mxu0
    %v4135 = vadd.f32 %v4094, %v4134
    %v4136 = vpop.f32.mrb[0].mxu0
    %v4137 = vpop.f32.mrb[0].mxu0
    %4138 = vdwg.mxu0
    %4139 = vmatprep.subr.bf16.mxu0 %v2756
    %4140 = vmatpush1.bf16.msra.mxu0 %v2755
    %4141 = vmatprep.subr.bf16.mxu0 %v2764
    %4142 = vmatpush1.bf16.msra.mxu0 %v2763
    %4143 = vmatprep.subr.bf16.mxu0 %v2772
    %4144 = vmatpush1.bf16.msra.mxu0 %v2771
    %4145 = vmatprep.subr.bf16.mxu0 %v2780
    %4146 = vmatpush1.bf16.msra.mxu0 %v2779
    %4147 = vmatprep.subr.bf16.mxu0 %v2788
    %4148 = vmatpush1.bf16.msra.mxu0 %v2787
    %4149 = vmatprep.subr.bf16.mxu0 %v2796
    %4150 = vmatpush1.bf16.msra.mxu0 %v2795
    %4151 = vmatprep.subr.bf16.mxu0 %v2804
    %4152 = vmatpush1.bf16.msra.mxu0 %v2803
    %4153 = vmatprep.subr.bf16.mxu0 %v2812
    %4154 = vmatpush1.bf16.msra.mxu0 %v2811
    %4155 = vmatprep.subr.bf16.mxu0 %v2820
    %4156 = vmatpush1.bf16.msra.mxu0 %v2819
    %4157 = vmatprep.subr.bf16.mxu0 %v2828
    %4158 = vmatpush1.bf16.msra.mxu0 %v2827
    %4159 = vmatprep.subr.bf16.mxu0 %v2836
    %4160 = vmatpush1.bf16.msra.mxu0 %v2835
    %4161 = vmatprep.subr.bf16.mxu0 %v2844
    %4162 = vmatpush1.bf16.msra.mxu0 %v2843
    %4163 = vmatprep.subr.bf16.mxu0 %v2852
    %4164 = vmatpush1.bf16.msra.mxu0 %v2851
    %4165 = vmatprep.subr.bf16.mxu0 %v2860
    %4166 = vmatpush1.bf16.msra.mxu0 %v2859
    %4167 = vmatprep.subr.bf16.mxu0 %v2868
    %4168 = vmatpush1.bf16.msra.mxu0 %v2867
    %4169 = vmatprep.subr.bf16.mxu0 %v2876
    %4170 = vmatpush1.bf16.msra.mxu0 %v2875
    %4171 = vmatprep.mubr.bf16.mxu0 %v187
    %4172 = vmatmul.mubr.bf16.gmra.mrb[0].mxu0 %v186
    %v4173 = vpop.f32.mrb[0].mxu0
    %v4174 = vadd.f32 %v4133, %v4173
    %v4175 = vpop.f32.mrb[0].mxu0
    %v4176 = vadd.f32 %v4135, %v4175
    %v4177 = vpop.f32.mrb[0].mxu0
    %v4178 = vpop.f32.mrb[0].mxu0
    %4179 = vdwg.mxu0
    %4180 = vmatprep.subr.bf16.mxu0 %v2884
    %4181 = vmatpush1.bf16.msra.mxu0 %v2883
    %4182 = vmatprep.subr.bf16.mxu0 %v2892
    %4183 = vmatpush1.bf16.msra.mxu0 %v2891
    %4184 = vmatprep.subr.bf16.mxu0 %v2900
    %4185 = vmatpush1.bf16.msra.mxu0 %v2899
    %4186 = vmatprep.subr.bf16.mxu0 %v2908
    %4187 = vmatpush1.bf16.msra.mxu0 %v2907
    %4188 = vmatprep.subr.bf16.mxu0 %v2916
    %4189 = vmatpush1.bf16.msra.mxu0 %v2915
    %4190 = vmatprep.subr.bf16.mxu0 %v2924
    %4191 = vmatpush1.bf16.msra.mxu0 %v2923
    %4192 = vmatprep.subr.bf16.mxu0 %v2932
    %4193 = vmatpush1.bf16.msra.mxu0 %v2931
    %4194 = vmatprep.subr.bf16.mxu0 %v2940
    %4195 = vmatpush1.bf16.msra.mxu0 %v2939
    %4196 = vmatprep.subr.bf16.mxu0 %v2948
    %4197 = vmatpush1.bf16.msra.mxu0 %v2947
    %4198 = vmatprep.subr.bf16.mxu0 %v2956
    %4199 = vmatpush1.bf16.msra.mxu0 %v2955
    %4200 = vmatprep.subr.bf16.mxu0 %v2964
    %4201 = vmatpush1.bf16.msra.mxu0 %v2963
    %4202 = vmatprep.subr.bf16.mxu0 %v2972
    %4203 = vmatpush1.bf16.msra.mxu0 %v2971
    %4204 = vmatprep.subr.bf16.mxu0 %v2980
    %4205 = vmatpush1.bf16.msra.mxu0 %v2979
    %4206 = vmatprep.subr.bf16.mxu0 %v2988
    %4207 = vmatpush1.bf16.msra.mxu0 %v2987
    %4208 = vmatprep.subr.bf16.mxu0 %v2996
    %4209 = vmatpush1.bf16.msra.mxu0 %v2995
    %4210 = vmatprep.subr.bf16.mxu0 %v3004
    %4211 = vmatpush1.bf16.msra.mxu0 %v3003
    %4212 = vmatprep.mubr.bf16.mxu0 %v189
    %4213 = vmatmul.mubr.bf16.gmra.mrb[0].mxu0 %v188
    %v4214 = vpop.f32.mrb[0].mxu0
    %v4215 = vadd.f32 %v4174, %v4214
    %v4216 = vpop.f32.mrb[0].mxu0
    %v4217 = vadd.f32 %v4176, %v4216
    %v4218 = vpop.f32.mrb[0].mxu0
    %v4219 = vpop.f32.mrb[0].mxu0
    %4220 = vdwg.mxu0
    %4221 = vmatprep.subr.bf16.mxu0 %v3012
    %4222 = vmatpush1.bf16.msra.mxu0 %v3011
    %4223 = vmatprep.subr.bf16.mxu0 %v3020
    %4224 = vmatpush1.bf16.msra.mxu0 %v3019
    %4225 = vmatprep.subr.bf16.mxu0 %v3028
    %4226 = vmatpush1.bf16.msra.mxu0 %v3027
    %4227 = vmatprep.subr.bf16.mxu0 %v3036
    %4228 = vmatpush1.bf16.msra.mxu0 %v3035
    %4229 = vmatprep.subr.bf16.mxu0 %v3044
    %4230 = vmatpush1.bf16.msra.mxu0 %v3043
    %4231 = vmatprep.subr.bf16.mxu0 %v3052
    %4232 = vmatpush1.bf16.msra.mxu0 %v3051
    %4233 = vmatprep.subr.bf16.mxu0 %v3060
    %4234 = vmatpush1.bf16.msra.mxu0 %v3059
    %4235 = vmatprep.subr.bf16.mxu0 %v3068
    %4236 = vmatpush1.bf16.msra.mxu0 %v3067
    %4237 = vmatprep.subr.bf16.mxu0 0
    %4238 = vmatpush1.bf16.msra.mxu0 0
    %4239 = vmatprep.subr.bf16.mxu0 0
    %4240 = vmatpush1.bf16.msra.mxu0 0
    %4241 = vmatprep.subr.bf16.mxu0 0
    %4242 = vmatpush1.bf16.msra.mxu0 0
    %4243 = vmatprep.subr.bf16.mxu0 0
    %4244 = vmatpush1.bf16.msra.mxu0 0
    %4245 = vmatprep.subr.bf16.mxu0 0
    %4246 = vmatpush1.bf16.msra.mxu0 0
    %4247 = vmatprep.subr.bf16.mxu0 0
    %4248 = vmatpush1.bf16.msra.mxu0 0
    %4249 = vmatprep.subr.bf16.mxu0 0
    %4250 = vmatpush1.bf16.msra.mxu0 0
    %4251 = vmatprep.subr.bf16.mxu0 0
    %4252 = vmatpush1.bf16.msra.mxu0 0
    %4253 = vmatprep.mubr.bf16.mxu0 0
    %4254 = vmatmul.mubr.bf16.gmra.mrb[0].mxu0 %v190
    %v4255 = vpop.f32.mrb[0].mxu0
    %v4256 = vadd.f32 %v4215, %v4255
    %v4257 = vpop.f32.mrb[0].mxu0
    %v4258 = vadd.f32 %v4217, %v4257
    %v4259 = vpop.f32.mrb[0].mxu0
    %v4260 = vpop.f32.mrb[0].mxu0
    %4261 = vdwg.mxu0
    %4262 = vmatprep.subr.bf16.mxu0 %v2502
    %4263 = vmatpush1.bf16.msra.mxu0 %v2501
    %4264 = vmatprep.subr.bf16.mxu0 %v2510
    %4265 = vmatpush1.bf16.msra.mxu0 %v2509
    %4266 = vmatprep.subr.bf16.mxu0 %v2518
    %4267 = vmatpush1.bf16.msra.mxu0 %v2517
    %4268 = vmatprep.subr.bf16.mxu0 %v2526
    %4269 = vmatpush1.bf16.msra.mxu0 %v2525
    %4270 = vmatprep.subr.bf16.mxu0 %v2534
    %4271 = vmatpush1.bf16.msra.mxu0 %v2533
    %4272 = vmatprep.subr.bf16.mxu0 %v2542
    %4273 = vmatpush1.bf16.msra.mxu0 %v2541
    %4274 = vmatprep.subr.bf16.mxu0 %v2550
    %4275 = vmatpush1.bf16.msra.mxu0 %v2549
    %4276 = vmatprep.subr.bf16.mxu0 %v2558
    %4277 = vmatpush1.bf16.msra.mxu0 %v2557
    %4278 = vmatprep.subr.bf16.mxu0 %v2566
    %4279 = vmatpush1.bf16.msra.mxu0 %v2565
    %4280 = vmatprep.subr.bf16.mxu0 %v2574
    %4281 = vmatpush1.bf16.msra.mxu0 %v2573
    %4282 = vmatprep.subr.bf16.mxu0 %v2582
    %4283 = vmatpush1.bf16.msra.mxu0 %v2581
    %4284 = vmatprep.subr.bf16.mxu0 %v2590
    %4285 = vmatpush1.bf16.msra.mxu0 %v2589
    %4286 = vmatprep.subr.bf16.mxu0 %v2598
    %4287 = vmatpush1.bf16.msra.mxu0 %v2597
    %4288 = vmatprep.subr.bf16.mxu0 %v2606
    %4289 = vmatpush1.bf16.msra.mxu0 %v2605
    %4290 = vmatprep.subr.bf16.mxu0 %v2614
    %4291 = vmatpush1.bf16.msra.mxu0 %v2613
    %4292 = vmatprep.subr.bf16.mxu0 %v2622
    %4293 = vmatpush1.bf16.msra.mxu0 %v2621
    %4294 = vmatprep.mubr.bf16.mxu0 %v183
    %4295 = vmatmul.mubr.bf16.gmra.mrb[0].mxu0 %v182
    %v4296 = vpop.f32.mrb[0].mxu0
    %v4297 = vadd.f32 0.0, %v4296
    %v4298 = vpop.f32.mrb[0].mxu0
    %v4299 = vadd.f32 0.0, %v4298
    %v4300 = vpop.f32.mrb[0].mxu0
    %v4301 = vpop.f32.mrb[0].mxu0
    %4302 = vdwg.mxu0
    %4303 = vmatprep.subr.bf16.mxu0 %v2630
    %4304 = vmatpush1.bf16.msra.mxu0 %v2629
    %4305 = vmatprep.subr.bf16.mxu0 %v2638
    %4306 = vmatpush1.bf16.msra.mxu0 %v2637
    %4307 = vmatprep.subr.bf16.mxu0 %v2646
    %4308 = vmatpush1.bf16.msra.mxu0 %v2645
    %4309 = vmatprep.subr.bf16.mxu0 %v2654
    %4310 = vmatpush1.bf16.msra.mxu0 %v2653
    %4311 = vmatprep.subr.bf16.mxu0 %v2662
    %4312 = vmatpush1.bf16.msra.mxu0 %v2661
    %4313 = vmatprep.subr.bf16.mxu0 %v2670
    %4314 = vmatpush1.bf16.msra.mxu0 %v2669
    %4315 = vmatprep.subr.bf16.mxu0 %v2678
    %4316 = vmatpush1.bf16.msra.mxu0 %v2677
    %4317 = vmatprep.subr.bf16.mxu0 %v2686
    %4318 = vmatpush1.bf16.msra.mxu0 %v2685
    %4319 = vmatprep.subr.bf16.mxu0 %v2694
    %4320 = vmatpush1.bf16.msra.mxu0 %v2693
    %4321 = vmatprep.subr.bf16.mxu0 %v2702
    %4322 = vmatpush1.bf16.msra.mxu0 %v2701
    %4323 = vmatprep.subr.bf16.mxu0 %v2710
    %4324 = vmatpush1.bf16.msra.mxu0 %v2709
    %4325 = vmatprep.subr.bf16.mxu0 %v2718
    %4326 = vmatpush1.bf16.msra.mxu0 %v2717
    %4327 = vmatprep.subr.bf16.mxu0 %v2726
    %4328 = vmatpush1.bf16.msra.mxu0 %v2725
    %4329 = vmatprep.subr.bf16.mxu0 %v2734
    %4330 = vmatpush1.bf16.msra.mxu0 %v2733
    %4331 = vmatprep.subr.bf16.mxu0 %v2742
    %4332 = vmatpush1.bf16.msra.mxu0 %v2741
    %4333 = vmatprep.subr.bf16.mxu0 %v2750
    %4334 = vmatpush1.bf16.msra.mxu0 %v2749
    %4335 = vmatprep.mubr.bf16.mxu0 %v185
    %4336 = vmatmul.mubr.bf16.gmra.mrb[0].mxu0 %v184
    %v4337 = vpop.f32.mrb[0].mxu0
    %v4338 = vadd.f32 %v4297, %v4337
    %v4339 = vpop.f32.mrb[0].mxu0
    %v4340 = vadd.f32 %v4299, %v4339
    %v4341 = vpop.f32.mrb[0].mxu0
    %v4342 = vpop.f32.mrb[0].mxu0
    %4343 = vdwg.mxu0
    %4344 = vmatprep.subr.bf16.mxu0 %v2758
    %4345 = vmatpush1.bf16.msra.mxu0 %v2757
    %4346 = vmatprep.subr.bf16.mxu0 %v2766
    %4347 = vmatpush1.bf16.msra.mxu0 %v2765
    %4348 = vmatprep.subr.bf16.mxu0 %v2774
    %4349 = vmatpush1.bf16.msra.mxu0 %v2773
    %4350 = vmatprep.subr.bf16.mxu0 %v2782
    %4351 = vmatpush1.bf16.msra.mxu0 %v2781
    %4352 = vmatprep.subr.bf16.mxu0 %v2790
    %4353 = vmatpush1.bf16.msra.mxu0 %v2789
    %4354 = vmatprep.subr.bf16.mxu0 %v2798
    %4355 = vmatpush1.bf16.msra.mxu0 %v2797
    %4356 = vmatprep.subr.bf16.mxu0 %v2806
    %4357 = vmatpush1.bf16.msra.mxu0 %v2805
    %4358 = vmatprep.subr.bf16.mxu0 %v2814
    %4359 = vmatpush1.bf16.msra.mxu0 %v2813
    %4360 = vmatprep.subr.bf16.mxu0 %v2822
    %4361 = vmatpush1.bf16.msra.mxu0 %v2821
    %4362 = vmatprep.subr.bf16.mxu0 %v2830
    %4363 = vmatpush1.bf16.msra.mxu0 %v2829
    %4364 = vmatprep.subr.bf16.mxu0 %v2838
    %4365 = vmatpush1.bf16.msra.mxu0 %v2837
    %4366 = vmatprep.subr.bf16.mxu0 %v2846
    %4367 = vmatpush1.bf16.msra.mxu0 %v2845
    %4368 = vmatprep.subr.bf16.mxu0 %v2854
    %4369 = vmatpush1.bf16.msra.mxu0 %v2853
    %4370 = vmatprep.subr.bf16.mxu0 %v2862
    %4371 = vmatpush1.bf16.msra.mxu0 %v2861
    %4372 = vmatprep.subr.bf16.mxu0 %v2870
    %4373 = vmatpush1.bf16.msra.mxu0 %v2869
    %4374 = vmatprep.subr.bf16.mxu0 %v2878
    %4375 = vmatpush1.bf16.msra.mxu0 %v2877
    %4376 = vmatprep.mubr.bf16.mxu0 %v187
    %4377 = vmatmul.mubr.bf16.gmra.mrb[0].mxu0 %v186
    %v4378 = vpop.f32.mrb[0].mxu0
    %v4379 = vadd.f32 %v4338, %v4378
    %v4380 = vpop.f32.mrb[0].mxu0
    %v4381 = vadd.f32 %v4340, %v4380
    %v4382 = vpop.f32.mrb[0].mxu0
    %v4383 = vpop.f32.mrb[0].mxu0
    %4384 = vdwg.mxu0
    %4385 = vmatprep.subr.bf16.mxu0 %v2886
    %4386 = vmatpush1.bf16.msra.mxu0 %v2885
    %4387 = vmatprep.subr.bf16.mxu0 %v2894
    %4388 = vmatpush1.bf16.msra.mxu0 %v2893
    %4389 = vmatprep.subr.bf16.mxu0 %v2902
    %4390 = vmatpush1.bf16.msra.mxu0 %v2901
    %4391 = vmatprep.subr.bf16.mxu0 %v2910
    %4392 = vmatpush1.bf16.msra.mxu0 %v2909
    %4393 = vmatprep.subr.bf16.mxu0 %v2918
    %4394 = vmatpush1.bf16.msra.mxu0 %v2917
    %4395 = vmatprep.subr.bf16.mxu0 %v2926
    %4396 = vmatpush1.bf16.msra.mxu0 %v2925
    %4397 = vmatprep.subr.bf16.mxu0 %v2934
    %4398 = vmatpush1.bf16.msra.mxu0 %v2933
    %4399 = vmatprep.subr.bf16.mxu0 %v2942
    %4400 = vmatpush1.bf16.msra.mxu0 %v2941
    %4401 = vmatprep.subr.bf16.mxu0 %v2950
    %4402 = vmatpush1.bf16.msra.mxu0 %v2949
    %4403 = vmatprep.subr.bf16.mxu0 %v2958
    %4404 = vmatpush1.bf16.msra.mxu0 %v2957
    %4405 = vmatprep.subr.bf16.mxu0 %v2966
    %4406 = vmatpush1.bf16.msra.mxu0 %v2965
    %4407 = vmatprep.subr.bf16.mxu0 %v2974
    %4408 = vmatpush1.bf16.msra.mxu0 %v2973
    %4409 = vmatprep.subr.bf16.mxu0 %v2982
    %4410 = vmatpush1.bf16.msra.mxu0 %v2981
    %4411 = vmatprep.subr.bf16.mxu0 %v2990
    %4412 = vmatpush1.bf16.msra.mxu0 %v2989
    %4413 = vmatprep.subr.bf16.mxu0 %v2998
    %4414 = vmatpush1.bf16.msra.mxu0 %v2997
    %4415 = vmatprep.subr.bf16.mxu0 %v3006
    %4416 = vmatpush1.bf16.msra.mxu0 %v3005
    %4417 = vmatprep.mubr.bf16.mxu0 %v189
    %4418 = vmatmul.mubr.bf16.gmra.mrb[0].mxu0 %v188
    %v4419 = vpop.f32.mrb[0].mxu0
    %v4420 = vadd.f32 %v4379, %v4419
    %v4421 = vpop.f32.mrb[0].mxu0
    %v4422 = vadd.f32 %v4381, %v4421
    %v4423 = vpop.f32.mrb[0].mxu0
    %v4424 = vpop.f32.mrb[0].mxu0
    %4425 = vdwg.mxu0
    %4426 = vmatprep.subr.bf16.mxu0 %v3014
    %4427 = vmatpush1.bf16.msra.mxu0 %v3013
    %4428 = vmatprep.subr.bf16.mxu0 %v3022
    %4429 = vmatpush1.bf16.msra.mxu0 %v3021
    %4430 = vmatprep.subr.bf16.mxu0 %v3030
    %4431 = vmatpush1.bf16.msra.mxu0 %v3029
    %4432 = vmatprep.subr.bf16.mxu0 %v3038
    %4433 = vmatpush1.bf16.msra.mxu0 %v3037
    %4434 = vmatprep.subr.bf16.mxu0 %v3046
    %4435 = vmatpush1.bf16.msra.mxu0 %v3045
    %4436 = vmatprep.subr.bf16.mxu0 %v3054
    %4437 = vmatpush1.bf16.msra.mxu0 %v3053
    %4438 = vmatprep.subr.bf16.mxu0 %v3062
    %4439 = vmatpush1.bf16.msra.mxu0 %v3061
    %4440 = vmatprep.subr.bf16.mxu0 %v3070
    %4441 = vmatpush1.bf16.msra.mxu0 %v3069
    %4442 = vmatprep.subr.bf16.mxu0 0
    %4443 = vmatpush1.bf16.msra.mxu0 0
    %4444 = vmatprep.subr.bf16.mxu0 0
    %4445 = vmatpush1.bf16.msra.mxu0 0
    %4446 = vmatprep.subr.bf16.mxu0 0
    %4447 = vmatpush1.bf16.msra.mxu0 0
    %4448 = vmatprep.subr.bf16.mxu0 0
    %4449 = vmatpush1.bf16.msra.mxu0 0
    %4450 = vmatprep.subr.bf16.mxu0 0
    %4451 = vmatpush1.bf16.msra.mxu0 0
    %4452 = vmatprep.subr.bf16.mxu0 0
    %4453 = vmatpush1.bf16.msra.mxu0 0
    %4454 = vmatprep.subr.bf16.mxu0 0
    %4455 = vmatpush1.bf16.msra.mxu0 0
    %4456 = vmatprep.subr.bf16.mxu0 0
    %4457 = vmatpush1.bf16.msra.mxu0 0
    %4458 = vmatprep.mubr.bf16.mxu0 0
    %4459 = vmatmul.mubr.bf16.gmra.mrb[0].mxu0 %v190
    %v4460 = vpop.f32.mrb[0].mxu0
    %v4461 = vadd.f32 %v4420, %v4460
    %v4462 = vpop.f32.mrb[0].mxu0
    %v4463 = vadd.f32 %v4422, %v4462
    %v4464 = vpop.f32.mrb[0].mxu0
    %v4465 = vpop.f32.mrb[0].mxu0
    %4466 = vdwg.mxu0
    %v4467 = vrot.slane %v3846, 4
    %v4468 = vadd.f32 %v3846, %v4467
    %v4469 = vrot.slane %v4468, 2
    %v4470 = vadd.f32 %v4468, %v4469
    %v4471 = vrot.slane %v4470, 1
    %v4472 = vadd.f32 %v4470, %v4471
    %v4473 = vrot.slane %v3848, 4
    %v4474 = vadd.f32 %v3848, %v4473
    %v4475 = vrot.slane %v4474, 2
    %v4476 = vadd.f32 %v4474, %v4475
    %v4477 = vrot.slane %v4476, 1
    %v4478 = vadd.f32 %v4476, %v4477
    %v4479 = vrot.slane %v4051, 4
    %v4480 = vadd.f32 %v4051, %v4479
    %v4481 = vrot.slane %v4480, 2
    %v4482 = vadd.f32 %v4480, %v4481
    %v4483 = vrot.slane %v4482, 1
    %v4484 = vadd.f32 %v4482, %v4483
    %v4485 = vrot.slane %v4053, 4
    %v4486 = vadd.f32 %v4053, %v4485
    %v4487 = vrot.slane %v4486, 2
    %v4488 = vadd.f32 %v4486, %v4487
    %v4489 = vrot.slane %v4488, 1
    %v4490 = vadd.f32 %v4488, %v4489
    %v4491 = vrot.slane %v4256, 4
    %v4492 = vadd.f32 %v4256, %v4491
    %v4493 = vrot.slane %v4492, 2
    %v4494 = vadd.f32 %v4492, %v4493
    %v4495 = vrot.slane %v4494, 1
    %v4496 = vadd.f32 %v4494, %v4495
    %v4497 = vrot.slane %v4258, 4
    %v4498 = vadd.f32 %v4258, %v4497
    %v4499 = vrot.slane %v4498, 2
    %v4500 = vadd.f32 %v4498, %v4499
    %v4501 = vrot.slane %v4500, 1
    %v4502 = vadd.f32 %v4500, %v4501
    %v4503 = vrot.slane %v4461, 4
    %v4504 = vadd.f32 %v4461, %v4503
    %v4505 = vrot.slane %v4504, 2
    %v4506 = vadd.f32 %v4504, %v4505
    %v4507 = vrot.slane %v4506, 1
    %v4508 = vadd.f32 %v4506, %v4507
    %v4509 = vrot.slane %v4463, 4
    %v4510 = vadd.f32 %v4463, %v4509
    %v4511 = vrot.slane %v4510, 2
    %v4512 = vadd.f32 %v4510, %v4511
    %v4513 = vrot.slane %v4512, 1
    %v4514 = vadd.f32 %v4512, %v4513
    %v4515 = vmul.f32 %v4472, 0.125
    %v4516 = vmul.f32 %v4478, 0.125
    %v4517 = vmul.f32 %v4484, 0.125
    %v4518 = vmul.f32 %v4490, 0.125
    %v4519 = vmul.f32 %v4496, 0.125
    %v4520 = vmul.f32 %v4502, 0.125
    %v4521 = vmul.f32 %v4508, 0.125
    %v4522 = vmul.f32 %v4514, 0.125
    %v4523 = vmul.f32 %v3846, %v3846
    %v4524 = vmul.f32 %v3848, %v3848
    %v4525 = vmul.f32 %v4051, %v4051
    %v4526 = vmul.f32 %v4053, %v4053
    %v4527 = vmul.f32 %v4256, %v4256
    %v4528 = vmul.f32 %v4258, %v4258
    %v4529 = vmul.f32 %v4461, %v4461
    %v4530 = vmul.f32 %v4463, %v4463
    %v4531 = vrot.slane %v4523, 4
    %v4532 = vadd.f32 %v4523, %v4531
    %v4533 = vrot.slane %v4532, 2
    %v4534 = vadd.f32 %v4532, %v4533
    %v4535 = vrot.slane %v4534, 1
    %v4536 = vadd.f32 %v4534, %v4535
    %v4537 = vrot.slane %v4524, 4
    %v4538 = vadd.f32 %v4524, %v4537
    %v4539 = vrot.slane %v4538, 2
    %v4540 = vadd.f32 %v4538, %v4539
    %v4541 = vrot.slane %v4540, 1
    %v4542 = vadd.f32 %v4540, %v4541
    %v4543 = vrot.slane %v4525, 4
    %v4544 = vadd.f32 %v4525, %v4543
    %v4545 = vrot.slane %v4544, 2
    %v4546 = vadd.f32 %v4544, %v4545
    %v4547 = vrot.slane %v4546, 1
    %v4548 = vadd.f32 %v4546, %v4547
    %v4549 = vrot.slane %v4526, 4
    %v4550 = vadd.f32 %v4526, %v4549
    %v4551 = vrot.slane %v4550, 2
    %v4552 = vadd.f32 %v4550, %v4551
    %v4553 = vrot.slane %v4552, 1
    %v4554 = vadd.f32 %v4552, %v4553
    %v4555 = vrot.slane %v4527, 4
    %v4556 = vadd.f32 %v4527, %v4555
    %v4557 = vrot.slane %v4556, 2
    %v4558 = vadd.f32 %v4556, %v4557
    %v4559 = vrot.slane %v4558, 1
    %v4560 = vadd.f32 %v4558, %v4559
    %v4561 = vrot.slane %v4528, 4
    %v4562 = vadd.f32 %v4528, %v4561
    %v4563 = vrot.slane %v4562, 2
    %v4564 = vadd.f32 %v4562, %v4563
    %v4565 = vrot.slane %v4564, 1
    %v4566 = vadd.f32 %v4564, %v4565
    %v4567 = vrot.slane %v4529, 4
    %v4568 = vadd.f32 %v4529, %v4567
    %v4569 = vrot.slane %v4568, 2
    %v4570 = vadd.f32 %v4568, %v4569
    %v4571 = vrot.slane %v4570, 1
    %v4572 = vadd.f32 %v4570, %v4571
    %v4573 = vrot.slane %v4530, 4
    %v4574 = vadd.f32 %v4530, %v4573
    %v4575 = vrot.slane %v4574, 2
    %v4576 = vadd.f32 %v4574, %v4575
    %v4577 = vrot.slane %v4576, 1
    %v4578 = vadd.f32 %v4576, %v4577
    %v4579 = vmul.f32 %v4536, 0.125
    %v4580 = vmul.f32 %v4542, 0.125
    %v4581 = vmul.f32 %v4548, 0.125
    %v4582 = vmul.f32 %v4554, 0.125
    %v4583 = vmul.f32 %v4560, 0.125
    %v4584 = vmul.f32 %v4566, 0.125
    %v4585 = vmul.f32 %v4572, 0.125
    %v4586 = vmul.f32 %v4578, 0.125
    %v4587 = vmul.f32 %v4515, %v4515
    %v4588 = vmul.f32 %v4516, %v4516
    %v4589 = vmul.f32 %v4517, %v4517
    %v4590 = vmul.f32 %v4518, %v4518
    %v4591 = vmul.f32 %v4519, %v4519
    %v4592 = vmul.f32 %v4520, %v4520
    %v4593 = vmul.f32 %v4521, %v4521
    %v4594 = vmul.f32 %v4522, %v4522
    %v4595 = vsub.f32 %v4579, %v4587
    %v4596 = vsub.f32 %v4580, %v4588
    %v4597 = vsub.f32 %v4581, %v4589
    %v4598 = vsub.f32 %v4582, %v4590
    %v4599 = vsub.f32 %v4583, %v4591
    %v4600 = vsub.f32 %v4584, %v4592
    %v4601 = vsub.f32 %v4585, %v4593
    %v4602 = vsub.f32 %v4586, %v4594
    %v4603 = vmax.f32 %v4595, 0.0
    %v4604 = vmax.f32 %v4596, 0.0
    %v4605 = vmax.f32 %v4597, 0.0
    %v4606 = vmax.f32 %v4598, 0.0
    %v4607 = vmax.f32 %v4599, 0.0
    %v4608 = vmax.f32 %v4600, 0.0
    %v4609 = vmax.f32 %v4601, 0.0
    %v4610 = vmax.f32 %v4602, 0.0
    %v4611 = vsub.f32 %v3846, %v4515
    %v4612 = vsub.f32 %v3848, %v4516
    %v4613 = vsub.f32 %v4051, %v4517
    %v4614 = vsub.f32 %v4053, %v4518
    %v4615 = vsub.f32 %v4256, %v4519
    %v4616 = vsub.f32 %v4258, %v4520
    %v4617 = vsub.f32 %v4461, %v4521
    %v4618 = vsub.f32 %v4463, %v4522
    %v4619 = vadd.f32 %v4603, 1e-05
    %v4620 = vadd.f32 %v4604, 1e-05
    %v4621 = vadd.f32 %v4605, 1e-05
    %v4622 = vadd.f32 %v4606, 1e-05
    %v4623 = vadd.f32 %v4607, 1e-05
    %v4624 = vadd.f32 %v4608, 1e-05
    %v4625 = vadd.f32 %v4609, 1e-05
    %v4626 = vadd.f32 %v4610, 1e-05
    %v4627 = vrsqrt.pop %v4619
    %v4628 = vrsqrt.pop %v4620
    %v4629 = vrsqrt.pop %v4621
    %v4630 = vrsqrt.pop %v4622
    %v4631 = vrsqrt.pop %v4623
    %v4632 = vrsqrt.pop %v4624
    %v4633 = vrsqrt.pop %v4625
    %v4634 = vrsqrt.pop %v4626
    %v4635 = vmul.f32 %v4611, %v4627
    %v4636 = vmul.f32 %v4612, %v4628
    %v4637 = vmul.f32 %v4613, %v4629
    %v4638 = vmul.f32 %v4614, %v4630
    %v4639 = vmul.f32 %v4615, %v4631
    %v4640 = vmul.f32 %v4616, %v4632
    %v4641 = vmul.f32 %v4617, %v4633
    %v4642 = vmul.f32 %v4618, %v4634
    %v4643 = vld [vmem:[#allocation10] sm:$0xff]
    %v4645 = vlaneseq
    %v4646 = vshrl.u32 %v4645, 7
    %v4647 = vsub.s32 0, %v4646
    %v4648 = vrot.slane %v4643, %v4647
    %v4649 = vlaneseq
    %v4650 = vshrl.u32 %v4649, 7
    %v4651 = vsub.s32 1, %v4650
    %v4652 = vrot.slane %v4643, %v4651
    %v4653 = vlaneseq
    %v4654 = vshrl.u32 %v4653, 7
    %v4655 = vsub.s32 2, %v4654
    %v4656 = vrot.slane %v4643, %v4655
    %v4657 = vlaneseq
    %v4658 = vshrl.u32 %v4657, 7
    %v4659 = vsub.s32 3, %v4658
    %v4660 = vrot.slane %v4643, %v4659
    %v4661 = vlaneseq
    %v4662 = vshrl.u32 %v4661, 7
    %v4663 = vsub.s32 4, %v4662
    %v4664 = vrot.slane %v4643, %v4663
    %v4665 = vlaneseq
    %v4666 = vshrl.u32 %v4665, 7
    %v4667 = vsub.s32 5, %v4666
    %v4668 = vrot.slane %v4643, %v4667
    %v4669 = vlaneseq
    %v4670 = vshrl.u32 %v4669, 7
    %v4671 = vsub.s32 6, %v4670
    %v4672 = vrot.slane %v4643, %v4671
    %v4673 = vlaneseq
    %v4674 = vshrl.u32 %v4673, 7
    %v4675 = vsub.s32 7, %v4674
    %v4676 = vrot.slane %v4643, %v4675
    %v4685 = vmul.f32 %v4648, %v4635
    %v4686 = vmul.f32 %v4652, %v4636
    %v4687 = vmul.f32 %v4656, %v4637
    %v4688 = vmul.f32 %v4660, %v4638
    %v4689 = vmul.f32 %v4664, %v4639
    %v4690 = vmul.f32 %v4668, %v4640
    %v4691 = vmul.f32 %v4672, %v4641
    %v4692 = vmul.f32 %v4676, %v4642
    %v4693 = vld [vmem:[#allocation11] sm:$0xff]
    %v4695 = vlaneseq
    %v4696 = vshrl.u32 %v4695, 7
    %v4697 = vsub.s32 0, %v4696
    %v4698 = vrot.slane %v4693, %v4697
    %v4699 = vlaneseq
    %v4700 = vshrl.u32 %v4699, 7
    %v4701 = vsub.s32 1, %v4700
    %v4702 = vrot.slane %v4693, %v4701
    %v4703 = vlaneseq
    %v4704 = vshrl.u32 %v4703, 7
    %v4705 = vsub.s32 2, %v4704
    %v4706 = vrot.slane %v4693, %v4705
    %v4707 = vlaneseq
    %v4708 = vshrl.u32 %v4707, 7
    %v4709 = vsub.s32 3, %v4708
    %v4710 = vrot.slane %v4693, %v4709
    %v4711 = vlaneseq
    %v4712 = vshrl.u32 %v4711, 7
    %v4713 = vsub.s32 4, %v4712
    %v4714 = vrot.slane %v4693, %v4713
    %v4715 = vlaneseq
    %v4716 = vshrl.u32 %v4715, 7
    %v4717 = vsub.s32 5, %v4716
    %v4718 = vrot.slane %v4693, %v4717
    %v4719 = vlaneseq
    %v4720 = vshrl.u32 %v4719, 7
    %v4721 = vsub.s32 6, %v4720
    %v4722 = vrot.slane %v4693, %v4721
    %v4723 = vlaneseq
    %v4724 = vshrl.u32 %v4723, 7
    %v4725 = vsub.s32 7, %v4724
    %v4726 = vrot.slane %v4693, %v4725
    %v4735 = vadd.f32 %v4685, %v4698
    %v4736 = vadd.f32 %v4686, %v4702
    %v4737 = vadd.f32 %v4687, %v4706
    %v4738 = vadd.f32 %v4688, %v4710
    %v4739 = vadd.f32 %v4689, %v4714
    %v4740 = vadd.f32 %v4690, %v4718
    %v4741 = vadd.f32 %v4691, %v4722
    %v4742 = vadd.f32 %v4692, %v4726
    %v4743 = vmax.f32 %v4735, 0.0
    %v4744 = vmax.f32 %v4736, 0.0
    %v4745 = vmax.f32 %v4737, 0.0
    %v4746 = vmax.f32 %v4738, 0.0
    %v4747 = vmax.f32 %v4739, 0.0
    %v4748 = vmax.f32 %v4740, 0.0
    %v4749 = vmax.f32 %v4741, 0.0
    %v4750 = vmax.f32 %v4742, 0.0
    %v4751 = vld [vmem:[#allocation5] sm:$0xff]
    %v4752 = vld [vmem:[#allocation5 + $0x8] sm:$0xff]
    %v4753 = vld [vmem:[#allocation5 + $0x10] sm:$0xff]
    %v4754 = vld [vmem:[#allocation5 + $0x18] sm:$0xff]
    %v4755 = vld [vmem:[#allocation5 + $0x20] sm:$0xff]
    %v4756 = vld [vmem:[#allocation5 + $0x28] sm:$0xff]
    %v4757 = vld [vmem:[#allocation5 + $0x30] sm:$0xff]
    %v4758 = vld [vmem:[#allocation5 + $0x38] sm:$0xff]
    %v4759 = vmul.f32 %v4743, %v4751
    %v4760 = vmul.f32 %v4744, %v4752
    %v4761 = vmul.f32 %v4745, %v4753
    %v4762 = vmul.f32 %v4746, %v4754
    %v4763 = vmul.f32 %v4747, %v4755
    %v4764 = vmul.f32 %v4748, %v4756
    %v4765 = vmul.f32 %v4749, %v4757
    %v4766 = vmul.f32 %v4750, %v4758
    %v4767 = vpack.c.bf16 %v4759, %v4759
    %v4768 = vpack.c.bf16 %v4760, %v4760
    %v4769 = vpack.c.bf16 %v4761, %v4761
    %v4770 = vpack.c.bf16 %v4762, %v4762
    %v4771 = vpack.c.bf16 %v4763, %v4763
    %v4772 = vpack.c.bf16 %v4764, %v4764
    %v4773 = vpack.c.bf16 %v4765, %v4765
    %v4774 = vpack.c.bf16 %v4766, %v4766
    %v4775 = vld [vmem:[#allocation13] sm:$0xff]
    %v4776 = vld [vmem:[#allocation13 + $0x8] sm:$0xff]
    %v4777 = vld [vmem:[#allocation13 + $0x10] sm:$0xff]
    %v4778 = vld [vmem:[#allocation13 + $0x18] sm:$0xff]
    %v4779 = vld [vmem:[#allocation13 + $0x20] sm:$0xff]
    %v4780 = vld [vmem:[#allocation13 + $0x28] sm:$0xff]
    %v4781 = vld [vmem:[#allocation13 + $0x30] sm:$0xff]
    %v4782 = vld [vmem:[#allocation13 + $0x38] sm:$0xff]
    %v4783 = vld [vmem:[#allocation13 + $0x40] sm:$0xff]
    %v4784 = vld [vmem:[#allocation13 + $0x48] sm:$0xff]
    %v4785 = vld [vmem:[#allocation13 + $0x50] sm:$0xff]
    %v4786 = vld [vmem:[#allocation13 + $0x58] sm:$0xff]
    %v4787 = vld [vmem:[#allocation13 + $0x60] sm:$0xff]
    %v4788 = vld [vmem:[#allocation13 + $0x68] sm:$0xff]
    %v4789 = vld [vmem:[#allocation13 + $0x70] sm:$0xff]
    %v4790 = vld [vmem:[#allocation13 + $0x78] sm:$0xff]
    %v4791 = vld [vmem:[#allocation13 + $0x80] sm:$0xff]
    %v4792 = vld [vmem:[#allocation13 + $0x88] sm:$0xff]
    %v4793 = vld [vmem:[#allocation13 + $0x90] sm:$0xff]
    %v4794 = vld [vmem:[#allocation13 + $0x98] sm:$0xff]
    %v4795 = vld [vmem:[#allocation13 + $0xa0] sm:$0xff]
    %v4796 = vld [vmem:[#allocation13 + $0xa8] sm:$0xff]
    %v4797 = vld [vmem:[#allocation13 + $0xb0] sm:$0xff]
    %v4798 = vld [vmem:[#allocation13 + $0xb8] sm:$0xff]
    %v4799 = vld [vmem:[#allocation13 + $0xc0] sm:$0xff]
    %v4800 = vld [vmem:[#allocation13 + $0xc8] sm:$0xff]
    %v4801 = vld [vmem:[#allocation13 + $0xd0] sm:$0xff]
    %v4802 = vld [vmem:[#allocation13 + $0xd8] sm:$0xff]
    %v4803 = vld [vmem:[#allocation13 + $0xe0] sm:$0xff]
    %v4804 = vld [vmem:[#allocation13 + $0xe8] sm:$0xff]
    %v4805 = vld [vmem:[#allocation13 + $0xf0] sm:$0xff]
    %v4806 = vld [vmem:[#allocation13 + $0xf8] sm:$0xff]
    %v4807 = vld [vmem:[#allocation13 + $0x100] sm:$0xff]
    %v4808 = vld [vmem:[#allocation13 + $0x108] sm:$0xff]
    %v4809 = vld [vmem:[#allocation13 + $0x110] sm:$0xff]
    %v4810 = vld [vmem:[#allocation13 + $0x118] sm:$0xff]
    %v4811 = vld [vmem:[#allocation13 + $0x120] sm:$0xff]
    %v4812 = vld [vmem:[#allocation13 + $0x128] sm:$0xff]
    %v4813 = vld [vmem:[#allocation13 + $0x130] sm:$0xff]
    %v4814 = vld [vmem:[#allocation13 + $0x138] sm:$0xff]
    %v4815 = vld [vmem:[#allocation13 + $0x140] sm:$0xff]
    %v4816 = vld [vmem:[#allocation13 + $0x148] sm:$0xff]
    %v4817 = vld [vmem:[#allocation13 + $0x150] sm:$0xff]
    %v4818 = vld [vmem:[#allocation13 + $0x158] sm:$0xff]
    %v4819 = vld [vmem:[#allocation13 + $0x160] sm:$0xff]
    %v4820 = vld [vmem:[#allocation13 + $0x168] sm:$0xff]
    %v4821 = vld [vmem:[#allocation13 + $0x170] sm:$0xff]
    %v4822 = vld [vmem:[#allocation13 + $0x178] sm:$0xff]
    %v4823 = vld [vmem:[#allocation13 + $0x180] sm:$0xff]
    %v4824 = vld [vmem:[#allocation13 + $0x188] sm:$0xff]
    %v4825 = vld [vmem:[#allocation13 + $0x190] sm:$0xff]
    %v4826 = vld [vmem:[#allocation13 + $0x198] sm:$0xff]
    %v4827 = vld [vmem:[#allocation13 + $0x1a0] sm:$0xff]
    %v4828 = vld [vmem:[#allocation13 + $0x1a8] sm:$0xff]
    %v4829 = vld [vmem:[#allocation13 + $0x1b0] sm:$0xff]
    %v4830 = vld [vmem:[#allocation13 + $0x1b8] sm:$0xff]
    %v4831 = vld [vmem:[#allocation13 + $0x1c0] sm:$0xff]
    %v4832 = vld [vmem:[#allocation13 + $0x1c8] sm:$0xff]
    %v4833 = vld [vmem:[#allocation13 + $0x1d0] sm:$0xff]
    %v4834 = vld [vmem:[#allocation13 + $0x1d8] sm:$0xff]
    %v4835 = vld [vmem:[#allocation13 + $0x1e0] sm:$0xff]
    %v4836 = vld [vmem:[#allocation13 + $0x1e8] sm:$0xff]
    %v4837 = vld [vmem:[#allocation13 + $0x1f0] sm:$0xff]
    %v4838 = vld [vmem:[#allocation13 + $0x1f8] sm:$0xff]
    %v4839 = vld [vmem:[#allocation13 + $0x200] sm:$0xff]
    %v4840 = vld [vmem:[#allocation13 + $0x208] sm:$0xff]
    %v4841 = vld [vmem:[#allocation13 + $0x210] sm:$0xff]
    %v4842 = vld [vmem:[#allocation13 + $0x218] sm:$0xff]
    %v4843 = vld [vmem:[#allocation13 + $0x220] sm:$0xff]
    %v4844 = vld [vmem:[#allocation13 + $0x228] sm:$0xff]
    %v4845 = vld [vmem:[#allocation13 + $0x230] sm:$0xff]
    %v4846 = vld [vmem:[#allocation13 + $0x238] sm:$0xff]
    %v4847 = vld [vmem:[#allocation13 + $0x240] sm:$0xff]
    %v4848 = vld [vmem:[#allocation13 + $0x248] sm:$0xff]
    %v4849 = vld [vmem:[#allocation13 + $0x250] sm:$0xff]
    %v4850 = vld [vmem:[#allocation13 + $0x258] sm:$0xff]
    %v4851 = vld [vmem:[#allocation13 + $0x260] sm:$0xff]
    %v4852 = vld [vmem:[#allocation13 + $0x268] sm:$0xff]
    %v4853 = vld [vmem:[#allocation13 + $0x270] sm:$0xff]
    %v4854 = vld [vmem:[#allocation13 + $0x278] sm:$0xff]
    %v4855 = vld [vmem:[#allocation13 + $0x280] sm:$0xff]
    %v4856 = vld [vmem:[#allocation13 + $0x288] sm:$0xff]
    %v4857 = vld [vmem:[#allocation13 + $0x290] sm:$0xff]
    %v4858 = vld [vmem:[#allocation13 + $0x298] sm:$0xff]
    %v4859 = vld [vmem:[#allocation13 + $0x2a0] sm:$0xff]
    %v4860 = vld [vmem:[#allocation13 + $0x2a8] sm:$0xff]
    %v4861 = vld [vmem:[#allocation13 + $0x2b0] sm:$0xff]
    %v4862 = vld [vmem:[#allocation13 + $0x2b8] sm:$0xff]
    %v4863 = vld [vmem:[#allocation13 + $0x2c0] sm:$0xff]
    %v4864 = vld [vmem:[#allocation13 + $0x2c8] sm:$0xff]
    %v4865 = vld [vmem:[#allocation13 + $0x2d0] sm:$0xff]
    %v4866 = vld [vmem:[#allocation13 + $0x2d8] sm:$0xff]
    %v4867 = vld [vmem:[#allocation13 + $0x2e0] sm:$0xff]
    %v4868 = vld [vmem:[#allocation13 + $0x2e8] sm:$0xff]
    %v4869 = vld [vmem:[#allocation13 + $0x2f0] sm:$0xff]
    %v4870 = vld [vmem:[#allocation13 + $0x2f8] sm:$0xff]
    %v4871 = vld [vmem:[#allocation13 + $0x300] sm:$0xff]
    %v4872 = vld [vmem:[#allocation13 + $0x308] sm:$0xff]
    %v4873 = vld [vmem:[#allocation13 + $0x310] sm:$0xff]
    %v4874 = vld [vmem:[#allocation13 + $0x318] sm:$0xff]
    %v4875 = vld [vmem:[#allocation13 + $0x320] sm:$0xff]
    %v4876 = vld [vmem:[#allocation13 + $0x328] sm:$0xff]
    %v4877 = vld [vmem:[#allocation13 + $0x330] sm:$0xff]
    %v4878 = vld [vmem:[#allocation13 + $0x338] sm:$0xff]
    %v4879 = vld [vmem:[#allocation13 + $0x340] sm:$0xff]
    %v4880 = vld [vmem:[#allocation13 + $0x348] sm:$0xff]
    %v4881 = vld [vmem:[#allocation13 + $0x350] sm:$0xff]
    %v4882 = vld [vmem:[#allocation13 + $0x358] sm:$0xff]
    %v4883 = vld [vmem:[#allocation13 + $0x360] sm:$0xff]
    %v4884 = vld [vmem:[#allocation13 + $0x368] sm:$0xff]
    %v4885 = vld [vmem:[#allocation13 + $0x370] sm:$0xff]
    %v4886 = vld [vmem:[#allocation13 + $0x378] sm:$0xff]
    %v4887 = vld [vmem:[#allocation13 + $0x380] sm:$0xff]
    %v4888 = vld [vmem:[#allocation13 + $0x388] sm:$0xff]
    %v4889 = vld [vmem:[#allocation13 + $0x390] sm:$0xff]
    %v4890 = vld [vmem:[#allocation13 + $0x398] sm:$0xff]
    %v4891 = vld [vmem:[#allocation13 + $0x3a0] sm:$0xff]
    %v4892 = vld [vmem:[#allocation13 + $0x3a8] sm:$0xff]
    %v4893 = vld [vmem:[#allocation13 + $0x3b0] sm:$0xff]
    %v4894 = vld [vmem:[#allocation13 + $0x3b8] sm:$0xff]
    %v4895 = vld [vmem:[#allocation13 + $0x3c0] sm:$0xff]
    %v4896 = vld [vmem:[#allocation13 + $0x3c8] sm:$0xff]
    %v4897 = vld [vmem:[#allocation13 + $0x3d0] sm:$0xff]
    %v4898 = vld [vmem:[#allocation13 + $0x3d8] sm:$0xff]
    %v4899 = vld [vmem:[#allocation13 + $0x3e0] sm:$0xff]
    %v4900 = vld [vmem:[#allocation13 + $0x3e8] sm:$0xff]
    %v4901 = vld [vmem:[#allocation13 + $0x3f0] sm:$0xff]
    %v4902 = vld [vmem:[#allocation13 + $0x3f8] sm:$0xff]
    %v4903 = vld [vmem:[#allocation13 + $0x400] sm:$0xff]
    %v4904 = vld [vmem:[#allocation13 + $0x408] sm:$0xff]
    %v4905 = vld [vmem:[#allocation13 + $0x410] sm:$0xff]
    %v4906 = vld [vmem:[#allocation13 + $0x418] sm:$0xff]
    %v4907 = vld [vmem:[#allocation13 + $0x420] sm:$0xff]
    %v4908 = vld [vmem:[#allocation13 + $0x428] sm:$0xff]
    %v4909 = vld [vmem:[#allocation13 + $0x430] sm:$0xff]
    %v4910 = vld [vmem:[#allocation13 + $0x438] sm:$0xff]
    %v4911 = vld [vmem:[#allocation13 + $0x440] sm:$0xff]
    %v4912 = vld [vmem:[#allocation13 + $0x448] sm:$0xff]
    %v4913 = vld [vmem:[#allocation13 + $0x450] sm:$0xff]
    %v4914 = vld [vmem:[#allocation13 + $0x458] sm:$0xff]
    %v4915 = vld [vmem:[#allocation13 + $0x460] sm:$0xff]
    %v4916 = vld [vmem:[#allocation13 + $0x468] sm:$0xff]
    %v4917 = vld [vmem:[#allocation13 + $0x470] sm:$0xff]
    %v4918 = vld [vmem:[#allocation13 + $0x478] sm:$0xff]
    %v4919 = vld [vmem:[#allocation13 + $0x480] sm:$0xff]
    %v4920 = vld [vmem:[#allocation13 + $0x488] sm:$0xff]
    %v4921 = vld [vmem:[#allocation13 + $0x490] sm:$0xff]
    %v4922 = vld [vmem:[#allocation13 + $0x498] sm:$0xff]
    %v4923 = vld [vmem:[#allocation13 + $0x4a0] sm:$0xff]
    %v4924 = vld [vmem:[#allocation13 + $0x4a8] sm:$0xff]
    %v4925 = vld [vmem:[#allocation13 + $0x4b0] sm:$0xff]
    %v4926 = vld [vmem:[#allocation13 + $0x4b8] sm:$0xff]
    %v4927 = vld [vmem:[#allocation13 + $0x4c0] sm:$0xff]
    %v4928 = vld [vmem:[#allocation13 + $0x4c8] sm:$0xff]
    %v4929 = vld [vmem:[#allocation13 + $0x4d0] sm:$0xff]
    %v4930 = vld [vmem:[#allocation13 + $0x4d8] sm:$0xff]
    %v4931 = vld [vmem:[#allocation13 + $0x4e0] sm:$0xff]
    %v4932 = vld [vmem:[#allocation13 + $0x4e8] sm:$0xff]
    %v4933 = vld [vmem:[#allocation13 + $0x4f0] sm:$0xff]
    %v4934 = vld [vmem:[#allocation13 + $0x4f8] sm:$0xff]
    %v4935 = vld [vmem:[#allocation13 + $0x500] sm:$0xff]
    %v4936 = vld [vmem:[#allocation13 + $0x508] sm:$0xff]
    %v4937 = vld [vmem:[#allocation13 + $0x510] sm:$0xff]
    %v4938 = vld [vmem:[#allocation13 + $0x518] sm:$0xff]
    %v4939 = vld [vmem:[#allocation13 + $0x520] sm:$0xff]
    %v4940 = vld [vmem:[#allocation13 + $0x528] sm:$0xff]
    %v4941 = vld [vmem:[#allocation13 + $0x530] sm:$0xff]
    %v4942 = vld [vmem:[#allocation13 + $0x538] sm:$0xff]
    %v4943 = vld [vmem:[#allocation13 + $0x540] sm:$0xff]
    %v4944 = vld [vmem:[#allocation13 + $0x548] sm:$0xff]
    %v4945 = vld [vmem:[#allocation13 + $0x550] sm:$0xff]
    %v4946 = vld [vmem:[#allocation13 + $0x558] sm:$0xff]
    %v4947 = vld [vmem:[#allocation13 + $0x560] sm:$0xff]
    %v4948 = vld [vmem:[#allocation13 + $0x568] sm:$0xff]
    %v4949 = vld [vmem:[#allocation13 + $0x570] sm:$0xff]
    %v4950 = vld [vmem:[#allocation13 + $0x578] sm:$0xff]
    %v4951 = vld [vmem:[#allocation13 + $0x580] sm:$0xff]
    %v4952 = vld [vmem:[#allocation13 + $0x588] sm:$0xff]
    %v4953 = vld [vmem:[#allocation13 + $0x590] sm:$0xff]
    %v4954 = vld [vmem:[#allocation13 + $0x598] sm:$0xff]
    %v4955 = vld [vmem:[#allocation13 + $0x5a0] sm:$0xff]
    %v4956 = vld [vmem:[#allocation13 + $0x5a8] sm:$0xff]
    %v4957 = vld [vmem:[#allocation13 + $0x5b0] sm:$0xff]
    %v4958 = vld [vmem:[#allocation13 + $0x5b8] sm:$0xff]
    %v4959 = vld [vmem:[#allocation13 + $0x5c0] sm:$0xff]
    %v4960 = vld [vmem:[#allocation13 + $0x5c8] sm:$0xff]
    %v4961 = vld [vmem:[#allocation13 + $0x5d0] sm:$0xff]
    %v4962 = vld [vmem:[#allocation13 + $0x5d8] sm:$0xff]
    %v4963 = vld [vmem:[#allocation13 + $0x5e0] sm:$0xff]
    %v4964 = vld [vmem:[#allocation13 + $0x5e8] sm:$0xff]
    %v4965 = vld [vmem:[#allocation13 + $0x5f0] sm:$0xff]
    %v4966 = vld [vmem:[#allocation13 + $0x5f8] sm:$0xff]
    %v4967 = vld [vmem:[#allocation13 + $0x600] sm:$0xff]
    %v4968 = vld [vmem:[#allocation13 + $0x608] sm:$0xff]
    %v4969 = vld [vmem:[#allocation13 + $0x610] sm:$0xff]
    %v4970 = vld [vmem:[#allocation13 + $0x618] sm:$0xff]
    %v4971 = vld [vmem:[#allocation13 + $0x620] sm:$0xff]
    %v4972 = vld [vmem:[#allocation13 + $0x628] sm:$0xff]
    %v4973 = vld [vmem:[#allocation13 + $0x630] sm:$0xff]
    %v4974 = vld [vmem:[#allocation13 + $0x638] sm:$0xff]
    %v4975 = vld [vmem:[#allocation13 + $0x640] sm:$0xff]
    %v4976 = vld [vmem:[#allocation13 + $0x648] sm:$0xff]
    %v4977 = vld [vmem:[#allocation13 + $0x650] sm:$0xff]
    %v4978 = vld [vmem:[#allocation13 + $0x658] sm:$0xff]
    %v4979 = vld [vmem:[#allocation13 + $0x660] sm:$0xff]
    %v4980 = vld [vmem:[#allocation13 + $0x668] sm:$0xff]
    %v4981 = vld [vmem:[#allocation13 + $0x670] sm:$0xff]
    %v4982 = vld [vmem:[#allocation13 + $0x678] sm:$0xff]
    %v4983 = vld [vmem:[#allocation13 + $0x680] sm:$0xff]
    %v4984 = vld [vmem:[#allocation13 + $0x688] sm:$0xff]
    %v4985 = vld [vmem:[#allocation13 + $0x690] sm:$0xff]
    %v4986 = vld [vmem:[#allocation13 + $0x698] sm:$0xff]
    %v4987 = vld [vmem:[#allocation13 + $0x6a0] sm:$0xff]
    %v4988 = vld [vmem:[#allocation13 + $0x6a8] sm:$0xff]
    %v4989 = vld [vmem:[#allocation13 + $0x6b0] sm:$0xff]
    %v4990 = vld [vmem:[#allocation13 + $0x6b8] sm:$0xff]
    %v4991 = vld [vmem:[#allocation13 + $0x6c0] sm:$0xff]
    %v4992 = vld [vmem:[#allocation13 + $0x6c8] sm:$0xff]
    %v4993 = vld [vmem:[#allocation13 + $0x6d0] sm:$0xff]
    %v4994 = vld [vmem:[#allocation13 + $0x6d8] sm:$0xff]
    %v4995 = vld [vmem:[#allocation13 + $0x6e0] sm:$0xff]
    %v4996 = vld [vmem:[#allocation13 + $0x6e8] sm:$0xff]
    %v4997 = vld [vmem:[#allocation13 + $0x6f0] sm:$0xff]
    %v4998 = vld [vmem:[#allocation13 + $0x6f8] sm:$0xff]
    %v4999 = vld [vmem:[#allocation13 + $0x700] sm:$0xff]
    %v5000 = vld [vmem:[#allocation13 + $0x708] sm:$0xff]
    %v5001 = vld [vmem:[#allocation13 + $0x710] sm:$0xff]
    %v5002 = vld [vmem:[#allocation13 + $0x718] sm:$0xff]
    %v5003 = vld [vmem:[#allocation13 + $0x720] sm:$0xff]
    %v5004 = vld [vmem:[#allocation13 + $0x728] sm:$0xff]
    %v5005 = vld [vmem:[#allocation13 + $0x730] sm:$0xff]
    %v5006 = vld [vmem:[#allocation13 + $0x738] sm:$0xff]
    %v5007 = vld [vmem:[#allocation13 + $0x740] sm:$0xff]
    %v5008 = vld [vmem:[#allocation13 + $0x748] sm:$0xff]
    %v5009 = vld [vmem:[#allocation13 + $0x750] sm:$0xff]
    %v5010 = vld [vmem:[#allocation13 + $0x758] sm:$0xff]
    %v5011 = vld [vmem:[#allocation13 + $0x760] sm:$0xff]
    %v5012 = vld [vmem:[#allocation13 + $0x768] sm:$0xff]
    %v5013 = vld [vmem:[#allocation13 + $0x770] sm:$0xff]
    %v5014 = vld [vmem:[#allocation13 + $0x778] sm:$0xff]
    %v5015 = vld [vmem:[#allocation13 + $0x780] sm:$0xff]
    %v5016 = vld [vmem:[#allocation13 + $0x788] sm:$0xff]
    %v5017 = vld [vmem:[#allocation13 + $0x790] sm:$0xff]
    %v5018 = vld [vmem:[#allocation13 + $0x798] sm:$0xff]
    %v5019 = vld [vmem:[#allocation13 + $0x7a0] sm:$0xff]
    %v5020 = vld [vmem:[#allocation13 + $0x7a8] sm:$0xff]
    %v5021 = vld [vmem:[#allocation13 + $0x7b0] sm:$0xff]
    %v5022 = vld [vmem:[#allocation13 + $0x7b8] sm:$0xff]
    %v5023 = vld [vmem:[#allocation13 + $0x7c0] sm:$0xff]
    %v5024 = vld [vmem:[#allocation13 + $0x7c8] sm:$0xff]
    %v5025 = vld [vmem:[#allocation13 + $0x7d0] sm:$0xff]
    %v5026 = vld [vmem:[#allocation13 + $0x7d8] sm:$0xff]
    %v5027 = vld [vmem:[#allocation13 + $0x7e0] sm:$0xff]
    %v5028 = vld [vmem:[#allocation13 + $0x7e8] sm:$0xff]
    %v5029 = vld [vmem:[#allocation13 + $0x7f0] sm:$0xff]
    %v5030 = vld [vmem:[#allocation13 + $0x7f8] sm:$0xff]
    %v5031 = vld [vmem:[#allocation13 + $0x800] sm:$0xff]
    %v5032 = vld [vmem:[#allocation13 + $0x808] sm:$0xff]
    %v5033 = vld [vmem:[#allocation13 + $0x810] sm:$0xff]
    %v5034 = vld [vmem:[#allocation13 + $0x818] sm:$0xff]
    %v5035 = vld [vmem:[#allocation13 + $0x820] sm:$0xff]
    %v5036 = vld [vmem:[#allocation13 + $0x828] sm:$0xff]
    %v5037 = vld [vmem:[#allocation13 + $0x830] sm:$0xff]
    %v5038 = vld [vmem:[#allocation13 + $0x838] sm:$0xff]
    %v5039 = vld [vmem:[#allocation13 + $0x840] sm:$0xff]
    %v5040 = vld [vmem:[#allocation13 + $0x848] sm:$0xff]
    %v5041 = vld [vmem:[#allocation13 + $0x850] sm:$0xff]
    %v5042 = vld [vmem:[#allocation13 + $0x858] sm:$0xff]
    %v5043 = vld [vmem:[#allocation13 + $0x860] sm:$0xff]
    %v5044 = vld [vmem:[#allocation13 + $0x868] sm:$0xff]
    %v5045 = vld [vmem:[#allocation13 + $0x870] sm:$0xff]
    %v5046 = vld [vmem:[#allocation13 + $0x878] sm:$0xff]
    %v5047 = vld [vmem:[#allocation13 + $0x880] sm:$0xff]
    %v5048 = vld [vmem:[#allocation13 + $0x888] sm:$0xff]
    %v5049 = vld [vmem:[#allocation13 + $0x890] sm:$0xff]
    %v5050 = vld [vmem:[#allocation13 + $0x898] sm:$0xff]
    %v5051 = vld [vmem:[#allocation13 + $0x8a0] sm:$0xff]
    %v5052 = vld [vmem:[#allocation13 + $0x8a8] sm:$0xff]
    %v5053 = vld [vmem:[#allocation13 + $0x8b0] sm:$0xff]
    %v5054 = vld [vmem:[#allocation13 + $0x8b8] sm:$0xff]
    %v5055 = vld [vmem:[#allocation13 + $0x8c0] sm:$0xff]
    %v5056 = vld [vmem:[#allocation13 + $0x8c8] sm:$0xff]
    %v5057 = vld [vmem:[#allocation13 + $0x8d0] sm:$0xff]
    %v5058 = vld [vmem:[#allocation13 + $0x8d8] sm:$0xff]
    %v5059 = vld [vmem:[#allocation13 + $0x8e0] sm:$0xff]
    %v5060 = vld [vmem:[#allocation13 + $0x8e8] sm:$0xff]
    %v5061 = vld [vmem:[#allocation13 + $0x8f0] sm:$0xff]
    %v5062 = vld [vmem:[#allocation13 + $0x8f8] sm:$0xff]
    %v5063 = vld [vmem:[#allocation13 + $0x900] sm:$0xff]
    %v5064 = vld [vmem:[#allocation13 + $0x908] sm:$0xff]
    %v5065 = vld [vmem:[#allocation13 + $0x910] sm:$0xff]
    %v5066 = vld [vmem:[#allocation13 + $0x918] sm:$0xff]
    %v5067 = vld [vmem:[#allocation13 + $0x920] sm:$0xff]
    %v5068 = vld [vmem:[#allocation13 + $0x928] sm:$0xff]
    %v5069 = vld [vmem:[#allocation13 + $0x930] sm:$0xff]
    %v5070 = vld [vmem:[#allocation13 + $0x938] sm:$0xff]
    %v5071 = vld [vmem:[#allocation13 + $0x940] sm:$0xff]
    %v5072 = vld [vmem:[#allocation13 + $0x948] sm:$0xff]
    %v5073 = vld [vmem:[#allocation13 + $0x950] sm:$0xff]
    %v5074 = vld [vmem:[#allocation13 + $0x958] sm:$0xff]
    %v5075 = vld [vmem:[#allocation13 + $0x960] sm:$0xff]
    %v5076 = vld [vmem:[#allocation13 + $0x968] sm:$0xff]
    %v5077 = vld [vmem:[#allocation13 + $0x970] sm:$0xff]
    %v5078 = vld [vmem:[#allocation13 + $0x978] sm:$0xff]
    %v5079 = vld [vmem:[#allocation13 + $0x980] sm:$0xff]
    %v5080 = vld [vmem:[#allocation13 + $0x988] sm:$0xff]
    %v5081 = vld [vmem:[#allocation13 + $0x990] sm:$0xff]
    %v5082 = vld [vmem:[#allocation13 + $0x998] sm:$0xff]
    %v5083 = vld [vmem:[#allocation13 + $0x9a0] sm:$0xff]
    %v5084 = vld [vmem:[#allocation13 + $0x9a8] sm:$0xff]
    %v5085 = vld [vmem:[#allocation13 + $0x9b0] sm:$0xff]
    %v5086 = vld [vmem:[#allocation13 + $0x9b8] sm:$0xff]
    %v5087 = vld [vmem:[#allocation13 + $0x9c0] sm:$0xff]
    %v5088 = vld [vmem:[#allocation13 + $0x9c8] sm:$0xff]
    %v5089 = vld [vmem:[#allocation13 + $0x9d0] sm:$0xff]
    %v5090 = vld [vmem:[#allocation13 + $0x9d8] sm:$0xff]
    %v5091 = vld [vmem:[#allocation13 + $0x9e0] sm:$0xff]
    %v5092 = vld [vmem:[#allocation13 + $0x9e8] sm:$0xff]
    %v5093 = vld [vmem:[#allocation13 + $0x9f0] sm:$0xff]
    %v5094 = vld [vmem:[#allocation13 + $0x9f8] sm:$0xff]
    %v5095 = vld [vmem:[#allocation13 + $0xa00] sm:$0xff]
    %v5096 = vld [vmem:[#allocation13 + $0xa08] sm:$0xff]
    %v5097 = vld [vmem:[#allocation13 + $0xa10] sm:$0xff]
    %v5098 = vld [vmem:[#allocation13 + $0xa18] sm:$0xff]
    %v5099 = vld [vmem:[#allocation13 + $0xa20] sm:$0xff]
    %v5100 = vld [vmem:[#allocation13 + $0xa28] sm:$0xff]
    %v5101 = vld [vmem:[#allocation13 + $0xa30] sm:$0xff]
    %v5102 = vld [vmem:[#allocation13 + $0xa38] sm:$0xff]
    %v5103 = vld [vmem:[#allocation13 + $0xa40] sm:$0xff]
    %v5104 = vld [vmem:[#allocation13 + $0xa48] sm:$0xff]
    %v5105 = vld [vmem:[#allocation13 + $0xa50] sm:$0xff]
    %v5106 = vld [vmem:[#allocation13 + $0xa58] sm:$0xff]
    %v5107 = vld [vmem:[#allocation13 + $0xa60] sm:$0xff]
    %v5108 = vld [vmem:[#allocation13 + $0xa68] sm:$0xff]
    %v5109 = vld [vmem:[#allocation13 + $0xa70] sm:$0xff]
    %v5110 = vld [vmem:[#allocation13 + $0xa78] sm:$0xff]
    %v5111 = vld [vmem:[#allocation13 + $0xa80] sm:$0xff]
    %v5112 = vld [vmem:[#allocation13 + $0xa88] sm:$0xff]
    %v5113 = vld [vmem:[#allocation13 + $0xa90] sm:$0xff]
    %v5114 = vld [vmem:[#allocation13 + $0xa98] sm:$0xff]
    %v5115 = vld [vmem:[#allocation13 + $0xaa0] sm:$0xff]
    %v5116 = vld [vmem:[#allocation13 + $0xaa8] sm:$0xff]
    %v5117 = vld [vmem:[#allocation13 + $0xab0] sm:$0xff]
    %v5118 = vld [vmem:[#allocation13 + $0xab8] sm:$0xff]
    %v5119 = vld [vmem:[#allocation13 + $0xac0] sm:$0xff]
    %v5120 = vld [vmem:[#allocation13 + $0xac8] sm:$0xff]
    %v5121 = vld [vmem:[#allocation13 + $0xad0] sm:$0xff]
    %v5122 = vld [vmem:[#allocation13 + $0xad8] sm:$0xff]
    %v5123 = vld [vmem:[#allocation13 + $0xae0] sm:$0xff]
    %v5124 = vld [vmem:[#allocation13 + $0xae8] sm:$0xff]
    %v5125 = vld [vmem:[#allocation13 + $0xaf0] sm:$0xff]
    %v5126 = vld [vmem:[#allocation13 + $0xaf8] sm:$0xff]
    %v5127 = vld [vmem:[#allocation13 + $0xb00] sm:$0xff]
    %v5128 = vld [vmem:[#allocation13 + $0xb08] sm:$0xff]
    %v5129 = vld [vmem:[#allocation13 + $0xb10] sm:$0xff]
    %v5130 = vld [vmem:[#allocation13 + $0xb18] sm:$0xff]
    %v5131 = vld [vmem:[#allocation13 + $0xb20] sm:$0xff]
    %v5132 = vld [vmem:[#allocation13 + $0xb28] sm:$0xff]
    %v5133 = vld [vmem:[#allocation13 + $0xb30] sm:$0xff]
    %v5134 = vld [vmem:[#allocation13 + $0xb38] sm:$0xff]
    %v5135 = vld [vmem:[#allocation13 + $0xb40] sm:$0xff]
    %v5136 = vld [vmem:[#allocation13 + $0xb48] sm:$0xff]
    %v5137 = vld [vmem:[#allocation13 + $0xb50] sm:$0xff]
    %v5138 = vld [vmem:[#allocation13 + $0xb58] sm:$0xff]
    %v5139 = vld [vmem:[#allocation13 + $0xb60] sm:$0xff]
    %v5140 = vld [vmem:[#allocation13 + $0xb68] sm:$0xff]
    %v5141 = vld [vmem:[#allocation13 + $0xb70] sm:$0xff]
    %v5142 = vld [vmem:[#allocation13 + $0xb78] sm:$0xff]
    %v5143 = vld [vmem:[#allocation13 + $0xb80] sm:$0xff]
    %v5144 = vld [vmem:[#allocation13 + $0xb88] sm:$0xff]
    %v5145 = vld [vmem:[#allocation13 + $0xb90] sm:$0xff]
    %v5146 = vld [vmem:[#allocation13 + $0xb98] sm:$0xff]
    %v5147 = vld [vmem:[#allocation13 + $0xba0] sm:$0xff]
    %v5148 = vld [vmem:[#allocation13 + $0xba8] sm:$0xff]
    %v5149 = vld [vmem:[#allocation13 + $0xbb0] sm:$0xff]
    %v5150 = vld [vmem:[#allocation13 + $0xbb8] sm:$0xff]
    %v5151 = vld [vmem:[#allocation13 + $0xbc0] sm:$0xff]
    %v5152 = vld [vmem:[#allocation13 + $0xbc8] sm:$0xff]
    %v5153 = vld [vmem:[#allocation13 + $0xbd0] sm:$0xff]
    %v5154 = vld [vmem:[#allocation13 + $0xbd8] sm:$0xff]
    %v5155 = vld [vmem:[#allocation13 + $0xbe0] sm:$0xff]
    %v5156 = vld [vmem:[#allocation13 + $0xbe8] sm:$0xff]
    %v5157 = vld [vmem:[#allocation13 + $0xbf0] sm:$0xff]
    %v5158 = vld [vmem:[#allocation13 + $0xbf8] sm:$0xff]
    %v5159 = vld [vmem:[#allocation13 + $0xc00] sm:$0xff]
    %v5160 = vld [vmem:[#allocation13 + $0xc08] sm:$0xff]
    %v5161 = vld [vmem:[#allocation13 + $0xc10] sm:$0xff]
    %v5162 = vld [vmem:[#allocation13 + $0xc18] sm:$0xff]
    %v5163 = vld [vmem:[#allocation13 + $0xc20] sm:$0xff]
    %v5164 = vld [vmem:[#allocation13 + $0xc28] sm:$0xff]
    %v5165 = vld [vmem:[#allocation13 + $0xc30] sm:$0xff]
    %v5166 = vld [vmem:[#allocation13 + $0xc38] sm:$0xff]
    %v5167 = vld [vmem:[#allocation13 + $0xc40] sm:$0xff]
    %v5168 = vld [vmem:[#allocation13 + $0xc48] sm:$0xff]
    %v5169 = vld [vmem:[#allocation13 + $0xc50] sm:$0xff]
    %v5170 = vld [vmem:[#allocation13 + $0xc58] sm:$0xff]
    %v5171 = vld [vmem:[#allocation13 + $0xc60] sm:$0xff]
    %v5172 = vld [vmem:[#allocation13 + $0xc68] sm:$0xff]
    %v5173 = vld [vmem:[#allocation13 + $0xc70] sm:$0xff]
    %v5174 = vld [vmem:[#allocation13 + $0xc78] sm:$0xff]
    %v5175 = vld [vmem:[#allocation13 + $0xc80] sm:$0xff]
    %v5176 = vld [vmem:[#allocation13 + $0xc88] sm:$0xff]
    %v5177 = vld [vmem:[#allocation13 + $0xc90] sm:$0xff]
    %v5178 = vld [vmem:[#allocation13 + $0xc98] sm:$0xff]
    %v5179 = vld [vmem:[#allocation13 + $0xca0] sm:$0xff]
    %v5180 = vld [vmem:[#allocation13 + $0xca8] sm:$0xff]
    %v5181 = vld [vmem:[#allocation13 + $0xcb0] sm:$0xff]
    %v5182 = vld [vmem:[#allocation13 + $0xcb8] sm:$0xff]
    %v5183 = vld [vmem:[#allocation13 + $0xcc0] sm:$0xff]
    %v5184 = vld [vmem:[#allocation13 + $0xcc8] sm:$0xff]
    %v5185 = vld [vmem:[#allocation13 + $0xcd0] sm:$0xff]
    %v5186 = vld [vmem:[#allocation13 + $0xcd8] sm:$0xff]
    %v5187 = vld [vmem:[#allocation13 + $0xce0] sm:$0xff]
    %v5188 = vld [vmem:[#allocation13 + $0xce8] sm:$0xff]
    %v5189 = vld [vmem:[#allocation13 + $0xcf0] sm:$0xff]
    %v5190 = vld [vmem:[#allocation13 + $0xcf8] sm:$0xff]
    %v5191 = vld [vmem:[#allocation13 + $0xd00] sm:$0xff]
    %v5192 = vld [vmem:[#allocation13 + $0xd08] sm:$0xff]
    %v5193 = vld [vmem:[#allocation13 + $0xd10] sm:$0xff]
    %v5194 = vld [vmem:[#allocation13 + $0xd18] sm:$0xff]
    %v5195 = vld [vmem:[#allocation13 + $0xd20] sm:$0xff]
    %v5196 = vld [vmem:[#allocation13 + $0xd28] sm:$0xff]
    %v5197 = vld [vmem:[#allocation13 + $0xd30] sm:$0xff]
    %v5198 = vld [vmem:[#allocation13 + $0xd38] sm:$0xff]
    %v5199 = vld [vmem:[#allocation13 + $0xd40] sm:$0xff]
    %v5200 = vld [vmem:[#allocation13 + $0xd48] sm:$0xff]
    %v5201 = vld [vmem:[#allocation13 + $0xd50] sm:$0xff]
    %v5202 = vld [vmem:[#allocation13 + $0xd58] sm:$0xff]
    %v5203 = vld [vmem:[#allocation13 + $0xd60] sm:$0xff]
    %v5204 = vld [vmem:[#allocation13 + $0xd68] sm:$0xff]
    %v5205 = vld [vmem:[#allocation13 + $0xd70] sm:$0xff]
    %v5206 = vld [vmem:[#allocation13 + $0xd78] sm:$0xff]
    %v5207 = vld [vmem:[#allocation13 + $0xd80] sm:$0xff]
    %v5208 = vld [vmem:[#allocation13 + $0xd88] sm:$0xff]
    %v5209 = vld [vmem:[#allocation13 + $0xd90] sm:$0xff]
    %v5210 = vld [vmem:[#allocation13 + $0xd98] sm:$0xff]
    %v5211 = vld [vmem:[#allocation13 + $0xda0] sm:$0xff]
    %v5212 = vld [vmem:[#allocation13 + $0xda8] sm:$0xff]
    %v5213 = vld [vmem:[#allocation13 + $0xdb0] sm:$0xff]
    %v5214 = vld [vmem:[#allocation13 + $0xdb8] sm:$0xff]
    %v5215 = vld [vmem:[#allocation13 + $0xdc0] sm:$0xff]
    %v5216 = vld [vmem:[#allocation13 + $0xdc8] sm:$0xff]
    %v5217 = vld [vmem:[#allocation13 + $0xdd0] sm:$0xff]
    %v5218 = vld [vmem:[#allocation13 + $0xdd8] sm:$0xff]
    %v5219 = vld [vmem:[#allocation13 + $0xde0] sm:$0xff]
    %v5220 = vld [vmem:[#allocation13 + $0xde8] sm:$0xff]
    %v5221 = vld [vmem:[#allocation13 + $0xdf0] sm:$0xff]
    %v5222 = vld [vmem:[#allocation13 + $0xdf8] sm:$0xff]
    %v5223 = vld [vmem:[#allocation13 + $0xe00] sm:$0xff]
    %v5224 = vld [vmem:[#allocation13 + $0xe08] sm:$0xff]
    %v5225 = vld [vmem:[#allocation13 + $0xe10] sm:$0xff]
    %v5226 = vld [vmem:[#allocation13 + $0xe18] sm:$0xff]
    %v5227 = vld [vmem:[#allocation13 + $0xe20] sm:$0xff]
    %v5228 = vld [vmem:[#allocation13 + $0xe28] sm:$0xff]
    %v5229 = vld [vmem:[#allocation13 + $0xe30] sm:$0xff]
    %v5230 = vld [vmem:[#allocation13 + $0xe38] sm:$0xff]
    %v5231 = vld [vmem:[#allocation13 + $0xe40] sm:$0xff]
    %v5232 = vld [vmem:[#allocation13 + $0xe48] sm:$0xff]
    %v5233 = vld [vmem:[#allocation13 + $0xe50] sm:$0xff]
    %v5234 = vld [vmem:[#allocation13 + $0xe58] sm:$0xff]
    %v5235 = vld [vmem:[#allocation13 + $0xe60] sm:$0xff]
    %v5236 = vld [vmem:[#allocation13 + $0xe68] sm:$0xff]
    %v5237 = vld [vmem:[#allocation13 + $0xe70] sm:$0xff]
    %v5238 = vld [vmem:[#allocation13 + $0xe78] sm:$0xff]
    %v5239 = vld [vmem:[#allocation13 + $0xe80] sm:$0xff]
    %v5240 = vld [vmem:[#allocation13 + $0xe88] sm:$0xff]
    %v5241 = vld [vmem:[#allocation13 + $0xe90] sm:$0xff]
    %v5242 = vld [vmem:[#allocation13 + $0xe98] sm:$0xff]
    %v5243 = vld [vmem:[#allocation13 + $0xea0] sm:$0xff]
    %v5244 = vld [vmem:[#allocation13 + $0xea8] sm:$0xff]
    %v5245 = vld [vmem:[#allocation13 + $0xeb0] sm:$0xff]
    %v5246 = vld [vmem:[#allocation13 + $0xeb8] sm:$0xff]
    %v5247 = vld [vmem:[#allocation13 + $0xec0] sm:$0xff]
    %v5248 = vld [vmem:[#allocation13 + $0xec8] sm:$0xff]
    %v5249 = vld [vmem:[#allocation13 + $0xed0] sm:$0xff]
    %v5250 = vld [vmem:[#allocation13 + $0xed8] sm:$0xff]
    %v5251 = vld [vmem:[#allocation13 + $0xee0] sm:$0xff]
    %v5252 = vld [vmem:[#allocation13 + $0xee8] sm:$0xff]
    %v5253 = vld [vmem:[#allocation13 + $0xef0] sm:$0xff]
    %v5254 = vld [vmem:[#allocation13 + $0xef8] sm:$0xff]
    %v5255 = vld [vmem:[#allocation13 + $0xf00] sm:$0xff]
    %v5256 = vld [vmem:[#allocation13 + $0xf08] sm:$0xff]
    %v5257 = vld [vmem:[#allocation13 + $0xf10] sm:$0xff]
    %v5258 = vld [vmem:[#allocation13 + $0xf18] sm:$0xff]
    %v5259 = vld [vmem:[#allocation13 + $0xf20] sm:$0xff]
    %v5260 = vld [vmem:[#allocation13 + $0xf28] sm:$0xff]
    %v5261 = vld [vmem:[#allocation13 + $0xf30] sm:$0xff]
    %v5262 = vld [vmem:[#allocation13 + $0xf38] sm:$0xff]
    %v5263 = vld [vmem:[#allocation13 + $0xf40] sm:$0xff]
    %v5264 = vld [vmem:[#allocation13 + $0xf48] sm:$0xff]
    %v5265 = vld [vmem:[#allocation13 + $0xf50] sm:$0xff]
    %v5266 = vld [vmem:[#allocation13 + $0xf58] sm:$0xff]
    %v5267 = vld [vmem:[#allocation13 + $0xf60] sm:$0xff]
    %v5268 = vld [vmem:[#allocation13 + $0xf68] sm:$0xff]
    %v5269 = vld [vmem:[#allocation13 + $0xf70] sm:$0xff]
    %v5270 = vld [vmem:[#allocation13 + $0xf78] sm:$0xff]
    %v5271 = vld [vmem:[#allocation13 + $0xf80] sm:$0xff]
    %v5272 = vld [vmem:[#allocation13 + $0xf88] sm:$0xff]
    %v5273 = vld [vmem:[#allocation13 + $0xf90] sm:$0xff]
    %v5274 = vld [vmem:[#allocation13 + $0xf98] sm:$0xff]
    %v5275 = vld [vmem:[#allocation13 + $0xfa0] sm:$0xff]
    %v5276 = vld [vmem:[#allocation13 + $0xfa8] sm:$0xff]
    %v5277 = vld [vmem:[#allocation13 + $0xfb0] sm:$0xff]
    %v5278 = vld [vmem:[#allocation13 + $0xfb8] sm:$0xff]
    %v5279 = vld [vmem:[#allocation13 + $0xfc0] sm:$0xff]
    %v5280 = vld [vmem:[#allocation13 + $0xfc8] sm:$0xff]
    %v5281 = vld [vmem:[#allocation13 + $0xfd0] sm:$0xff]
    %v5282 = vld [vmem:[#allocation13 + $0xfd8] sm:$0xff]
    %v5283 = vld [vmem:[#allocation13 + $0xfe0] sm:$0xff]
    %v5284 = vld [vmem:[#allocation13 + $0xfe8] sm:$0xff]
    %v5285 = vld [vmem:[#allocation13 + $0xff0] sm:$0xff]
    %v5286 = vld [vmem:[#allocation13 + $0xff8] sm:$0xff]
    %v5799 = vunpack.c.l.b16 %v4775
    %v5800 = vunpack.c.h.b16 %v4775
    %v5801 = vunpack.c.l.b16 %v4776
    %v5802 = vunpack.c.h.b16 %v4776
    %v5803 = vunpack.c.l.b16 %v4777
    %v5804 = vunpack.c.h.b16 %v4777
    %v5805 = vunpack.c.l.b16 %v4778
    %v5806 = vunpack.c.h.b16 %v4778
    %v5807 = vunpack.c.l.b16 %v4779
    %v5808 = vunpack.c.h.b16 %v4779
    %v5809 = vunpack.c.l.b16 %v4780
    %v5810 = vunpack.c.h.b16 %v4780
    %v5811 = vunpack.c.l.b16 %v4781
    %v5812 = vunpack.c.h.b16 %v4781
    %v5813 = vunpack.c.l.b16 %v4782
    %v5814 = vunpack.c.h.b16 %v4782
    %v5815 = vunpack.c.l.b16 %v4783
    %v5816 = vunpack.c.h.b16 %v4783
    %v5817 = vunpack.c.l.b16 %v4784
    %v5818 = vunpack.c.h.b16 %v4784
    %v5819 = vunpack.c.l.b16 %v4785
    %v5820 = vunpack.c.h.b16 %v4785
    %v5821 = vunpack.c.l.b16 %v4786
    %v5822 = vunpack.c.h.b16 %v4786
    %v5823 = vunpack.c.l.b16 %v4787
    %v5824 = vunpack.c.h.b16 %v4787
    %v5825 = vunpack.c.l.b16 %v4788
    %v5826 = vunpack.c.h.b16 %v4788
    %v5827 = vunpack.c.l.b16 %v4789
    %v5828 = vunpack.c.h.b16 %v4789
    %v5829 = vunpack.c.l.b16 %v4790
    %v5830 = vunpack.c.h.b16 %v4790
    %v5831 = vunpack.c.l.b16 %v4791
    %v5832 = vunpack.c.h.b16 %v4791
    %v5833 = vunpack.c.l.b16 %v4792
    %v5834 = vunpack.c.h.b16 %v4792
    %v5835 = vunpack.c.l.b16 %v4793
    %v5836 = vunpack.c.h.b16 %v4793
    %v5837 = vunpack.c.l.b16 %v4794
    %v5838 = vunpack.c.h.b16 %v4794
    %v5839 = vunpack.c.l.b16 %v4795
    %v5840 = vunpack.c.h.b16 %v4795
    %v5841 = vunpack.c.l.b16 %v4796
    %v5842 = vunpack.c.h.b16 %v4796
    %v5843 = vunpack.c.l.b16 %v4797
    %v5844 = vunpack.c.h.b16 %v4797
    %v5845 = vunpack.c.l.b16 %v4798
    %v5846 = vunpack.c.h.b16 %v4798
    %v5847 = vunpack.c.l.b16 %v4799
    %v5848 = vunpack.c.h.b16 %v4799
    %v5849 = vunpack.c.l.b16 %v4800
    %v5850 = vunpack.c.h.b16 %v4800
    %v5851 = vunpack.c.l.b16 %v4801
    %v5852 = vunpack.c.h.b16 %v4801
    %v5853 = vunpack.c.l.b16 %v4802
    %v5854 = vunpack.c.h.b16 %v4802
    %v5855 = vunpack.c.l.b16 %v4803
    %v5856 = vunpack.c.h.b16 %v4803
    %v5857 = vunpack.c.l.b16 %v4804
    %v5858 = vunpack.c.h.b16 %v4804
    %v5859 = vunpack.c.l.b16 %v4805
    %v5860 = vunpack.c.h.b16 %v4805
    %v5861 = vunpack.c.l.b16 %v4806
    %v5862 = vunpack.c.h.b16 %v4806
    %v5863 = vunpack.c.l.b16 %v4807
    %v5864 = vunpack.c.h.b16 %v4807
    %v5865 = vunpack.c.l.b16 %v4808
    %v5866 = vunpack.c.h.b16 %v4808
    %v5867 = vunpack.c.l.b16 %v4809
    %v5868 = vunpack.c.h.b16 %v4809
    %v5869 = vunpack.c.l.b16 %v4810
    %v5870 = vunpack.c.h.b16 %v4810
    %v5871 = vunpack.c.l.b16 %v4811
    %v5872 = vunpack.c.h.b16 %v4811
    %v5873 = vunpack.c.l.b16 %v4812
    %v5874 = vunpack.c.h.b16 %v4812
    %v5875 = vunpack.c.l.b16 %v4813
    %v5876 = vunpack.c.h.b16 %v4813
    %v5877 = vunpack.c.l.b16 %v4814
    %v5878 = vunpack.c.h.b16 %v4814
    %v5879 = vunpack.c.l.b16 %v4815
    %v5880 = vunpack.c.h.b16 %v4815
    %v5881 = vunpack.c.l.b16 %v4816
    %v5882 = vunpack.c.h.b16 %v4816
    %v5883 = vunpack.c.l.b16 %v4817
    %v5884 = vunpack.c.h.b16 %v4817
    %v5885 = vunpack.c.l.b16 %v4818
    %v5886 = vunpack.c.h.b16 %v4818
    %v5887 = vunpack.c.l.b16 %v4819
    %v5888 = vunpack.c.h.b16 %v4819
    %v5889 = vunpack.c.l.b16 %v4820
    %v5890 = vunpack.c.h.b16 %v4820
    %v5891 = vunpack.c.l.b16 %v4821
    %v5892 = vunpack.c.h.b16 %v4821
    %v5893 = vunpack.c.l.b16 %v4822
    %v5894 = vunpack.c.h.b16 %v4822
    %v5895 = vunpack.c.l.b16 %v4823
    %v5896 = vunpack.c.h.b16 %v4823
    %v5897 = vunpack.c.l.b16 %v4824
    %v5898 = vunpack.c.h.b16 %v4824
    %v5899 = vunpack.c.l.b16 %v4825
    %v5900 = vunpack.c.h.b16 %v4825
    %v5901 = vunpack.c.l.b16 %v4826
    %v5902 = vunpack.c.h.b16 %v4826
    %v5903 = vunpack.c.l.b16 %v4827
    %v5904 = vunpack.c.h.b16 %v4827
    %v5905 = vunpack.c.l.b16 %v4828
    %v5906 = vunpack.c.h.b16 %v4828
    %v5907 = vunpack.c.l.b16 %v4829
    %v5908 = vunpack.c.h.b16 %v4829
    %v5909 = vunpack.c.l.b16 %v4830
    %v5910 = vunpack.c.h.b16 %v4830
    %v5911 = vunpack.c.l.b16 %v4831
    %v5912 = vunpack.c.h.b16 %v4831
    %v5913 = vunpack.c.l.b16 %v4832
    %v5914 = vunpack.c.h.b16 %v4832
    %v5915 = vunpack.c.l.b16 %v4833
    %v5916 = vunpack.c.h.b16 %v4833
    %v5917 = vunpack.c.l.b16 %v4834
    %v5918 = vunpack.c.h.b16 %v4834
    %v5919 = vunpack.c.l.b16 %v4835
    %v5920 = vunpack.c.h.b16 %v4835
    %v5921 = vunpack.c.l.b16 %v4836
    %v5922 = vunpack.c.h.b16 %v4836
    %v5923 = vunpack.c.l.b16 %v4837
    %v5924 = vunpack.c.h.b16 %v4837
    %v5925 = vunpack.c.l.b16 %v4838
    %v5926 = vunpack.c.h.b16 %v4838
    %v5927 = vunpack.c.l.b16 %v4839
    %v5928 = vunpack.c.h.b16 %v4839
    %v5929 = vunpack.c.l.b16 %v4840
    %v5930 = vunpack.c.h.b16 %v4840
    %v5931 = vunpack.c.l.b16 %v4841
    %v5932 = vunpack.c.h.b16 %v4841
    %v5933 = vunpack.c.l.b16 %v4842
    %v5934 = vunpack.c.h.b16 %v4842
    %v5935 = vunpack.c.l.b16 %v4843
    %v5936 = vunpack.c.h.b16 %v4843
    %v5937 = vunpack.c.l.b16 %v4844
    %v5938 = vunpack.c.h.b16 %v4844
    %v5939 = vunpack.c.l.b16 %v4845
    %v5940 = vunpack.c.h.b16 %v4845
    %v5941 = vunpack.c.l.b16 %v4846
    %v5942 = vunpack.c.h.b16 %v4846
    %v5943 = vunpack.c.l.b16 %v4847
    %v5944 = vunpack.c.h.b16 %v4847
    %v5945 = vunpack.c.l.b16 %v4848
    %v5946 = vunpack.c.h.b16 %v4848
    %v5947 = vunpack.c.l.b16 %v4849
    %v5948 = vunpack.c.h.b16 %v4849
    %v5949 = vunpack.c.l.b16 %v4850
    %v5950 = vunpack.c.h.b16 %v4850
    %v5951 = vunpack.c.l.b16 %v4851
    %v5952 = vunpack.c.h.b16 %v4851
    %v5953 = vunpack.c.l.b16 %v4852
    %v5954 = vunpack.c.h.b16 %v4852
    %v5955 = vunpack.c.l.b16 %v4853
    %v5956 = vunpack.c.h.b16 %v4853
    %v5957 = vunpack.c.l.b16 %v4854
    %v5958 = vunpack.c.h.b16 %v4854
    %v5959 = vunpack.c.l.b16 %v4855
    %v5960 = vunpack.c.h.b16 %v4855
    %v5961 = vunpack.c.l.b16 %v4856
    %v5962 = vunpack.c.h.b16 %v4856
    %v5963 = vunpack.c.l.b16 %v4857
    %v5964 = vunpack.c.h.b16 %v4857
    %v5965 = vunpack.c.l.b16 %v4858
    %v5966 = vunpack.c.h.b16 %v4858
    %v5967 = vunpack.c.l.b16 %v4859
    %v5968 = vunpack.c.h.b16 %v4859
    %v5969 = vunpack.c.l.b16 %v4860
    %v5970 = vunpack.c.h.b16 %v4860
    %v5971 = vunpack.c.l.b16 %v4861
    %v5972 = vunpack.c.h.b16 %v4861
    %v5973 = vunpack.c.l.b16 %v4862
    %v5974 = vunpack.c.h.b16 %v4862
    %v5975 = vunpack.c.l.b16 %v4863
    %v5976 = vunpack.c.h.b16 %v4863
    %v5977 = vunpack.c.l.b16 %v4864
    %v5978 = vunpack.c.h.b16 %v4864
    %v5979 = vunpack.c.l.b16 %v4865
    %v5980 = vunpack.c.h.b16 %v4865
    %v5981 = vunpack.c.l.b16 %v4866
    %v5982 = vunpack.c.h.b16 %v4866
    %v5983 = vunpack.c.l.b16 %v4867
    %v5984 = vunpack.c.h.b16 %v4867
    %v5985 = vunpack.c.l.b16 %v4868
    %v5986 = vunpack.c.h.b16 %v4868
    %v5987 = vunpack.c.l.b16 %v4869
    %v5988 = vunpack.c.h.b16 %v4869
    %v5989 = vunpack.c.l.b16 %v4870
    %v5990 = vunpack.c.h.b16 %v4870
    %v5991 = vunpack.c.l.b16 %v4871
    %v5992 = vunpack.c.h.b16 %v4871
    %v5993 = vunpack.c.l.b16 %v4872
    %v5994 = vunpack.c.h.b16 %v4872
    %v5995 = vunpack.c.l.b16 %v4873
    %v5996 = vunpack.c.h.b16 %v4873
    %v5997 = vunpack.c.l.b16 %v4874
    %v5998 = vunpack.c.h.b16 %v4874
    %v5999 = vunpack.c.l.b16 %v4875
    %v6000 = vunpack.c.h.b16 %v4875
    %v6001 = vunpack.c.l.b16 %v4876
    %v6002 = vunpack.c.h.b16 %v4876
    %v6003 = vunpack.c.l.b16 %v4877
    %v6004 = vunpack.c.h.b16 %v4877
    %v6005 = vunpack.c.l.b16 %v4878
    %v6006 = vunpack.c.h.b16 %v4878
    %v6007 = vunpack.c.l.b16 %v4879
    %v6008 = vunpack.c.h.b16 %v4879
    %v6009 = vunpack.c.l.b16 %v4880
    %v6010 = vunpack.c.h.b16 %v4880
    %v6011 = vunpack.c.l.b16 %v4881
    %v6012 = vunpack.c.h.b16 %v4881
    %v6013 = vunpack.c.l.b16 %v4882
    %v6014 = vunpack.c.h.b16 %v4882
    %v6015 = vunpack.c.l.b16 %v4883
    %v6016 = vunpack.c.h.b16 %v4883
    %v6017 = vunpack.c.l.b16 %v4884
    %v6018 = vunpack.c.h.b16 %v4884
    %v6019 = vunpack.c.l.b16 %v4885
    %v6020 = vunpack.c.h.b16 %v4885
    %v6021 = vunpack.c.l.b16 %v4886
    %v6022 = vunpack.c.h.b16 %v4886
    %v6023 = vunpack.c.l.b16 %v4887
    %v6024 = vunpack.c.h.b16 %v4887
    %v6025 = vunpack.c.l.b16 %v4888
    %v6026 = vunpack.c.h.b16 %v4888
    %v6027 = vunpack.c.l.b16 %v4889
    %v6028 = vunpack.c.h.b16 %v4889
    %v6029 = vunpack.c.l.b16 %v4890
    %v6030 = vunpack.c.h.b16 %v4890
    %v6031 = vunpack.c.l.b16 %v4891
    %v6032 = vunpack.c.h.b16 %v4891
    %v6033 = vunpack.c.l.b16 %v4892
    %v6034 = vunpack.c.h.b16 %v4892
    %v6035 = vunpack.c.l.b16 %v4893
    %v6036 = vunpack.c.h.b16 %v4893
    %v6037 = vunpack.c.l.b16 %v4894
    %v6038 = vunpack.c.h.b16 %v4894
    %v6039 = vunpack.c.l.b16 %v4895
    %v6040 = vunpack.c.h.b16 %v4895
    %v6041 = vunpack.c.l.b16 %v4896
    %v6042 = vunpack.c.h.b16 %v4896
    %v6043 = vunpack.c.l.b16 %v4897
    %v6044 = vunpack.c.h.b16 %v4897
    %v6045 = vunpack.c.l.b16 %v4898
    %v6046 = vunpack.c.h.b16 %v4898
    %v6047 = vunpack.c.l.b16 %v4899
    %v6048 = vunpack.c.h.b16 %v4899
    %v6049 = vunpack.c.l.b16 %v4900
    %v6050 = vunpack.c.h.b16 %v4900
    %v6051 = vunpack.c.l.b16 %v4901
    %v6052 = vunpack.c.h.b16 %v4901
    %v6053 = vunpack.c.l.b16 %v4902
    %v6054 = vunpack.c.h.b16 %v4902
    %v6055 = vunpack.c.l.b16 %v4903
    %v6056 = vunpack.c.h.b16 %v4903
    %v6057 = vunpack.c.l.b16 %v4904
    %v6058 = vunpack.c.h.b16 %v4904
    %v6059 = vunpack.c.l.b16 %v4905
    %v6060 = vunpack.c.h.b16 %v4905
    %v6061 = vunpack.c.l.b16 %v4906
    %v6062 = vunpack.c.h.b16 %v4906
    %v6063 = vunpack.c.l.b16 %v4907
    %v6064 = vunpack.c.h.b16 %v4907
    %v6065 = vunpack.c.l.b16 %v4908
    %v6066 = vunpack.c.h.b16 %v4908
    %v6067 = vunpack.c.l.b16 %v4909
    %v6068 = vunpack.c.h.b16 %v4909
    %v6069 = vunpack.c.l.b16 %v4910
    %v6070 = vunpack.c.h.b16 %v4910
    %v6071 = vunpack.c.l.b16 %v4911
    %v6072 = vunpack.c.h.b16 %v4911
    %v6073 = vunpack.c.l.b16 %v4912
    %v6074 = vunpack.c.h.b16 %v4912
    %v6075 = vunpack.c.l.b16 %v4913
    %v6076 = vunpack.c.h.b16 %v4913
    %v6077 = vunpack.c.l.b16 %v4914
    %v6078 = vunpack.c.h.b16 %v4914
    %v6079 = vunpack.c.l.b16 %v4915
    %v6080 = vunpack.c.h.b16 %v4915
    %v6081 = vunpack.c.l.b16 %v4916
    %v6082 = vunpack.c.h.b16 %v4916
    %v6083 = vunpack.c.l.b16 %v4917
    %v6084 = vunpack.c.h.b16 %v4917
    %v6085 = vunpack.c.l.b16 %v4918
    %v6086 = vunpack.c.h.b16 %v4918
    %v6087 = vunpack.c.l.b16 %v4919
    %v6088 = vunpack.c.h.b16 %v4919
    %v6089 = vunpack.c.l.b16 %v4920
    %v6090 = vunpack.c.h.b16 %v4920
    %v6091 = vunpack.c.l.b16 %v4921
    %v6092 = vunpack.c.h.b16 %v4921
    %v6093 = vunpack.c.l.b16 %v4922
    %v6094 = vunpack.c.h.b16 %v4922
    %v6095 = vunpack.c.l.b16 %v4923
    %v6096 = vunpack.c.h.b16 %v4923
    %v6097 = vunpack.c.l.b16 %v4924
    %v6098 = vunpack.c.h.b16 %v4924
    %v6099 = vunpack.c.l.b16 %v4925
    %v6100 = vunpack.c.h.b16 %v4925
    %v6101 = vunpack.c.l.b16 %v4926
    %v6102 = vunpack.c.h.b16 %v4926
    %v6103 = vunpack.c.l.b16 %v4927
    %v6104 = vunpack.c.h.b16 %v4927
    %v6105 = vunpack.c.l.b16 %v4928
    %v6106 = vunpack.c.h.b16 %v4928
    %v6107 = vunpack.c.l.b16 %v4929
    %v6108 = vunpack.c.h.b16 %v4929
    %v6109 = vunpack.c.l.b16 %v4930
    %v6110 = vunpack.c.h.b16 %v4930
    %v6111 = vunpack.c.l.b16 %v4931
    %v6112 = vunpack.c.h.b16 %v4931
    %v6113 = vunpack.c.l.b16 %v4932
    %v6114 = vunpack.c.h.b16 %v4932
    %v6115 = vunpack.c.l.b16 %v4933
    %v6116 = vunpack.c.h.b16 %v4933
    %v6117 = vunpack.c.l.b16 %v4934
    %v6118 = vunpack.c.h.b16 %v4934
    %v6119 = vunpack.c.l.b16 %v4935
    %v6120 = vunpack.c.h.b16 %v4935
    %v6121 = vunpack.c.l.b16 %v4936
    %v6122 = vunpack.c.h.b16 %v4936
    %v6123 = vunpack.c.l.b16 %v4937
    %v6124 = vunpack.c.h.b16 %v4937
    %v6125 = vunpack.c.l.b16 %v4938
    %v6126 = vunpack.c.h.b16 %v4938
    %v6127 = vunpack.c.l.b16 %v4939
    %v6128 = vunpack.c.h.b16 %v4939
    %v6129 = vunpack.c.l.b16 %v4940
    %v6130 = vunpack.c.h.b16 %v4940
    %v6131 = vunpack.c.l.b16 %v4941
    %v6132 = vunpack.c.h.b16 %v4941
    %v6133 = vunpack.c.l.b16 %v4942
    %v6134 = vunpack.c.h.b16 %v4942
    %v6135 = vunpack.c.l.b16 %v4943
    %v6136 = vunpack.c.h.b16 %v4943
    %v6137 = vunpack.c.l.b16 %v4944
    %v6138 = vunpack.c.h.b16 %v4944
    %v6139 = vunpack.c.l.b16 %v4945
    %v6140 = vunpack.c.h.b16 %v4945
    %v6141 = vunpack.c.l.b16 %v4946
    %v6142 = vunpack.c.h.b16 %v4946
    %v6143 = vunpack.c.l.b16 %v4947
    %v6144 = vunpack.c.h.b16 %v4947
    %v6145 = vunpack.c.l.b16 %v4948
    %v6146 = vunpack.c.h.b16 %v4948
    %v6147 = vunpack.c.l.b16 %v4949
    %v6148 = vunpack.c.h.b16 %v4949
    %v6149 = vunpack.c.l.b16 %v4950
    %v6150 = vunpack.c.h.b16 %v4950
    %v6151 = vunpack.c.l.b16 %v4951
    %v6152 = vunpack.c.h.b16 %v4951
    %v6153 = vunpack.c.l.b16 %v4952
    %v6154 = vunpack.c.h.b16 %v4952
    %v6155 = vunpack.c.l.b16 %v4953
    %v6156 = vunpack.c.h.b16 %v4953
    %v6157 = vunpack.c.l.b16 %v4954
    %v6158 = vunpack.c.h.b16 %v4954
    %v6159 = vunpack.c.l.b16 %v4955
    %v6160 = vunpack.c.h.b16 %v4955
    %v6161 = vunpack.c.l.b16 %v4956
    %v6162 = vunpack.c.h.b16 %v4956
    %v6163 = vunpack.c.l.b16 %v4957
    %v6164 = vunpack.c.h.b16 %v4957
    %v6165 = vunpack.c.l.b16 %v4958
    %v6166 = vunpack.c.h.b16 %v4958
    %v6167 = vunpack.c.l.b16 %v4959
    %v6168 = vunpack.c.h.b16 %v4959
    %v6169 = vunpack.c.l.b16 %v4960
    %v6170 = vunpack.c.h.b16 %v4960
    %v6171 = vunpack.c.l.b16 %v4961
    %v6172 = vunpack.c.h.b16 %v4961
    %v6173 = vunpack.c.l.b16 %v4962
    %v6174 = vunpack.c.h.b16 %v4962
    %v6175 = vunpack.c.l.b16 %v4963
    %v6176 = vunpack.c.h.b16 %v4963
    %v6177 = vunpack.c.l.b16 %v4964
    %v6178 = vunpack.c.h.b16 %v4964
    %v6179 = vunpack.c.l.b16 %v4965
    %v6180 = vunpack.c.h.b16 %v4965
    %v6181 = vunpack.c.l.b16 %v4966
    %v6182 = vunpack.c.h.b16 %v4966
    %v6183 = vunpack.c.l.b16 %v4967
    %v6184 = vunpack.c.h.b16 %v4967
    %v6185 = vunpack.c.l.b16 %v4968
    %v6186 = vunpack.c.h.b16 %v4968
    %v6187 = vunpack.c.l.b16 %v4969
    %v6188 = vunpack.c.h.b16 %v4969
    %v6189 = vunpack.c.l.b16 %v4970
    %v6190 = vunpack.c.h.b16 %v4970
    %v6191 = vunpack.c.l.b16 %v4971
    %v6192 = vunpack.c.h.b16 %v4971
    %v6193 = vunpack.c.l.b16 %v4972
    %v6194 = vunpack.c.h.b16 %v4972
    %v6195 = vunpack.c.l.b16 %v4973
    %v6196 = vunpack.c.h.b16 %v4973
    %v6197 = vunpack.c.l.b16 %v4974
    %v6198 = vunpack.c.h.b16 %v4974
    %v6199 = vunpack.c.l.b16 %v4975
    %v6200 = vunpack.c.h.b16 %v4975
    %v6201 = vunpack.c.l.b16 %v4976
    %v6202 = vunpack.c.h.b16 %v4976
    %v6203 = vunpack.c.l.b16 %v4977
    %v6204 = vunpack.c.h.b16 %v4977
    %v6205 = vunpack.c.l.b16 %v4978
    %v6206 = vunpack.c.h.b16 %v4978
    %v6207 = vunpack.c.l.b16 %v4979
    %v6208 = vunpack.c.h.b16 %v4979
    %v6209 = vunpack.c.l.b16 %v4980
    %v6210 = vunpack.c.h.b16 %v4980
    %v6211 = vunpack.c.l.b16 %v4981
    %v6212 = vunpack.c.h.b16 %v4981
    %v6213 = vunpack.c.l.b16 %v4982
    %v6214 = vunpack.c.h.b16 %v4982
    %v6215 = vunpack.c.l.b16 %v4983
    %v6216 = vunpack.c.h.b16 %v4983
    %v6217 = vunpack.c.l.b16 %v4984
    %v6218 = vunpack.c.h.b16 %v4984
    %v6219 = vunpack.c.l.b16 %v4985
    %v6220 = vunpack.c.h.b16 %v4985
    %v6221 = vunpack.c.l.b16 %v4986
    %v6222 = vunpack.c.h.b16 %v4986
    %v6223 = vunpack.c.l.b16 %v4987
    %v6224 = vunpack.c.h.b16 %v4987
    %v6225 = vunpack.c.l.b16 %v4988
    %v6226 = vunpack.c.h.b16 %v4988
    %v6227 = vunpack.c.l.b16 %v4989
    %v6228 = vunpack.c.h.b16 %v4989
    %v6229 = vunpack.c.l.b16 %v4990
    %v6230 = vunpack.c.h.b16 %v4990
    %v6231 = vunpack.c.l.b16 %v4991
    %v6232 = vunpack.c.h.b16 %v4991
    %v6233 = vunpack.c.l.b16 %v4992
    %v6234 = vunpack.c.h.b16 %v4992
    %v6235 = vunpack.c.l.b16 %v4993
    %v6236 = vunpack.c.h.b16 %v4993
    %v6237 = vunpack.c.l.b16 %v4994
    %v6238 = vunpack.c.h.b16 %v4994
    %v6239 = vunpack.c.l.b16 %v4995
    %v6240 = vunpack.c.h.b16 %v4995
    %v6241 = vunpack.c.l.b16 %v4996
    %v6242 = vunpack.c.h.b16 %v4996
    %v6243 = vunpack.c.l.b16 %v4997
    %v6244 = vunpack.c.h.b16 %v4997
    %v6245 = vunpack.c.l.b16 %v4998
    %v6246 = vunpack.c.h.b16 %v4998
    %v6247 = vunpack.c.l.b16 %v4999
    %v6248 = vunpack.c.h.b16 %v4999
    %v6249 = vunpack.c.l.b16 %v5000
    %v6250 = vunpack.c.h.b16 %v5000
    %v6251 = vunpack.c.l.b16 %v5001
    %v6252 = vunpack.c.h.b16 %v5001
    %v6253 = vunpack.c.l.b16 %v5002
    %v6254 = vunpack.c.h.b16 %v5002
    %v6255 = vunpack.c.l.b16 %v5003
    %v6256 = vunpack.c.h.b16 %v5003
    %v6257 = vunpack.c.l.b16 %v5004
    %v6258 = vunpack.c.h.b16 %v5004
    %v6259 = vunpack.c.l.b16 %v5005
    %v6260 = vunpack.c.h.b16 %v5005
    %v6261 = vunpack.c.l.b16 %v5006
    %v6262 = vunpack.c.h.b16 %v5006
    %v6263 = vunpack.c.l.b16 %v5007
    %v6264 = vunpack.c.h.b16 %v5007
    %v6265 = vunpack.c.l.b16 %v5008
    %v6266 = vunpack.c.h.b16 %v5008
    %v6267 = vunpack.c.l.b16 %v5009
    %v6268 = vunpack.c.h.b16 %v5009
    %v6269 = vunpack.c.l.b16 %v5010
    %v6270 = vunpack.c.h.b16 %v5010
    %v6271 = vunpack.c.l.b16 %v5011
    %v6272 = vunpack.c.h.b16 %v5011
    %v6273 = vunpack.c.l.b16 %v5012
    %v6274 = vunpack.c.h.b16 %v5012
    %v6275 = vunpack.c.l.b16 %v5013
    %v6276 = vunpack.c.h.b16 %v5013
    %v6277 = vunpack.c.l.b16 %v5014
    %v6278 = vunpack.c.h.b16 %v5014
    %v6279 = vunpack.c.l.b16 %v5015
    %v6280 = vunpack.c.h.b16 %v5015
    %v6281 = vunpack.c.l.b16 %v5016
    %v6282 = vunpack.c.h.b16 %v5016
    %v6283 = vunpack.c.l.b16 %v5017
    %v6284 = vunpack.c.h.b16 %v5017
    %v6285 = vunpack.c.l.b16 %v5018
    %v6286 = vunpack.c.h.b16 %v5018
    %v6287 = vunpack.c.l.b16 %v5019
    %v6288 = vunpack.c.h.b16 %v5019
    %v6289 = vunpack.c.l.b16 %v5020
    %v6290 = vunpack.c.h.b16 %v5020
    %v6291 = vunpack.c.l.b16 %v5021
    %v6292 = vunpack.c.h.b16 %v5021
    %v6293 = vunpack.c.l.b16 %v5022
    %v6294 = vunpack.c.h.b16 %v5022
    %v6295 = vunpack.c.l.b16 %v5023
    %v6296 = vunpack.c.h.b16 %v5023
    %v6297 = vunpack.c.l.b16 %v5024
    %v6298 = vunpack.c.h.b16 %v5024
    %v6299 = vunpack.c.l.b16 %v5025
    %v6300 = vunpack.c.h.b16 %v5025
    %v6301 = vunpack.c.l.b16 %v5026
    %v6302 = vunpack.c.h.b16 %v5026
    %v6303 = vunpack.c.l.b16 %v5027
    %v6304 = vunpack.c.h.b16 %v5027
    %v6305 = vunpack.c.l.b16 %v5028
    %v6306 = vunpack.c.h.b16 %v5028
    %v6307 = vunpack.c.l.b16 %v5029
    %v6308 = vunpack.c.h.b16 %v5029
    %v6309 = vunpack.c.l.b16 %v5030
    %v6310 = vunpack.c.h.b16 %v5030
    %v6311 = vunpack.c.l.b16 %v5031
    %v6312 = vunpack.c.h.b16 %v5031
    %v6313 = vunpack.c.l.b16 %v5032
    %v6314 = vunpack.c.h.b16 %v5032
    %v6315 = vunpack.c.l.b16 %v5033
    %v6316 = vunpack.c.h.b16 %v5033
    %v6317 = vunpack.c.l.b16 %v5034
    %v6318 = vunpack.c.h.b16 %v5034
    %v6319 = vunpack.c.l.b16 %v5035
    %v6320 = vunpack.c.h.b16 %v5035
    %v6321 = vunpack.c.l.b16 %v5036
    %v6322 = vunpack.c.h.b16 %v5036
    %v6323 = vunpack.c.l.b16 %v5037
    %v6324 = vunpack.c.h.b16 %v5037
    %v6325 = vunpack.c.l.b16 %v5038
    %v6326 = vunpack.c.h.b16 %v5038
    %v6327 = vunpack.c.l.b16 %v5039
    %v6328 = vunpack.c.h.b16 %v5039
    %v6329 = vunpack.c.l.b16 %v5040
    %v6330 = vunpack.c.h.b16 %v5040
    %v6331 = vunpack.c.l.b16 %v5041
    %v6332 = vunpack.c.h.b16 %v5041
    %v6333 = vunpack.c.l.b16 %v5042
    %v6334 = vunpack.c.h.b16 %v5042
    %v6335 = vunpack.c.l.b16 %v5043
    %v6336 = vunpack.c.h.b16 %v5043
    %v6337 = vunpack.c.l.b16 %v5044
    %v6338 = vunpack.c.h.b16 %v5044
    %v6339 = vunpack.c.l.b16 %v5045
    %v6340 = vunpack.c.h.b16 %v5045
    %v6341 = vunpack.c.l.b16 %v5046
    %v6342 = vunpack.c.h.b16 %v5046
    %v6343 = vunpack.c.l.b16 %v5047
    %v6344 = vunpack.c.h.b16 %v5047
    %v6345 = vunpack.c.l.b16 %v5048
    %v6346 = vunpack.c.h.b16 %v5048
    %v6347 = vunpack.c.l.b16 %v5049
    %v6348 = vunpack.c.h.b16 %v5049
    %v6349 = vunpack.c.l.b16 %v5050
    %v6350 = vunpack.c.h.b16 %v5050
    %v6351 = vunpack.c.l.b16 %v5051
    %v6352 = vunpack.c.h.b16 %v5051
    %v6353 = vunpack.c.l.b16 %v5052
    %v6354 = vunpack.c.h.b16 %v5052
    %v6355 = vunpack.c.l.b16 %v5053
    %v6356 = vunpack.c.h.b16 %v5053
    %v6357 = vunpack.c.l.b16 %v5054
    %v6358 = vunpack.c.h.b16 %v5054
    %v6359 = vunpack.c.l.b16 %v5055
    %v6360 = vunpack.c.h.b16 %v5055
    %v6361 = vunpack.c.l.b16 %v5056
    %v6362 = vunpack.c.h.b16 %v5056
    %v6363 = vunpack.c.l.b16 %v5057
    %v6364 = vunpack.c.h.b16 %v5057
    %v6365 = vunpack.c.l.b16 %v5058
    %v6366 = vunpack.c.h.b16 %v5058
    %v6367 = vunpack.c.l.b16 %v5059
    %v6368 = vunpack.c.h.b16 %v5059
    %v6369 = vunpack.c.l.b16 %v5060
    %v6370 = vunpack.c.h.b16 %v5060
    %v6371 = vunpack.c.l.b16 %v5061
    %v6372 = vunpack.c.h.b16 %v5061
    %v6373 = vunpack.c.l.b16 %v5062
    %v6374 = vunpack.c.h.b16 %v5062
    %v6375 = vunpack.c.l.b16 %v5063
    %v6376 = vunpack.c.h.b16 %v5063
    %v6377 = vunpack.c.l.b16 %v5064
    %v6378 = vunpack.c.h.b16 %v5064
    %v6379 = vunpack.c.l.b16 %v5065
    %v6380 = vunpack.c.h.b16 %v5065
    %v6381 = vunpack.c.l.b16 %v5066
    %v6382 = vunpack.c.h.b16 %v5066
    %v6383 = vunpack.c.l.b16 %v5067
    %v6384 = vunpack.c.h.b16 %v5067
    %v6385 = vunpack.c.l.b16 %v5068
    %v6386 = vunpack.c.h.b16 %v5068
    %v6387 = vunpack.c.l.b16 %v5069
    %v6388 = vunpack.c.h.b16 %v5069
    %v6389 = vunpack.c.l.b16 %v5070
    %v6390 = vunpack.c.h.b16 %v5070
    %v6391 = vunpack.c.l.b16 %v5071
    %v6392 = vunpack.c.h.b16 %v5071
    %v6393 = vunpack.c.l.b16 %v5072
    %v6394 = vunpack.c.h.b16 %v5072
    %v6395 = vunpack.c.l.b16 %v5073
    %v6396 = vunpack.c.h.b16 %v5073
    %v6397 = vunpack.c.l.b16 %v5074
    %v6398 = vunpack.c.h.b16 %v5074
    %v6399 = vunpack.c.l.b16 %v5075
    %v6400 = vunpack.c.h.b16 %v5075
    %v6401 = vunpack.c.l.b16 %v5076
    %v6402 = vunpack.c.h.b16 %v5076
    %v6403 = vunpack.c.l.b16 %v5077
    %v6404 = vunpack.c.h.b16 %v5077
    %v6405 = vunpack.c.l.b16 %v5078
    %v6406 = vunpack.c.h.b16 %v5078
    %v6407 = vunpack.c.l.b16 %v5079
    %v6408 = vunpack.c.h.b16 %v5079
    %v6409 = vunpack.c.l.b16 %v5080
    %v6410 = vunpack.c.h.b16 %v5080
    %v6411 = vunpack.c.l.b16 %v5081
    %v6412 = vunpack.c.h.b16 %v5081
    %v6413 = vunpack.c.l.b16 %v5082
    %v6414 = vunpack.c.h.b16 %v5082
    %v6415 = vunpack.c.l.b16 %v5083
    %v6416 = vunpack.c.h.b16 %v5083
    %v6417 = vunpack.c.l.b16 %v5084
    %v6418 = vunpack.c.h.b16 %v5084
    %v6419 = vunpack.c.l.b16 %v5085
    %v6420 = vunpack.c.h.b16 %v5085
    %v6421 = vunpack.c.l.b16 %v5086
    %v6422 = vunpack.c.h.b16 %v5086
    %v6423 = vunpack.c.l.b16 %v5087
    %v6424 = vunpack.c.h.b16 %v5087
    %v6425 = vunpack.c.l.b16 %v5088
    %v6426 = vunpack.c.h.b16 %v5088
    %v6427 = vunpack.c.l.b16 %v5089
    %v6428 = vunpack.c.h.b16 %v5089
    %v6429 = vunpack.c.l.b16 %v5090
    %v6430 = vunpack.c.h.b16 %v5090
    %v6431 = vunpack.c.l.b16 %v5091
    %v6432 = vunpack.c.h.b16 %v5091
    %v6433 = vunpack.c.l.b16 %v5092
    %v6434 = vunpack.c.h.b16 %v5092
    %v6435 = vunpack.c.l.b16 %v5093
    %v6436 = vunpack.c.h.b16 %v5093
    %v6437 = vunpack.c.l.b16 %v5094
    %v6438 = vunpack.c.h.b16 %v5094
    %v6439 = vunpack.c.l.b16 %v5095
    %v6440 = vunpack.c.h.b16 %v5095
    %v6441 = vunpack.c.l.b16 %v5096
    %v6442 = vunpack.c.h.b16 %v5096
    %v6443 = vunpack.c.l.b16 %v5097
    %v6444 = vunpack.c.h.b16 %v5097
    %v6445 = vunpack.c.l.b16 %v5098
    %v6446 = vunpack.c.h.b16 %v5098
    %v6447 = vunpack.c.l.b16 %v5099
    %v6448 = vunpack.c.h.b16 %v5099
    %v6449 = vunpack.c.l.b16 %v5100
    %v6450 = vunpack.c.h.b16 %v5100
    %v6451 = vunpack.c.l.b16 %v5101
    %v6452 = vunpack.c.h.b16 %v5101
    %v6453 = vunpack.c.l.b16 %v5102
    %v6454 = vunpack.c.h.b16 %v5102
    %v6455 = vunpack.c.l.b16 %v5103
    %v6456 = vunpack.c.h.b16 %v5103
    %v6457 = vunpack.c.l.b16 %v5104
    %v6458 = vunpack.c.h.b16 %v5104
    %v6459 = vunpack.c.l.b16 %v5105
    %v6460 = vunpack.c.h.b16 %v5105
    %v6461 = vunpack.c.l.b16 %v5106
    %v6462 = vunpack.c.h.b16 %v5106
    %v6463 = vunpack.c.l.b16 %v5107
    %v6464 = vunpack.c.h.b16 %v5107
    %v6465 = vunpack.c.l.b16 %v5108
    %v6466 = vunpack.c.h.b16 %v5108
    %v6467 = vunpack.c.l.b16 %v5109
    %v6468 = vunpack.c.h.b16 %v5109
    %v6469 = vunpack.c.l.b16 %v5110
    %v6470 = vunpack.c.h.b16 %v5110
    %v6471 = vunpack.c.l.b16 %v5111
    %v6472 = vunpack.c.h.b16 %v5111
    %v6473 = vunpack.c.l.b16 %v5112
    %v6474 = vunpack.c.h.b16 %v5112
    %v6475 = vunpack.c.l.b16 %v5113
    %v6476 = vunpack.c.h.b16 %v5113
    %v6477 = vunpack.c.l.b16 %v5114
    %v6478 = vunpack.c.h.b16 %v5114
    %v6479 = vunpack.c.l.b16 %v5115
    %v6480 = vunpack.c.h.b16 %v5115
    %v6481 = vunpack.c.l.b16 %v5116
    %v6482 = vunpack.c.h.b16 %v5116
    %v6483 = vunpack.c.l.b16 %v5117
    %v6484 = vunpack.c.h.b16 %v5117
    %v6485 = vunpack.c.l.b16 %v5118
    %v6486 = vunpack.c.h.b16 %v5118
    %v6487 = vunpack.c.l.b16 %v5119
    %v6488 = vunpack.c.h.b16 %v5119
    %v6489 = vunpack.c.l.b16 %v5120
    %v6490 = vunpack.c.h.b16 %v5120
    %v6491 = vunpack.c.l.b16 %v5121
    %v6492 = vunpack.c.h.b16 %v5121
    %v6493 = vunpack.c.l.b16 %v5122
    %v6494 = vunpack.c.h.b16 %v5122
    %v6495 = vunpack.c.l.b16 %v5123
    %v6496 = vunpack.c.h.b16 %v5123
    %v6497 = vunpack.c.l.b16 %v5124
    %v6498 = vunpack.c.h.b16 %v5124
    %v6499 = vunpack.c.l.b16 %v5125
    %v6500 = vunpack.c.h.b16 %v5125
    %v6501 = vunpack.c.l.b16 %v5126
    %v6502 = vunpack.c.h.b16 %v5126
    %v6503 = vunpack.c.l.b16 %v5127
    %v6504 = vunpack.c.h.b16 %v5127
    %v6505 = vunpack.c.l.b16 %v5128
    %v6506 = vunpack.c.h.b16 %v5128
    %v6507 = vunpack.c.l.b16 %v5129
    %v6508 = vunpack.c.h.b16 %v5129
    %v6509 = vunpack.c.l.b16 %v5130
    %v6510 = vunpack.c.h.b16 %v5130
    %v6511 = vunpack.c.l.b16 %v5131
    %v6512 = vunpack.c.h.b16 %v5131
    %v6513 = vunpack.c.l.b16 %v5132
    %v6514 = vunpack.c.h.b16 %v5132
    %v6515 = vunpack.c.l.b16 %v5133
    %v6516 = vunpack.c.h.b16 %v5133
    %v6517 = vunpack.c.l.b16 %v5134
    %v6518 = vunpack.c.h.b16 %v5134
    %v6519 = vunpack.c.l.b16 %v5135
    %v6520 = vunpack.c.h.b16 %v5135
    %v6521 = vunpack.c.l.b16 %v5136
    %v6522 = vunpack.c.h.b16 %v5136
    %v6523 = vunpack.c.l.b16 %v5137
    %v6524 = vunpack.c.h.b16 %v5137
    %v6525 = vunpack.c.l.b16 %v5138
    %v6526 = vunpack.c.h.b16 %v5138
    %v6527 = vunpack.c.l.b16 %v5139
    %v6528 = vunpack.c.h.b16 %v5139
    %v6529 = vunpack.c.l.b16 %v5140
    %v6530 = vunpack.c.h.b16 %v5140
    %v6531 = vunpack.c.l.b16 %v5141
    %v6532 = vunpack.c.h.b16 %v5141
    %v6533 = vunpack.c.l.b16 %v5142
    %v6534 = vunpack.c.h.b16 %v5142
    %v6535 = vunpack.c.l.b16 %v5143
    %v6536 = vunpack.c.h.b16 %v5143
    %v6537 = vunpack.c.l.b16 %v5144
    %v6538 = vunpack.c.h.b16 %v5144
    %v6539 = vunpack.c.l.b16 %v5145
    %v6540 = vunpack.c.h.b16 %v5145
    %v6541 = vunpack.c.l.b16 %v5146
    %v6542 = vunpack.c.h.b16 %v5146
    %v6543 = vunpack.c.l.b16 %v5147
    %v6544 = vunpack.c.h.b16 %v5147
    %v6545 = vunpack.c.l.b16 %v5148
    %v6546 = vunpack.c.h.b16 %v5148
    %v6547 = vunpack.c.l.b16 %v5149
    %v6548 = vunpack.c.h.b16 %v5149
    %v6549 = vunpack.c.l.b16 %v5150
    %v6550 = vunpack.c.h.b16 %v5150
    %v6551 = vunpack.c.l.b16 %v5151
    %v6552 = vunpack.c.h.b16 %v5151
    %v6553 = vunpack.c.l.b16 %v5152
    %v6554 = vunpack.c.h.b16 %v5152
    %v6555 = vunpack.c.l.b16 %v5153
    %v6556 = vunpack.c.h.b16 %v5153
    %v6557 = vunpack.c.l.b16 %v5154
    %v6558 = vunpack.c.h.b16 %v5154
    %v6559 = vunpack.c.l.b16 %v5155
    %v6560 = vunpack.c.h.b16 %v5155
    %v6561 = vunpack.c.l.b16 %v5156
    %v6562 = vunpack.c.h.b16 %v5156
    %v6563 = vunpack.c.l.b16 %v5157
    %v6564 = vunpack.c.h.b16 %v5157
    %v6565 = vunpack.c.l.b16 %v5158
    %v6566 = vunpack.c.h.b16 %v5158
    %v6567 = vunpack.c.l.b16 %v5159
    %v6568 = vunpack.c.h.b16 %v5159
    %v6569 = vunpack.c.l.b16 %v5160
    %v6570 = vunpack.c.h.b16 %v5160
    %v6571 = vunpack.c.l.b16 %v5161
    %v6572 = vunpack.c.h.b16 %v5161
    %v6573 = vunpack.c.l.b16 %v5162
    %v6574 = vunpack.c.h.b16 %v5162
    %v6575 = vunpack.c.l.b16 %v5163
    %v6576 = vunpack.c.h.b16 %v5163
    %v6577 = vunpack.c.l.b16 %v5164
    %v6578 = vunpack.c.h.b16 %v5164
    %v6579 = vunpack.c.l.b16 %v5165
    %v6580 = vunpack.c.h.b16 %v5165
    %v6581 = vunpack.c.l.b16 %v5166
    %v6582 = vunpack.c.h.b16 %v5166
    %v6583 = vunpack.c.l.b16 %v5167
    %v6584 = vunpack.c.h.b16 %v5167
    %v6585 = vunpack.c.l.b16 %v5168
    %v6586 = vunpack.c.h.b16 %v5168
    %v6587 = vunpack.c.l.b16 %v5169
    %v6588 = vunpack.c.h.b16 %v5169
    %v6589 = vunpack.c.l.b16 %v5170
    %v6590 = vunpack.c.h.b16 %v5170
    %v6591 = vunpack.c.l.b16 %v5171
    %v6592 = vunpack.c.h.b16 %v5171
    %v6593 = vunpack.c.l.b16 %v5172
    %v6594 = vunpack.c.h.b16 %v5172
    %v6595 = vunpack.c.l.b16 %v5173
    %v6596 = vunpack.c.h.b16 %v5173
    %v6597 = vunpack.c.l.b16 %v5174
    %v6598 = vunpack.c.h.b16 %v5174
    %v6599 = vunpack.c.l.b16 %v5175
    %v6600 = vunpack.c.h.b16 %v5175
    %v6601 = vunpack.c.l.b16 %v5176
    %v6602 = vunpack.c.h.b16 %v5176
    %v6603 = vunpack.c.l.b16 %v5177
    %v6604 = vunpack.c.h.b16 %v5177
    %v6605 = vunpack.c.l.b16 %v5178
    %v6606 = vunpack.c.h.b16 %v5178
    %v6607 = vunpack.c.l.b16 %v5179
    %v6608 = vunpack.c.h.b16 %v5179
    %v6609 = vunpack.c.l.b16 %v5180
    %v6610 = vunpack.c.h.b16 %v5180
    %v6611 = vunpack.c.l.b16 %v5181
    %v6612 = vunpack.c.h.b16 %v5181
    %v6613 = vunpack.c.l.b16 %v5182
    %v6614 = vunpack.c.h.b16 %v5182
    %v6615 = vunpack.c.l.b16 %v5183
    %v6616 = vunpack.c.h.b16 %v5183
    %v6617 = vunpack.c.l.b16 %v5184
    %v6618 = vunpack.c.h.b16 %v5184
    %v6619 = vunpack.c.l.b16 %v5185
    %v6620 = vunpack.c.h.b16 %v5185
    %v6621 = vunpack.c.l.b16 %v5186
    %v6622 = vunpack.c.h.b16 %v5186
    %v6623 = vunpack.c.l.b16 %v5187
    %v6624 = vunpack.c.h.b16 %v5187
    %v6625 = vunpack.c.l.b16 %v5188
    %v6626 = vunpack.c.h.b16 %v5188
    %v6627 = vunpack.c.l.b16 %v5189
    %v6628 = vunpack.c.h.b16 %v5189
    %v6629 = vunpack.c.l.b16 %v5190
    %v6630 = vunpack.c.h.b16 %v5190
    %v6631 = vunpack.c.l.b16 %v5191
    %v6632 = vunpack.c.h.b16 %v5191
    %v6633 = vunpack.c.l.b16 %v5192
    %v6634 = vunpack.c.h.b16 %v5192
    %v6635 = vunpack.c.l.b16 %v5193
    %v6636 = vunpack.c.h.b16 %v5193
    %v6637 = vunpack.c.l.b16 %v5194
    %v6638 = vunpack.c.h.b16 %v5194
    %v6639 = vunpack.c.l.b16 %v5195
    %v6640 = vunpack.c.h.b16 %v5195
    %v6641 = vunpack.c.l.b16 %v5196
    %v6642 = vunpack.c.h.b16 %v5196
    %v6643 = vunpack.c.l.b16 %v5197
    %v6644 = vunpack.c.h.b16 %v5197
    %v6645 = vunpack.c.l.b16 %v5198
    %v6646 = vunpack.c.h.b16 %v5198
    %v6647 = vunpack.c.l.b16 %v5199
    %v6648 = vunpack.c.h.b16 %v5199
    %v6649 = vunpack.c.l.b16 %v5200
    %v6650 = vunpack.c.h.b16 %v5200
    %v6651 = vunpack.c.l.b16 %v5201
    %v6652 = vunpack.c.h.b16 %v5201
    %v6653 = vunpack.c.l.b16 %v5202
    %v6654 = vunpack.c.h.b16 %v5202
    %v6655 = vunpack.c.l.b16 %v5203
    %v6656 = vunpack.c.h.b16 %v5203
    %v6657 = vunpack.c.l.b16 %v5204
    %v6658 = vunpack.c.h.b16 %v5204
    %v6659 = vunpack.c.l.b16 %v5205
    %v6660 = vunpack.c.h.b16 %v5205
    %v6661 = vunpack.c.l.b16 %v5206
    %v6662 = vunpack.c.h.b16 %v5206
    %v6663 = vunpack.c.l.b16 %v5207
    %v6664 = vunpack.c.h.b16 %v5207
    %v6665 = vunpack.c.l.b16 %v5208
    %v6666 = vunpack.c.h.b16 %v5208
    %v6667 = vunpack.c.l.b16 %v5209
    %v6668 = vunpack.c.h.b16 %v5209
    %v6669 = vunpack.c.l.b16 %v5210
    %v6670 = vunpack.c.h.b16 %v5210
    %v6671 = vunpack.c.l.b16 %v5211
    %v6672 = vunpack.c.h.b16 %v5211
    %v6673 = vunpack.c.l.b16 %v5212
    %v6674 = vunpack.c.h.b16 %v5212
    %v6675 = vunpack.c.l.b16 %v5213
    %v6676 = vunpack.c.h.b16 %v5213
    %v6677 = vunpack.c.l.b16 %v5214
    %v6678 = vunpack.c.h.b16 %v5214
    %v6679 = vunpack.c.l.b16 %v5215
    %v6680 = vunpack.c.h.b16 %v5215
    %v6681 = vunpack.c.l.b16 %v5216
    %v6682 = vunpack.c.h.b16 %v5216
    %v6683 = vunpack.c.l.b16 %v5217
    %v6684 = vunpack.c.h.b16 %v5217
    %v6685 = vunpack.c.l.b16 %v5218
    %v6686 = vunpack.c.h.b16 %v5218
    %v6687 = vunpack.c.l.b16 %v5219
    %v6688 = vunpack.c.h.b16 %v5219
    %v6689 = vunpack.c.l.b16 %v5220
    %v6690 = vunpack.c.h.b16 %v5220
    %v6691 = vunpack.c.l.b16 %v5221
    %v6692 = vunpack.c.h.b16 %v5221
    %v6693 = vunpack.c.l.b16 %v5222
    %v6694 = vunpack.c.h.b16 %v5222
    %v6695 = vunpack.c.l.b16 %v5223
    %v6696 = vunpack.c.h.b16 %v5223
    %v6697 = vunpack.c.l.b16 %v5224
    %v6698 = vunpack.c.h.b16 %v5224
    %v6699 = vunpack.c.l.b16 %v5225
    %v6700 = vunpack.c.h.b16 %v5225
    %v6701 = vunpack.c.l.b16 %v5226
    %v6702 = vunpack.c.h.b16 %v5226
    %v6703 = vunpack.c.l.b16 %v5227
    %v6704 = vunpack.c.h.b16 %v5227
    %v6705 = vunpack.c.l.b16 %v5228
    %v6706 = vunpack.c.h.b16 %v5228
    %v6707 = vunpack.c.l.b16 %v5229
    %v6708 = vunpack.c.h.b16 %v5229
    %v6709 = vunpack.c.l.b16 %v5230
    %v6710 = vunpack.c.h.b16 %v5230
    %v6711 = vunpack.c.l.b16 %v5231
    %v6712 = vunpack.c.h.b16 %v5231
    %v6713 = vunpack.c.l.b16 %v5232
    %v6714 = vunpack.c.h.b16 %v5232
    %v6715 = vunpack.c.l.b16 %v5233
    %v6716 = vunpack.c.h.b16 %v5233
    %v6717 = vunpack.c.l.b16 %v5234
    %v6718 = vunpack.c.h.b16 %v5234
    %v6719 = vunpack.c.l.b16 %v5235
    %v6720 = vunpack.c.h.b16 %v5235
    %v6721 = vunpack.c.l.b16 %v5236
    %v6722 = vunpack.c.h.b16 %v5236
    %v6723 = vunpack.c.l.b16 %v5237
    %v6724 = vunpack.c.h.b16 %v5237
    %v6725 = vunpack.c.l.b16 %v5238
    %v6726 = vunpack.c.h.b16 %v5238
    %v6727 = vunpack.c.l.b16 %v5239
    %v6728 = vunpack.c.h.b16 %v5239
    %v6729 = vunpack.c.l.b16 %v5240
    %v6730 = vunpack.c.h.b16 %v5240
    %v6731 = vunpack.c.l.b16 %v5241
    %v6732 = vunpack.c.h.b16 %v5241
    %v6733 = vunpack.c.l.b16 %v5242
    %v6734 = vunpack.c.h.b16 %v5242
    %v6735 = vunpack.c.l.b16 %v5243
    %v6736 = vunpack.c.h.b16 %v5243
    %v6737 = vunpack.c.l.b16 %v5244
    %v6738 = vunpack.c.h.b16 %v5244
    %v6739 = vunpack.c.l.b16 %v5245
    %v6740 = vunpack.c.h.b16 %v5245
    %v6741 = vunpack.c.l.b16 %v5246
    %v6742 = vunpack.c.h.b16 %v5246
    %v6743 = vunpack.c.l.b16 %v5247
    %v6744 = vunpack.c.h.b16 %v5247
    %v6745 = vunpack.c.l.b16 %v5248
    %v6746 = vunpack.c.h.b16 %v5248
    %v6747 = vunpack.c.l.b16 %v5249
    %v6748 = vunpack.c.h.b16 %v5249
    %v6749 = vunpack.c.l.b16 %v5250
    %v6750 = vunpack.c.h.b16 %v5250
    %v6751 = vunpack.c.l.b16 %v5251
    %v6752 = vunpack.c.h.b16 %v5251
    %v6753 = vunpack.c.l.b16 %v5252
    %v6754 = vunpack.c.h.b16 %v5252
    %v6755 = vunpack.c.l.b16 %v5253
    %v6756 = vunpack.c.h.b16 %v5253
    %v6757 = vunpack.c.l.b16 %v5254
    %v6758 = vunpack.c.h.b16 %v5254
    %v6759 = vunpack.c.l.b16 %v5255
    %v6760 = vunpack.c.h.b16 %v5255
    %v6761 = vunpack.c.l.b16 %v5256
    %v6762 = vunpack.c.h.b16 %v5256
    %v6763 = vunpack.c.l.b16 %v5257
    %v6764 = vunpack.c.h.b16 %v5257
    %v6765 = vunpack.c.l.b16 %v5258
    %v6766 = vunpack.c.h.b16 %v5258
    %v6767 = vunpack.c.l.b16 %v5259
    %v6768 = vunpack.c.h.b16 %v5259
    %v6769 = vunpack.c.l.b16 %v5260
    %v6770 = vunpack.c.h.b16 %v5260
    %v6771 = vunpack.c.l.b16 %v5261
    %v6772 = vunpack.c.h.b16 %v5261
    %v6773 = vunpack.c.l.b16 %v5262
    %v6774 = vunpack.c.h.b16 %v5262
    %v6775 = vunpack.c.l.b16 %v5263
    %v6776 = vunpack.c.h.b16 %v5263
    %v6777 = vunpack.c.l.b16 %v5264
    %v6778 = vunpack.c.h.b16 %v5264
    %v6779 = vunpack.c.l.b16 %v5265
    %v6780 = vunpack.c.h.b16 %v5265
    %v6781 = vunpack.c.l.b16 %v5266
    %v6782 = vunpack.c.h.b16 %v5266
    %v6783 = vunpack.c.l.b16 %v5267
    %v6784 = vunpack.c.h.b16 %v5267
    %v6785 = vunpack.c.l.b16 %v5268
    %v6786 = vunpack.c.h.b16 %v5268
    %v6787 = vunpack.c.l.b16 %v5269
    %v6788 = vunpack.c.h.b16 %v5269
    %v6789 = vunpack.c.l.b16 %v5270
    %v6790 = vunpack.c.h.b16 %v5270
    %v6791 = vunpack.c.l.b16 %v5271
    %v6792 = vunpack.c.h.b16 %v5271
    %v6793 = vunpack.c.l.b16 %v5272
    %v6794 = vunpack.c.h.b16 %v5272
    %v6795 = vunpack.c.l.b16 %v5273
    %v6796 = vunpack.c.h.b16 %v5273
    %v6797 = vunpack.c.l.b16 %v5274
    %v6798 = vunpack.c.h.b16 %v5274
    %v6799 = vunpack.c.l.b16 %v5275
    %v6800 = vunpack.c.h.b16 %v5275
    %v6801 = vunpack.c.l.b16 %v5276
    %v6802 = vunpack.c.h.b16 %v5276
    %v6803 = vunpack.c.l.b16 %v5277
    %v6804 = vunpack.c.h.b16 %v5277
    %v6805 = vunpack.c.l.b16 %v5278
    %v6806 = vunpack.c.h.b16 %v5278
    %v6807 = vunpack.c.l.b16 %v5279
    %v6808 = vunpack.c.h.b16 %v5279
    %v6809 = vunpack.c.l.b16 %v5280
    %v6810 = vunpack.c.h.b16 %v5280
    %v6811 = vunpack.c.l.b16 %v5281
    %v6812 = vunpack.c.h.b16 %v5281
    %v6813 = vunpack.c.l.b16 %v5282
    %v6814 = vunpack.c.h.b16 %v5282
    %v6815 = vunpack.c.l.b16 %v5283
    %v6816 = vunpack.c.h.b16 %v5283
    %v6817 = vunpack.c.l.b16 %v5284
    %v6818 = vunpack.c.h.b16 %v5284
    %v6819 = vunpack.c.l.b16 %v5285
    %v6820 = vunpack.c.h.b16 %v5285
    %v6821 = vunpack.c.l.b16 %v5286
    %v6822 = vunpack.c.h.b16 %v5286
    %v6823 = vpack.c.b16 %v5807, %v5799
    %v6824 = vpack.c.b16 %v5808, %v5800
    %v6825 = vpack.c.b16 %v5809, %v5801
    %v6826 = vpack.c.b16 %v5810, %v5802
    %v6827 = vpack.c.b16 %v5811, %v5803
    %v6828 = vpack.c.b16 %v5812, %v5804
    %v6829 = vpack.c.b16 %v5813, %v5805
    %v6830 = vpack.c.b16 %v5814, %v5806
    %v6831 = vpack.c.b16 %v5823, %v5815
    %v6832 = vpack.c.b16 %v5824, %v5816
    %v6833 = vpack.c.b16 %v5825, %v5817
    %v6834 = vpack.c.b16 %v5826, %v5818
    %v6835 = vpack.c.b16 %v5827, %v5819
    %v6836 = vpack.c.b16 %v5828, %v5820
    %v6837 = vpack.c.b16 %v5829, %v5821
    %v6838 = vpack.c.b16 %v5830, %v5822
    %v6839 = vpack.c.b16 %v5839, %v5831
    %v6840 = vpack.c.b16 %v5840, %v5832
    %v6841 = vpack.c.b16 %v5841, %v5833
    %v6842 = vpack.c.b16 %v5842, %v5834
    %v6843 = vpack.c.b16 %v5843, %v5835
    %v6844 = vpack.c.b16 %v5844, %v5836
    %v6845 = vpack.c.b16 %v5845, %v5837
    %v6846 = vpack.c.b16 %v5846, %v5838
    %v6847 = vpack.c.b16 %v5855, %v5847
    %v6848 = vpack.c.b16 %v5856, %v5848
    %v6849 = vpack.c.b16 %v5857, %v5849
    %v6850 = vpack.c.b16 %v5858, %v5850
    %v6851 = vpack.c.b16 %v5859, %v5851
    %v6852 = vpack.c.b16 %v5860, %v5852
    %v6853 = vpack.c.b16 %v5861, %v5853
    %v6854 = vpack.c.b16 %v5862, %v5854
    %v6855 = vpack.c.b16 %v5871, %v5863
    %v6856 = vpack.c.b16 %v5872, %v5864
    %v6857 = vpack.c.b16 %v5873, %v5865
    %v6858 = vpack.c.b16 %v5874, %v5866
    %v6859 = vpack.c.b16 %v5875, %v5867
    %v6860 = vpack.c.b16 %v5876, %v5868
    %v6861 = vpack.c.b16 %v5877, %v5869
    %v6862 = vpack.c.b16 %v5878, %v5870
    %v6863 = vpack.c.b16 %v5887, %v5879
    %v6864 = vpack.c.b16 %v5888, %v5880
    %v6865 = vpack.c.b16 %v5889, %v5881
    %v6866 = vpack.c.b16 %v5890, %v5882
    %v6867 = vpack.c.b16 %v5891, %v5883
    %v6868 = vpack.c.b16 %v5892, %v5884
    %v6869 = vpack.c.b16 %v5893, %v5885
    %v6870 = vpack.c.b16 %v5894, %v5886
    %v6871 = vpack.c.b16 %v5903, %v5895
    %v6872 = vpack.c.b16 %v5904, %v5896
    %v6873 = vpack.c.b16 %v5905, %v5897
    %v6874 = vpack.c.b16 %v5906, %v5898
    %v6875 = vpack.c.b16 %v5907, %v5899
    %v6876 = vpack.c.b16 %v5908, %v5900
    %v6877 = vpack.c.b16 %v5909, %v5901
    %v6878 = vpack.c.b16 %v5910, %v5902
    %v6879 = vpack.c.b16 %v5919, %v5911
    %v6880 = vpack.c.b16 %v5920, %v5912
    %v6881 = vpack.c.b16 %v5921, %v5913
    %v6882 = vpack.c.b16 %v5922, %v5914
    %v6883 = vpack.c.b16 %v5923, %v5915
    %v6884 = vpack.c.b16 %v5924, %v5916
    %v6885 = vpack.c.b16 %v5925, %v5917
    %v6886 = vpack.c.b16 %v5926, %v5918
    %v6887 = vpack.c.b16 %v5935, %v5927
    %v6888 = vpack.c.b16 %v5936, %v5928
    %v6889 = vpack.c.b16 %v5937, %v5929
    %v6890 = vpack.c.b16 %v5938, %v5930
    %v6891 = vpack.c.b16 %v5939, %v5931
    %v6892 = vpack.c.b16 %v5940, %v5932
    %v6893 = vpack.c.b16 %v5941, %v5933
    %v6894 = vpack.c.b16 %v5942, %v5934
    %v6895 = vpack.c.b16 %v5951, %v5943
    %v6896 = vpack.c.b16 %v5952, %v5944
    %v6897 = vpack.c.b16 %v5953, %v5945
    %v6898 = vpack.c.b16 %v5954, %v5946
    %v6899 = vpack.c.b16 %v5955, %v5947
    %v6900 = vpack.c.b16 %v5956, %v5948
    %v6901 = vpack.c.b16 %v5957, %v5949
    %v6902 = vpack.c.b16 %v5958, %v5950
    %v6903 = vpack.c.b16 %v5967, %v5959
    %v6904 = vpack.c.b16 %v5968, %v5960
    %v6905 = vpack.c.b16 %v5969, %v5961
    %v6906 = vpack.c.b16 %v5970, %v5962
    %v6907 = vpack.c.b16 %v5971, %v5963
    %v6908 = vpack.c.b16 %v5972, %v5964
    %v6909 = vpack.c.b16 %v5973, %v5965
    %v6910 = vpack.c.b16 %v5974, %v5966
    %v6911 = vpack.c.b16 %v5983, %v5975
    %v6912 = vpack.c.b16 %v5984, %v5976
    %v6913 = vpack.c.b16 %v5985, %v5977
    %v6914 = vpack.c.b16 %v5986, %v5978
    %v6915 = vpack.c.b16 %v5987, %v5979
    %v6916 = vpack.c.b16 %v5988, %v5980
    %v6917 = vpack.c.b16 %v5989, %v5981
    %v6918 = vpack.c.b16 %v5990, %v5982
    %v6919 = vpack.c.b16 %v5999, %v5991
    %v6920 = vpack.c.b16 %v6000, %v5992
    %v6921 = vpack.c.b16 %v6001, %v5993
    %v6922 = vpack.c.b16 %v6002, %v5994
    %v6923 = vpack.c.b16 %v6003, %v5995
    %v6924 = vpack.c.b16 %v6004, %v5996
    %v6925 = vpack.c.b16 %v6005, %v5997
    %v6926 = vpack.c.b16 %v6006, %v5998
    %v6927 = vpack.c.b16 %v6015, %v6007
    %v6928 = vpack.c.b16 %v6016, %v6008
    %v6929 = vpack.c.b16 %v6017, %v6009
    %v6930 = vpack.c.b16 %v6018, %v6010
    %v6931 = vpack.c.b16 %v6019, %v6011
    %v6932 = vpack.c.b16 %v6020, %v6012
    %v6933 = vpack.c.b16 %v6021, %v6013
    %v6934 = vpack.c.b16 %v6022, %v6014
    %v6935 = vpack.c.b16 %v6031, %v6023
    %v6936 = vpack.c.b16 %v6032, %v6024
    %v6937 = vpack.c.b16 %v6033, %v6025
    %v6938 = vpack.c.b16 %v6034, %v6026
    %v6939 = vpack.c.b16 %v6035, %v6027
    %v6940 = vpack.c.b16 %v6036, %v6028
    %v6941 = vpack.c.b16 %v6037, %v6029
    %v6942 = vpack.c.b16 %v6038, %v6030
    %v6943 = vpack.c.b16 %v6047, %v6039
    %v6944 = vpack.c.b16 %v6048, %v6040
    %v6945 = vpack.c.b16 %v6049, %v6041
    %v6946 = vpack.c.b16 %v6050, %v6042
    %v6947 = vpack.c.b16 %v6051, %v6043
    %v6948 = vpack.c.b16 %v6052, %v6044
    %v6949 = vpack.c.b16 %v6053, %v6045
    %v6950 = vpack.c.b16 %v6054, %v6046
    %v6951 = vpack.c.b16 %v6063, %v6055
    %v6952 = vpack.c.b16 %v6064, %v6056
    %v6953 = vpack.c.b16 %v6065, %v6057
    %v6954 = vpack.c.b16 %v6066, %v6058
    %v6955 = vpack.c.b16 %v6067, %v6059
    %v6956 = vpack.c.b16 %v6068, %v6060
    %v6957 = vpack.c.b16 %v6069, %v6061
    %v6958 = vpack.c.b16 %v6070, %v6062
    %v6959 = vpack.c.b16 %v6079, %v6071
    %v6960 = vpack.c.b16 %v6080, %v6072
    %v6961 = vpack.c.b16 %v6081, %v6073
    %v6962 = vpack.c.b16 %v6082, %v6074
    %v6963 = vpack.c.b16 %v6083, %v6075
    %v6964 = vpack.c.b16 %v6084, %v6076
    %v6965 = vpack.c.b16 %v6085, %v6077
    %v6966 = vpack.c.b16 %v6086, %v6078
    %v6967 = vpack.c.b16 %v6095, %v6087
    %v6968 = vpack.c.b16 %v6096, %v6088
    %v6969 = vpack.c.b16 %v6097, %v6089
    %v6970 = vpack.c.b16 %v6098, %v6090
    %v6971 = vpack.c.b16 %v6099, %v6091
    %v6972 = vpack.c.b16 %v6100, %v6092
    %v6973 = vpack.c.b16 %v6101, %v6093
    %v6974 = vpack.c.b16 %v6102, %v6094
    %v6975 = vpack.c.b16 %v6111, %v6103
    %v6976 = vpack.c.b16 %v6112, %v6104
    %v6977 = vpack.c.b16 %v6113, %v6105
    %v6978 = vpack.c.b16 %v6114, %v6106
    %v6979 = vpack.c.b16 %v6115, %v6107
    %v6980 = vpack.c.b16 %v6116, %v6108
    %v6981 = vpack.c.b16 %v6117, %v6109
    %v6982 = vpack.c.b16 %v6118, %v6110
    %v6983 = vpack.c.b16 %v6127, %v6119
    %v6984 = vpack.c.b16 %v6128, %v6120
    %v6985 = vpack.c.b16 %v6129, %v6121
    %v6986 = vpack.c.b16 %v6130, %v6122
    %v6987 = vpack.c.b16 %v6131, %v6123
    %v6988 = vpack.c.b16 %v6132, %v6124
    %v6989 = vpack.c.b16 %v6133, %v6125
    %v6990 = vpack.c.b16 %v6134, %v6126
    %v6991 = vpack.c.b16 %v6143, %v6135
    %v6992 = vpack.c.b16 %v6144, %v6136
    %v6993 = vpack.c.b16 %v6145, %v6137
    %v6994 = vpack.c.b16 %v6146, %v6138
    %v6995 = vpack.c.b16 %v6147, %v6139
    %v6996 = vpack.c.b16 %v6148, %v6140
    %v6997 = vpack.c.b16 %v6149, %v6141
    %v6998 = vpack.c.b16 %v6150, %v6142
    %v6999 = vpack.c.b16 %v6159, %v6151
    %v7000 = vpack.c.b16 %v6160, %v6152
    %v7001 = vpack.c.b16 %v6161, %v6153
    %v7002 = vpack.c.b16 %v6162, %v6154
    %v7003 = vpack.c.b16 %v6163, %v6155
    %v7004 = vpack.c.b16 %v6164, %v6156
    %v7005 = vpack.c.b16 %v6165, %v6157
    %v7006 = vpack.c.b16 %v6166, %v6158
    %v7007 = vpack.c.b16 %v6175, %v6167
    %v7008 = vpack.c.b16 %v6176, %v6168
    %v7009 = vpack.c.b16 %v6177, %v6169
    %v7010 = vpack.c.b16 %v6178, %v6170
    %v7011 = vpack.c.b16 %v6179, %v6171
    %v7012 = vpack.c.b16 %v6180, %v6172
    %v7013 = vpack.c.b16 %v6181, %v6173
    %v7014 = vpack.c.b16 %v6182, %v6174
    %v7015 = vpack.c.b16 %v6191, %v6183
    %v7016 = vpack.c.b16 %v6192, %v6184
    %v7017 = vpack.c.b16 %v6193, %v6185
    %v7018 = vpack.c.b16 %v6194, %v6186
    %v7019 = vpack.c.b16 %v6195, %v6187
    %v7020 = vpack.c.b16 %v6196, %v6188
    %v7021 = vpack.c.b16 %v6197, %v6189
    %v7022 = vpack.c.b16 %v6198, %v6190
    %v7023 = vpack.c.b16 %v6207, %v6199
    %v7024 = vpack.c.b16 %v6208, %v6200
    %v7025 = vpack.c.b16 %v6209, %v6201
    %v7026 = vpack.c.b16 %v6210, %v6202
    %v7027 = vpack.c.b16 %v6211, %v6203
    %v7028 = vpack.c.b16 %v6212, %v6204
    %v7029 = vpack.c.b16 %v6213, %v6205
    %v7030 = vpack.c.b16 %v6214, %v6206
    %v7031 = vpack.c.b16 %v6223, %v6215
    %v7032 = vpack.c.b16 %v6224, %v6216
    %v7033 = vpack.c.b16 %v6225, %v6217
    %v7034 = vpack.c.b16 %v6226, %v6218
    %v7035 = vpack.c.b16 %v6227, %v6219
    %v7036 = vpack.c.b16 %v6228, %v6220
    %v7037 = vpack.c.b16 %v6229, %v6221
    %v7038 = vpack.c.b16 %v6230, %v6222
    %v7039 = vpack.c.b16 %v6239, %v6231
    %v7040 = vpack.c.b16 %v6240, %v6232
    %v7041 = vpack.c.b16 %v6241, %v6233
    %v7042 = vpack.c.b16 %v6242, %v6234
    %v7043 = vpack.c.b16 %v6243, %v6235
    %v7044 = vpack.c.b16 %v6244, %v6236
    %v7045 = vpack.c.b16 %v6245, %v6237
    %v7046 = vpack.c.b16 %v6246, %v6238
    %v7047 = vpack.c.b16 %v6255, %v6247
    %v7048 = vpack.c.b16 %v6256, %v6248
    %v7049 = vpack.c.b16 %v6257, %v6249
    %v7050 = vpack.c.b16 %v6258, %v6250
    %v7051 = vpack.c.b16 %v6259, %v6251
    %v7052 = vpack.c.b16 %v6260, %v6252
    %v7053 = vpack.c.b16 %v6261, %v6253
    %v7054 = vpack.c.b16 %v6262, %v6254
    %v7055 = vpack.c.b16 %v6271, %v6263
    %v7056 = vpack.c.b16 %v6272, %v6264
    %v7057 = vpack.c.b16 %v6273, %v6265
    %v7058 = vpack.c.b16 %v6274, %v6266
    %v7059 = vpack.c.b16 %v6275, %v6267
    %v7060 = vpack.c.b16 %v6276, %v6268
    %v7061 = vpack.c.b16 %v6277, %v6269
    %v7062 = vpack.c.b16 %v6278, %v6270
    %v7063 = vpack.c.b16 %v6287, %v6279
    %v7064 = vpack.c.b16 %v6288, %v6280
    %v7065 = vpack.c.b16 %v6289, %v6281
    %v7066 = vpack.c.b16 %v6290, %v6282
    %v7067 = vpack.c.b16 %v6291, %v6283
    %v7068 = vpack.c.b16 %v6292, %v6284
    %v7069 = vpack.c.b16 %v6293, %v6285
    %v7070 = vpack.c.b16 %v6294, %v6286
    %v7071 = vpack.c.b16 %v6303, %v6295
    %v7072 = vpack.c.b16 %v6304, %v6296
    %v7073 = vpack.c.b16 %v6305, %v6297
    %v7074 = vpack.c.b16 %v6306, %v6298
    %v7075 = vpack.c.b16 %v6307, %v6299
    %v7076 = vpack.c.b16 %v6308, %v6300
    %v7077 = vpack.c.b16 %v6309, %v6301
    %v7078 = vpack.c.b16 %v6310, %v6302
    %v7079 = vpack.c.b16 %v6319, %v6311
    %v7080 = vpack.c.b16 %v6320, %v6312
    %v7081 = vpack.c.b16 %v6321, %v6313
    %v7082 = vpack.c.b16 %v6322, %v6314
    %v7083 = vpack.c.b16 %v6323, %v6315
    %v7084 = vpack.c.b16 %v6324, %v6316
    %v7085 = vpack.c.b16 %v6325, %v6317
    %v7086 = vpack.c.b16 %v6326, %v6318
    %v7087 = vpack.c.b16 %v6335, %v6327
    %v7088 = vpack.c.b16 %v6336, %v6328
    %v7089 = vpack.c.b16 %v6337, %v6329
    %v7090 = vpack.c.b16 %v6338, %v6330
    %v7091 = vpack.c.b16 %v6339, %v6331
    %v7092 = vpack.c.b16 %v6340, %v6332
    %v7093 = vpack.c.b16 %v6341, %v6333
    %v7094 = vpack.c.b16 %v6342, %v6334
    %v7095 = vpack.c.b16 %v6351, %v6343
    %v7096 = vpack.c.b16 %v6352, %v6344
    %v7097 = vpack.c.b16 %v6353, %v6345
    %v7098 = vpack.c.b16 %v6354, %v6346
    %v7099 = vpack.c.b16 %v6355, %v6347
    %v7100 = vpack.c.b16 %v6356, %v6348
    %v7101 = vpack.c.b16 %v6357, %v6349
    %v7102 = vpack.c.b16 %v6358, %v6350
    %v7103 = vpack.c.b16 %v6367, %v6359
    %v7104 = vpack.c.b16 %v6368, %v6360
    %v7105 = vpack.c.b16 %v6369, %v6361
    %v7106 = vpack.c.b16 %v6370, %v6362
    %v7107 = vpack.c.b16 %v6371, %v6363
    %v7108 = vpack.c.b16 %v6372, %v6364
    %v7109 = vpack.c.b16 %v6373, %v6365
    %v7110 = vpack.c.b16 %v6374, %v6366
    %v7111 = vpack.c.b16 %v6383, %v6375
    %v7112 = vpack.c.b16 %v6384, %v6376
    %v7113 = vpack.c.b16 %v6385, %v6377
    %v7114 = vpack.c.b16 %v6386, %v6378
    %v7115 = vpack.c.b16 %v6387, %v6379
    %v7116 = vpack.c.b16 %v6388, %v6380
    %v7117 = vpack.c.b16 %v6389, %v6381
    %v7118 = vpack.c.b16 %v6390, %v6382
    %v7119 = vpack.c.b16 %v6399, %v6391
    %v7120 = vpack.c.b16 %v6400, %v6392
    %v7121 = vpack.c.b16 %v6401, %v6393
    %v7122 = vpack.c.b16 %v6402, %v6394
    %v7123 = vpack.c.b16 %v6403, %v6395
    %v7124 = vpack.c.b16 %v6404, %v6396
    %v7125 = vpack.c.b16 %v6405, %v6397
    %v7126 = vpack.c.b16 %v6406, %v6398
    %v7127 = vpack.c.b16 %v6415, %v6407
    %v7128 = vpack.c.b16 %v6416, %v6408
    %v7129 = vpack.c.b16 %v6417, %v6409
    %v7130 = vpack.c.b16 %v6418, %v6410
    %v7131 = vpack.c.b16 %v6419, %v6411
    %v7132 = vpack.c.b16 %v6420, %v6412
    %v7133 = vpack.c.b16 %v6421, %v6413
    %v7134 = vpack.c.b16 %v6422, %v6414
    %v7135 = vpack.c.b16 %v6431, %v6423
    %v7136 = vpack.c.b16 %v6432, %v6424
    %v7137 = vpack.c.b16 %v6433, %v6425
    %v7138 = vpack.c.b16 %v6434, %v6426
    %v7139 = vpack.c.b16 %v6435, %v6427
    %v7140 = vpack.c.b16 %v6436, %v6428
    %v7141 = vpack.c.b16 %v6437, %v6429
    %v7142 = vpack.c.b16 %v6438, %v6430
    %v7143 = vpack.c.b16 %v6447, %v6439
    %v7144 = vpack.c.b16 %v6448, %v6440
    %v7145 = vpack.c.b16 %v6449, %v6441
    %v7146 = vpack.c.b16 %v6450, %v6442
    %v7147 = vpack.c.b16 %v6451, %v6443
    %v7148 = vpack.c.b16 %v6452, %v6444
    %v7149 = vpack.c.b16 %v6453, %v6445
    %v7150 = vpack.c.b16 %v6454, %v6446
    %v7151 = vpack.c.b16 %v6463, %v6455
    %v7152 = vpack.c.b16 %v6464, %v6456
    %v7153 = vpack.c.b16 %v6465, %v6457
    %v7154 = vpack.c.b16 %v6466, %v6458
    %v7155 = vpack.c.b16 %v6467, %v6459
    %v7156 = vpack.c.b16 %v6468, %v6460
    %v7157 = vpack.c.b16 %v6469, %v6461
    %v7158 = vpack.c.b16 %v6470, %v6462
    %v7159 = vpack.c.b16 %v6479, %v6471
    %v7160 = vpack.c.b16 %v6480, %v6472
    %v7161 = vpack.c.b16 %v6481, %v6473
    %v7162 = vpack.c.b16 %v6482, %v6474
    %v7163 = vpack.c.b16 %v6483, %v6475
    %v7164 = vpack.c.b16 %v6484, %v6476
    %v7165 = vpack.c.b16 %v6485, %v6477
    %v7166 = vpack.c.b16 %v6486, %v6478
    %v7167 = vpack.c.b16 %v6495, %v6487
    %v7168 = vpack.c.b16 %v6496, %v6488
    %v7169 = vpack.c.b16 %v6497, %v6489
    %v7170 = vpack.c.b16 %v6498, %v6490
    %v7171 = vpack.c.b16 %v6499, %v6491
    %v7172 = vpack.c.b16 %v6500, %v6492
    %v7173 = vpack.c.b16 %v6501, %v6493
    %v7174 = vpack.c.b16 %v6502, %v6494
    %v7175 = vpack.c.b16 %v6511, %v6503
    %v7176 = vpack.c.b16 %v6512, %v6504
    %v7177 = vpack.c.b16 %v6513, %v6505
    %v7178 = vpack.c.b16 %v6514, %v6506
    %v7179 = vpack.c.b16 %v6515, %v6507
    %v7180 = vpack.c.b16 %v6516, %v6508
    %v7181 = vpack.c.b16 %v6517, %v6509
    %v7182 = vpack.c.b16 %v6518, %v6510
    %v7183 = vpack.c.b16 %v6527, %v6519
    %v7184 = vpack.c.b16 %v6528, %v6520
    %v7185 = vpack.c.b16 %v6529, %v6521
    %v7186 = vpack.c.b16 %v6530, %v6522
    %v7187 = vpack.c.b16 %v6531, %v6523
    %v7188 = vpack.c.b16 %v6532, %v6524
    %v7189 = vpack.c.b16 %v6533, %v6525
    %v7190 = vpack.c.b16 %v6534, %v6526
    %v7191 = vpack.c.b16 %v6543, %v6535
    %v7192 = vpack.c.b16 %v6544, %v6536
    %v7193 = vpack.c.b16 %v6545, %v6537
    %v7194 = vpack.c.b16 %v6546, %v6538
    %v7195 = vpack.c.b16 %v6547, %v6539
    %v7196 = vpack.c.b16 %v6548, %v6540
    %v7197 = vpack.c.b16 %v6549, %v6541
    %v7198 = vpack.c.b16 %v6550, %v6542
    %v7199 = vpack.c.b16 %v6559, %v6551
    %v7200 = vpack.c.b16 %v6560, %v6552
    %v7201 = vpack.c.b16 %v6561, %v6553
    %v7202 = vpack.c.b16 %v6562, %v6554
    %v7203 = vpack.c.b16 %v6563, %v6555
    %v7204 = vpack.c.b16 %v6564, %v6556
    %v7205 = vpack.c.b16 %v6565, %v6557
    %v7206 = vpack.c.b16 %v6566, %v6558
    %v7207 = vpack.c.b16 %v6575, %v6567
    %v7208 = vpack.c.b16 %v6576, %v6568
    %v7209 = vpack.c.b16 %v6577, %v6569
    %v7210 = vpack.c.b16 %v6578, %v6570
    %v7211 = vpack.c.b16 %v6579, %v6571
    %v7212 = vpack.c.b16 %v6580, %v6572
    %v7213 = vpack.c.b16 %v6581, %v6573
    %v7214 = vpack.c.b16 %v6582, %v6574
    %v7215 = vpack.c.b16 %v6591, %v6583
    %v7216 = vpack.c.b16 %v6592, %v6584
    %v7217 = vpack.c.b16 %v6593, %v6585
    %v7218 = vpack.c.b16 %v6594, %v6586
    %v7219 = vpack.c.b16 %v6595, %v6587
    %v7220 = vpack.c.b16 %v6596, %v6588
    %v7221 = vpack.c.b16 %v6597, %v6589
    %v7222 = vpack.c.b16 %v6598, %v6590
    %v7223 = vpack.c.b16 %v6607, %v6599
    %v7224 = vpack.c.b16 %v6608, %v6600
    %v7225 = vpack.c.b16 %v6609, %v6601
    %v7226 = vpack.c.b16 %v6610, %v6602
    %v7227 = vpack.c.b16 %v6611, %v6603
    %v7228 = vpack.c.b16 %v6612, %v6604
    %v7229 = vpack.c.b16 %v6613, %v6605
    %v7230 = vpack.c.b16 %v6614, %v6606
    %v7231 = vpack.c.b16 %v6623, %v6615
    %v7232 = vpack.c.b16 %v6624, %v6616
    %v7233 = vpack.c.b16 %v6625, %v6617
    %v7234 = vpack.c.b16 %v6626, %v6618
    %v7235 = vpack.c.b16 %v6627, %v6619
    %v7236 = vpack.c.b16 %v6628, %v6620
    %v7237 = vpack.c.b16 %v6629, %v6621
    %v7238 = vpack.c.b16 %v6630, %v6622
    %v7239 = vpack.c.b16 %v6639, %v6631
    %v7240 = vpack.c.b16 %v6640, %v6632
    %v7241 = vpack.c.b16 %v6641, %v6633
    %v7242 = vpack.c.b16 %v6642, %v6634
    %v7243 = vpack.c.b16 %v6643, %v6635
    %v7244 = vpack.c.b16 %v6644, %v6636
    %v7245 = vpack.c.b16 %v6645, %v6637
    %v7246 = vpack.c.b16 %v6646, %v6638
    %v7247 = vpack.c.b16 %v6655, %v6647
    %v7248 = vpack.c.b16 %v6656, %v6648
    %v7249 = vpack.c.b16 %v6657, %v6649
    %v7250 = vpack.c.b16 %v6658, %v6650
    %v7251 = vpack.c.b16 %v6659, %v6651
    %v7252 = vpack.c.b16 %v6660, %v6652
    %v7253 = vpack.c.b16 %v6661, %v6653
    %v7254 = vpack.c.b16 %v6662, %v6654
    %v7255 = vpack.c.b16 %v6671, %v6663
    %v7256 = vpack.c.b16 %v6672, %v6664
    %v7257 = vpack.c.b16 %v6673, %v6665
    %v7258 = vpack.c.b16 %v6674, %v6666
    %v7259 = vpack.c.b16 %v6675, %v6667
    %v7260 = vpack.c.b16 %v6676, %v6668
    %v7261 = vpack.c.b16 %v6677, %v6669
    %v7262 = vpack.c.b16 %v6678, %v6670
    %v7263 = vpack.c.b16 %v6687, %v6679
    %v7264 = vpack.c.b16 %v6688, %v6680
    %v7265 = vpack.c.b16 %v6689, %v6681
    %v7266 = vpack.c.b16 %v6690, %v6682
    %v7267 = vpack.c.b16 %v6691, %v6683
    %v7268 = vpack.c.b16 %v6692, %v6684
    %v7269 = vpack.c.b16 %v6693, %v6685
    %v7270 = vpack.c.b16 %v6694, %v6686
    %v7271 = vpack.c.b16 %v6703, %v6695
    %v7272 = vpack.c.b16 %v6704, %v6696
    %v7273 = vpack.c.b16 %v6705, %v6697
    %v7274 = vpack.c.b16 %v6706, %v6698
    %v7275 = vpack.c.b16 %v6707, %v6699
    %v7276 = vpack.c.b16 %v6708, %v6700
    %v7277 = vpack.c.b16 %v6709, %v6701
    %v7278 = vpack.c.b16 %v6710, %v6702
    %v7279 = vpack.c.b16 %v6719, %v6711
    %v7280 = vpack.c.b16 %v6720, %v6712
    %v7281 = vpack.c.b16 %v6721, %v6713
    %v7282 = vpack.c.b16 %v6722, %v6714
    %v7283 = vpack.c.b16 %v6723, %v6715
    %v7284 = vpack.c.b16 %v6724, %v6716
    %v7285 = vpack.c.b16 %v6725, %v6717
    %v7286 = vpack.c.b16 %v6726, %v6718
    %v7287 = vpack.c.b16 %v6735, %v6727
    %v7288 = vpack.c.b16 %v6736, %v6728
    %v7289 = vpack.c.b16 %v6737, %v6729
    %v7290 = vpack.c.b16 %v6738, %v6730
    %v7291 = vpack.c.b16 %v6739, %v6731
    %v7292 = vpack.c.b16 %v6740, %v6732
    %v7293 = vpack.c.b16 %v6741, %v6733
    %v7294 = vpack.c.b16 %v6742, %v6734
    %v7295 = vpack.c.b16 %v6751, %v6743
    %v7296 = vpack.c.b16 %v6752, %v6744
    %v7297 = vpack.c.b16 %v6753, %v6745
    %v7298 = vpack.c.b16 %v6754, %v6746
    %v7299 = vpack.c.b16 %v6755, %v6747
    %v7300 = vpack.c.b16 %v6756, %v6748
    %v7301 = vpack.c.b16 %v6757, %v6749
    %v7302 = vpack.c.b16 %v6758, %v6750
    %v7303 = vpack.c.b16 %v6767, %v6759
    %v7304 = vpack.c.b16 %v6768, %v6760
    %v7305 = vpack.c.b16 %v6769, %v6761
    %v7306 = vpack.c.b16 %v6770, %v6762
    %v7307 = vpack.c.b16 %v6771, %v6763
    %v7308 = vpack.c.b16 %v6772, %v6764
    %v7309 = vpack.c.b16 %v6773, %v6765
    %v7310 = vpack.c.b16 %v6774, %v6766
    %v7311 = vpack.c.b16 %v6783, %v6775
    %v7312 = vpack.c.b16 %v6784, %v6776
    %v7313 = vpack.c.b16 %v6785, %v6777
    %v7314 = vpack.c.b16 %v6786, %v6778
    %v7315 = vpack.c.b16 %v6787, %v6779
    %v7316 = vpack.c.b16 %v6788, %v6780
    %v7317 = vpack.c.b16 %v6789, %v6781
    %v7318 = vpack.c.b16 %v6790, %v6782
    %v7319 = vpack.c.b16 %v6799, %v6791
    %v7320 = vpack.c.b16 %v6800, %v6792
    %v7321 = vpack.c.b16 %v6801, %v6793
    %v7322 = vpack.c.b16 %v6802, %v6794
    %v7323 = vpack.c.b16 %v6803, %v6795
    %v7324 = vpack.c.b16 %v6804, %v6796
    %v7325 = vpack.c.b16 %v6805, %v6797
    %v7326 = vpack.c.b16 %v6806, %v6798
    %v7327 = vpack.c.b16 %v6815, %v6807
    %v7328 = vpack.c.b16 %v6816, %v6808
    %v7329 = vpack.c.b16 %v6817, %v6809
    %v7330 = vpack.c.b16 %v6818, %v6810
    %v7331 = vpack.c.b16 %v6819, %v6811
    %v7332 = vpack.c.b16 %v6820, %v6812
    %v7333 = vpack.c.b16 %v6821, %v6813
    %v7334 = vpack.c.b16 %v6822, %v6814
    %7847 = vmatprep.subr.bf16.mxu0 %v6824
    %7848 = vmatpush1.bf16.msra.mxu0 %v6823
    %7849 = vmatprep.subr.bf16.mxu0 %v6832
    %7850 = vmatpush1.bf16.msra.mxu0 %v6831
    %7851 = vmatprep.subr.bf16.mxu0 %v6840
    %7852 = vmatpush1.bf16.msra.mxu0 %v6839
    %7853 = vmatprep.subr.bf16.mxu0 %v6848
    %7854 = vmatpush1.bf16.msra.mxu0 %v6847
    %7855 = vmatprep.subr.bf16.mxu0 %v6856
    %7856 = vmatpush1.bf16.msra.mxu0 %v6855
    %7857 = vmatprep.subr.bf16.mxu0 %v6864
    %7858 = vmatpush1.bf16.msra.mxu0 %v6863
    %7859 = vmatprep.subr.bf16.mxu0 %v6872
    %7860 = vmatpush1.bf16.msra.mxu0 %v6871
    %7861 = vmatprep.subr.bf16.mxu0 %v6880
    %7862 = vmatpush1.bf16.msra.mxu0 %v6879
    %7863 = vmatprep.subr.bf16.mxu0 %v6888
    %7864 = vmatpush1.bf16.msra.mxu0 %v6887
    %7865 = vmatprep.subr.bf16.mxu0 %v6896
    %7866 = vmatpush1.bf16.msra.mxu0 %v6895
    %7867 = vmatprep.subr.bf16.mxu0 %v6904
    %7868 = vmatpush1.bf16.msra.mxu0 %v6903
    %7869 = vmatprep.subr.bf16.mxu0 %v6912
    %7870 = vmatpush1.bf16.msra.mxu0 %v6911
    %7871 = vmatprep.subr.bf16.mxu0 %v6920
    %7872 = vmatpush1.bf16.msra.mxu0 %v6919
    %7873 = vmatprep.subr.bf16.mxu0 %v6928
    %7874 = vmatpush1.bf16.msra.mxu0 %v6927
    %7875 = vmatprep.subr.bf16.mxu0 %v6936
    %7876 = vmatpush1.bf16.msra.mxu0 %v6935
    %7877 = vmatprep.subr.bf16.mxu0 %v6944
    %7878 = vmatpush1.bf16.msra.mxu0 %v6943
    %7879 = vmatprep.mubr.bf16.mxu0 %v4768
    %7880 = vmatmul.mubr.bf16.gmra.mrb[0].mxu0 %v4767
    %v7881 = vpop.f32.mrb[0].mxu0
    %v7882 = vadd.f32 0.0, %v7881
    %v7883 = vpop.f32.mrb[0].mxu0
    %v7884 = vadd.f32 0.0, %v7883
    %v7885 = vpop.f32.mrb[0].mxu0
    %v7886 = vpop.f32.mrb[0].mxu0
    %7887 = vdwg.mxu0
    %7888 = vmatprep.subr.bf16.mxu0 %v6952
    %7889 = vmatpush1.bf16.msra.mxu0 %v6951
    %7890 = vmatprep.subr.bf16.mxu0 %v6960
    %7891 = vmatpush1.bf16.msra.mxu0 %v6959
    %7892 = vmatprep.subr.bf16.mxu0 %v6968
    %7893 = vmatpush1.bf16.msra.mxu0 %v6967
    %7894 = vmatprep.subr.bf16.mxu0 %v6976
    %7895 = vmatpush1.bf16.msra.mxu0 %v6975
    %7896 = vmatprep.subr.bf16.mxu0 %v6984
    %7897 = vmatpush1.bf16.msra.mxu0 %v6983
    %7898 = vmatprep.subr.bf16.mxu0 %v6992
    %7899 = vmatpush1.bf16.msra.mxu0 %v6991
    %7900 = vmatprep.subr.bf16.mxu0 %v7000
    %7901 = vmatpush1.bf16.msra.mxu0 %v6999
    %7902 = vmatprep.subr.bf16.mxu0 %v7008
    %7903 = vmatpush1.bf16.msra.mxu0 %v7007
    %7904 = vmatprep.subr.bf16.mxu0 %v7016
    %7905 = vmatpush1.bf16.msra.mxu0 %v7015
    %7906 = vmatprep.subr.bf16.mxu0 %v7024
    %7907 = vmatpush1.bf16.msra.mxu0 %v7023
    %7908 = vmatprep.subr.bf16.mxu0 %v7032
    %7909 = vmatpush1.bf16.msra.mxu0 %v7031
    %7910 = vmatprep.subr.bf16.mxu0 %v7040
    %7911 = vmatpush1.bf16.msra.mxu0 %v7039
    %7912 = vmatprep.subr.bf16.mxu0 %v7048
    %7913 = vmatpush1.bf16.msra.mxu0 %v7047
    %7914 = vmatprep.subr.bf16.mxu0 %v7056
    %7915 = vmatpush1.bf16.msra.mxu0 %v7055
    %7916 = vmatprep.subr.bf16.mxu0 %v7064
    %7917 = vmatpush1.bf16.msra.mxu0 %v7063
    %7918 = vmatprep.subr.bf16.mxu0 %v7072
    %7919 = vmatpush1.bf16.msra.mxu0 %v7071
    %7920 = vmatprep.mubr.bf16.mxu0 %v4770
    %7921 = vmatmul.mubr.bf16.gmra.mrb[0].mxu0 %v4769
    %v7922 = vpop.f32.mrb[0].mxu0
    %v7923 = vadd.f32 %v7882, %v7922
    %v7924 = vpop.f32.mrb[0].mxu0
    %v7925 = vadd.f32 %v7884, %v7924
    %v7926 = vpop.f32.mrb[0].mxu0
    %v7927 = vpop.f32.mrb[0].mxu0
    %7928 = vdwg.mxu0
    %7929 = vmatprep.subr.bf16.mxu0 %v7080
    %7930 = vmatpush1.bf16.msra.mxu0 %v7079
    %7931 = vmatprep.subr.bf16.mxu0 %v7088
    %7932 = vmatpush1.bf16.msra.mxu0 %v7087
    %7933 = vmatprep.subr.bf16.mxu0 %v7096
    %7934 = vmatpush1.bf16.msra.mxu0 %v7095
    %7935 = vmatprep.subr.bf16.mxu0 %v7104
    %7936 = vmatpush1.bf16.msra.mxu0 %v7103
    %7937 = vmatprep.subr.bf16.mxu0 %v7112
    %7938 = vmatpush1.bf16.msra.mxu0 %v7111
    %7939 = vmatprep.subr.bf16.mxu0 %v7120
    %7940 = vmatpush1.bf16.msra.mxu0 %v7119
    %7941 = vmatprep.subr.bf16.mxu0 %v7128
    %7942 = vmatpush1.bf16.msra.mxu0 %v7127
    %7943 = vmatprep.subr.bf16.mxu0 %v7136
    %7944 = vmatpush1.bf16.msra.mxu0 %v7135
    %7945 = vmatprep.subr.bf16.mxu0 %v7144
    %7946 = vmatpush1.bf16.msra.mxu0 %v7143
    %7947 = vmatprep.subr.bf16.mxu0 %v7152
    %7948 = vmatpush1.bf16.msra.mxu0 %v7151
    %7949 = vmatprep.subr.bf16.mxu0 %v7160
    %7950 = vmatpush1.bf16.msra.mxu0 %v7159
    %7951 = vmatprep.subr.bf16.mxu0 %v7168
    %7952 = vmatpush1.bf16.msra.mxu0 %v7167
    %7953 = vmatprep.subr.bf16.mxu0 %v7176
    %7954 = vmatpush1.bf16.msra.mxu0 %v7175
    %7955 = vmatprep.subr.bf16.mxu0 %v7184
    %7956 = vmatpush1.bf16.msra.mxu0 %v7183
    %7957 = vmatprep.subr.bf16.mxu0 %v7192
    %7958 = vmatpush1.bf16.msra.mxu0 %v7191
    %7959 = vmatprep.subr.bf16.mxu0 %v7200
    %7960 = vmatpush1.bf16.msra.mxu0 %v7199
    %7961 = vmatprep.mubr.bf16.mxu0 %v4772
    %7962 = vmatmul.mubr.bf16.gmra.mrb[0].mxu0 %v4771
    %v7963 = vpop.f32.mrb[0].mxu0
    %v7964 = vadd.f32 %v7923, %v7963
    %v7965 = vpop.f32.mrb[0].mxu0
    %v7966 = vadd.f32 %v7925, %v7965
    %v7967 = vpop.f32.mrb[0].mxu0
    %v7968 = vpop.f32.mrb[0].mxu0
    %7969 = vdwg.mxu0
    %7970 = vmatprep.subr.bf16.mxu0 %v7208
    %7971 = vmatpush1.bf16.msra.mxu0 %v7207
    %7972 = vmatprep.subr.bf16.mxu0 %v7216
    %7973 = vmatpush1.bf16.msra.mxu0 %v7215
    %7974 = vmatprep.subr.bf16.mxu0 %v7224
    %7975 = vmatpush1.bf16.msra.mxu0 %v7223
    %7976 = vmatprep.subr.bf16.mxu0 %v7232
    %7977 = vmatpush1.bf16.msra.mxu0 %v7231
    %7978 = vmatprep.subr.bf16.mxu0 %v7240
    %7979 = vmatpush1.bf16.msra.mxu0 %v7239
    %7980 = vmatprep.subr.bf16.mxu0 %v7248
    %7981 = vmatpush1.bf16.msra.mxu0 %v7247
    %7982 = vmatprep.subr.bf16.mxu0 %v7256
    %7983 = vmatpush1.bf16.msra.mxu0 %v7255
    %7984 = vmatprep.subr.bf16.mxu0 %v7264
    %7985 = vmatpush1.bf16.msra.mxu0 %v7263
    %7986 = vmatprep.subr.bf16.mxu0 %v7272
    %7987 = vmatpush1.bf16.msra.mxu0 %v7271
    %7988 = vmatprep.subr.bf16.mxu0 %v7280
    %7989 = vmatpush1.bf16.msra.mxu0 %v7279
    %7990 = vmatprep.subr.bf16.mxu0 %v7288
    %7991 = vmatpush1.bf16.msra.mxu0 %v7287
    %7992 = vmatprep.subr.bf16.mxu0 %v7296
    %7993 = vmatpush1.bf16.msra.mxu0 %v7295
    %7994 = vmatprep.subr.bf16.mxu0 %v7304
    %7995 = vmatpush1.bf16.msra.mxu0 %v7303
    %7996 = vmatprep.subr.bf16.mxu0 %v7312
    %7997 = vmatpush1.bf16.msra.mxu0 %v7311
    %7998 = vmatprep.subr.bf16.mxu0 %v7320
    %7999 = vmatpush1.bf16.msra.mxu0 %v7319
    %8000 = vmatprep.subr.bf16.mxu0 %v7328
    %8001 = vmatpush1.bf16.msra.mxu0 %v7327
    %8002 = vmatprep.mubr.bf16.mxu0 %v4774
    %8003 = vmatmul.mubr.bf16.gmra.mrb[0].mxu0 %v4773
    %v8004 = vpop.f32.mrb[0].mxu0
    %v8005 = vadd.f32 %v7964, %v8004
    %v8006 = vpop.f32.mrb[0].mxu0
    %v8007 = vadd.f32 %v7966, %v8006
    %v8008 = vpop.f32.mrb[0].mxu0
    %v8009 = vpop.f32.mrb[0].mxu0
    %8010 = vdwg.mxu0
    %8011 = vmatprep.subr.bf16.mxu0 %v6826
    %8012 = vmatpush1.bf16.msra.mxu0 %v6825
    %8013 = vmatprep.subr.bf16.mxu0 %v6834
    %8014 = vmatpush1.bf16.msra.mxu0 %v6833
    %8015 = vmatprep.subr.bf16.mxu0 %v6842
    %8016 = vmatpush1.bf16.msra.mxu0 %v6841
    %8017 = vmatprep.subr.bf16.mxu0 %v6850
    %8018 = vmatpush1.bf16.msra.mxu0 %v6849
    %8019 = vmatprep.subr.bf16.mxu0 %v6858
    %8020 = vmatpush1.bf16.msra.mxu0 %v6857
    %8021 = vmatprep.subr.bf16.mxu0 %v6866
    %8022 = vmatpush1.bf16.msra.mxu0 %v6865
    %8023 = vmatprep.subr.bf16.mxu0 %v6874
    %8024 = vmatpush1.bf16.msra.mxu0 %v6873
    %8025 = vmatprep.subr.bf16.mxu0 %v6882
    %8026 = vmatpush1.bf16.msra.mxu0 %v6881
    %8027 = vmatprep.subr.bf16.mxu0 %v6890
    %8028 = vmatpush1.bf16.msra.mxu0 %v6889
    %8029 = vmatprep.subr.bf16.mxu0 %v6898
    %8030 = vmatpush1.bf16.msra.mxu0 %v6897
    %8031 = vmatprep.subr.bf16.mxu0 %v6906
    %8032 = vmatpush1.bf16.msra.mxu0 %v6905
    %8033 = vmatprep.subr.bf16.mxu0 %v6914
    %8034 = vmatpush1.bf16.msra.mxu0 %v6913
    %8035 = vmatprep.subr.bf16.mxu0 %v6922
    %8036 = vmatpush1.bf16.msra.mxu0 %v6921
    %8037 = vmatprep.subr.bf16.mxu0 %v6930
    %8038 = vmatpush1.bf16.msra.mxu0 %v6929
    %8039 = vmatprep.subr.bf16.mxu0 %v6938
    %8040 = vmatpush1.bf16.msra.mxu0 %v6937
    %8041 = vmatprep.subr.bf16.mxu0 %v6946
    %8042 = vmatpush1.bf16.msra.mxu0 %v6945
    %8043 = vmatprep.mubr.bf16.mxu0 %v4768
    %8044 = vmatmul.mubr.bf16.gmra.mrb[0].mxu0 %v4767
    %v8045 = vpop.f32.mrb[0].mxu0
    %v8046 = vadd.f32 0.0, %v8045
    %v8047 = vpop.f32.mrb[0].mxu0
    %v8048 = vadd.f32 0.0, %v8047
    %v8049 = vpop.f32.mrb[0].mxu0
    %v8050 = vpop.f32.mrb[0].mxu0
    %8051 = vdwg.mxu0
    %8052 = vmatprep.subr.bf16.mxu0 %v6954
    %8053 = vmatpush1.bf16.msra.mxu0 %v6953
    %8054 = vmatprep.subr.bf16.mxu0 %v6962
    %8055 = vmatpush1.bf16.msra.mxu0 %v6961
    %8056 = vmatprep.subr.bf16.mxu0 %v6970
    %8057 = vmatpush1.bf16.msra.mxu0 %v6969
    %8058 = vmatprep.subr.bf16.mxu0 %v6978
    %8059 = vmatpush1.bf16.msra.mxu0 %v6977
    %8060 = vmatprep.subr.bf16.mxu0 %v6986
    %8061 = vmatpush1.bf16.msra.mxu0 %v6985
    %8062 = vmatprep.subr.bf16.mxu0 %v6994
    %8063 = vmatpush1.bf16.msra.mxu0 %v6993
    %8064 = vmatprep.subr.bf16.mxu0 %v7002
    %8065 = vmatpush1.bf16.msra.mxu0 %v7001
    %8066 = vmatprep.subr.bf16.mxu0 %v7010
    %8067 = vmatpush1.bf16.msra.mxu0 %v7009
    %8068 = vmatprep.subr.bf16.mxu0 %v7018
    %8069 = vmatpush1.bf16.msra.mxu0 %v7017
    %8070 = vmatprep.subr.bf16.mxu0 %v7026
    %8071 = vmatpush1.bf16.msra.mxu0 %v7025
    %8072 = vmatprep.subr.bf16.mxu0 %v7034
    %8073 = vmatpush1.bf16.msra.mxu0 %v7033
    %8074 = vmatprep.subr.bf16.mxu0 %v7042
    %8075 = vmatpush1.bf16.msra.mxu0 %v7041
    %8076 = vmatprep.subr.bf16.mxu0 %v7050
    %8077 = vmatpush1.bf16.msra.mxu0 %v7049
    %8078 = vmatprep.subr.bf16.mxu0 %v7058
    %8079 = vmatpush1.bf16.msra.mxu0 %v7057
    %8080 = vmatprep.subr.bf16.mxu0 %v7066
    %8081 = vmatpush1.bf16.msra.mxu0 %v7065
    %8082 = vmatprep.subr.bf16.mxu0 %v7074
    %8083 = vmatpush1.bf16.msra.mxu0 %v7073
    %8084 = vmatprep.mubr.bf16.mxu0 %v4770
    %8085 = vmatmul.mubr.bf16.gmra.mrb[0].mxu0 %v4769
    %v8086 = vpop.f32.mrb[0].mxu0
    %v8087 = vadd.f32 %v8046, %v8086
    %v8088 = vpop.f32.mrb[0].mxu0
    %v8089 = vadd.f32 %v8048, %v8088
    %v8090 = vpop.f32.mrb[0].mxu0
    %v8091 = vpop.f32.mrb[0].mxu0
    %8092 = vdwg.mxu0
    %8093 = vmatprep.subr.bf16.mxu0 %v7082
    %8094 = vmatpush1.bf16.msra.mxu0 %v7081
    %8095 = vmatprep.subr.bf16.mxu0 %v7090
    %8096 = vmatpush1.bf16.msra.mxu0 %v7089
    %8097 = vmatprep.subr.bf16.mxu0 %v7098
    %8098 = vmatpush1.bf16.msra.mxu0 %v7097
    %8099 = vmatprep.subr.bf16.mxu0 %v7106
    %8100 = vmatpush1.bf16.msra.mxu0 %v7105
    %8101 = vmatprep.subr.bf16.mxu0 %v7114
    %8102 = vmatpush1.bf16.msra.mxu0 %v7113
    %8103 = vmatprep.subr.bf16.mxu0 %v7122
    %8104 = vmatpush1.bf16.msra.mxu0 %v7121
    %8105 = vmatprep.subr.bf16.mxu0 %v7130
    %8106 = vmatpush1.bf16.msra.mxu0 %v7129
    %8107 = vmatprep.subr.bf16.mxu0 %v7138
    %8108 = vmatpush1.bf16.msra.mxu0 %v7137
    %8109 = vmatprep.subr.bf16.mxu0 %v7146
    %8110 = vmatpush1.bf16.msra.mxu0 %v7145
    %8111 = vmatprep.subr.bf16.mxu0 %v7154
    %8112 = vmatpush1.bf16.msra.mxu0 %v7153
    %8113 = vmatprep.subr.bf16.mxu0 %v7162
    %8114 = vmatpush1.bf16.msra.mxu0 %v7161
    %8115 = vmatprep.subr.bf16.mxu0 %v7170
    %8116 = vmatpush1.bf16.msra.mxu0 %v7169
    %8117 = vmatprep.subr.bf16.mxu0 %v7178
    %8118 = vmatpush1.bf16.msra.mxu0 %v7177
    %8119 = vmatprep.subr.bf16.mxu0 %v7186
    %8120 = vmatpush1.bf16.msra.mxu0 %v7185
    %8121 = vmatprep.subr.bf16.mxu0 %v7194
    %8122 = vmatpush1.bf16.msra.mxu0 %v7193
    %8123 = vmatprep.subr.bf16.mxu0 %v7202
    %8124 = vmatpush1.bf16.msra.mxu0 %v7201
    %8125 = vmatprep.mubr.bf16.mxu0 %v4772
    %8126 = vmatmul.mubr.bf16.gmra.mrb[0].mxu0 %v4771
    %v8127 = vpop.f32.mrb[0].mxu0
    %v8128 = vadd.f32 %v8087, %v8127
    %v8129 = vpop.f32.mrb[0].mxu0
    %v8130 = vadd.f32 %v8089, %v8129
    %v8131 = vpop.f32.mrb[0].mxu0
    %v8132 = vpop.f32.mrb[0].mxu0
    %8133 = vdwg.mxu0
    %8134 = vmatprep.subr.bf16.mxu0 %v7210
    %8135 = vmatpush1.bf16.msra.mxu0 %v7209
    %8136 = vmatprep.subr.bf16.mxu0 %v7218
    %8137 = vmatpush1.bf16.msra.mxu0 %v7217
    %8138 = vmatprep.subr.bf16.mxu0 %v7226
    %8139 = vmatpush1.bf16.msra.mxu0 %v7225
    %8140 = vmatprep.subr.bf16.mxu0 %v7234
    %8141 = vmatpush1.bf16.msra.mxu0 %v7233
    %8142 = vmatprep.subr.bf16.mxu0 %v7242
    %8143 = vmatpush1.bf16.msra.mxu0 %v7241
    %8144 = vmatprep.subr.bf16.mxu0 %v7250
    %8145 = vmatpush1.bf16.msra.mxu0 %v7249
    %8146 = vmatprep.subr.bf16.mxu0 %v7258
    %8147 = vmatpush1.bf16.msra.mxu0 %v7257
    %8148 = vmatprep.subr.bf16.mxu0 %v7266
    %8149 = vmatpush1.bf16.msra.mxu0 %v7265
    %8150 = vmatprep.subr.bf16.mxu0 %v7274
    %8151 = vmatpush1.bf16.msra.mxu0 %v7273
    %8152 = vmatprep.subr.bf16.mxu0 %v7282
    %8153 = vmatpush1.bf16.msra.mxu0 %v7281
    %8154 = vmatprep.subr.bf16.mxu0 %v7290
    %8155 = vmatpush1.bf16.msra.mxu0 %v7289
    %8156 = vmatprep.subr.bf16.mxu0 %v7298
    %8157 = vmatpush1.bf16.msra.mxu0 %v7297
    %8158 = vmatprep.subr.bf16.mxu0 %v7306
    %8159 = vmatpush1.bf16.msra.mxu0 %v7305
    %8160 = vmatprep.subr.bf16.mxu0 %v7314
    %8161 = vmatpush1.bf16.msra.mxu0 %v7313
    %8162 = vmatprep.subr.bf16.mxu0 %v7322
    %8163 = vmatpush1.bf16.msra.mxu0 %v7321
    %8164 = vmatprep.subr.bf16.mxu0 %v7330
    %8165 = vmatpush1.bf16.msra.mxu0 %v7329
    %8166 = vmatprep.mubr.bf16.mxu0 %v4774
    %8167 = vmatmul.mubr.bf16.gmra.mrb[0].mxu0 %v4773
    %v8168 = vpop.f32.mrb[0].mxu0
    %v8169 = vadd.f32 %v8128, %v8168
    %v8170 = vpop.f32.mrb[0].mxu0
    %v8171 = vadd.f32 %v8130, %v8170
    %v8172 = vpop.f32.mrb[0].mxu0
    %v8173 = vpop.f32.mrb[0].mxu0
    %8174 = vdwg.mxu0
    %8175 = vmatprep.subr.bf16.mxu0 %v6828
    %8176 = vmatpush1.bf16.msra.mxu0 %v6827
    %8177 = vmatprep.subr.bf16.mxu0 %v6836
    %8178 = vmatpush1.bf16.msra.mxu0 %v6835
    %8179 = vmatprep.subr.bf16.mxu0 %v6844
    %8180 = vmatpush1.bf16.msra.mxu0 %v6843
    %8181 = vmatprep.subr.bf16.mxu0 %v6852
    %8182 = vmatpush1.bf16.msra.mxu0 %v6851
    %8183 = vmatprep.subr.bf16.mxu0 %v6860
    %8184 = vmatpush1.bf16.msra.mxu0 %v6859
    %8185 = vmatprep.subr.bf16.mxu0 %v6868
    %8186 = vmatpush1.bf16.msra.mxu0 %v6867
    %8187 = vmatprep.subr.bf16.mxu0 %v6876
    %8188 = vmatpush1.bf16.msra.mxu0 %v6875
    %8189 = vmatprep.subr.bf16.mxu0 %v6884
    %8190 = vmatpush1.bf16.msra.mxu0 %v6883
    %8191 = vmatprep.subr.bf16.mxu0 %v6892
    %8192 = vmatpush1.bf16.msra.mxu0 %v6891
    %8193 = vmatprep.subr.bf16.mxu0 %v6900
    %8194 = vmatpush1.bf16.msra.mxu0 %v6899
    %8195 = vmatprep.subr.bf16.mxu0 %v6908
    %8196 = vmatpush1.bf16.msra.mxu0 %v6907
    %8197 = vmatprep.subr.bf16.mxu0 %v6916
    %8198 = vmatpush1.bf16.msra.mxu0 %v6915
    %8199 = vmatprep.subr.bf16.mxu0 %v6924
    %8200 = vmatpush1.bf16.msra.mxu0 %v6923
    %8201 = vmatprep.subr.bf16.mxu0 %v6932
    %8202 = vmatpush1.bf16.msra.mxu0 %v6931
    %8203 = vmatprep.subr.bf16.mxu0 %v6940
    %8204 = vmatpush1.bf16.msra.mxu0 %v6939
    %8205 = vmatprep.subr.bf16.mxu0 %v6948
    %8206 = vmatpush1.bf16.msra.mxu0 %v6947
    %8207 = vmatprep.mubr.bf16.mxu0 %v4768
    %8208 = vmatmul.mubr.bf16.gmra.mrb[0].mxu0 %v4767
    %v8209 = vpop.f32.mrb[0].mxu0
    %v8210 = vadd.f32 0.0, %v8209
    %v8211 = vpop.f32.mrb[0].mxu0
    %v8212 = vadd.f32 0.0, %v8211
    %v8213 = vpop.f32.mrb[0].mxu0
    %v8214 = vpop.f32.mrb[0].mxu0
    %8215 = vdwg.mxu0
    %8216 = vmatprep.subr.bf16.mxu0 %v6956
    %8217 = vmatpush1.bf16.msra.mxu0 %v6955
    %8218 = vmatprep.subr.bf16.mxu0 %v6964
    %8219 = vmatpush1.bf16.msra.mxu0 %v6963
    %8220 = vmatprep.subr.bf16.mxu0 %v6972
    %8221 = vmatpush1.bf16.msra.mxu0 %v6971
    %8222 = vmatprep.subr.bf16.mxu0 %v6980
    %8223 = vmatpush1.bf16.msra.mxu0 %v6979
    %8224 = vmatprep.subr.bf16.mxu0 %v6988
    %8225 = vmatpush1.bf16.msra.mxu0 %v6987
    %8226 = vmatprep.subr.bf16.mxu0 %v6996
    %8227 = vmatpush1.bf16.msra.mxu0 %v6995
    %8228 = vmatprep.subr.bf16.mxu0 %v7004
    %8229 = vmatpush1.bf16.msra.mxu0 %v7003
    %8230 = vmatprep.subr.bf16.mxu0 %v7012
    %8231 = vmatpush1.bf16.msra.mxu0 %v7011
    %8232 = vmatprep.subr.bf16.mxu0 %v7020
    %8233 = vmatpush1.bf16.msra.mxu0 %v7019
    %8234 = vmatprep.subr.bf16.mxu0 %v7028
    %8235 = vmatpush1.bf16.msra.mxu0 %v7027
    %8236 = vmatprep.subr.bf16.mxu0 %v7036
    %8237 = vmatpush1.bf16.msra.mxu0 %v7035
    %8238 = vmatprep.subr.bf16.mxu0 %v7044
    %8239 = vmatpush1.bf16.msra.mxu0 %v7043
    %8240 = vmatprep.subr.bf16.mxu0 %v7052
    %8241 = vmatpush1.bf16.msra.mxu0 %v7051
    %8242 = vmatprep.subr.bf16.mxu0 %v7060
    %8243 = vmatpush1.bf16.msra.mxu0 %v7059
    %8244 = vmatprep.subr.bf16.mxu0 %v7068
    %8245 = vmatpush1.bf16.msra.mxu0 %v7067
    %8246 = vmatprep.subr.bf16.mxu0 %v7076
    %8247 = vmatpush1.bf16.msra.mxu0 %v7075
    %8248 = vmatprep.mubr.bf16.mxu0 %v4770
    %8249 = vmatmul.mubr.bf16.gmra.mrb[0].mxu0 %v4769
    %v8250 = vpop.f32.mrb[0].mxu0
    %v8251 = vadd.f32 %v8210, %v8250
    %v8252 = vpop.f32.mrb[0].mxu0
    %v8253 = vadd.f32 %v8212, %v8252
    %v8254 = vpop.f32.mrb[0].mxu0
    %v8255 = vpop.f32.mrb[0].mxu0
    %8256 = vdwg.mxu0
    %8257 = vmatprep.subr.bf16.mxu0 %v7084
    %8258 = vmatpush1.bf16.msra.mxu0 %v7083
    %8259 = vmatprep.subr.bf16.mxu0 %v7092
    %8260 = vmatpush1.bf16.msra.mxu0 %v7091
    %8261 = vmatprep.subr.bf16.mxu0 %v7100
    %8262 = vmatpush1.bf16.msra.mxu0 %v7099
    %8263 = vmatprep.subr.bf16.mxu0 %v7108
    %8264 = vmatpush1.bf16.msra.mxu0 %v7107
    %8265 = vmatprep.subr.bf16.mxu0 %v7116
    %8266 = vmatpush1.bf16.msra.mxu0 %v7115
    %8267 = vmatprep.subr.bf16.mxu0 %v7124
    %8268 = vmatpush1.bf16.msra.mxu0 %v7123
    %8269 = vmatprep.subr.bf16.mxu0 %v7132
    %8270 = vmatpush1.bf16.msra.mxu0 %v7131
    %8271 = vmatprep.subr.bf16.mxu0 %v7140
    %8272 = vmatpush1.bf16.msra.mxu0 %v7139
    %8273 = vmatprep.subr.bf16.mxu0 %v7148
    %8274 = vmatpush1.bf16.msra.mxu0 %v7147
    %8275 = vmatprep.subr.bf16.mxu0 %v7156
    %8276 = vmatpush1.bf16.msra.mxu0 %v7155
    %8277 = vmatprep.subr.bf16.mxu0 %v7164
    %8278 = vmatpush1.bf16.msra.mxu0 %v7163
    %8279 = vmatprep.subr.bf16.mxu0 %v7172
    %8280 = vmatpush1.bf16.msra.mxu0 %v7171
    %8281 = vmatprep.subr.bf16.mxu0 %v7180
    %8282 = vmatpush1.bf16.msra.mxu0 %v7179
    %8283 = vmatprep.subr.bf16.mxu0 %v7188
    %8284 = vmatpush1.bf16.msra.mxu0 %v7187
    %8285 = vmatprep.subr.bf16.mxu0 %v7196
    %8286 = vmatpush1.bf16.msra.mxu0 %v7195
    %8287 = vmatprep.subr.bf16.mxu0 %v7204
    %8288 = vmatpush1.bf16.msra.mxu0 %v7203
    %8289 = vmatprep.mubr.bf16.mxu0 %v4772
    %8290 = vmatmul.mubr.bf16.gmra.mrb[0].mxu0 %v4771
    %v8291 = vpop.f32.mrb[0].mxu0
    %v8292 = vadd.f32 %v8251, %v8291
    %v8293 = vpop.f32.mrb[0].mxu0
    %v8294 = vadd.f32 %v8253, %v8293
    %v8295 = vpop.f32.mrb[0].mxu0
    %v8296 = vpop.f32.mrb[0].mxu0
    %8297 = vdwg.mxu0
    %8298 = vmatprep.subr.bf16.mxu0 %v7212
    %8299 = vmatpush1.bf16.msra.mxu0 %v7211
    %8300 = vmatprep.subr.bf16.mxu0 %v7220
    %8301 = vmatpush1.bf16.msra.mxu0 %v7219
    %8302 = vmatprep.subr.bf16.mxu0 %v7228
    %8303 = vmatpush1.bf16.msra.mxu0 %v7227
    %8304 = vmatprep.subr.bf16.mxu0 %v7236
    %8305 = vmatpush1.bf16.msra.mxu0 %v7235
    %8306 = vmatprep.subr.bf16.mxu0 %v7244
    %8307 = vmatpush1.bf16.msra.mxu0 %v7243
    %8308 = vmatprep.subr.bf16.mxu0 %v7252
    %8309 = vmatpush1.bf16.msra.mxu0 %v7251
    %8310 = vmatprep.subr.bf16.mxu0 %v7260
    %8311 = vmatpush1.bf16.msra.mxu0 %v7259
    %8312 = vmatprep.subr.bf16.mxu0 %v7268
    %8313 = vmatpush1.bf16.msra.mxu0 %v7267
    %8314 = vmatprep.subr.bf16.mxu0 %v7276
    %8315 = vmatpush1.bf16.msra.mxu0 %v7275
    %8316 = vmatprep.subr.bf16.mxu0 %v7284
    %8317 = vmatpush1.bf16.msra.mxu0 %v7283
    %8318 = vmatprep.subr.bf16.mxu0 %v7292
    %8319 = vmatpush1.bf16.msra.mxu0 %v7291
    %8320 = vmatprep.subr.bf16.mxu0 %v7300
    %8321 = vmatpush1.bf16.msra.mxu0 %v7299
    %8322 = vmatprep.subr.bf16.mxu0 %v7308
    %8323 = vmatpush1.bf16.msra.mxu0 %v7307
    %8324 = vmatprep.subr.bf16.mxu0 %v7316
    %8325 = vmatpush1.bf16.msra.mxu0 %v7315
    %8326 = vmatprep.subr.bf16.mxu0 %v7324
    %8327 = vmatpush1.bf16.msra.mxu0 %v7323
    %8328 = vmatprep.subr.bf16.mxu0 %v7332
    %8329 = vmatpush1.bf16.msra.mxu0 %v7331
    %8330 = vmatprep.mubr.bf16.mxu0 %v4774
    %8331 = vmatmul.mubr.bf16.gmra.mrb[0].mxu0 %v4773
    %v8332 = vpop.f32.mrb[0].mxu0
    %v8333 = vadd.f32 %v8292, %v8332
    %v8334 = vpop.f32.mrb[0].mxu0
    %v8335 = vadd.f32 %v8294, %v8334
    %v8336 = vpop.f32.mrb[0].mxu0
    %v8337 = vpop.f32.mrb[0].mxu0
    %8338 = vdwg.mxu0
    %8339 = vmatprep.subr.bf16.mxu0 %v6830
    %8340 = vmatpush1.bf16.msra.mxu0 %v6829
    %8341 = vmatprep.subr.bf16.mxu0 %v6838
    %8342 = vmatpush1.bf16.msra.mxu0 %v6837
    %8343 = vmatprep.subr.bf16.mxu0 %v6846
    %8344 = vmatpush1.bf16.msra.mxu0 %v6845
    %8345 = vmatprep.subr.bf16.mxu0 %v6854
    %8346 = vmatpush1.bf16.msra.mxu0 %v6853
    %8347 = vmatprep.subr.bf16.mxu0 %v6862
    %8348 = vmatpush1.bf16.msra.mxu0 %v6861
    %8349 = vmatprep.subr.bf16.mxu0 %v6870
    %8350 = vmatpush1.bf16.msra.mxu0 %v6869
    %8351 = vmatprep.subr.bf16.mxu0 %v6878
    %8352 = vmatpush1.bf16.msra.mxu0 %v6877
    %8353 = vmatprep.subr.bf16.mxu0 %v6886
    %8354 = vmatpush1.bf16.msra.mxu0 %v6885
    %8355 = vmatprep.subr.bf16.mxu0 %v6894
    %8356 = vmatpush1.bf16.msra.mxu0 %v6893
    %8357 = vmatprep.subr.bf16.mxu0 %v6902
    %8358 = vmatpush1.bf16.msra.mxu0 %v6901
    %8359 = vmatprep.subr.bf16.mxu0 %v6910
    %8360 = vmatpush1.bf16.msra.mxu0 %v6909
    %8361 = vmatprep.subr.bf16.mxu0 %v6918
    %8362 = vmatpush1.bf16.msra.mxu0 %v6917
    %8363 = vmatprep.subr.bf16.mxu0 %v6926
    %8364 = vmatpush1.bf16.msra.mxu0 %v6925
    %8365 = vmatprep.subr.bf16.mxu0 %v6934
    %8366 = vmatpush1.bf16.msra.mxu0 %v6933
    %8367 = vmatprep.subr.bf16.mxu0 %v6942
    %8368 = vmatpush1.bf16.msra.mxu0 %v6941
    %8369 = vmatprep.subr.bf16.mxu0 %v6950
    %8370 = vmatpush1.bf16.msra.mxu0 %v6949
    %8371 = vmatprep.mubr.bf16.mxu0 %v4768
    %8372 = vmatmul.mubr.bf16.gmra.mrb[0].mxu0 %v4767
    %v8373 = vpop.f32.mrb[0].mxu0
    %v8374 = vadd.f32 0.0, %v8373
    %v8375 = vpop.f32.mrb[0].mxu0
    %v8376 = vadd.f32 0.0, %v8375
    %v8377 = vpop.f32.mrb[0].mxu0
    %v8378 = vpop.f32.mrb[0].mxu0
    %8379 = vdwg.mxu0
    %8380 = vmatprep.subr.bf16.mxu0 %v6958
    %8381 = vmatpush1.bf16.msra.mxu0 %v6957
    %8382 = vmatprep.subr.bf16.mxu0 %v6966
    %8383 = vmatpush1.bf16.msra.mxu0 %v6965
    %8384 = vmatprep.subr.bf16.mxu0 %v6974
    %8385 = vmatpush1.bf16.msra.mxu0 %v6973
    %8386 = vmatprep.subr.bf16.mxu0 %v6982
    %8387 = vmatpush1.bf16.msra.mxu0 %v6981
    %8388 = vmatprep.subr.bf16.mxu0 %v6990
    %8389 = vmatpush1.bf16.msra.mxu0 %v6989
    %8390 = vmatprep.subr.bf16.mxu0 %v6998
    %8391 = vmatpush1.bf16.msra.mxu0 %v6997
    %8392 = vmatprep.subr.bf16.mxu0 %v7006
    %8393 = vmatpush1.bf16.msra.mxu0 %v7005
    %8394 = vmatprep.subr.bf16.mxu0 %v7014
    %8395 = vmatpush1.bf16.msra.mxu0 %v7013
    %8396 = vmatprep.subr.bf16.mxu0 %v7022
    %8397 = vmatpush1.bf16.msra.mxu0 %v7021
    %8398 = vmatprep.subr.bf16.mxu0 %v7030
    %8399 = vmatpush1.bf16.msra.mxu0 %v7029
    %8400 = vmatprep.subr.bf16.mxu0 %v7038
    %8401 = vmatpush1.bf16.msra.mxu0 %v7037
    %8402 = vmatprep.subr.bf16.mxu0 %v7046
    %8403 = vmatpush1.bf16.msra.mxu0 %v7045
    %8404 = vmatprep.subr.bf16.mxu0 %v7054
    %8405 = vmatpush1.bf16.msra.mxu0 %v7053
    %8406 = vmatprep.subr.bf16.mxu0 %v7062
    %8407 = vmatpush1.bf16.msra.mxu0 %v7061
    %8408 = vmatprep.subr.bf16.mxu0 %v7070
    %8409 = vmatpush1.bf16.msra.mxu0 %v7069
    %8410 = vmatprep.subr.bf16.mxu0 %v7078
    %8411 = vmatpush1.bf16.msra.mxu0 %v7077
    %8412 = vmatprep.mubr.bf16.mxu0 %v4770
    %8413 = vmatmul.mubr.bf16.gmra.mrb[0].mxu0 %v4769
    %v8414 = vpop.f32.mrb[0].mxu0
    %v8415 = vadd.f32 %v8374, %v8414
    %v8416 = vpop.f32.mrb[0].mxu0
    %v8417 = vadd.f32 %v8376, %v8416
    %v8418 = vpop.f32.mrb[0].mxu0
    %v8419 = vpop.f32.mrb[0].mxu0
    %8420 = vdwg.mxu0
    %8421 = vmatprep.subr.bf16.mxu0 %v7086
    %8422 = vmatpush1.bf16.msra.mxu0 %v7085
    %8423 = vmatprep.subr.bf16.mxu0 %v7094
    %8424 = vmatpush1.bf16.msra.mxu0 %v7093
    %8425 = vmatprep.subr.bf16.mxu0 %v7102
    %8426 = vmatpush1.bf16.msra.mxu0 %v7101
    %8427 = vmatprep.subr.bf16.mxu0 %v7110
    %8428 = vmatpush1.bf16.msra.mxu0 %v7109
    %8429 = vmatprep.subr.bf16.mxu0 %v7118
    %8430 = vmatpush1.bf16.msra.mxu0 %v7117
    %8431 = vmatprep.subr.bf16.mxu0 %v7126
    %8432 = vmatpush1.bf16.msra.mxu0 %v7125
    %8433 = vmatprep.subr.bf16.mxu0 %v7134
    %8434 = vmatpush1.bf16.msra.mxu0 %v7133
    %8435 = vmatprep.subr.bf16.mxu0 %v7142
    %8436 = vmatpush1.bf16.msra.mxu0 %v7141
    %8437 = vmatprep.subr.bf16.mxu0 %v7150
    %8438 = vmatpush1.bf16.msra.mxu0 %v7149
    %8439 = vmatprep.subr.bf16.mxu0 %v7158
    %8440 = vmatpush1.bf16.msra.mxu0 %v7157
    %8441 = vmatprep.subr.bf16.mxu0 %v7166
    %8442 = vmatpush1.bf16.msra.mxu0 %v7165
    %8443 = vmatprep.subr.bf16.mxu0 %v7174
    %8444 = vmatpush1.bf16.msra.mxu0 %v7173
    %8445 = vmatprep.subr.bf16.mxu0 %v7182
    %8446 = vmatpush1.bf16.msra.mxu0 %v7181
    %8447 = vmatprep.subr.bf16.mxu0 %v7190
    %8448 = vmatpush1.bf16.msra.mxu0 %v7189
    %8449 = vmatprep.subr.bf16.mxu0 %v7198
    %8450 = vmatpush1.bf16.msra.mxu0 %v7197
    %8451 = vmatprep.subr.bf16.mxu0 %v7206
    %8452 = vmatpush1.bf16.msra.mxu0 %v7205
    %8453 = vmatprep.mubr.bf16.mxu0 %v4772
    %8454 = vmatmul.mubr.bf16.gmra.mrb[0].mxu0 %v4771
    %v8455 = vpop.f32.mrb[0].mxu0
    %v8456 = vadd.f32 %v8415, %v8455
    %v8457 = vpop.f32.mrb[0].mxu0
    %v8458 = vadd.f32 %v8417, %v8457
    %v8459 = vpop.f32.mrb[0].mxu0
    %v8460 = vpop.f32.mrb[0].mxu0
    %8461 = vdwg.mxu0
    %8462 = vmatprep.subr.bf16.mxu0 %v7214
    %8463 = vmatpush1.bf16.msra.mxu0 %v7213
    %8464 = vmatprep.subr.bf16.mxu0 %v7222
    %8465 = vmatpush1.bf16.msra.mxu0 %v7221
    %8466 = vmatprep.subr.bf16.mxu0 %v7230
    %8467 = vmatpush1.bf16.msra.mxu0 %v7229
    %8468 = vmatprep.subr.bf16.mxu0 %v7238
    %8469 = vmatpush1.bf16.msra.mxu0 %v7237
    %8470 = vmatprep.subr.bf16.mxu0 %v7246
    %8471 = vmatpush1.bf16.msra.mxu0 %v7245
    %8472 = vmatprep.subr.bf16.mxu0 %v7254
    %8473 = vmatpush1.bf16.msra.mxu0 %v7253
    %8474 = vmatprep.subr.bf16.mxu0 %v7262
    %8475 = vmatpush1.bf16.msra.mxu0 %v7261
    %8476 = vmatprep.subr.bf16.mxu0 %v7270
    %8477 = vmatpush1.bf16.msra.mxu0 %v7269
    %8478 = vmatprep.subr.bf16.mxu0 %v7278
    %8479 = vmatpush1.bf16.msra.mxu0 %v7277
    %8480 = vmatprep.subr.bf16.mxu0 %v7286
    %8481 = vmatpush1.bf16.msra.mxu0 %v7285
    %8482 = vmatprep.subr.bf16.mxu0 %v7294
    %8483 = vmatpush1.bf16.msra.mxu0 %v7293
    %8484 = vmatprep.subr.bf16.mxu0 %v7302
    %8485 = vmatpush1.bf16.msra.mxu0 %v7301
    %8486 = vmatprep.subr.bf16.mxu0 %v7310
    %8487 = vmatpush1.bf16.msra.mxu0 %v7309
    %8488 = vmatprep.subr.bf16.mxu0 %v7318
    %8489 = vmatpush1.bf16.msra.mxu0 %v7317
    %8490 = vmatprep.subr.bf16.mxu0 %v7326
    %8491 = vmatpush1.bf16.msra.mxu0 %v7325
    %8492 = vmatprep.subr.bf16.mxu0 %v7334
    %8493 = vmatpush1.bf16.msra.mxu0 %v7333
    %8494 = vmatprep.mubr.bf16.mxu0 %v4774
    %8495 = vmatmul.mubr.bf16.gmra.mrb[0].mxu0 %v4773
    %v8496 = vpop.f32.mrb[0].mxu0
    %v8497 = vadd.f32 %v8456, %v8496
    %v8498 = vpop.f32.mrb[0].mxu0
    %v8499 = vadd.f32 %v8458, %v8498
    %v8500 = vpop.f32.mrb[0].mxu0
    %v8501 = vpop.f32.mrb[0].mxu0
    %8502 = vdwg.mxu0
    %v8503 = vrot.slane %v8005, 4
    %v8504 = vadd.f32 %v8005, %v8503
    %v8505 = vrot.slane %v8504, 2
    %v8506 = vadd.f32 %v8504, %v8505
    %v8507 = vrot.slane %v8506, 1
    %v8508 = vadd.f32 %v8506, %v8507
    %v8509 = vrot.slane %v8007, 4
    %v8510 = vadd.f32 %v8007, %v8509
    %v8511 = vrot.slane %v8510, 2
    %v8512 = vadd.f32 %v8510, %v8511
    %v8513 = vrot.slane %v8512, 1
    %v8514 = vadd.f32 %v8512, %v8513
    %v8515 = vrot.slane %v8169, 4
    %v8516 = vadd.f32 %v8169, %v8515
    %v8517 = vrot.slane %v8516, 2
    %v8518 = vadd.f32 %v8516, %v8517
    %v8519 = vrot.slane %v8518, 1
    %v8520 = vadd.f32 %v8518, %v8519
    %v8521 = vrot.slane %v8171, 4
    %v8522 = vadd.f32 %v8171, %v8521
    %v8523 = vrot.slane %v8522, 2
    %v8524 = vadd.f32 %v8522, %v8523
    %v8525 = vrot.slane %v8524, 1
    %v8526 = vadd.f32 %v8524, %v8525
    %v8527 = vrot.slane %v8333, 4
    %v8528 = vadd.f32 %v8333, %v8527
    %v8529 = vrot.slane %v8528, 2
    %v8530 = vadd.f32 %v8528, %v8529
    %v8531 = vrot.slane %v8530, 1
    %v8532 = vadd.f32 %v8530, %v8531
    %v8533 = vrot.slane %v8335, 4
    %v8534 = vadd.f32 %v8335, %v8533
    %v8535 = vrot.slane %v8534, 2
    %v8536 = vadd.f32 %v8534, %v8535
    %v8537 = vrot.slane %v8536, 1
    %v8538 = vadd.f32 %v8536, %v8537
    %v8539 = vrot.slane %v8497, 4
    %v8540 = vadd.f32 %v8497, %v8539
    %v8541 = vrot.slane %v8540, 2
    %v8542 = vadd.f32 %v8540, %v8541
    %v8543 = vrot.slane %v8542, 1
    %v8544 = vadd.f32 %v8542, %v8543
    %v8545 = vrot.slane %v8499, 4
    %v8546 = vadd.f32 %v8499, %v8545
    %v8547 = vrot.slane %v8546, 2
    %v8548 = vadd.f32 %v8546, %v8547
    %v8549 = vrot.slane %v8548, 1
    %v8550 = vadd.f32 %v8548, %v8549
    %v8551 = vmul.f32 %v8508, 0.125
    %v8552 = vmul.f32 %v8514, 0.125
    %v8553 = vmul.f32 %v8520, 0.125
    %v8554 = vmul.f32 %v8526, 0.125
    %v8555 = vmul.f32 %v8532, 0.125
    %v8556 = vmul.f32 %v8538, 0.125
    %v8557 = vmul.f32 %v8544, 0.125
    %v8558 = vmul.f32 %v8550, 0.125
    %v8559 = vmul.f32 %v8005, %v8005
    %v8560 = vmul.f32 %v8007, %v8007
    %v8561 = vmul.f32 %v8169, %v8169
    %v8562 = vmul.f32 %v8171, %v8171
    %v8563 = vmul.f32 %v8333, %v8333
    %v8564 = vmul.f32 %v8335, %v8335
    %v8565 = vmul.f32 %v8497, %v8497
    %v8566 = vmul.f32 %v8499, %v8499
    %v8567 = vrot.slane %v8559, 4
    %v8568 = vadd.f32 %v8559, %v8567
    %v8569 = vrot.slane %v8568, 2
    %v8570 = vadd.f32 %v8568, %v8569
    %v8571 = vrot.slane %v8570, 1
    %v8572 = vadd.f32 %v8570, %v8571
    %v8573 = vrot.slane %v8560, 4
    %v8574 = vadd.f32 %v8560, %v8573
    %v8575 = vrot.slane %v8574, 2
    %v8576 = vadd.f32 %v8574, %v8575
    %v8577 = vrot.slane %v8576, 1
    %v8578 = vadd.f32 %v8576, %v8577
    %v8579 = vrot.slane %v8561, 4
    %v8580 = vadd.f32 %v8561, %v8579
    %v8581 = vrot.slane %v8580, 2
    %v8582 = vadd.f32 %v8580, %v8581
    %v8583 = vrot.slane %v8582, 1
    %v8584 = vadd.f32 %v8582, %v8583
    %v8585 = vrot.slane %v8562, 4
    %v8586 = vadd.f32 %v8562, %v8585
    %v8587 = vrot.slane %v8586, 2
    %v8588 = vadd.f32 %v8586, %v8587
    %v8589 = vrot.slane %v8588, 1
    %v8590 = vadd.f32 %v8588, %v8589
    %v8591 = vrot.slane %v8563, 4
    %v8592 = vadd.f32 %v8563, %v8591
    %v8593 = vrot.slane %v8592, 2
    %v8594 = vadd.f32 %v8592, %v8593
    %v8595 = vrot.slane %v8594, 1
    %v8596 = vadd.f32 %v8594, %v8595
    %v8597 = vrot.slane %v8564, 4
    %v8598 = vadd.f32 %v8564, %v8597
    %v8599 = vrot.slane %v8598, 2
    %v8600 = vadd.f32 %v8598, %v8599
    %v8601 = vrot.slane %v8600, 1
    %v8602 = vadd.f32 %v8600, %v8601
    %v8603 = vrot.slane %v8565, 4
    %v8604 = vadd.f32 %v8565, %v8603
    %v8605 = vrot.slane %v8604, 2
    %v8606 = vadd.f32 %v8604, %v8605
    %v8607 = vrot.slane %v8606, 1
    %v8608 = vadd.f32 %v8606, %v8607
    %v8609 = vrot.slane %v8566, 4
    %v8610 = vadd.f32 %v8566, %v8609
    %v8611 = vrot.slane %v8610, 2
    %v8612 = vadd.f32 %v8610, %v8611
    %v8613 = vrot.slane %v8612, 1
    %v8614 = vadd.f32 %v8612, %v8613
    %v8615 = vmul.f32 %v8572, 0.125
    %v8616 = vmul.f32 %v8578, 0.125
    %v8617 = vmul.f32 %v8584, 0.125
    %v8618 = vmul.f32 %v8590, 0.125
    %v8619 = vmul.f32 %v8596, 0.125
    %v8620 = vmul.f32 %v8602, 0.125
    %v8621 = vmul.f32 %v8608, 0.125
    %v8622 = vmul.f32 %v8614, 0.125
    %v8623 = vmul.f32 %v8551, %v8551
    %v8624 = vmul.f32 %v8552, %v8552
    %v8625 = vmul.f32 %v8553, %v8553
    %v8626 = vmul.f32 %v8554, %v8554
    %v8627 = vmul.f32 %v8555, %v8555
    %v8628 = vmul.f32 %v8556, %v8556
    %v8629 = vmul.f32 %v8557, %v8557
    %v8630 = vmul.f32 %v8558, %v8558
    %v8631 = vsub.f32 %v8615, %v8623
    %v8632 = vsub.f32 %v8616, %v8624
    %v8633 = vsub.f32 %v8617, %v8625
    %v8634 = vsub.f32 %v8618, %v8626
    %v8635 = vsub.f32 %v8619, %v8627
    %v8636 = vsub.f32 %v8620, %v8628
    %v8637 = vsub.f32 %v8621, %v8629
    %v8638 = vsub.f32 %v8622, %v8630
    %v8639 = vmax.f32 %v8631, 0.0
    %v8640 = vmax.f32 %v8632, 0.0
    %v8641 = vmax.f32 %v8633, 0.0
    %v8642 = vmax.f32 %v8634, 0.0
    %v8643 = vmax.f32 %v8635, 0.0
    %v8644 = vmax.f32 %v8636, 0.0
    %v8645 = vmax.f32 %v8637, 0.0
    %v8646 = vmax.f32 %v8638, 0.0
    %v8647 = vsub.f32 %v8005, %v8551
    %v8648 = vsub.f32 %v8007, %v8552
    %v8649 = vsub.f32 %v8169, %v8553
    %v8650 = vsub.f32 %v8171, %v8554
    %v8651 = vsub.f32 %v8333, %v8555
    %v8652 = vsub.f32 %v8335, %v8556
    %v8653 = vsub.f32 %v8497, %v8557
    %v8654 = vsub.f32 %v8499, %v8558
    %v8655 = vadd.f32 %v8639, 1e-05
    %v8656 = vadd.f32 %v8640, 1e-05
    %v8657 = vadd.f32 %v8641, 1e-05
    %v8658 = vadd.f32 %v8642, 1e-05
    %v8659 = vadd.f32 %v8643, 1e-05
    %v8660 = vadd.f32 %v8644, 1e-05
    %v8661 = vadd.f32 %v8645, 1e-05
    %v8662 = vadd.f32 %v8646, 1e-05
    %v8663 = vrsqrt.pop %v8655
    %v8664 = vrsqrt.pop %v8656
    %v8665 = vrsqrt.pop %v8657
    %v8666 = vrsqrt.pop %v8658
    %v8667 = vrsqrt.pop %v8659
    %v8668 = vrsqrt.pop %v8660
    %v8669 = vrsqrt.pop %v8661
    %v8670 = vrsqrt.pop %v8662
    %v8671 = vmul.f32 %v8647, %v8663
    %v8672 = vmul.f32 %v8648, %v8664
    %v8673 = vmul.f32 %v8649, %v8665
    %v8674 = vmul.f32 %v8650, %v8666
    %v8675 = vmul.f32 %v8651, %v8667
    %v8676 = vmul.f32 %v8652, %v8668
    %v8677 = vmul.f32 %v8653, %v8669
    %v8678 = vmul.f32 %v8654, %v8670
    %v8679 = vld [vmem:[#allocation14] sm:$0xff]
    %v8681 = vlaneseq
    %v8682 = vshrl.u32 %v8681, 7
    %v8683 = vsub.s32 0, %v8682
    %v8684 = vrot.slane %v8679, %v8683
    %v8685 = vlaneseq
    %v8686 = vshrl.u32 %v8685, 7
    %v8687 = vsub.s32 1, %v8686
    %v8688 = vrot.slane %v8679, %v8687
    %v8689 = vlaneseq
    %v8690 = vshrl.u32 %v8689, 7
    %v8691 = vsub.s32 2, %v8690
    %v8692 = vrot.slane %v8679, %v8691
    %v8693 = vlaneseq
    %v8694 = vshrl.u32 %v8693, 7
    %v8695 = vsub.s32 3, %v8694
    %v8696 = vrot.slane %v8679, %v8695
    %v8697 = vlaneseq
    %v8698 = vshrl.u32 %v8697, 7
    %v8699 = vsub.s32 4, %v8698
    %v8700 = vrot.slane %v8679, %v8699
    %v8701 = vlaneseq
    %v8702 = vshrl.u32 %v8701, 7
    %v8703 = vsub.s32 5, %v8702
    %v8704 = vrot.slane %v8679, %v8703
    %v8705 = vlaneseq
    %v8706 = vshrl.u32 %v8705, 7
    %v8707 = vsub.s32 6, %v8706
    %v8708 = vrot.slane %v8679, %v8707
    %v8709 = vlaneseq
    %v8710 = vshrl.u32 %v8709, 7
    %v8711 = vsub.s32 7, %v8710
    %v8712 = vrot.slane %v8679, %v8711
    %v8721 = vmul.f32 %v8684, %v8671
    %v8722 = vmul.f32 %v8688, %v8672
    %v8723 = vmul.f32 %v8692, %v8673
    %v8724 = vmul.f32 %v8696, %v8674
    %v8725 = vmul.f32 %v8700, %v8675
    %v8726 = vmul.f32 %v8704, %v8676
    %v8727 = vmul.f32 %v8708, %v8677
    %v8728 = vmul.f32 %v8712, %v8678
    %v8729 = vld [vmem:[#allocation16] sm:$0xff]
    %v8731 = vlaneseq
    %v8732 = vshrl.u32 %v8731, 7
    %v8733 = vsub.s32 0, %v8732
    %v8734 = vrot.slane %v8729, %v8733
    %v8735 = vlaneseq
    %v8736 = vshrl.u32 %v8735, 7
    %v8737 = vsub.s32 1, %v8736
    %v8738 = vrot.slane %v8729, %v8737
    %v8739 = vlaneseq
    %v8740 = vshrl.u32 %v8739, 7
    %v8741 = vsub.s32 2, %v8740
    %v8742 = vrot.slane %v8729, %v8741
    %v8743 = vlaneseq
    %v8744 = vshrl.u32 %v8743, 7
    %v8745 = vsub.s32 3, %v8744
    %v8746 = vrot.slane %v8729, %v8745
    %v8747 = vlaneseq
    %v8748 = vshrl.u32 %v8747, 7
    %v8749 = vsub.s32 4, %v8748
    %v8750 = vrot.slane %v8729, %v8749
    %v8751 = vlaneseq
    %v8752 = vshrl.u32 %v8751, 7
    %v8753 = vsub.s32 5, %v8752
    %v8754 = vrot.slane %v8729, %v8753
    %v8755 = vlaneseq
    %v8756 = vshrl.u32 %v8755, 7
    %v8757 = vsub.s32 6, %v8756
    %v8758 = vrot.slane %v8729, %v8757
    %v8759 = vlaneseq
    %v8760 = vshrl.u32 %v8759, 7
    %v8761 = vsub.s32 7, %v8760
    %v8762 = vrot.slane %v8729, %v8761
    %v8771 = vadd.f32 %v8721, %v8734
    %v8772 = vadd.f32 %v8722, %v8738
    %v8773 = vadd.f32 %v8723, %v8742
    %v8774 = vadd.f32 %v8724, %v8746
    %v8775 = vadd.f32 %v8725, %v8750
    %v8776 = vadd.f32 %v8726, %v8754
    %v8777 = vadd.f32 %v8727, %v8758
    %v8778 = vadd.f32 %v8728, %v8762
    %v8779 = vmax.f32 %v8771, 0.0
    %v8780 = vmax.f32 %v8772, 0.0
    %v8781 = vmax.f32 %v8773, 0.0
    %v8782 = vmax.f32 %v8774, 0.0
    %v8783 = vmax.f32 %v8775, 0.0
    %v8784 = vmax.f32 %v8776, 0.0
    %v8785 = vmax.f32 %v8777, 0.0
    %v8786 = vmax.f32 %v8778, 0.0
    %v8787 = vld [vmem:[#allocation7] sm:$0xff]
    %v8788 = vld [vmem:[#allocation7 + $0x8] sm:$0xff]
    %v8789 = vld [vmem:[#allocation7 + $0x10] sm:$0xff]
    %v8790 = vld [vmem:[#allocation7 + $0x18] sm:$0xff]
    %v8791 = vld [vmem:[#allocation7 + $0x20] sm:$0xff]
    %v8792 = vld [vmem:[#allocation7 + $0x28] sm:$0xff]
    %v8793 = vld [vmem:[#allocation7 + $0x30] sm:$0xff]
    %v8794 = vld [vmem:[#allocation7 + $0x38] sm:$0xff]
    %v8795 = vmul.f32 %v8779, %v8787
    %v8796 = vmul.f32 %v8780, %v8788
    %v8797 = vmul.f32 %v8781, %v8789
    %v8798 = vmul.f32 %v8782, %v8790
    %v8799 = vmul.f32 %v8783, %v8791
    %v8800 = vmul.f32 %v8784, %v8792
    %v8801 = vmul.f32 %v8785, %v8793
    %v8802 = vmul.f32 %v8786, %v8794
    %v8803 = vpack.c.bf16 %v8795, %v8795
    %v8804 = vpack.c.bf16 %v8796, %v8796
    %v8805 = vpack.c.bf16 %v8797, %v8797
    %v8806 = vpack.c.bf16 %v8798, %v8798
    %v8807 = vpack.c.bf16 %v8799, %v8799
    %v8808 = vpack.c.bf16 %v8800, %v8800
    %v8809 = vpack.c.bf16 %v8801, %v8801
    %v8810 = vpack.c.bf16 %v8802, %v8802
    %v8811 = vld [vmem:[#allocation17] sm:$0xf]
    %v8812 = vld [vmem:[#allocation17 + $0x4] sm:$0xf]
    %v8813 = vld [vmem:[#allocation17 + $0x8] sm:$0xf]
    %v8814 = vld [vmem:[#allocation17 + $0xc] sm:$0xf]
    %v8815 = vld [vmem:[#allocation17 + $0x10] sm:$0xf]
    %v8816 = vld [vmem:[#allocation17 + $0x14] sm:$0xf]
    %v8817 = vld [vmem:[#allocation17 + $0x18] sm:$0xf]
    %v8818 = vld [vmem:[#allocation17 + $0x1c] sm:$0xf]
    %v8819 = vld [vmem:[#allocation17 + $0x20] sm:$0xf]
    %v8820 = vld [vmem:[#allocation17 + $0x24] sm:$0xf]
    %v8821 = vld [vmem:[#allocation17 + $0x28] sm:$0xf]
    %v8822 = vld [vmem:[#allocation17 + $0x2c] sm:$0xf]
    %v8823 = vld [vmem:[#allocation17 + $0x30] sm:$0xf]
    %v8824 = vld [vmem:[#allocation17 + $0x34] sm:$0xf]
    %v8825 = vld [vmem:[#allocation17 + $0x38] sm:$0xf]
    %v8826 = vld [vmem:[#allocation17 + $0x3c] sm:$0xf]
    %v8827 = vld [vmem:[#allocation17 + $0x40] sm:$0xf]
    %v8828 = vld [vmem:[#allocation17 + $0x44] sm:$0xf]
    %v8829 = vld [vmem:[#allocation17 + $0x48] sm:$0xf]
    %v8830 = vld [vmem:[#allocation17 + $0x4c] sm:$0xf]
    %v8831 = vld [vmem:[#allocation17 + $0x50] sm:$0xf]
    %v8832 = vld [vmem:[#allocation17 + $0x54] sm:$0xf]
    %v8833 = vld [vmem:[#allocation17 + $0x58] sm:$0xf]
    %v8834 = vld [vmem:[#allocation17 + $0x5c] sm:$0xf]
    %v8835 = vld [vmem:[#allocation17 + $0x60] sm:$0xf]
    %v8836 = vld [vmem:[#allocation17 + $0x64] sm:$0xf]
    %v8837 = vld [vmem:[#allocation17 + $0x68] sm:$0xf]
    %v8838 = vld [vmem:[#allocation17 + $0x6c] sm:$0xf]
    %v8839 = vld [vmem:[#allocation17 + $0x70] sm:$0xf]
    %v8840 = vld [vmem:[#allocation17 + $0x74] sm:$0xf]
    %v8841 = vld [vmem:[#allocation17 + $0x78] sm:$0xf]
    %v8842 = vld [vmem:[#allocation17 + $0x7c] sm:$0xf]
    %v8843 = vld [vmem:[#allocation17 + $0x80] sm:$0xf]
    %v8844 = vld [vmem:[#allocation17 + $0x84] sm:$0xf]
    %v8845 = vld [vmem:[#allocation17 + $0x88] sm:$0xf]
    %v8846 = vld [vmem:[#allocation17 + $0x8c] sm:$0xf]
    %v8847 = vld [vmem:[#allocation17 + $0x90] sm:$0xf]
    %v8848 = vld [vmem:[#allocation17 + $0x94] sm:$0xf]
    %v8849 = vld [vmem:[#allocation17 + $0x98] sm:$0xf]
    %v8850 = vld [vmem:[#allocation17 + $0x9c] sm:$0xf]
    %v8851 = vld [vmem:[#allocation17 + $0xa0] sm:$0xf]
    %v8852 = vld [vmem:[#allocation17 + $0xa4] sm:$0xf]
    %v8853 = vld [vmem:[#allocation17 + $0xa8] sm:$0xf]
    %v8854 = vld [vmem:[#allocation17 + $0xac] sm:$0xf]
    %v8855 = vld [vmem:[#allocation17 + $0xb0] sm:$0xf]
    %v8856 = vld [vmem:[#allocation17 + $0xb4] sm:$0xf]
    %v8857 = vld [vmem:[#allocation17 + $0xb8] sm:$0xf]
    %v8858 = vld [vmem:[#allocation17 + $0xbc] sm:$0xf]
    %v8859 = vld [vmem:[#allocation17 + $0xc0] sm:$0xf]
    %v8860 = vld [vmem:[#allocation17 + $0xc4] sm:$0xf]
    %v8861 = vld [vmem:[#allocation17 + $0xc8] sm:$0xf]
    %v8862 = vld [vmem:[#allocation17 + $0xcc] sm:$0xf]
    %v8863 = vld [vmem:[#allocation17 + $0xd0] sm:$0xf]
    %v8864 = vld [vmem:[#allocation17 + $0xd4] sm:$0xf]
    %v8865 = vld [vmem:[#allocation17 + $0xd8] sm:$0xf]
    %v8866 = vld [vmem:[#allocation17 + $0xdc] sm:$0xf]
    %v8867 = vld [vmem:[#allocation17 + $0xe0] sm:$0xf]
    %v8868 = vld [vmem:[#allocation17 + $0xe4] sm:$0xf]
    %v8869 = vld [vmem:[#allocation17 + $0xe8] sm:$0xf]
    %v8870 = vld [vmem:[#allocation17 + $0xec] sm:$0xf]
    %v8871 = vld [vmem:[#allocation17 + $0xf0] sm:$0xf]
    %v8872 = vld [vmem:[#allocation17 + $0xf4] sm:$0xf]
    %v8873 = vld [vmem:[#allocation17 + $0xf8] sm:$0xf]
    %v8874 = vld [vmem:[#allocation17 + $0xfc] sm:$0xf]
    %v8875 = vld [vmem:[#allocation17 + $0x100] sm:$0xf]
    %v8876 = vld [vmem:[#allocation17 + $0x104] sm:$0xf]
    %v8877 = vld [vmem:[#allocation17 + $0x108] sm:$0xf]
    %v8878 = vld [vmem:[#allocation17 + $0x10c] sm:$0xf]
    %v8879 = vld [vmem:[#allocation17 + $0x110] sm:$0xf]
    %v8880 = vld [vmem:[#allocation17 + $0x114] sm:$0xf]
    %v8881 = vld [vmem:[#allocation17 + $0x118] sm:$0xf]
    %v8882 = vld [vmem:[#allocation17 + $0x11c] sm:$0xf]
    %v8883 = vld [vmem:[#allocation17 + $0x120] sm:$0xf]
    %v8884 = vld [vmem:[#allocation17 + $0x124] sm:$0xf]
    %v8885 = vld [vmem:[#allocation17 + $0x128] sm:$0xf]
    %v8886 = vld [vmem:[#allocation17 + $0x12c] sm:$0xf]
    %v8887 = vld [vmem:[#allocation17 + $0x130] sm:$0xf]
    %v8888 = vld [vmem:[#allocation17 + $0x134] sm:$0xf]
    %v8889 = vld [vmem:[#allocation17 + $0x138] sm:$0xf]
    %v8890 = vld [vmem:[#allocation17 + $0x13c] sm:$0xf]
    %v8891 = vld [vmem:[#allocation17 + $0x140] sm:$0xf]
    %v8892 = vld [vmem:[#allocation17 + $0x144] sm:$0xf]
    %v8893 = vld [vmem:[#allocation17 + $0x148] sm:$0xf]
    %v8894 = vld [vmem:[#allocation17 + $0x14c] sm:$0xf]
    %v8895 = vld [vmem:[#allocation17 + $0x150] sm:$0xf]
    %v8896 = vld [vmem:[#allocation17 + $0x154] sm:$0xf]
    %v8897 = vld [vmem:[#allocation17 + $0x158] sm:$0xf]
    %v8898 = vld [vmem:[#allocation17 + $0x15c] sm:$0xf]
    %v8899 = vld [vmem:[#allocation17 + $0x160] sm:$0xf]
    %v8900 = vld [vmem:[#allocation17 + $0x164] sm:$0xf]
    %v8901 = vld [vmem:[#allocation17 + $0x168] sm:$0xf]
    %v8902 = vld [vmem:[#allocation17 + $0x16c] sm:$0xf]
    %v8903 = vld [vmem:[#allocation17 + $0x170] sm:$0xf]
    %v8904 = vld [vmem:[#allocation17 + $0x174] sm:$0xf]
    %v8905 = vld [vmem:[#allocation17 + $0x178] sm:$0xf]
    %v8906 = vld [vmem:[#allocation17 + $0x17c] sm:$0xf]
    %v8907 = vld [vmem:[#allocation17 + $0x180] sm:$0xf]
    %v8908 = vld [vmem:[#allocation17 + $0x184] sm:$0xf]
    %v8909 = vld [vmem:[#allocation17 + $0x188] sm:$0xf]
    %v8910 = vld [vmem:[#allocation17 + $0x18c] sm:$0xf]
    %v8911 = vld [vmem:[#allocation17 + $0x190] sm:$0xf]
    %v8912 = vld [vmem:[#allocation17 + $0x194] sm:$0xf]
    %v8913 = vld [vmem:[#allocation17 + $0x198] sm:$0xf]
    %v8914 = vld [vmem:[#allocation17 + $0x19c] sm:$0xf]
    %v8915 = vld [vmem:[#allocation17 + $0x1a0] sm:$0xf]
    %v8916 = vld [vmem:[#allocation17 + $0x1a4] sm:$0xf]
    %v8917 = vld [vmem:[#allocation17 + $0x1a8] sm:$0xf]
    %v8918 = vld [vmem:[#allocation17 + $0x1ac] sm:$0xf]
    %v8919 = vld [vmem:[#allocation17 + $0x1b0] sm:$0xf]
    %v8920 = vld [vmem:[#allocation17 + $0x1b4] sm:$0xf]
    %v8921 = vld [vmem:[#allocation17 + $0x1b8] sm:$0xf]
    %v8922 = vld [vmem:[#allocation17 + $0x1bc] sm:$0xf]
    %v8923 = vld [vmem:[#allocation17 + $0x1c0] sm:$0xf]
    %v8924 = vld [vmem:[#allocation17 + $0x1c4] sm:$0xf]
    %v8925 = vld [vmem:[#allocation17 + $0x1c8] sm:$0xf]
    %v8926 = vld [vmem:[#allocation17 + $0x1cc] sm:$0xf]
    %v8927 = vld [vmem:[#allocation17 + $0x1d0] sm:$0xf]
    %v8928 = vld [vmem:[#allocation17 + $0x1d4] sm:$0xf]
    %v8929 = vld [vmem:[#allocation17 + $0x1d8] sm:$0xf]
    %v8930 = vld [vmem:[#allocation17 + $0x1dc] sm:$0xf]
    %v8931 = vld [vmem:[#allocation17 + $0x1e0] sm:$0xf]
    %v8932 = vld [vmem:[#allocation17 + $0x1e4] sm:$0xf]
    %v8933 = vld [vmem:[#allocation17 + $0x1e8] sm:$0xf]
    %v8934 = vld [vmem:[#allocation17 + $0x1ec] sm:$0xf]
    %v8935 = vld [vmem:[#allocation17 + $0x1f0] sm:$0xf]
    %v8936 = vld [vmem:[#allocation17 + $0x1f4] sm:$0xf]
    %v8937 = vld [vmem:[#allocation17 + $0x1f8] sm:$0xf]
    %v8938 = vld [vmem:[#allocation17 + $0x1fc] sm:$0xf]
    %v8939 = vld [vmem:[#allocation19] sm:$0x1]
    %v8941 = vlaneseq
    %v8942 = vshrl.u32 %v8941, 7
    %v8943 = vsub.s32 0, %v8942
    %v8944 = vrot.slane %v8939, %v8943
    %v9074 = vunpack.c.l.b16 %v8811
    %v9075 = vunpack.c.l.b16 %v8812
    %v9076 = vunpack.c.l.b16 %v8813
    %v9077 = vunpack.c.l.b16 %v8814
    %v9078 = vunpack.c.l.b16 %v8815
    %v9079 = vunpack.c.l.b16 %v8816
    %v9080 = vunpack.c.l.b16 %v8817
    %v9081 = vunpack.c.l.b16 %v8818
    %v9082 = vunpack.c.l.b16 %v8819
    %v9083 = vunpack.c.l.b16 %v8820
    %v9084 = vunpack.c.l.b16 %v8821
    %v9085 = vunpack.c.l.b16 %v8822
    %v9086 = vunpack.c.l.b16 %v8823
    %v9087 = vunpack.c.l.b16 %v8824
    %v9088 = vunpack.c.l.b16 %v8825
    %v9089 = vunpack.c.l.b16 %v8826
    %v9090 = vunpack.c.l.b16 %v8827
    %v9091 = vunpack.c.l.b16 %v8828
    %v9092 = vunpack.c.l.b16 %v8829
    %v9093 = vunpack.c.l.b16 %v8830
    %v9094 = vunpack.c.l.b16 %v8831
    %v9095 = vunpack.c.l.b16 %v8832
    %v9096 = vunpack.c.l.b16 %v8833
    %v9097 = vunpack.c.l.b16 %v8834
    %v9098 = vunpack.c.l.b16 %v8835
    %v9099 = vunpack.c.l.b16 %v8836
    %v9100 = vunpack.c.l.b16 %v8837
    %v9101 = vunpack.c.l.b16 %v8838
    %v9102 = vunpack.c.l.b16 %v8839
    %v9103 = vunpack.c.l.b16 %v8840
    %v9104 = vunpack.c.l.b16 %v8841
    %v9105 = vunpack.c.l.b16 %v8842
    %v9106 = vunpack.c.l.b16 %v8843
    %v9107 = vunpack.c.l.b16 %v8844
    %v9108 = vunpack.c.l.b16 %v8845
    %v9109 = vunpack.c.l.b16 %v8846
    %v9110 = vunpack.c.l.b16 %v8847
    %v9111 = vunpack.c.l.b16 %v8848
    %v9112 = vunpack.c.l.b16 %v8849
    %v9113 = vunpack.c.l.b16 %v8850
    %v9114 = vunpack.c.l.b16 %v8851
    %v9115 = vunpack.c.l.b16 %v8852
    %v9116 = vunpack.c.l.b16 %v8853
    %v9117 = vunpack.c.l.b16 %v8854
    %v9118 = vunpack.c.l.b16 %v8855
    %v9119 = vunpack.c.l.b16 %v8856
    %v9120 = vunpack.c.l.b16 %v8857
    %v9121 = vunpack.c.l.b16 %v8858
    %v9122 = vunpack.c.l.b16 %v8859
    %v9123 = vunpack.c.l.b16 %v8860
    %v9124 = vunpack.c.l.b16 %v8861
    %v9125 = vunpack.c.l.b16 %v8862
    %v9126 = vunpack.c.l.b16 %v8863
    %v9127 = vunpack.c.l.b16 %v8864
    %v9128 = vunpack.c.l.b16 %v8865
    %v9129 = vunpack.c.l.b16 %v8866
    %v9130 = vunpack.c.l.b16 %v8867
    %v9131 = vunpack.c.l.b16 %v8868
    %v9132 = vunpack.c.l.b16 %v8869
    %v9133 = vunpack.c.l.b16 %v8870
    %v9134 = vunpack.c.l.b16 %v8871
    %v9135 = vunpack.c.l.b16 %v8872
    %v9136 = vunpack.c.l.b16 %v8873
    %v9137 = vunpack.c.l.b16 %v8874
    %v9138 = vunpack.c.l.b16 %v8875
    %v9139 = vunpack.c.l.b16 %v8876
    %v9140 = vunpack.c.l.b16 %v8877
    %v9141 = vunpack.c.l.b16 %v8878
    %v9142 = vunpack.c.l.b16 %v8879
    %v9143 = vunpack.c.l.b16 %v8880
    %v9144 = vunpack.c.l.b16 %v8881
    %v9145 = vunpack.c.l.b16 %v8882
    %v9146 = vunpack.c.l.b16 %v8883
    %v9147 = vunpack.c.l.b16 %v8884
    %v9148 = vunpack.c.l.b16 %v8885
    %v9149 = vunpack.c.l.b16 %v8886
    %v9150 = vunpack.c.l.b16 %v8887
    %v9151 = vunpack.c.l.b16 %v8888
    %v9152 = vunpack.c.l.b16 %v8889
    %v9153 = vunpack.c.l.b16 %v8890
    %v9154 = vunpack.c.l.b16 %v8891
    %v9155 = vunpack.c.l.b16 %v8892
    %v9156 = vunpack.c.l.b16 %v8893
    %v9157 = vunpack.c.l.b16 %v8894
    %v9158 = vunpack.c.l.b16 %v8895
    %v9159 = vunpack.c.l.b16 %v8896
    %v9160 = vunpack.c.l.b16 %v8897
    %v9161 = vunpack.c.l.b16 %v8898
    %v9162 = vunpack.c.l.b16 %v8899
    %v9163 = vunpack.c.l.b16 %v8900
    %v9164 = vunpack.c.l.b16 %v8901
    %v9165 = vunpack.c.l.b16 %v8902
    %v9166 = vunpack.c.l.b16 %v8903
    %v9167 = vunpack.c.l.b16 %v8904
    %v9168 = vunpack.c.l.b16 %v8905
    %v9169 = vunpack.c.l.b16 %v8906
    %v9170 = vunpack.c.l.b16 %v8907
    %v9171 = vunpack.c.l.b16 %v8908
    %v9172 = vunpack.c.l.b16 %v8909
    %v9173 = vunpack.c.l.b16 %v8910
    %v9174 = vunpack.c.l.b16 %v8911
    %v9175 = vunpack.c.l.b16 %v8912
    %v9176 = vunpack.c.l.b16 %v8913
    %v9177 = vunpack.c.l.b16 %v8914
    %v9178 = vunpack.c.l.b16 %v8915
    %v9179 = vunpack.c.l.b16 %v8916
    %v9180 = vunpack.c.l.b16 %v8917
    %v9181 = vunpack.c.l.b16 %v8918
    %v9182 = vunpack.c.l.b16 %v8919
    %v9183 = vunpack.c.l.b16 %v8920
    %v9184 = vunpack.c.l.b16 %v8921
    %v9185 = vunpack.c.l.b16 %v8922
    %v9186 = vunpack.c.l.b16 %v8923
    %v9187 = vunpack.c.l.b16 %v8924
    %v9188 = vunpack.c.l.b16 %v8925
    %v9189 = vunpack.c.l.b16 %v8926
    %v9190 = vunpack.c.l.b16 %v8927
    %v9191 = vunpack.c.l.b16 %v8928
    %v9192 = vunpack.c.l.b16 %v8929
    %v9193 = vunpack.c.l.b16 %v8930
    %v9194 = vunpack.c.l.b16 %v8931
    %v9195 = vunpack.c.l.b16 %v8932
    %v9196 = vunpack.c.l.b16 %v8933
    %v9197 = vunpack.c.l.b16 %v8934
    %v9198 = vunpack.c.l.b16 %v8935
    %v9199 = vunpack.c.l.b16 %v8936
    %v9200 = vunpack.c.l.b16 %v8937
    %v9201 = vunpack.c.l.b16 %v8938
    %v9202 = vpack.c.b16 %v9075, %v9074
    %v9203 = vpack.c.b16 %v9077, %v9076
    %v9204 = vpack.c.b16 %v9079, %v9078
    %v9205 = vpack.c.b16 %v9081, %v9080
    %v9206 = vpack.c.b16 %v9083, %v9082
    %v9207 = vpack.c.b16 %v9085, %v9084
    %v9208 = vpack.c.b16 %v9087, %v9086
    %v9209 = vpack.c.b16 %v9089, %v9088
    %v9210 = vpack.c.b16 %v9091, %v9090
    %v9211 = vpack.c.b16 %v9093, %v9092
    %v9212 = vpack.c.b16 %v9095, %v9094
    %v9213 = vpack.c.b16 %v9097, %v9096
    %v9214 = vpack.c.b16 %v9099, %v9098
    %v9215 = vpack.c.b16 %v9101, %v9100
    %v9216 = vpack.c.b16 %v9103, %v9102
    %v9217 = vpack.c.b16 %v9105, %v9104
    %v9218 = vpack.c.b16 %v9107, %v9106
    %v9219 = vpack.c.b16 %v9109, %v9108
    %v9220 = vpack.c.b16 %v9111, %v9110
    %v9221 = vpack.c.b16 %v9113, %v9112
    %v9222 = vpack.c.b16 %v9115, %v9114
    %v9223 = vpack.c.b16 %v9117, %v9116
    %v9224 = vpack.c.b16 %v9119, %v9118
    %v9225 = vpack.c.b16 %v9121, %v9120
    %v9226 = vpack.c.b16 %v9123, %v9122
    %v9227 = vpack.c.b16 %v9125, %v9124
    %v9228 = vpack.c.b16 %v9127, %v9126
    %v9229 = vpack.c.b16 %v9129, %v9128
    %v9230 = vpack.c.b16 %v9131, %v9130
    %v9231 = vpack.c.b16 %v9133, %v9132
    %v9232 = vpack.c.b16 %v9135, %v9134
    %v9233 = vpack.c.b16 %v9137, %v9136
    %v9234 = vpack.c.b16 %v9139, %v9138
    %v9235 = vpack.c.b16 %v9141, %v9140
    %v9236 = vpack.c.b16 %v9143, %v9142
    %v9237 = vpack.c.b16 %v9145, %v9144
    %v9238 = vpack.c.b16 %v9147, %v9146
    %v9239 = vpack.c.b16 %v9149, %v9148
    %v9240 = vpack.c.b16 %v9151, %v9150
    %v9241 = vpack.c.b16 %v9153, %v9152
    %v9242 = vpack.c.b16 %v9155, %v9154
    %v9243 = vpack.c.b16 %v9157, %v9156
    %v9244 = vpack.c.b16 %v9159, %v9158
    %v9245 = vpack.c.b16 %v9161, %v9160
    %v9246 = vpack.c.b16 %v9163, %v9162
    %v9247 = vpack.c.b16 %v9165, %v9164
    %v9248 = vpack.c.b16 %v9167, %v9166
    %v9249 = vpack.c.b16 %v9169, %v9168
    %v9250 = vpack.c.b16 %v9171, %v9170
    %v9251 = vpack.c.b16 %v9173, %v9172
    %v9252 = vpack.c.b16 %v9175, %v9174
    %v9253 = vpack.c.b16 %v9177, %v9176
    %v9254 = vpack.c.b16 %v9179, %v9178
    %v9255 = vpack.c.b16 %v9181, %v9180
    %v9256 = vpack.c.b16 %v9183, %v9182
    %v9257 = vpack.c.b16 %v9185, %v9184
    %v9258 = vpack.c.b16 %v9187, %v9186
    %v9259 = vpack.c.b16 %v9189, %v9188
    %v9260 = vpack.c.b16 %v9191, %v9190
    %v9261 = vpack.c.b16 %v9193, %v9192
    %v9262 = vpack.c.b16 %v9195, %v9194
    %v9263 = vpack.c.b16 %v9197, %v9196
    %v9264 = vpack.c.b16 %v9199, %v9198
    %v9265 = vpack.c.b16 %v9201, %v9200
    %9330 = vmatprep.subr.bf16.mxu0 0
    %9331 = vmatpush1.bf16.msra.mxu0 %v9202
    %9332 = vmatprep.subr.bf16.mxu0 0
    %9333 = vmatpush1.bf16.msra.mxu0 %v9203
    %9334 = vmatprep.subr.bf16.mxu0 0
    %9335 = vmatpush1.bf16.msra.mxu0 %v9204
    %9336 = vmatprep.subr.bf16.mxu0 0
    %9337 = vmatpush1.bf16.msra.mxu0 %v9205
    %9338 = vmatprep.subr.bf16.mxu0 0
    %9339 = vmatpush1.bf16.msra.mxu0 %v9206
    %9340 = vmatprep.subr.bf16.mxu0 0
    %9341 = vmatpush1.bf16.msra.mxu0 %v9207
    %9342 = vmatprep.subr.bf16.mxu0 0
    %9343 = vmatpush1.bf16.msra.mxu0 %v9208
    %9344 = vmatprep.subr.bf16.mxu0 0
    %9345 = vmatpush1.bf16.msra.mxu0 %v9209
    %9346 = vmatprep.subr.bf16.mxu0 0
    %9347 = vmatpush1.bf16.msra.mxu0 %v9210
    %9348 = vmatprep.subr.bf16.mxu0 0
    %9349 = vmatpush1.bf16.msra.mxu0 %v9211
    %9350 = vmatprep.subr.bf16.mxu0 0
    %9351 = vmatpush1.bf16.msra.mxu0 %v9212
    %9352 = vmatprep.subr.bf16.mxu0 0
    %9353 = vmatpush1.bf16.msra.mxu0 %v9213
    %9354 = vmatprep.subr.bf16.mxu0 0
    %9355 = vmatpush1.bf16.msra.mxu0 %v9214
    %9356 = vmatprep.subr.bf16.mxu0 0
    %9357 = vmatpush1.bf16.msra.mxu0 %v9215
    %9358 = vmatprep.subr.bf16.mxu0 0
    %9359 = vmatpush1.bf16.msra.mxu0 %v9216
    %9360 = vmatprep.subr.bf16.mxu0 0
    %9361 = vmatpush1.bf16.msra.mxu0 %v9217
    %9362 = vmatprep.mubr.bf16.mxu0 %v8804
    %9363 = vmatmul.mubr.bf16.gmra.mrb[0].mxu0 %v8803
    %v9364 = vpop.f32.mrb[0].mxu0
    %v9365 = vadd.f32 %v8944, %v9364
    %v9366 = vpop.f32.mrb[0].mxu0
    %v9367 = vpop.f32.mrb[0].mxu0
    %v9368 = vpop.f32.mrb[0].mxu0
    %9369 = vdwg.mxu0
    %9370 = vmatprep.subr.bf16.mxu0 0
    %9371 = vmatpush1.bf16.msra.mxu0 %v9218
    %9372 = vmatprep.subr.bf16.mxu0 0
    %9373 = vmatpush1.bf16.msra.mxu0 %v9219
    %9374 = vmatprep.subr.bf16.mxu0 0
    %9375 = vmatpush1.bf16.msra.mxu0 %v9220
    %9376 = vmatprep.subr.bf16.mxu0 0
    %9377 = vmatpush1.bf16.msra.mxu0 %v9221
    %9378 = vmatprep.subr.bf16.mxu0 0
    %9379 = vmatpush1.bf16.msra.mxu0 %v9222
    %9380 = vmatprep.subr.bf16.mxu0 0
    %9381 = vmatpush1.bf16.msra.mxu0 %v9223
    %9382 = vmatprep.subr.bf16.mxu0 0
    %9383 = vmatpush1.bf16.msra.mxu0 %v9224
    %9384 = vmatprep.subr.bf16.mxu0 0
    %9385 = vmatpush1.bf16.msra.mxu0 %v9225
    %9386 = vmatprep.subr.bf16.mxu0 0
    %9387 = vmatpush1.bf16.msra.mxu0 %v9226
    %9388 = vmatprep.subr.bf16.mxu0 0
    %9389 = vmatpush1.bf16.msra.mxu0 %v9227
    %9390 = vmatprep.subr.bf16.mxu0 0
    %9391 = vmatpush1.bf16.msra.mxu0 %v9228
    %9392 = vmatprep.subr.bf16.mxu0 0
    %9393 = vmatpush1.bf16.msra.mxu0 %v9229
    %9394 = vmatprep.subr.bf16.mxu0 0
    %9395 = vmatpush1.bf16.msra.mxu0 %v9230
    %9396 = vmatprep.subr.bf16.mxu0 0
    %9397 = vmatpush1.bf16.msra.mxu0 %v9231
    %9398 = vmatprep.subr.bf16.mxu0 0
    %9399 = vmatpush1.bf16.msra.mxu0 %v9232
    %9400 = vmatprep.subr.bf16.mxu0 0
    %9401 = vmatpush1.bf16.msra.mxu0 %v9233
    %9402 = vmatprep.mubr.bf16.mxu0 %v8806
    %9403 = vmatmul.mubr.bf16.gmra.mrb[0].mxu0 %v8805
    %v9404 = vpop.f32.mrb[0].mxu0
    %v9405 = vadd.f32 %v9365, %v9404
    %v9406 = vpop.f32.mrb[0].mxu0
    %v9407 = vpop.f32.mrb[0].mxu0
    %v9408 = vpop.f32.mrb[0].mxu0
    %9409 = vdwg.mxu0
    %9410 = vmatprep.subr.bf16.mxu0 0
    %9411 = vmatpush1.bf16.msra.mxu0 %v9234
    %9412 = vmatprep.subr.bf16.mxu0 0
    %9413 = vmatpush1.bf16.msra.mxu0 %v9235
    %9414 = vmatprep.subr.bf16.mxu0 0
    %9415 = vmatpush1.bf16.msra.mxu0 %v9236
    %9416 = vmatprep.subr.bf16.mxu0 0
    %9417 = vmatpush1.bf16.msra.mxu0 %v9237
    %9418 = vmatprep.subr.bf16.mxu0 0
    %9419 = vmatpush1.bf16.msra.mxu0 %v9238
    %9420 = vmatprep.subr.bf16.mxu0 0
    %9421 = vmatpush1.bf16.msra.mxu0 %v9239
    %9422 = vmatprep.subr.bf16.mxu0 0
    %9423 = vmatpush1.bf16.msra.mxu0 %v9240
    %9424 = vmatprep.subr.bf16.mxu0 0
    %9425 = vmatpush1.bf16.msra.mxu0 %v9241
    %9426 = vmatprep.subr.bf16.mxu0 0
    %9427 = vmatpush1.bf16.msra.mxu0 %v9242
    %9428 = vmatprep.subr.bf16.mxu0 0
    %9429 = vmatpush1.bf16.msra.mxu0 %v9243
    %9430 = vmatprep.subr.bf16.mxu0 0
    %9431 = vmatpush1.bf16.msra.mxu0 %v9244
    %9432 = vmatprep.subr.bf16.mxu0 0
    %9433 = vmatpush1.bf16.msra.mxu0 %v9245
    %9434 = vmatprep.subr.bf16.mxu0 0
    %9435 = vmatpush1.bf16.msra.mxu0 %v9246
    %9436 = vmatprep.subr.bf16.mxu0 0
    %9437 = vmatpush1.bf16.msra.mxu0 %v9247
    %9438 = vmatprep.subr.bf16.mxu0 0
    %9439 = vmatpush1.bf16.msra.mxu0 %v9248
    %9440 = vmatprep.subr.bf16.mxu0 0
    %9441 = vmatpush1.bf16.msra.mxu0 %v9249
    %9442 = vmatprep.mubr.bf16.mxu0 %v8808
    %9443 = vmatmul.mubr.bf16.gmra.mrb[0].mxu0 %v8807
    %v9444 = vpop.f32.mrb[0].mxu0
    %v9445 = vadd.f32 %v9405, %v9444
    %v9446 = vpop.f32.mrb[0].mxu0
    %v9447 = vpop.f32.mrb[0].mxu0
    %v9448 = vpop.f32.mrb[0].mxu0
    %9449 = vdwg.mxu0
    %9450 = vmatprep.subr.bf16.mxu0 0
    %9451 = vmatpush1.bf16.msra.mxu0 %v9250
    %9452 = vmatprep.subr.bf16.mxu0 0
    %9453 = vmatpush1.bf16.msra.mxu0 %v9251
    %9454 = vmatprep.subr.bf16.mxu0 0
    %9455 = vmatpush1.bf16.msra.mxu0 %v9252
    %9456 = vmatprep.subr.bf16.mxu0 0
    %9457 = vmatpush1.bf16.msra.mxu0 %v9253
    %9458 = vmatprep.subr.bf16.mxu0 0
    %9459 = vmatpush1.bf16.msra.mxu0 %v9254
    %9460 = vmatprep.subr.bf16.mxu0 0
    %9461 = vmatpush1.bf16.msra.mxu0 %v9255
    %9462 = vmatprep.subr.bf16.mxu0 0
    %9463 = vmatpush1.bf16.msra.mxu0 %v9256
    %9464 = vmatprep.subr.bf16.mxu0 0
    %9465 = vmatpush1.bf16.msra.mxu0 %v9257
    %9466 = vmatprep.subr.bf16.mxu0 0
    %9467 = vmatpush1.bf16.msra.mxu0 %v9258
    %9468 = vmatprep.subr.bf16.mxu0 0
    %9469 = vmatpush1.bf16.msra.mxu0 %v9259
    %9470 = vmatprep.subr.bf16.mxu0 0
    %9471 = vmatpush1.bf16.msra.mxu0 %v9260
    %9472 = vmatprep.subr.bf16.mxu0 0
    %9473 = vmatpush1.bf16.msra.mxu0 %v9261
    %9474 = vmatprep.subr.bf16.mxu0 0
    %9475 = vmatpush1.bf16.msra.mxu0 %v9262
    %9476 = vmatprep.subr.bf16.mxu0 0
    %9477 = vmatpush1.bf16.msra.mxu0 %v9263
    %9478 = vmatprep.subr.bf16.mxu0 0
    %9479 = vmatpush1.bf16.msra.mxu0 %v9264
    %9480 = vmatprep.subr.bf16.mxu0 0
    %9481 = vmatpush1.bf16.msra.mxu0 %v9265
    %9482 = vmatprep.mubr.bf16.mxu0 %v8810
    %9483 = vmatmul.mubr.bf16.gmra.mrb[0].mxu0 %v8809
    %v9484 = vpop.f32.mrb[0].mxu0
    %v9485 = vadd.f32 %v9445, %v9484
    %v9486 = vpop.f32.mrb[0].mxu0
    %v9487 = vpop.f32.mrb[0].mxu0
    %v9488 = vpop.f32.mrb[0].mxu0
    %9489 = vdwg.mxu0
    %9490 = vmax.xlane.f32.xlu0 %v9485
    %v9491 = vpop.xlane.xlu0 %9490
    %v9492 = vsub.f32 %v9485, %v9491
    %v9493 = vmul.f32 %v9492, 1.442695
    %v9494 = vpow.pop %v9493
    %9495 = vadd.xlane.f32.xlu0 %v9494
    %v9496 = vpop.xlane.xlu0 %9495
    %v9497 = vlog2.pop %v9496
    %v9498 = vmul.f32 %v9497, 0.6931472
    %v9499 = vadd.f32 %v9491, %v9498
    %v9500 = vsub.f32 %v9485, %v9499
    %9501 = vst [vmem:[#allocation20] sm:$0xff] %v9500
    // Predicated region
    $region90: #{tpu_custom_call.1} parent=1 // pred_check
      _
    $region91: #{tpu_custom_call.1} parent=1 // pred_check_branch
      %9503 = sbr.rel (0) target = $region93
    $region92: #{tpu_custom_call.1} parent=1 // pred_region
      %s9505 = ssub.s32 128, 128
      %9506 = vsyncadd [#allocation4], %s9505
      %s9508 = sshll.u32 [#allocation20], 4
      %s9509 = int_to_ptr.vmem [resolvable:$true] %s9508
      %9511 = dma.vmem_to_hbm [thread:$0]  %s9509, 128, %s11, [#allocation4]
    $region93: #{tpu_custom_call.1} parent=1 // pred_fallthru
      _
    // Predicated region
    $region94: #{tpu_custom_call.1} parent=1 // pred_check
      _
    $region95: #{tpu_custom_call.1} parent=1 // pred_check_branch
      %9513 = sbr.rel (0) target = $region97
    $region96: #{tpu_custom_call.1} parent=1 // pred_region
      %9514 = dma.done [#allocation4], 128
    $region97: #{tpu_custom_call.1} parent=1 // pred_fallthru
      _
    %9515 = vsyncpa [#allocation3], 1
    %9516 = vsyncpa [#allocation6], 1
    %9517 = vsyncpa [#allocation9], 1
    %9518 = vsyncpa [#allocation12], 1
    %9519 = vsyncpa [#allocation15], 1
    %9520 = vsyncpa [#allocation18], 1
    %9521 = vsyncpa [#allocation4], 1

</llo_original>
